<compile_context>
chip_gen: v6e
topology: v6e:2x2x1
jax: 0.10.0
libtpu: 0.0.40
codegen_flags: <defaults>
</compile_context>

<pallas_src>
import numpy as np
import jax
import jax.numpy as jnp
from jax.experimental import pallas as pl
from jax.experimental.pallas import tpu as pltpu


# ------------------------------ XLA-side glue ---------------------------------

def _conv1_patches(x_nhwc, kh=4, kw=4, stride=2, pad=1):
    """(N,H,W,1) f32 -> (N, oh*ow, kh*kw) bf16 patches, column order (ky,kx)."""
    x = jnp.pad(x_nhwc, ((0, 0), (pad, pad), (pad, pad), (0, 0))).astype(jnp.bfloat16)
    n, hp, wp, _ = x.shape
    oh = (hp - kh) // stride + 1
    ow = (wp - kw) // stride + 1
    cols = []
    for ky in range(kh):
        for kx in range(kw):
            cols.append(x[:, ky:ky + stride * (oh - 1) + 1:stride,
                          kx:kx + stride * (ow - 1) + 1:stride, 0])
    patches = jnp.stack(cols, axis=-1)                 # (N, oh, ow, kh*kw)
    return patches.reshape(n, oh * ow, kh * kw), oh, ow


def _gather_matrix(ih, iw, kh, kw, stride, pad):
    """0/1 selection matrix S (kh*kw*oh*ow, ih*iw) turning im2col into a matmul.

    Row t*oh*ow + (oy*ow+ox) selects the input spatial position feeding kernel
    tap t=(ky,kx) of output position (oy,ox); all-zero row when the tap lands
    in padding.  Built with numpy -> becomes a compile-time constant.
    """
    oh = (ih + 2 * pad - kh) // stride + 1
    ow = (iw + 2 * pad - kw) // stride + 1
    m = oh * ow
    s = np.zeros((kh * kw * m, ih * iw), np.float32)
    for ky in range(kh):
        for kx in range(kw):
            t = ky * kw + kx
            for oy in range(oh):
                for ox in range(ow):
                    iy = oy * stride - pad + ky
                    ix = ox * stride - pad + kx
                    if 0 <= iy < ih and 0 <= ix < iw:
                        s[t * m + oy * ow + ox, iy * iw + ix] = 1.0
    return jnp.asarray(s, jnp.bfloat16), oh, ow


# ------------------------------- Pallas kernel --------------------------------

def _encoder_vq_kernel(p1_ref, w1_ref, b1_ref,
                       sg2_ref, w2_ref, b2_ref,
                       sg3_ref, w3_ref, b3_ref,
                       wr1a_ref, wr1b_ref, wr2a_ref, wr2b_ref,
                       wp_ref, bp_ref, cbn_ref, cbr_ref,
                       out_ref):
    """One grid step = full CVQ-VAE encode + cosine VQ of ONE conditioning image."""
    f32, bf16 = jnp.float32, jnp.bfloat16
    m = sg3_ref.shape[1]                     # latent spatial positions (oh2*ow2)

    def gathered(sg_ref, act_f32):
        # im2col as a matmul with a constant 0/1 selection matrix (stays on the
        # MXU; exact, since selected values are already bf16).
        return jnp.dot(sg_ref[...], act_f32.astype(bf16),
                       preferred_element_type=f32).astype(bf16)

    def tap_sum(g, w_ref, n_taps):
        # sum over kernel taps: (n_taps*m, cin) x (n_taps*cin, cout) -> (m, cout)
        cin = w_ref.shape[0] // n_taps
        acc = None
        for t in range(n_taps):
            part = jnp.dot(g[t * m:(t + 1) * m, :],
                           w_ref[t * cin:(t + 1) * cin, :],
                           preferred_element_type=f32)
            acc = part if acc is None else acc + part
        return acc

    # conv1: 4x4 s2 p1, 1 -> 64 (patches pre-formed in XLA from raw input) + ReLU
    h1 = jnp.dot(p1_ref[0], w1_ref[...], preferred_element_type=f32) + b1_ref[...]
    h1 = jnp.maximum(h1, 0.0)                               # (oh1*ow1, 64) f32

    # conv2: 4x4 s2 p1, 64 -> 128 + ReLU  (in-kernel gather + per-tap matmuls)
    n_taps2 = sg2_ref.shape[0] // m
    h = tap_sum(gathered(sg2_ref, h1), w2_ref, n_taps2) + b2_ref[...]
    h = jnp.maximum(h, 0.0)                                 # (m, 128) f32

    # conv3: 3x3 s1 p1, 128 -> 128 (no ReLU)
    h = tap_sum(gathered(sg3_ref, h), w3_ref, 9) + b3_ref[...]

    # residual stack (x2): h += conv1x1(relu(conv3x3(relu(h))))
    for wa_ref, wb_ref in ((wr1a_ref, wr1b_ref), (wr2a_ref, wr2b_ref)):
        r = tap_sum(gathered(sg3_ref, jnp.maximum(h, 0.0)), wa_ref, 9)   # (m, 32)
        r = jnp.maximum(r, 0.0).astype(bf16)
        h = h + jnp.dot(r, wb_ref[...], preferred_element_type=f32)

    # final ReLU of the residual stack + pre-VQ 1x1 conv (128 -> 4)
    a = jnp.maximum(h, 0.0).astype(bf16)
    z = jnp.dot(a, wp_ref[...], preferred_element_type=f32) + bp_ref[...]  # (m, 4)

    # cosine VQ: normalize, similarity against the pre-normalized transposed
    # codebook (D, K), first-index argmax.
    zn = z * jax.lax.rsqrt(jnp.sum(z * z, axis=-1, keepdims=True) + 1e-10)
    sim = jnp.dot(zn, cbn_ref[...], preferred_element_type=f32)            # (m, K)
    kc = sim.shape[-1]
    mx = jnp.max(sim, axis=-1, keepdims=True)
    iota = jax.lax.broadcasted_iota(jnp.int32, sim.shape, 1)
    idx = jnp.min(jnp.where(sim >= mx, iota, kc), axis=-1, keepdims=True)  # first max
    hit = iota == idx                                                      # (m, K) bool

    # Gather raw codebook rows with masked lane reductions: avoids both the
    # lane-padded (K, 4) codebook in VMEM and the (m, K) f32 one-hot matmul.
    d = z.shape[-1]
    lane = jax.lax.broadcasted_iota(jnp.int32, (1, d), 1)
    q = jnp.zeros_like(z)
    for j in range(d):
        col = jnp.sum(jnp.where(hit, cbr_ref[j:j + 1, :], 0.0),
                      axis=-1, keepdims=True)                              # (m, 1)
        q = q + jnp.where(lane == j, col, 0.0)
    # TODO(synk): CVQ-VAE quantizer internals unknown (checkpoint unavailable);
    # selection uses cosine distance, output uses raw codebook rows.
    out_ref[0] = q.astype(out_ref.dtype)                                   # (m, d)


# ------------------------------ fused encode call ------------------------------

def encode_and_quantize(qp, x_n1hw):
    """(N,1,H,W) f32 -> (N, oh*ow, D) quantized latents via one pallas_call."""
    n_img, _, hh, ww = x_n1hw.shape
    x = jnp.transpose(x_n1hw, (0, 2, 3, 1))                     # NHWC
    p1, oh1, ow1 = _conv1_patches(x)                            # (N, oh1*ow1, 16)
    sg2, oh2, ow2 = _gather_matrix(oh1, ow1, 4, 4, 2, 1)        # (16*m, oh1*ow1)
    sg3, _, _ = _gather_matrix(oh2, ow2, 3, 3, 1, 1)            # (9*m, m)
    m = oh2 * ow2
    c1 = qp["w1"].shape[1]
    c2 = qp["w2"].shape[1]
    rh = qp["res"][0][0].shape[1]
    d = qp["wp"].shape[1]
    kc = qp["cbn_t"].shape[1]

    macs = (oh1 * ow1 * 16 * c1
            + sg2.shape[0] * sg2.shape[1] * c1 + sg2.shape[0] * c1 * c2
            + 3 * sg3.shape[0] * sg3.shape[1] * c2 + sg3.shape[0] * c2 * c2
            + 2 * sg3.shape[0] * c2 * rh + 2 * m * rh * c2
            + m * c2 * d + m * d * kc)
    operands = (p1, qp["w1"], qp["b1"], sg2, qp["w2"], qp["b2"], sg3, qp["w3"],
                qp["b3"], qp["res"][0][0], qp["res"][0][1], qp["res"][1][0],
                qp["res"][1][1], qp["wp"], qp["bp"], qp["cbn_t"], qp["cbr_t"])
    bytes_in = sum(int(np.prod(a.shape)) * a.dtype.itemsize for a in operands)

    _resident = lambda i: (0, 0)
    out = pl.pallas_call(
        _encoder_vq_kernel,
        out_shape=jax.ShapeDtypeStruct((n_img, m, d), jnp.float32),
        grid=(n_img,),
        in_specs=[
            pl.BlockSpec((1, oh1 * ow1, 16), lambda i: (i, 0, 0)),   # conv1 patches
            pl.BlockSpec(qp["w1"].shape, _resident),
            pl.BlockSpec(qp["b1"].shape, _resident),
            pl.BlockSpec(sg2.shape, _resident),
            pl.BlockSpec(qp["w2"].shape, _resident),
            pl.BlockSpec(qp["b2"].shape, _resident),
            pl.BlockSpec(sg3.shape, _resident),
            pl.BlockSpec(qp["w3"].shape, _resident),
            pl.BlockSpec(qp["b3"].shape, _resident),
            pl.BlockSpec(qp["res"][0][0].shape, _resident),
            pl.BlockSpec(qp["res"][0][1].shape, _resident),
            pl.BlockSpec(qp["res"][1][0].shape, _resident),
            pl.BlockSpec(qp["res"][1][1].shape, _resident),
            pl.BlockSpec(qp["wp"].shape, _resident),
            pl.BlockSpec(qp["bp"].shape, _resident),
            pl.BlockSpec(qp["cbn_t"].shape, _resident),
            pl.BlockSpec(qp["cbr_t"].shape, _resident),
        ],
        out_specs=pl.BlockSpec((1, m, d), lambda i: (i, 0, 0)),
        compiler_params=pltpu.CompilerParams(
            dimension_semantics=("parallel",),          # shard images across TCs (v7x)
            vmem_limit_bytes=32 * 1024 * 1024,
        ),
        cost_estimate=pl.CostEstimate(
            flops=2 * macs * n_img,
            transcendentals=m * n_img,
            bytes_accessed=bytes_in + n_img * m * d * 4,
        ),
    )(*operands)
    return out, oh2, ow2


def label_embedder_forward(qp, condition):
    """condition: (B, 2, H, W) NCHW -> (B, 2*embedding_dim, H/4, W/4) NCHW."""
    b, two, hh, ww = condition.shape
    assert two == 2
    x = condition.reshape(b * 2, 1, hh, ww)            # batch both channels together
    zq, oh, ow = encode_and_quantize(qp, x)            # (2B, oh*ow, D)
    d = zq.shape[-1]
    # (2B, m, D) -> (2B, D, m) -> (B, 2*D, oh, ow)  == cat([enc(ch0), enc(ch1)], dim=1)
    return jnp.transpose(zq, (0, 2, 1)).reshape(b, 2 * d, oh, ow)


# ------------------------------- parameters ------------------------------------

def init_conv(key, cout, cin, kh, kw, bias=True):
    k1, k2 = jax.random.split(key)
    fan_in = cin * kh * kw
    w = jax.random.normal(k1, (cout, cin, kh, kw), jnp.float32) / jnp.sqrt(float(fan_in))
    b = (jax.random.normal(k2, (cout,), jnp.float32) * 0.01) if bias \
        else jnp.zeros((cout,), jnp.float32)
    return w, b


def init_params(key, num_hiddens=128, num_residual_layers=2,
                num_residual_hiddens=32, num_embeddings=4096, embedding_dim=4):
    keys = jax.random.split(key, 4 + 2 * num_residual_layers + 2)
    p = {}
    p["conv1"] = init_conv(keys[0], num_hiddens // 2, 1, 4, 4)
    p["conv2"] = init_conv(keys[1], num_hiddens, num_hiddens // 2, 4, 4)
    p["conv3"] = init_conv(keys[2], num_hiddens, num_hiddens, 3, 3)
    p["res"] = []
    for l in range(num_residual_layers):
        w1, _ = init_conv(keys[3 + 2 * l], num_residual_hiddens, num_hiddens, 3, 3, bias=False)
        w2, _ = init_conv(keys[4 + 2 * l], num_hiddens, num_residual_hiddens, 1, 1, bias=False)
        p["res"].append((w1, w2))
    p["pre_vq"] = init_conv(keys[-2], embedding_dim, num_hiddens, 1, 1)
    p["codebook"] = jax.random.normal(keys[-1], (num_embeddings, embedding_dim), jnp.float32)
    return p


def prep_params(p):
    """OIHW -> (kh*kw*cin, cout) bf16 matmul weights; transposed (D,K) codebooks."""
    def w_mat(w_oihw):
        cout, cin, kh, kw = w_oihw.shape
        return (jnp.transpose(w_oihw, (2, 3, 1, 0))
                .reshape(kh * kw * cin, cout).astype(jnp.bfloat16))

    q = {}
    w, b = p["conv1"]; q["w1"], q["b1"] = w_mat(w), b.reshape(1, -1).astype(jnp.float32)
    w, b = p["conv2"]; q["w2"], q["b2"] = w_mat(w), b.reshape(1, -1).astype(jnp.float32)
    w, b = p["conv3"]; q["w3"], q["b3"] = w_mat(w), b.reshape(1, -1).astype(jnp.float32)
    q["res"] = [(w_mat(w1), w_mat(w2)) for (w1, w2) in p["res"]]
    w, b = p["pre_vq"]; q["wp"], q["bp"] = w_mat(w), b.reshape(1, -1).astype(jnp.float32)
    e = p["codebook"].astype(jnp.float32)                             # (K, D)
    en = e * jax.lax.rsqrt(jnp.sum(e * e, axis=-1, keepdims=True) + 1e-10)
    q["cbr_t"] = jnp.transpose(e)                                     # (D, K) raw
    q["cbn_t"] = jnp.transpose(en)                                    # (D, K) normalized
    return q


# ----------------------------------- main ---------------------------------------

if __name__ == "__main__":
    key = jax.random.PRNGKey(0)
    pkey, xkey = jax.random.split(key)
    params = init_params(pkey)
    qp = prep_params(params)

    # condition: batch=2, two conditioning channels, 16x16 spatial (NCHW)
    condition = jax.random.normal(xkey, (2, 2, 16, 16), jnp.float32)

    fwd = jax.jit(lambda cond: label_embedder_forward(qp, cond))
    c = fwd(condition)
    jax.block_until_ready(c)

    assert c.shape == (2, 8, 4, 4), c.shape       # [B, 2*embedding_dim, H/4, W/4]
    assert c.dtype == jnp.float32
    print("KERNEL_OK")
</pallas_src>

<mosaic_0001>
module attributes {stable_mosaic.version = 11 : i64} {
  func.func @_encoder_vq_kernel(%arg0: i32, %arg1: memref<1x64x16xbf16, #tpu.memory_space<vmem>>, %arg2: memref<16x64xbf16, #tpu.memory_space<vmem>>, %arg3: memref<1x64xf32, #tpu.memory_space<vmem>>, %arg4: memref<256x64xbf16, #tpu.memory_space<vmem>>, %arg5: memref<1024x128xbf16, #tpu.memory_space<vmem>>, %arg6: memref<1x128xf32, #tpu.memory_space<vmem>>, %arg7: memref<144x16xbf16, #tpu.memory_space<vmem>>, %arg8: memref<1152x128xbf16, #tpu.memory_space<vmem>>, %arg9: memref<1x128xf32, #tpu.memory_space<vmem>>, %arg10: memref<1152x32xbf16, #tpu.memory_space<vmem>>, %arg11: memref<32x128xbf16, #tpu.memory_space<vmem>>, %arg12: memref<1152x32xbf16, #tpu.memory_space<vmem>>, %arg13: memref<32x128xbf16, #tpu.memory_space<vmem>>, %arg14: memref<128x4xbf16, #tpu.memory_space<vmem>>, %arg15: memref<1x4xf32, #tpu.memory_space<vmem>>, %arg16: memref<4x4096xf32, #tpu.memory_space<vmem>>, %arg17: memref<4x4096xf32, #tpu.memory_space<vmem>>, %arg18: memref<1x16x4xf32, #tpu.memory_space<vmem>>) attributes {dimension_semantics = [#tpu.dimension_semantics<parallel>], iteration_bounds = array<i64: 4>, scalar_prefetch = 0 : i64, scratch_operands = 0 : i64, tpu.core_type = #tpu.core_type<tc>, window_params = [{transform_indices = @transform_0, window_bounds = array<i64: 1, 64, 16>}, {pipeline_mode = #tpu.pipeline_mode<synchronous>, transform_indices = @transform_1, window_bounds = array<i64: 16, 64>}, {pipeline_mode = #tpu.pipeline_mode<synchronous>, transform_indices = @transform_2, window_bounds = array<i64: 1, 64>}, {pipeline_mode = #tpu.pipeline_mode<synchronous>, transform_indices = @transform_3, window_bounds = array<i64: 256, 64>}, {pipeline_mode = #tpu.pipeline_mode<synchronous>, transform_indices = @transform_4, window_bounds = array<i64: 1024, 128>}, {pipeline_mode = #tpu.pipeline_mode<synchronous>, transform_indices = @transform_5, window_bounds = array<i64: 1, 128>}, {pipeline_mode = #tpu.pipeline_mode<synchronous>, transform_indices = @transform_6, window_bounds = array<i64: 144, 16>}, {pipeline_mode = #tpu.pipeline_mode<synchronous>, transform_indices = @transform_7, window_bounds = array<i64: 1152, 128>}, {pipeline_mode = #tpu.pipeline_mode<synchronous>, transform_indices = @transform_8, window_bounds = array<i64: 1, 128>}, {pipeline_mode = #tpu.pipeline_mode<synchronous>, transform_indices = @transform_9, window_bounds = array<i64: 1152, 32>}, {pipeline_mode = #tpu.pipeline_mode<synchronous>, transform_indices = @transform_10, window_bounds = array<i64: 32, 128>}, {pipeline_mode = #tpu.pipeline_mode<synchronous>, transform_indices = @transform_11, window_bounds = array<i64: 1152, 32>}, {pipeline_mode = #tpu.pipeline_mode<synchronous>, transform_indices = @transform_12, window_bounds = array<i64: 32, 128>}, {pipeline_mode = #tpu.pipeline_mode<synchronous>, transform_indices = @transform_13, window_bounds = array<i64: 128, 4>}, {pipeline_mode = #tpu.pipeline_mode<synchronous>, transform_indices = @transform_14, window_bounds = array<i64: 1, 4>}, {pipeline_mode = #tpu.pipeline_mode<synchronous>, transform_indices = @transform_15, window_bounds = array<i64: 4, 4096>}, {pipeline_mode = #tpu.pipeline_mode<synchronous>, transform_indices = @transform_16, window_bounds = array<i64: 4, 4096>}, {transform_indices = @transform_17, window_bounds = array<i64: 1, 16, 4>}]} {
    %c0 = arith.constant 0 : index
    %c0_0 = arith.constant 0 : index
    %c0_1 = arith.constant 0 : index
    %0 = vector.load %arg1[%c0, %c0_0, %c0_1] : memref<1x64x16xbf16, #tpu.memory_space<vmem>>, vector<1x64x16xbf16>
    %1 = vector.shape_cast %0 : vector<1x64x16xbf16> to vector<64x16xbf16>
    %c0_2 = arith.constant 0 : index
    %c0_3 = arith.constant 0 : index
    %2 = vector.load %arg2[%c0_2, %c0_3] : memref<16x64xbf16, #tpu.memory_space<vmem>>, vector<16x64xbf16>
    %cst = arith.constant dense<0.000000e+00> : vector<64x64xf32>
    %3 = tpu.matmul %1, %2, %cst {dimension_numbers = #tpu.dot_dimension_numbers<[1], [0], [0], [1], [0, 0, 1, 1], [], []>} : vector<64x16xbf16>, vector<16x64xbf16>, vector<64x64xf32> -> vector<64x64xf32>
    %c0_4 = arith.constant 0 : index
    %c0_5 = arith.constant 0 : index
    %4 = vector.load %arg3[%c0_4, %c0_5] : memref<1x64xf32, #tpu.memory_space<vmem>>, vector<1x64xf32>
    %5 = vector.broadcast %4 : vector<1x64xf32> to vector<64x64xf32>
    %6 = arith.addf %3, %5 : vector<64x64xf32>
    %cst_6 = arith.constant 0.000000e+00 : f32
    %7 = vector.broadcast %cst_6 : f32 to vector<64x64xf32>
    %8 = arith.maximumf %6, %7 : vector<64x64xf32>
    %c0_7 = arith.constant 0 : index
    %c0_8 = arith.constant 0 : index
    %9 = vector.load %arg4[%c0_7, %c0_8] : memref<256x64xbf16, #tpu.memory_space<vmem>>, vector<256x64xbf16>
    %10 = arith.truncf %8 : vector<64x64xf32> to vector<64x64xbf16>
    %cst_9 = arith.constant dense<0.000000e+00> : vector<256x64xf32>
    %11 = tpu.matmul %9, %10, %cst_9 {dimension_numbers = #tpu.dot_dimension_numbers<[1], [0], [0], [1], [0, 0, 1, 1], [], []>} : vector<256x64xbf16>, vector<64x64xbf16>, vector<256x64xf32> -> vector<256x64xf32>
    %12 = arith.truncf %11 : vector<256x64xf32> to vector<256x64xbf16>
    %13 = vector.extract_strided_slice %12 {offsets = [0, 0], sizes = [16, 64], strides = [1, 1]} : vector<256x64xbf16> to vector<16x64xbf16>
    %c0_10 = arith.constant 0 : index
    %c0_11 = arith.constant 0 : index
    %14 = vector.load %arg5[%c0_10, %c0_11] : memref<1024x128xbf16, #tpu.memory_space<vmem>>, vector<64x128xbf16>
    %cst_12 = arith.constant dense<0.000000e+00> : vector<16x128xf32>
    %15 = tpu.matmul %13, %14, %cst_12 {dimension_numbers = #tpu.dot_dimension_numbers<[1], [0], [0], [1], [0, 0, 1, 1], [], []>} : vector<16x64xbf16>, vector<64x128xbf16>, vector<16x128xf32> -> vector<16x128xf32>
    %16 = vector.extract_strided_slice %12 {offsets = [16, 0], sizes = [16, 64], strides = [1, 1]} : vector<256x64xbf16> to vector<16x64xbf16>
    %c64 = arith.constant 64 : index
    %c0_13 = arith.constant 0 : index
    %17 = vector.load %arg5[%c64, %c0_13] : memref<1024x128xbf16, #tpu.memory_space<vmem>>, vector<64x128xbf16>
    %cst_14 = arith.constant dense<0.000000e+00> : vector<16x128xf32>
    %18 = tpu.matmul %16, %17, %cst_14 {dimension_numbers = #tpu.dot_dimension_numbers<[1], [0], [0], [1], [0, 0, 1, 1], [], []>} : vector<16x64xbf16>, vector<64x128xbf16>, vector<16x128xf32> -> vector<16x128xf32>
    %19 = arith.addf %15, %18 : vector<16x128xf32>
    %20 = vector.extract_strided_slice %12 {offsets = [32, 0], sizes = [16, 64], strides = [1, 1]} : vector<256x64xbf16> to vector<16x64xbf16>
    %c128 = arith.constant 128 : index
    %c0_15 = arith.constant 0 : index
    %21 = vector.load %arg5[%c128, %c0_15] : memref<1024x128xbf16, #tpu.memory_space<vmem>>, vector<64x128xbf16>
    %cst_16 = arith.constant dense<0.000000e+00> : vector<16x128xf32>
    %22 = tpu.matmul %20, %21, %cst_16 {dimension_numbers = #tpu.dot_dimension_numbers<[1], [0], [0], [1], [0, 0, 1, 1], [], []>} : vector<16x64xbf16>, vector<64x128xbf16>, vector<16x128xf32> -> vector<16x128xf32>
    %23 = arith.addf %19, %22 : vector<16x128xf32>
    %24 = vector.extract_strided_slice %12 {offsets = [48, 0], sizes = [16, 64], strides = [1, 1]} : vector<256x64xbf16> to vector<16x64xbf16>
    %c192 = arith.constant 192 : index
    %c0_17 = arith.constant 0 : index
    %25 = vector.load %arg5[%c192, %c0_17] : memref<1024x128xbf16, #tpu.memory_space<vmem>>, vector<64x128xbf16>
    %cst_18 = arith.constant dense<0.000000e+00> : vector<16x128xf32>
    %26 = tpu.matmul %24, %25, %cst_18 {dimension_numbers = #tpu.dot_dimension_numbers<[1], [0], [0], [1], [0, 0, 1, 1], [], []>} : vector<16x64xbf16>, vector<64x128xbf16>, vector<16x128xf32> -> vector<16x128xf32>
    %27 = arith.addf %23, %26 : vector<16x128xf32>
    %28 = vector.extract_strided_slice %12 {offsets = [64, 0], sizes = [16, 64], strides = [1, 1]} : vector<256x64xbf16> to vector<16x64xbf16>
    %c256 = arith.constant 256 : index
    %c0_19 = arith.constant 0 : index
    %29 = vector.load %arg5[%c256, %c0_19] : memref<1024x128xbf16, #tpu.memory_space<vmem>>, vector<64x128xbf16>
    %cst_20 = arith.constant dense<0.000000e+00> : vector<16x128xf32>
    %30 = tpu.matmul %28, %29, %cst_20 {dimension_numbers = #tpu.dot_dimension_numbers<[1], [0], [0], [1], [0, 0, 1, 1], [], []>} : vector<16x64xbf16>, vector<64x128xbf16>, vector<16x128xf32> -> vector<16x128xf32>
    %31 = arith.addf %27, %30 : vector<16x128xf32>
    %32 = vector.extract_strided_slice %12 {offsets = [80, 0], sizes = [16, 64], strides = [1, 1]} : vector<256x64xbf16> to vector<16x64xbf16>
    %c320 = arith.constant 320 : index
    %c0_21 = arith.constant 0 : index
    %33 = vector.load %arg5[%c320, %c0_21] : memref<1024x128xbf16, #tpu.memory_space<vmem>>, vector<64x128xbf16>
    %cst_22 = arith.constant dense<0.000000e+00> : vector<16x128xf32>
    %34 = tpu.matmul %32, %33, %cst_22 {dimension_numbers = #tpu.dot_dimension_numbers<[1], [0], [0], [1], [0, 0, 1, 1], [], []>} : vector<16x64xbf16>, vector<64x128xbf16>, vector<16x128xf32> -> vector<16x128xf32>
    %35 = arith.addf %31, %34 : vector<16x128xf32>
    %36 = vector.extract_strided_slice %12 {offsets = [96, 0], sizes = [16, 64], strides = [1, 1]} : vector<256x64xbf16> to vector<16x64xbf16>
    %c384 = arith.constant 384 : index
    %c0_23 = arith.constant 0 : index
    %37 = vector.load %arg5[%c384, %c0_23] : memref<1024x128xbf16, #tpu.memory_space<vmem>>, vector<64x128xbf16>
    %cst_24 = arith.constant dense<0.000000e+00> : vector<16x128xf32>
    %38 = tpu.matmul %36, %37, %cst_24 {dimension_numbers = #tpu.dot_dimension_numbers<[1], [0], [0], [1], [0, 0, 1, 1], [], []>} : vector<16x64xbf16>, vector<64x128xbf16>, vector<16x128xf32> -> vector<16x128xf32>
    %39 = arith.addf %35, %38 : vector<16x128xf32>
    %40 = vector.extract_strided_slice %12 {offsets = [112, 0], sizes = [16, 64], strides = [1, 1]} : vector<256x64xbf16> to vector<16x64xbf16>
    %c448 = arith.constant 448 : index
    %c0_25 = arith.constant 0 : index
    %41 = vector.load %arg5[%c448, %c0_25] : memref<1024x128xbf16, #tpu.memory_space<vmem>>, vector<64x128xbf16>
    %cst_26 = arith.constant dense<0.000000e+00> : vector<16x128xf32>
    %42 = tpu.matmul %40, %41, %cst_26 {dimension_numbers = #tpu.dot_dimension_numbers<[1], [0], [0], [1], [0, 0, 1, 1], [], []>} : vector<16x64xbf16>, vector<64x128xbf16>, vector<16x128xf32> -> vector<16x128xf32>
    %43 = arith.addf %39, %42 : vector<16x128xf32>
    %44 = vector.extract_strided_slice %12 {offsets = [128, 0], sizes = [16, 64], strides = [1, 1]} : vector<256x64xbf16> to vector<16x64xbf16>
    %c512 = arith.constant 512 : index
    %c0_27 = arith.constant 0 : index
    %45 = vector.load %arg5[%c512, %c0_27] : memref<1024x128xbf16, #tpu.memory_space<vmem>>, vector<64x128xbf16>
    %cst_28 = arith.constant dense<0.000000e+00> : vector<16x128xf32>
    %46 = tpu.matmul %44, %45, %cst_28 {dimension_numbers = #tpu.dot_dimension_numbers<[1], [0], [0], [1], [0, 0, 1, 1], [], []>} : vector<16x64xbf16>, vector<64x128xbf16>, vector<16x128xf32> -> vector<16x128xf32>
    %47 = arith.addf %43, %46 : vector<16x128xf32>
    %48 = vector.extract_strided_slice %12 {offsets = [144, 0], sizes = [16, 64], strides = [1, 1]} : vector<256x64xbf16> to vector<16x64xbf16>
    %c576 = arith.constant 576 : index
    %c0_29 = arith.constant 0 : index
    %49 = vector.load %arg5[%c576, %c0_29] : memref<1024x128xbf16, #tpu.memory_space<vmem>>, vector<64x128xbf16>
    %cst_30 = arith.constant dense<0.000000e+00> : vector<16x128xf32>
    %50 = tpu.matmul %48, %49, %cst_30 {dimension_numbers = #tpu.dot_dimension_numbers<[1], [0], [0], [1], [0, 0, 1, 1], [], []>} : vector<16x64xbf16>, vector<64x128xbf16>, vector<16x128xf32> -> vector<16x128xf32>
    %51 = arith.addf %47, %50 : vector<16x128xf32>
    %52 = vector.extract_strided_slice %12 {offsets = [160, 0], sizes = [16, 64], strides = [1, 1]} : vector<256x64xbf16> to vector<16x64xbf16>
    %c640 = arith.constant 640 : index
    %c0_31 = arith.constant 0 : index
    %53 = vector.load %arg5[%c640, %c0_31] : memref<1024x128xbf16, #tpu.memory_space<vmem>>, vector<64x128xbf16>
    %cst_32 = arith.constant dense<0.000000e+00> : vector<16x128xf32>
    %54 = tpu.matmul %52, %53, %cst_32 {dimension_numbers = #tpu.dot_dimension_numbers<[1], [0], [0], [1], [0, 0, 1, 1], [], []>} : vector<16x64xbf16>, vector<64x128xbf16>, vector<16x128xf32> -> vector<16x128xf32>
    %55 = arith.addf %51, %54 : vector<16x128xf32>
    %56 = vector.extract_strided_slice %12 {offsets = [176, 0], sizes = [16, 64], strides = [1, 1]} : vector<256x64xbf16> to vector<16x64xbf16>
    %c704 = arith.constant 704 : index
    %c0_33 = arith.constant 0 : index
    %57 = vector.load %arg5[%c704, %c0_33] : memref<1024x128xbf16, #tpu.memory_space<vmem>>, vector<64x128xbf16>
    %cst_34 = arith.constant dense<0.000000e+00> : vector<16x128xf32>
    %58 = tpu.matmul %56, %57, %cst_34 {dimension_numbers = #tpu.dot_dimension_numbers<[1], [0], [0], [1], [0, 0, 1, 1], [], []>} : vector<16x64xbf16>, vector<64x128xbf16>, vector<16x128xf32> -> vector<16x128xf32>
    %59 = arith.addf %55, %58 : vector<16x128xf32>
    %60 = vector.extract_strided_slice %12 {offsets = [192, 0], sizes = [16, 64], strides = [1, 1]} : vector<256x64xbf16> to vector<16x64xbf16>
    %c768 = arith.constant 768 : index
    %c0_35 = arith.constant 0 : index
    %61 = vector.load %arg5[%c768, %c0_35] : memref<1024x128xbf16, #tpu.memory_space<vmem>>, vector<64x128xbf16>
    %cst_36 = arith.constant dense<0.000000e+00> : vector<16x128xf32>
    %62 = tpu.matmul %60, %61, %cst_36 {dimension_numbers = #tpu.dot_dimension_numbers<[1], [0], [0], [1], [0, 0, 1, 1], [], []>} : vector<16x64xbf16>, vector<64x128xbf16>, vector<16x128xf32> -> vector<16x128xf32>
    %63 = arith.addf %59, %62 : vector<16x128xf32>
    %64 = vector.extract_strided_slice %12 {offsets = [208, 0], sizes = [16, 64], strides = [1, 1]} : vector<256x64xbf16> to vector<16x64xbf16>
    %c832 = arith.constant 832 : index
    %c0_37 = arith.constant 0 : index
    %65 = vector.load %arg5[%c832, %c0_37] : memref<1024x128xbf16, #tpu.memory_space<vmem>>, vector<64x128xbf16>
    %cst_38 = arith.constant dense<0.000000e+00> : vector<16x128xf32>
    %66 = tpu.matmul %64, %65, %cst_38 {dimension_numbers = #tpu.dot_dimension_numbers<[1], [0], [0], [1], [0, 0, 1, 1], [], []>} : vector<16x64xbf16>, vector<64x128xbf16>, vector<16x128xf32> -> vector<16x128xf32>
    %67 = arith.addf %63, %66 : vector<16x128xf32>
    %68 = vector.extract_strided_slice %12 {offsets = [224, 0], sizes = [16, 64], strides = [1, 1]} : vector<256x64xbf16> to vector<16x64xbf16>
    %c896 = arith.constant 896 : index
    %c0_39 = arith.constant 0 : index
    %69 = vector.load %arg5[%c896, %c0_39] : memref<1024x128xbf16, #tpu.memory_space<vmem>>, vector<64x128xbf16>
    %cst_40 = arith.constant dense<0.000000e+00> : vector<16x128xf32>
    %70 = tpu.matmul %68, %69, %cst_40 {dimension_numbers = #tpu.dot_dimension_numbers<[1], [0], [0], [1], [0, 0, 1, 1], [], []>} : vector<16x64xbf16>, vector<64x128xbf16>, vector<16x128xf32> -> vector<16x128xf32>
    %71 = arith.addf %67, %70 : vector<16x128xf32>
    %72 = vector.extract_strided_slice %12 {offsets = [240, 0], sizes = [16, 64], strides = [1, 1]} : vector<256x64xbf16> to vector<16x64xbf16>
    %c960 = arith.constant 960 : index
    %c0_41 = arith.constant 0 : index
    %73 = vector.load %arg5[%c960, %c0_41] : memref<1024x128xbf16, #tpu.memory_space<vmem>>, vector<64x128xbf16>
    %cst_42 = arith.constant dense<0.000000e+00> : vector<16x128xf32>
    %74 = tpu.matmul %72, %73, %cst_42 {dimension_numbers = #tpu.dot_dimension_numbers<[1], [0], [0], [1], [0, 0, 1, 1], [], []>} : vector<16x64xbf16>, vector<64x128xbf16>, vector<16x128xf32> -> vector<16x128xf32>
    %75 = arith.addf %71, %74 : vector<16x128xf32>
    %c0_43 = arith.constant 0 : index
    %c0_44 = arith.constant 0 : index
    %76 = vector.load %arg6[%c0_43, %c0_44] : memref<1x128xf32, #tpu.memory_space<vmem>>, vector<1x128xf32>
    %77 = vector.broadcast %76 : vector<1x128xf32> to vector<16x128xf32>
    %78 = arith.addf %75, %77 : vector<16x128xf32>
    %cst_45 = arith.constant 0.000000e+00 : f32
    %79 = vector.broadcast %cst_45 : f32 to vector<16x128xf32>
    %80 = arith.maximumf %78, %79 : vector<16x128xf32>
    %c0_46 = arith.constant 0 : index
    %c0_47 = arith.constant 0 : index
    %81 = vector.load %arg7[%c0_46, %c0_47] : memref<144x16xbf16, #tpu.memory_space<vmem>>, vector<144x16xbf16>
    %82 = arith.truncf %80 : vector<16x128xf32> to vector<16x128xbf16>
    %cst_48 = arith.constant dense<0.000000e+00> : vector<144x128xf32>
    %83 = tpu.matmul %81, %82, %cst_48 {dimension_numbers = #tpu.dot_dimension_numbers<[1], [0], [0], [1], [0, 0, 1, 1], [], []>} : vector<144x16xbf16>, vector<16x128xbf16>, vector<144x128xf32> -> vector<144x128xf32>
    %84 = arith.truncf %83 : vector<144x128xf32> to vector<144x128xbf16>
    %85 = vector.extract_strided_slice %84 {offsets = [0, 0], sizes = [16, 128], strides = [1, 1]} : vector<144x128xbf16> to vector<16x128xbf16>
    %c0_49 = arith.constant 0 : index
    %c0_50 = arith.constant 0 : index
    %86 = vector.load %arg8[%c0_49, %c0_50] : memref<1152x128xbf16, #tpu.memory_space<vmem>>, vector<128x128xbf16>
    %cst_51 = arith.constant dense<0.000000e+00> : vector<16x128xf32>
    %87 = tpu.matmul %85, %86, %cst_51 {dimension_numbers = #tpu.dot_dimension_numbers<[1], [0], [0], [1], [0, 0, 1, 1], [], []>} : vector<16x128xbf16>, vector<128x128xbf16>, vector<16x128xf32> -> vector<16x128xf32>
    %88 = vector.extract_strided_slice %84 {offsets = [16, 0], sizes = [16, 128], strides = [1, 1]} : vector<144x128xbf16> to vector<16x128xbf16>
    %c128_52 = arith.constant 128 : index
    %c0_53 = arith.constant 0 : index
    %89 = vector.load %arg8[%c128_52, %c0_53] : memref<1152x128xbf16, #tpu.memory_space<vmem>>, vector<128x128xbf16>
    %cst_54 = arith.constant dense<0.000000e+00> : vector<16x128xf32>
    %90 = tpu.matmul %88, %89, %cst_54 {dimension_numbers = #tpu.dot_dimension_numbers<[1], [0], [0], [1], [0, 0, 1, 1], [], []>} : vector<16x128xbf16>, vector<128x128xbf16>, vector<16x128xf32> -> vector<16x128xf32>
    %91 = arith.addf %87, %90 : vector<16x128xf32>
    %92 = vector.extract_strided_slice %84 {offsets = [32, 0], sizes = [16, 128], strides = [1, 1]} : vector<144x128xbf16> to vector<16x128xbf16>
    %c256_55 = arith.constant 256 : index
    %c0_56 = arith.constant 0 : index
    %93 = vector.load %arg8[%c256_55, %c0_56] : memref<1152x128xbf16, #tpu.memory_space<vmem>>, vector<128x128xbf16>
    %cst_57 = arith.constant dense<0.000000e+00> : vector<16x128xf32>
    %94 = tpu.matmul %92, %93, %cst_57 {dimension_numbers = #tpu.dot_dimension_numbers<[1], [0], [0], [1], [0, 0, 1, 1], [], []>} : vector<16x128xbf16>, vector<128x128xbf16>, vector<16x128xf32> -> vector<16x128xf32>
    %95 = arith.addf %91, %94 : vector<16x128xf32>
    %96 = vector.extract_strided_slice %84 {offsets = [48, 0], sizes = [16, 128], strides = [1, 1]} : vector<144x128xbf16> to vector<16x128xbf16>
    %c384_58 = arith.constant 384 : index
    %c0_59 = arith.constant 0 : index
    %97 = vector.load %arg8[%c384_58, %c0_59] : memref<1152x128xbf16, #tpu.memory_space<vmem>>, vector<128x128xbf16>
    %cst_60 = arith.constant dense<0.000000e+00> : vector<16x128xf32>
    %98 = tpu.matmul %96, %97, %cst_60 {dimension_numbers = #tpu.dot_dimension_numbers<[1], [0], [0], [1], [0, 0, 1, 1], [], []>} : vector<16x128xbf16>, vector<128x128xbf16>, vector<16x128xf32> -> vector<16x128xf32>
    %99 = arith.addf %95, %98 : vector<16x128xf32>
    %100 = vector.extract_strided_slice %84 {offsets = [64, 0], sizes = [16, 128], strides = [1, 1]} : vector<144x128xbf16> to vector<16x128xbf16>
    %c512_61 = arith.constant 512 : index
    %c0_62 = arith.constant 0 : index
    %101 = vector.load %arg8[%c512_61, %c0_62] : memref<1152x128xbf16, #tpu.memory_space<vmem>>, vector<128x128xbf16>
    %cst_63 = arith.constant dense<0.000000e+00> : vector<16x128xf32>
    %102 = tpu.matmul %100, %101, %cst_63 {dimension_numbers = #tpu.dot_dimension_numbers<[1], [0], [0], [1], [0, 0, 1, 1], [], []>} : vector<16x128xbf16>, vector<128x128xbf16>, vector<16x128xf32> -> vector<16x128xf32>
    %103 = arith.addf %99, %102 : vector<16x128xf32>
    %104 = vector.extract_strided_slice %84 {offsets = [80, 0], sizes = [16, 128], strides = [1, 1]} : vector<144x128xbf16> to vector<16x128xbf16>
    %c640_64 = arith.constant 640 : index
    %c0_65 = arith.constant 0 : index
    %105 = vector.load %arg8[%c640_64, %c0_65] : memref<1152x128xbf16, #tpu.memory_space<vmem>>, vector<128x128xbf16>
    %cst_66 = arith.constant dense<0.000000e+00> : vector<16x128xf32>
    %106 = tpu.matmul %104, %105, %cst_66 {dimension_numbers = #tpu.dot_dimension_numbers<[1], [0], [0], [1], [0, 0, 1, 1], [], []>} : vector<16x128xbf16>, vector<128x128xbf16>, vector<16x128xf32> -> vector<16x128xf32>
    %107 = arith.addf %103, %106 : vector<16x128xf32>
    %108 = vector.extract_strided_slice %84 {offsets = [96, 0], sizes = [16, 128], strides = [1, 1]} : vector<144x128xbf16> to vector<16x128xbf16>
    %c768_67 = arith.constant 768 : index
    %c0_68 = arith.constant 0 : index
    %109 = vector.load %arg8[%c768_67, %c0_68] : memref<1152x128xbf16, #tpu.memory_space<vmem>>, vector<128x128xbf16>
    %cst_69 = arith.constant dense<0.000000e+00> : vector<16x128xf32>
    %110 = tpu.matmul %108, %109, %cst_69 {dimension_numbers = #tpu.dot_dimension_numbers<[1], [0], [0], [1], [0, 0, 1, 1], [], []>} : vector<16x128xbf16>, vector<128x128xbf16>, vector<16x128xf32> -> vector<16x128xf32>
    %111 = arith.addf %107, %110 : vector<16x128xf32>
    %112 = vector.extract_strided_slice %84 {offsets = [112, 0], sizes = [16, 128], strides = [1, 1]} : vector<144x128xbf16> to vector<16x128xbf16>
    %c896_70 = arith.constant 896 : index
    %c0_71 = arith.constant 0 : index
    %113 = vector.load %arg8[%c896_70, %c0_71] : memref<1152x128xbf16, #tpu.memory_space<vmem>>, vector<128x128xbf16>
    %cst_72 = arith.constant dense<0.000000e+00> : vector<16x128xf32>
    %114 = tpu.matmul %112, %113, %cst_72 {dimension_numbers = #tpu.dot_dimension_numbers<[1], [0], [0], [1], [0, 0, 1, 1], [], []>} : vector<16x128xbf16>, vector<128x128xbf16>, vector<16x128xf32> -> vector<16x128xf32>
    %115 = arith.addf %111, %114 : vector<16x128xf32>
    %116 = vector.extract_strided_slice %84 {offsets = [128, 0], sizes = [16, 128], strides = [1, 1]} : vector<144x128xbf16> to vector<16x128xbf16>
    %c1024 = arith.constant 1024 : index
    %c0_73 = arith.constant 0 : index
    %117 = vector.load %arg8[%c1024, %c0_73] : memref<1152x128xbf16, #tpu.memory_space<vmem>>, vector<128x128xbf16>
    %cst_74 = arith.constant dense<0.000000e+00> : vector<16x128xf32>
    %118 = tpu.matmul %116, %117, %cst_74 {dimension_numbers = #tpu.dot_dimension_numbers<[1], [0], [0], [1], [0, 0, 1, 1], [], []>} : vector<16x128xbf16>, vector<128x128xbf16>, vector<16x128xf32> -> vector<16x128xf32>
    %119 = arith.addf %115, %118 : vector<16x128xf32>
    %c0_75 = arith.constant 0 : index
    %c0_76 = arith.constant 0 : index
    %120 = vector.load %arg9[%c0_75, %c0_76] : memref<1x128xf32, #tpu.memory_space<vmem>>, vector<1x128xf32>
    %121 = vector.broadcast %120 : vector<1x128xf32> to vector<16x128xf32>
    %122 = arith.addf %119, %121 : vector<16x128xf32>
    %cst_77 = arith.constant 0.000000e+00 : f32
    %123 = vector.broadcast %cst_77 : f32 to vector<16x128xf32>
    %124 = arith.maximumf %122, %123 : vector<16x128xf32>
    %c0_78 = arith.constant 0 : index
    %c0_79 = arith.constant 0 : index
    %125 = vector.load %arg7[%c0_78, %c0_79] : memref<144x16xbf16, #tpu.memory_space<vmem>>, vector<144x16xbf16>
    %126 = arith.truncf %124 : vector<16x128xf32> to vector<16x128xbf16>
    %cst_80 = arith.constant dense<0.000000e+00> : vector<144x128xf32>
    %127 = tpu.matmul %125, %126, %cst_80 {dimension_numbers = #tpu.dot_dimension_numbers<[1], [0], [0], [1], [0, 0, 1, 1], [], []>} : vector<144x16xbf16>, vector<16x128xbf16>, vector<144x128xf32> -> vector<144x128xf32>
    %128 = arith.truncf %127 : vector<144x128xf32> to vector<144x128xbf16>
    %129 = vector.extract_strided_slice %128 {offsets = [0, 0], sizes = [16, 128], strides = [1, 1]} : vector<144x128xbf16> to vector<16x128xbf16>
    %c0_81 = arith.constant 0 : index
    %c0_82 = arith.constant 0 : index
    %130 = vector.load %arg10[%c0_81, %c0_82] : memref<1152x32xbf16, #tpu.memory_space<vmem>>, vector<128x32xbf16>
    %cst_83 = arith.constant dense<0.000000e+00> : vector<16x32xf32>
    %131 = tpu.matmul %129, %130, %cst_83 {dimension_numbers = #tpu.dot_dimension_numbers<[1], [0], [0], [1], [0, 0, 1, 1], [], []>} : vector<16x128xbf16>, vector<128x32xbf16>, vector<16x32xf32> -> vector<16x32xf32>
    %132 = vector.extract_strided_slice %128 {offsets = [16, 0], sizes = [16, 128], strides = [1, 1]} : vector<144x128xbf16> to vector<16x128xbf16>
    %c128_84 = arith.constant 128 : index
    %c0_85 = arith.constant 0 : index
    %133 = vector.load %arg10[%c128_84, %c0_85] : memref<1152x32xbf16, #tpu.memory_space<vmem>>, vector<128x32xbf16>
    %cst_86 = arith.constant dense<0.000000e+00> : vector<16x32xf32>
    %134 = tpu.matmul %132, %133, %cst_86 {dimension_numbers = #tpu.dot_dimension_numbers<[1], [0], [0], [1], [0, 0, 1, 1], [], []>} : vector<16x128xbf16>, vector<128x32xbf16>, vector<16x32xf32> -> vector<16x32xf32>
    %135 = arith.addf %131, %134 : vector<16x32xf32>
    %136 = vector.extract_strided_slice %128 {offsets = [32, 0], sizes = [16, 128], strides = [1, 1]} : vector<144x128xbf16> to vector<16x128xbf16>
    %c256_87 = arith.constant 256 : index
    %c0_88 = arith.constant 0 : index
    %137 = vector.load %arg10[%c256_87, %c0_88] : memref<1152x32xbf16, #tpu.memory_space<vmem>>, vector<128x32xbf16>
    %cst_89 = arith.constant dense<0.000000e+00> : vector<16x32xf32>
    %138 = tpu.matmul %136, %137, %cst_89 {dimension_numbers = #tpu.dot_dimension_numbers<[1], [0], [0], [1], [0, 0, 1, 1], [], []>} : vector<16x128xbf16>, vector<128x32xbf16>, vector<16x32xf32> -> vector<16x32xf32>
    %139 = arith.addf %135, %138 : vector<16x32xf32>
    %140 = vector.extract_strided_slice %128 {offsets = [48, 0], sizes = [16, 128], strides = [1, 1]} : vector<144x128xbf16> to vector<16x128xbf16>
    %c384_90 = arith.constant 384 : index
    %c0_91 = arith.constant 0 : index
    %141 = vector.load %arg10[%c384_90, %c0_91] : memref<1152x32xbf16, #tpu.memory_space<vmem>>, vector<128x32xbf16>
    %cst_92 = arith.constant dense<0.000000e+00> : vector<16x32xf32>
    %142 = tpu.matmul %140, %141, %cst_92 {dimension_numbers = #tpu.dot_dimension_numbers<[1], [0], [0], [1], [0, 0, 1, 1], [], []>} : vector<16x128xbf16>, vector<128x32xbf16>, vector<16x32xf32> -> vector<16x32xf32>
    %143 = arith.addf %139, %142 : vector<16x32xf32>
    %144 = vector.extract_strided_slice %128 {offsets = [64, 0], sizes = [16, 128], strides = [1, 1]} : vector<144x128xbf16> to vector<16x128xbf16>
    %c512_93 = arith.constant 512 : index
    %c0_94 = arith.constant 0 : index
    %145 = vector.load %arg10[%c512_93, %c0_94] : memref<1152x32xbf16, #tpu.memory_space<vmem>>, vector<128x32xbf16>
    %cst_95 = arith.constant dense<0.000000e+00> : vector<16x32xf32>
    %146 = tpu.matmul %144, %145, %cst_95 {dimension_numbers = #tpu.dot_dimension_numbers<[1], [0], [0], [1], [0, 0, 1, 1], [], []>} : vector<16x128xbf16>, vector<128x32xbf16>, vector<16x32xf32> -> vector<16x32xf32>
    %147 = arith.addf %143, %146 : vector<16x32xf32>
    %148 = vector.extract_strided_slice %128 {offsets = [80, 0], sizes = [16, 128], strides = [1, 1]} : vector<144x128xbf16> to vector<16x128xbf16>
    %c640_96 = arith.constant 640 : index
    %c0_97 = arith.constant 0 : index
    %149 = vector.load %arg10[%c640_96, %c0_97] : memref<1152x32xbf16, #tpu.memory_space<vmem>>, vector<128x32xbf16>
    %cst_98 = arith.constant dense<0.000000e+00> : vector<16x32xf32>
    %150 = tpu.matmul %148, %149, %cst_98 {dimension_numbers = #tpu.dot_dimension_numbers<[1], [0], [0], [1], [0, 0, 1, 1], [], []>} : vector<16x128xbf16>, vector<128x32xbf16>, vector<16x32xf32> -> vector<16x32xf32>
    %151 = arith.addf %147, %150 : vector<16x32xf32>
    %152 = vector.extract_strided_slice %128 {offsets = [96, 0], sizes = [16, 128], strides = [1, 1]} : vector<144x128xbf16> to vector<16x128xbf16>
    %c768_99 = arith.constant 768 : index
    %c0_100 = arith.constant 0 : index
    %153 = vector.load %arg10[%c768_99, %c0_100] : memref<1152x32xbf16, #tpu.memory_space<vmem>>, vector<128x32xbf16>
    %cst_101 = arith.constant dense<0.000000e+00> : vector<16x32xf32>
    %154 = tpu.matmul %152, %153, %cst_101 {dimension_numbers = #tpu.dot_dimension_numbers<[1], [0], [0], [1], [0, 0, 1, 1], [], []>} : vector<16x128xbf16>, vector<128x32xbf16>, vector<16x32xf32> -> vector<16x32xf32>
    %155 = arith.addf %151, %154 : vector<16x32xf32>
    %156 = vector.extract_strided_slice %128 {offsets = [112, 0], sizes = [16, 128], strides = [1, 1]} : vector<144x128xbf16> to vector<16x128xbf16>
    %c896_102 = arith.constant 896 : index
    %c0_103 = arith.constant 0 : index
    %157 = vector.load %arg10[%c896_102, %c0_103] : memref<1152x32xbf16, #tpu.memory_space<vmem>>, vector<128x32xbf16>
    %cst_104 = arith.constant dense<0.000000e+00> : vector<16x32xf32>
    %158 = tpu.matmul %156, %157, %cst_104 {dimension_numbers = #tpu.dot_dimension_numbers<[1], [0], [0], [1], [0, 0, 1, 1], [], []>} : vector<16x128xbf16>, vector<128x32xbf16>, vector<16x32xf32> -> vector<16x32xf32>
    %159 = arith.addf %155, %158 : vector<16x32xf32>
    %160 = vector.extract_strided_slice %128 {offsets = [128, 0], sizes = [16, 128], strides = [1, 1]} : vector<144x128xbf16> to vector<16x128xbf16>
    %c1024_105 = arith.constant 1024 : index
    %c0_106 = arith.constant 0 : index
    %161 = vector.load %arg10[%c1024_105, %c0_106] : memref<1152x32xbf16, #tpu.memory_space<vmem>>, vector<128x32xbf16>
    %cst_107 = arith.constant dense<0.000000e+00> : vector<16x32xf32>
    %162 = tpu.matmul %160, %161, %cst_107 {dimension_numbers = #tpu.dot_dimension_numbers<[1], [0], [0], [1], [0, 0, 1, 1], [], []>} : vector<16x128xbf16>, vector<128x32xbf16>, vector<16x32xf32> -> vector<16x32xf32>
    %163 = arith.addf %159, %162 : vector<16x32xf32>
    %cst_108 = arith.constant 0.000000e+00 : f32
    %164 = vector.broadcast %cst_108 : f32 to vector<16x32xf32>
    %165 = arith.maximumf %163, %164 : vector<16x32xf32>
    %166 = arith.truncf %165 : vector<16x32xf32> to vector<16x32xbf16>
    %c0_109 = arith.constant 0 : index
    %c0_110 = arith.constant 0 : index
    %167 = vector.load %arg11[%c0_109, %c0_110] : memref<32x128xbf16, #tpu.memory_space<vmem>>, vector<32x128xbf16>
    %cst_111 = arith.constant dense<0.000000e+00> : vector<16x128xf32>
    %168 = tpu.matmul %166, %167, %cst_111 {dimension_numbers = #tpu.dot_dimension_numbers<[1], [0], [0], [1], [0, 0, 1, 1], [], []>} : vector<16x32xbf16>, vector<32x128xbf16>, vector<16x128xf32> -> vector<16x128xf32>
    %169 = arith.addf %122, %168 : vector<16x128xf32>
    %cst_112 = arith.constant 0.000000e+00 : f32
    %170 = vector.broadcast %cst_112 : f32 to vector<16x128xf32>
    %171 = arith.maximumf %169, %170 : vector<16x128xf32>
    %c0_113 = arith.constant 0 : index
    %c0_114 = arith.constant 0 : index
    %172 = vector.load %arg7[%c0_113, %c0_114] : memref<144x16xbf16, #tpu.memory_space<vmem>>, vector<144x16xbf16>
    %173 = arith.truncf %171 : vector<16x128xf32> to vector<16x128xbf16>
    %cst_115 = arith.constant dense<0.000000e+00> : vector<144x128xf32>
    %174 = tpu.matmul %172, %173, %cst_115 {dimension_numbers = #tpu.dot_dimension_numbers<[1], [0], [0], [1], [0, 0, 1, 1], [], []>} : vector<144x16xbf16>, vector<16x128xbf16>, vector<144x128xf32> -> vector<144x128xf32>
    %175 = arith.truncf %174 : vector<144x128xf32> to vector<144x128xbf16>
    %176 = vector.extract_strided_slice %175 {offsets = [0, 0], sizes = [16, 128], strides = [1, 1]} : vector<144x128xbf16> to vector<16x128xbf16>
    %c0_116 = arith.constant 0 : index
    %c0_117 = arith.constant 0 : index
    %177 = vector.load %arg12[%c0_116, %c0_117] : memref<1152x32xbf16, #tpu.memory_space<vmem>>, vector<128x32xbf16>
    %cst_118 = arith.constant dense<0.000000e+00> : vector<16x32xf32>
    %178 = tpu.matmul %176, %177, %cst_118 {dimension_numbers = #tpu.dot_dimension_numbers<[1], [0], [0], [1], [0, 0, 1, 1], [], []>} : vector<16x128xbf16>, vector<128x32xbf16>, vector<16x32xf32> -> vector<16x32xf32>
    %179 = vector.extract_strided_slice %175 {offsets = [16, 0], sizes = [16, 128], strides = [1, 1]} : vector<144x128xbf16> to vector<16x128xbf16>
    %c128_119 = arith.constant 128 : index
    %c0_120 = arith.constant 0 : index
    %180 = vector.load %arg12[%c128_119, %c0_120] : memref<1152x32xbf16, #tpu.memory_space<vmem>>, vector<128x32xbf16>
    %cst_121 = arith.constant dense<0.000000e+00> : vector<16x32xf32>
    %181 = tpu.matmul %179, %180, %cst_121 {dimension_numbers = #tpu.dot_dimension_numbers<[1], [0], [0], [1], [0, 0, 1, 1], [], []>} : vector<16x128xbf16>, vector<128x32xbf16>, vector<16x32xf32> -> vector<16x32xf32>
    %182 = arith.addf %178, %181 : vector<16x32xf32>
    %183 = vector.extract_strided_slice %175 {offsets = [32, 0], sizes = [16, 128], strides = [1, 1]} : vector<144x128xbf16> to vector<16x128xbf16>
    %c256_122 = arith.constant 256 : index
    %c0_123 = arith.constant 0 : index
    %184 = vector.load %arg12[%c256_122, %c0_123] : memref<1152x32xbf16, #tpu.memory_space<vmem>>, vector<128x32xbf16>
    %cst_124 = arith.constant dense<0.000000e+00> : vector<16x32xf32>
    %185 = tpu.matmul %183, %184, %cst_124 {dimension_numbers = #tpu.dot_dimension_numbers<[1], [0], [0], [1], [0, 0, 1, 1], [], []>} : vector<16x128xbf16>, vector<128x32xbf16>, vector<16x32xf32> -> vector<16x32xf32>
    %186 = arith.addf %182, %185 : vector<16x32xf32>
    %187 = vector.extract_strided_slice %175 {offsets = [48, 0], sizes = [16, 128], strides = [1, 1]} : vector<144x128xbf16> to vector<16x128xbf16>
    %c384_125 = arith.constant 384 : index
    %c0_126 = arith.constant 0 : index
    %188 = vector.load %arg12[%c384_125, %c0_126] : memref<1152x32xbf16, #tpu.memory_space<vmem>>, vector<128x32xbf16>
    %cst_127 = arith.constant dense<0.000000e+00> : vector<16x32xf32>
    %189 = tpu.matmul %187, %188, %cst_127 {dimension_numbers = #tpu.dot_dimension_numbers<[1], [0], [0], [1], [0, 0, 1, 1], [], []>} : vector<16x128xbf16>, vector<128x32xbf16>, vector<16x32xf32> -> vector<16x32xf32>
    %190 = arith.addf %186, %189 : vector<16x32xf32>
    %191 = vector.extract_strided_slice %175 {offsets = [64, 0], sizes = [16, 128], strides = [1, 1]} : vector<144x128xbf16> to vector<16x128xbf16>
    %c512_128 = arith.constant 512 : index
    %c0_129 = arith.constant 0 : index
    %192 = vector.load %arg12[%c512_128, %c0_129] : memref<1152x32xbf16, #tpu.memory_space<vmem>>, vector<128x32xbf16>
    %cst_130 = arith.constant dense<0.000000e+00> : vector<16x32xf32>
    %193 = tpu.matmul %191, %192, %cst_130 {dimension_numbers = #tpu.dot_dimension_numbers<[1], [0], [0], [1], [0, 0, 1, 1], [], []>} : vector<16x128xbf16>, vector<128x32xbf16>, vector<16x32xf32> -> vector<16x32xf32>
    %194 = arith.addf %190, %193 : vector<16x32xf32>
    %195 = vector.extract_strided_slice %175 {offsets = [80, 0], sizes = [16, 128], strides = [1, 1]} : vector<144x128xbf16> to vector<16x128xbf16>
    %c640_131 = arith.constant 640 : index
    %c0_132 = arith.constant 0 : index
    %196 = vector.load %arg12[%c640_131, %c0_132] : memref<1152x32xbf16, #tpu.memory_space<vmem>>, vector<128x32xbf16>
    %cst_133 = arith.constant dense<0.000000e+00> : vector<16x32xf32>
    %197 = tpu.matmul %195, %196, %cst_133 {dimension_numbers = #tpu.dot_dimension_numbers<[1], [0], [0], [1], [0, 0, 1, 1], [], []>} : vector<16x128xbf16>, vector<128x32xbf16>, vector<16x32xf32> -> vector<16x32xf32>
    %198 = arith.addf %194, %197 : vector<16x32xf32>
    %199 = vector.extract_strided_slice %175 {offsets = [96, 0], sizes = [16, 128], strides = [1, 1]} : vector<144x128xbf16> to vector<16x128xbf16>
    %c768_134 = arith.constant 768 : index
    %c0_135 = arith.constant 0 : index
    %200 = vector.load %arg12[%c768_134, %c0_135] : memref<1152x32xbf16, #tpu.memory_space<vmem>>, vector<128x32xbf16>
    %cst_136 = arith.constant dense<0.000000e+00> : vector<16x32xf32>
    %201 = tpu.matmul %199, %200, %cst_136 {dimension_numbers = #tpu.dot_dimension_numbers<[1], [0], [0], [1], [0, 0, 1, 1], [], []>} : vector<16x128xbf16>, vector<128x32xbf16>, vector<16x32xf32> -> vector<16x32xf32>
    %202 = arith.addf %198, %201 : vector<16x32xf32>
    %203 = vector.extract_strided_slice %175 {offsets = [112, 0], sizes = [16, 128], strides = [1, 1]} : vector<144x128xbf16> to vector<16x128xbf16>
    %c896_137 = arith.constant 896 : index
    %c0_138 = arith.constant 0 : index
    %204 = vector.load %arg12[%c896_137, %c0_138] : memref<1152x32xbf16, #tpu.memory_space<vmem>>, vector<128x32xbf16>
    %cst_139 = arith.constant dense<0.000000e+00> : vector<16x32xf32>
    %205 = tpu.matmul %203, %204, %cst_139 {dimension_numbers = #tpu.dot_dimension_numbers<[1], [0], [0], [1], [0, 0, 1, 1], [], []>} : vector<16x128xbf16>, vector<128x32xbf16>, vector<16x32xf32> -> vector<16x32xf32>
    %206 = arith.addf %202, %205 : vector<16x32xf32>
    %207 = vector.extract_strided_slice %175 {offsets = [128, 0], sizes = [16, 128], strides = [1, 1]} : vector<144x128xbf16> to vector<16x128xbf16>
    %c1024_140 = arith.constant 1024 : index
    %c0_141 = arith.constant 0 : index
    %208 = vector.load %arg12[%c1024_140, %c0_141] : memref<1152x32xbf16, #tpu.memory_space<vmem>>, vector<128x32xbf16>
    %cst_142 = arith.constant dense<0.000000e+00> : vector<16x32xf32>
    %209 = tpu.matmul %207, %208, %cst_142 {dimension_numbers = #tpu.dot_dimension_numbers<[1], [0], [0], [1], [0, 0, 1, 1], [], []>} : vector<16x128xbf16>, vector<128x32xbf16>, vector<16x32xf32> -> vector<16x32xf32>
    %210 = arith.addf %206, %209 : vector<16x32xf32>
    %cst_143 = arith.constant 0.000000e+00 : f32
    %211 = vector.broadcast %cst_143 : f32 to vector<16x32xf32>
    %212 = arith.maximumf %210, %211 : vector<16x32xf32>
    %213 = arith.truncf %212 : vector<16x32xf32> to vector<16x32xbf16>
    %c0_144 = arith.constant 0 : index
    %c0_145 = arith.constant 0 : index
    %214 = vector.load %arg13[%c0_144, %c0_145] : memref<32x128xbf16, #tpu.memory_space<vmem>>, vector<32x128xbf16>
    %cst_146 = arith.constant dense<0.000000e+00> : vector<16x128xf32>
    %215 = tpu.matmul %213, %214, %cst_146 {dimension_numbers = #tpu.dot_dimension_numbers<[1], [0], [0], [1], [0, 0, 1, 1], [], []>} : vector<16x32xbf16>, vector<32x128xbf16>, vector<16x128xf32> -> vector<16x128xf32>
    %216 = arith.addf %169, %215 : vector<16x128xf32>
    %cst_147 = arith.constant 0.000000e+00 : f32
    %217 = vector.broadcast %cst_147 : f32 to vector<16x128xf32>
    %218 = arith.maximumf %216, %217 : vector<16x128xf32>
    %219 = arith.truncf %218 : vector<16x128xf32> to vector<16x128xbf16>
    %c0_148 = arith.constant 0 : index
    %c0_149 = arith.constant 0 : index
    %220 = vector.load %arg14[%c0_148, %c0_149] : memref<128x4xbf16, #tpu.memory_space<vmem>>, vector<128x4xbf16>
    %cst_150 = arith.constant dense<0.000000e+00> : vector<16x4xf32>
    %221 = tpu.matmul %219, %220, %cst_150 {dimension_numbers = #tpu.dot_dimension_numbers<[1], [0], [0], [1], [0, 0, 1, 1], [], []>} : vector<16x128xbf16>, vector<128x4xbf16>, vector<16x4xf32> -> vector<16x4xf32>
    %c0_151 = arith.constant 0 : index
    %c0_152 = arith.constant 0 : index
    %222 = vector.load %arg15[%c0_151, %c0_152] : memref<1x4xf32, #tpu.memory_space<vmem>>, vector<1x4xf32>
    %223 = vector.broadcast %222 : vector<1x4xf32> to vector<16x4xf32>
    %224 = arith.addf %221, %223 : vector<16x4xf32>
    %225 = arith.mulf %224, %224 : vector<16x4xf32>
    %cst_153 = arith.constant dense<0.000000e+00> : vector<16xf32>
    %226 = vector.multi_reduction <add>, %225, %cst_153 [1] : vector<16x4xf32> to vector<16xf32>
    %227 = vector.shape_cast %226 : vector<16xf32> to vector<16x1xf32>
    %cst_154 = arith.constant 1.000000e-10 : f32
    %228 = vector.broadcast %cst_154 : f32 to vector<16x1xf32>
    %229 = arith.addf %227, %228 : vector<16x1xf32>
    %230 = math.rsqrt %229 : vector<16x1xf32>
    %231 = vector.broadcast %230 : vector<16x1xf32> to vector<16x4xf32>
    %232 = arith.mulf %224, %231 : vector<16x4xf32>
    %c0_155 = arith.constant 0 : index
    %c0_156 = arith.constant 0 : index
    %233 = vector.load %arg16[%c0_155, %c0_156] : memref<4x4096xf32, #tpu.memory_space<vmem>>, vector<4x4096xf32>
    %cst_157 = arith.constant dense<0.000000e+00> : vector<16x4096xf32>
    %234 = tpu.matmul %232, %233, %cst_157 {dimension_numbers = #tpu.dot_dimension_numbers<[1], [0], [0], [1], [0, 0, 1, 1], [], []>} : vector<16x4xf32>, vector<4x4096xf32>, vector<16x4096xf32> -> vector<16x4096xf32>
    %cst_158 = arith.constant dense<0xFF800000> : vector<16xf32>
    %235 = vector.multi_reduction <maximumf>, %234, %cst_158 [1] : vector<16x4096xf32> to vector<16xf32>
    %236 = vector.shape_cast %235 : vector<16xf32> to vector<16x1xf32>
    %237 = tpu.iota {dimensions = array<i32: 1>} : vector<16x4096xi32>
    %238 = vector.broadcast %236 : vector<16x1xf32> to vector<16x4096xf32>
    %239 = arith.cmpf oge, %234, %238 : vector<16x4096xf32>
    %c4096_i32 = arith.constant 4096 : i32
    %240 = vector.broadcast %c4096_i32 : i32 to vector<16x4096xi32>
    %241 = arith.select %239, %237, %240 : vector<16x4096xi1>, vector<16x4096xi32>
    %cst_159 = arith.constant dense<2147483647> : vector<16xi32>
    %242 = vector.multi_reduction <minsi>, %241, %cst_159 [1] : vector<16x4096xi32> to vector<16xi32>
    %243 = vector.shape_cast %242 : vector<16xi32> to vector<16x1xi32>
    %244 = vector.broadcast %243 : vector<16x1xi32> to vector<16x4096xi32>
    %245 = arith.cmpi eq, %237, %244 : vector<16x4096xi32>
    %246 = tpu.iota {dimensions = array<i32: 1>} : vector<1x4xi32>
    %cst_160 = arith.constant 0.000000e+00 : f32
    %247 = vector.broadcast %cst_160 : f32 to vector<16x4xf32>
    %c0_161 = arith.constant 0 : index
    %c0_162 = arith.constant 0 : index
    %248 = vector.load %arg17[%c0_161, %c0_162] : memref<4x4096xf32, #tpu.memory_space<vmem>>, vector<1x4096xf32>
    %cst_163 = arith.constant 0.000000e+00 : f32
    %249 = vector.shape_cast %248 : vector<1x4096xf32> to vector<1x4096xf32>
    %250 = vector.broadcast %249 : vector<1x4096xf32> to vector<16x4096xf32>
    %251 = vector.broadcast %cst_163 : f32 to vector<16x4096xf32>
    %252 = arith.select %245, %250, %251 : vector<16x4096xi1>, vector<16x4096xf32>
    %cst_164 = arith.constant dense<0.000000e+00> : vector<16xf32>
    %253 = vector.multi_reduction <add>, %252, %cst_164 [1] : vector<16x4096xf32> to vector<16xf32>
    %254 = vector.shape_cast %253 : vector<16xf32> to vector<16x1xf32>
    %c0_i32 = arith.constant 0 : i32
    %255 = vector.broadcast %c0_i32 : i32 to vector<1x4xi32>
    %256 = arith.cmpi eq, %246, %255 : vector<1x4xi32>
    %cst_165 = arith.constant 0.000000e+00 : f32
    %257 = vector.shape_cast %256 : vector<1x4xi1> to vector<1x4xi1>
    %258 = vector.broadcast %257 : vector<1x4xi1> to vector<16x4xi1>
    %259 = vector.shape_cast %254 : vector<16x1xf32> to vector<16x1xf32>
    %260 = vector.broadcast %259 : vector<16x1xf32> to vector<16x4xf32>
    %261 = vector.broadcast %cst_165 : f32 to vector<16x4xf32>
    %262 = arith.select %258, %260, %261 : vector<16x4xi1>, vector<16x4xf32>
    %263 = arith.addf %247, %262 : vector<16x4xf32>
    %c1 = arith.constant 1 : index
    %c0_166 = arith.constant 0 : index
    %264 = vector.load %arg17[%c1, %c0_166] : memref<4x4096xf32, #tpu.memory_space<vmem>>, vector<1x4096xf32>
    %cst_167 = arith.constant 0.000000e+00 : f32
    %265 = vector.shape_cast %264 : vector<1x4096xf32> to vector<1x4096xf32>
    %266 = vector.broadcast %265 : vector<1x4096xf32> to vector<16x4096xf32>
    %267 = vector.broadcast %cst_167 : f32 to vector<16x4096xf32>
    %268 = arith.select %245, %266, %267 : vector<16x4096xi1>, vector<16x4096xf32>
    %cst_168 = arith.constant dense<0.000000e+00> : vector<16xf32>
    %269 = vector.multi_reduction <add>, %268, %cst_168 [1] : vector<16x4096xf32> to vector<16xf32>
    %270 = vector.shape_cast %269 : vector<16xf32> to vector<16x1xf32>
    %c1_i32 = arith.constant 1 : i32
    %271 = vector.broadcast %c1_i32 : i32 to vector<1x4xi32>
    %272 = arith.cmpi eq, %246, %271 : vector<1x4xi32>
    %cst_169 = arith.constant 0.000000e+00 : f32
    %273 = vector.shape_cast %272 : vector<1x4xi1> to vector<1x4xi1>
    %274 = vector.broadcast %273 : vector<1x4xi1> to vector<16x4xi1>
    %275 = vector.shape_cast %270 : vector<16x1xf32> to vector<16x1xf32>
    %276 = vector.broadcast %275 : vector<16x1xf32> to vector<16x4xf32>
    %277 = vector.broadcast %cst_169 : f32 to vector<16x4xf32>
    %278 = arith.select %274, %276, %277 : vector<16x4xi1>, vector<16x4xf32>
    %279 = arith.addf %263, %278 : vector<16x4xf32>
    %c2 = arith.constant 2 : index
    %c0_170 = arith.constant 0 : index
    %280 = vector.load %arg17[%c2, %c0_170] : memref<4x4096xf32, #tpu.memory_space<vmem>>, vector<1x4096xf32>
    %cst_171 = arith.constant 0.000000e+00 : f32
    %281 = vector.shape_cast %280 : vector<1x4096xf32> to vector<1x4096xf32>
    %282 = vector.broadcast %281 : vector<1x4096xf32> to vector<16x4096xf32>
    %283 = vector.broadcast %cst_171 : f32 to vector<16x4096xf32>
    %284 = arith.select %245, %282, %283 : vector<16x4096xi1>, vector<16x4096xf32>
    %cst_172 = arith.constant dense<0.000000e+00> : vector<16xf32>
    %285 = vector.multi_reduction <add>, %284, %cst_172 [1] : vector<16x4096xf32> to vector<16xf32>
    %286 = vector.shape_cast %285 : vector<16xf32> to vector<16x1xf32>
    %c2_i32 = arith.constant 2 : i32
    %287 = vector.broadcast %c2_i32 : i32 to vector<1x4xi32>
    %288 = arith.cmpi eq, %246, %287 : vector<1x4xi32>
    %cst_173 = arith.constant 0.000000e+00 : f32
    %289 = vector.shape_cast %288 : vector<1x4xi1> to vector<1x4xi1>
    %290 = vector.broadcast %289 : vector<1x4xi1> to vector<16x4xi1>
    %291 = vector.shape_cast %286 : vector<16x1xf32> to vector<16x1xf32>
    %292 = vector.broadcast %291 : vector<16x1xf32> to vector<16x4xf32>
    %293 = vector.broadcast %cst_173 : f32 to vector<16x4xf32>
    %294 = arith.select %290, %292, %293 : vector<16x4xi1>, vector<16x4xf32>
    %295 = arith.addf %279, %294 : vector<16x4xf32>
    %c3 = arith.constant 3 : index
    %c0_174 = arith.constant 0 : index
    %296 = vector.load %arg17[%c3, %c0_174] : memref<4x4096xf32, #tpu.memory_space<vmem>>, vector<1x4096xf32>
    %cst_175 = arith.constant 0.000000e+00 : f32
    %297 = vector.shape_cast %296 : vector<1x4096xf32> to vector<1x4096xf32>
    %298 = vector.broadcast %297 : vector<1x4096xf32> to vector<16x4096xf32>
    %299 = vector.broadcast %cst_175 : f32 to vector<16x4096xf32>
    %300 = arith.select %245, %298, %299 : vector<16x4096xi1>, vector<16x4096xf32>
    %cst_176 = arith.constant dense<0.000000e+00> : vector<16xf32>
    %301 = vector.multi_reduction <add>, %300, %cst_176 [1] : vector<16x4096xf32> to vector<16xf32>
    %302 = vector.shape_cast %301 : vector<16xf32> to vector<16x1xf32>
    %c3_i32 = arith.constant 3 : i32
    %303 = vector.broadcast %c3_i32 : i32 to vector<1x4xi32>
    %304 = arith.cmpi eq, %246, %303 : vector<1x4xi32>
    %cst_177 = arith.constant 0.000000e+00 : f32
    %305 = vector.shape_cast %304 : vector<1x4xi1> to vector<1x4xi1>
    %306 = vector.broadcast %305 : vector<1x4xi1> to vector<16x4xi1>
    %307 = vector.shape_cast %302 : vector<16x1xf32> to vector<16x1xf32>
    %308 = vector.broadcast %307 : vector<16x1xf32> to vector<16x4xf32>
    %309 = vector.broadcast %cst_177 : f32 to vector<16x4xf32>
    %310 = arith.select %306, %308, %309 : vector<16x4xi1>, vector<16x4xf32>
    %311 = arith.addf %295, %310 : vector<16x4xf32>
    %c0_178 = arith.constant 0 : index
    %c0_179 = arith.constant 0 : index
    %c0_180 = arith.constant 0 : index
    %312 = vector.load %arg18[%c0_178, %c0_179, %c0_180] : memref<1x16x4xf32, #tpu.memory_space<vmem>>, vector<1x16x4xf32>
    %313 = vector.shape_cast %312 : vector<1x16x4xf32> to vector<16x4xf32>
    %314 = vector.shape_cast %311 : vector<16x4xf32> to vector<1x16x4xf32>
    tpu.vector_store %arg18[%c0_178, %c0_179, %c0_180], %314 {strides = array<i32>} : memref<1x16x4xf32, #tpu.memory_space<vmem>>, vector<1x16x4xf32>,
    return
  }
  func.func @transform_0(%arg0: i32) -> (i32, i32, i32) {
    %c0_i32 = arith.constant 0 : i32
    %c0_i32_0 = arith.constant 0 : i32
    %c0_i32_1 = arith.constant 0 : i32
    return %arg0, %c0_i32, %c0_i32_0 : i32, i32, i32
  }
  func.func @transform_1(%arg0: i32) -> (i32, i32) {
    %c0_i32 = arith.constant 0 : i32
    %c0_i32_0 = arith.constant 0 : i32
    %c0_i32_1 = arith.constant 0 : i32
    return %c0_i32, %c0_i32_0 : i32, i32
  }
  func.func @transform_2(%arg0: i32) -> (i32, i32) {
    %c0_i32 = arith.constant 0 : i32
    %c0_i32_0 = arith.constant 0 : i32
    %c0_i32_1 = arith.constant 0 : i32
    return %c0_i32, %c0_i32_0 : i32, i32
  }
  func.func @transform_3(%arg0: i32) -> (i32, i32) {
    %c0_i32 = arith.constant 0 : i32
    %c0_i32_0 = arith.constant 0 : i32
    %c0_i32_1 = arith.constant 0 : i32
    return %c0_i32, %c0_i32_0 : i32, i32
  }
  func.func @transform_4(%arg0: i32) -> (i32, i32) {
    %c0_i32 = arith.constant 0 : i32
    %c0_i32_0 = arith.constant 0 : i32
    %c0_i32_1 = arith.constant 0 : i32
    return %c0_i32, %c0_i32_0 : i32, i32
  }
  func.func @transform_5(%arg0: i32) -> (i32, i32) {
    %c0_i32 = arith.constant 0 : i32
    %c0_i32_0 = arith.constant 0 : i32
    %c0_i32_1 = arith.constant 0 : i32
    return %c0_i32, %c0_i32_0 : i32, i32
  }
  func.func @transform_6(%arg0: i32) -> (i32, i32) {
    %c0_i32 = arith.constant 0 : i32
    %c0_i32_0 = arith.constant 0 : i32
    %c0_i32_1 = arith.constant 0 : i32
    return %c0_i32, %c0_i32_0 : i32, i32
  }
  func.func @transform_7(%arg0: i32) -> (i32, i32) {
    %c0_i32 = arith.constant 0 : i32
    %c0_i32_0 = arith.constant 0 : i32
    %c0_i32_1 = arith.constant 0 : i32
    return %c0_i32, %c0_i32_0 : i32, i32
  }
  func.func @transform_8(%arg0: i32) -> (i32, i32) {
    %c0_i32 = arith.constant 0 : i32
    %c0_i32_0 = arith.constant 0 : i32
    %c0_i32_1 = arith.constant 0 : i32
    return %c0_i32, %c0_i32_0 : i32, i32
  }
  func.func @transform_9(%arg0: i32) -> (i32, i32) {
    %c0_i32 = arith.constant 0 : i32
    %c0_i32_0 = arith.constant 0 : i32
    %c0_i32_1 = arith.constant 0 : i32
    return %c0_i32, %c0_i32_0 : i32, i32
  }
  func.func @transform_10(%arg0: i32) -> (i32, i32) {
    %c0_i32 = arith.constant 0 : i32
    %c0_i32_0 = arith.constant 0 : i32
    %c0_i32_1 = arith.constant 0 : i32
    return %c0_i32, %c0_i32_0 : i32, i32
  }
  func.func @transform_11(%arg0: i32) -> (i32, i32) {
    %c0_i32 = arith.constant 0 : i32
    %c0_i32_0 = arith.constant 0 : i32
    %c0_i32_1 = arith.constant 0 : i32
    return %c0_i32, %c0_i32_0 : i32, i32
  }
  func.func @transform_12(%arg0: i32) -> (i32, i32) {
    %c0_i32 = arith.constant 0 : i32
    %c0_i32_0 = arith.constant 0 : i32
    %c0_i32_1 = arith.constant 0 : i32
    return %c0_i32, %c0_i32_0 : i32, i32
  }
  func.func @transform_13(%arg0: i32) -> (i32, i32) {
    %c0_i32 = arith.constant 0 : i32
    %c0_i32_0 = arith.constant 0 : i32
    %c0_i32_1 = arith.constant 0 : i32
    return %c0_i32, %c0_i32_0 : i32, i32
  }
  func.func @transform_14(%arg0: i32) -> (i32, i32) {
    %c0_i32 = arith.constant 0 : i32
    %c0_i32_0 = arith.constant 0 : i32
    %c0_i32_1 = arith.constant 0 : i32
    return %c0_i32, %c0_i32_0 : i32, i32
  }
  func.func @transform_15(%arg0: i32) -> (i32, i32) {
    %c0_i32 = arith.constant 0 : i32
    %c0_i32_0 = arith.constant 0 : i32
    %c0_i32_1 = arith.constant 0 : i32
    return %c0_i32, %c0_i32_0 : i32, i32
  }
  func.func @transform_16(%arg0: i32) -> (i32, i32) {
    %c0_i32 = arith.constant 0 : i32
    %c0_i32_0 = arith.constant 0 : i32
    %c0_i32_1 = arith.constant 0 : i32
    return %c0_i32, %c0_i32_0 : i32, i32
  }
  func.func @transform_17(%arg0: i32) -> (i32, i32, i32) {
    %c0_i32 = arith.constant 0 : i32
    %c0_i32_0 = arith.constant 0 : i32
    %c0_i32_1 = arith.constant 0 : i32
    return %arg0, %c0_i32, %c0_i32_0 : i32, i32, i32
  }
}

</mosaic_0001>

<llo_original>
// kernel: _lambda_.1
$region0: #{_lambda_.1}
  #allocation0 [shape = 'u32[]', space=smem, size = 0x4, offset = 0x4, fixed_abs, tag = 'smem constant byte address 0x4 - core index']
  #allocation1 [shape = 'u32[144,128]{1,0:T(1,128)}', space=vmem, size = 0x12000, scoped, tag = 'internal scratch']
  %s0 = inlined_call_operand.vmem [shape: bf16[4,64,16], index: 0, kind: input, shape index: {}]
  %s1 = inlined_call_operand.vmem [shape: bf16[16,64], index: 1, kind: input, shape index: {}]
  %s2 = inlined_call_operand.vmem [shape: f32[1,64], index: 2, kind: input, shape index: {}]
  %s3 = inlined_call_operand.vmem [shape: bf16[256,64], index: 3, kind: input, shape index: {}]
  %s4 = inlined_call_operand.vmem [shape: bf16[1024,128], index: 4, kind: input, shape index: {}]
  %s5 = inlined_call_operand.vmem [shape: f32[1,128], index: 5, kind: input, shape index: {}]
  %s6 = inlined_call_operand.vmem [shape: bf16[144,16], index: 6, kind: input, shape index: {}]
  %s7 = inlined_call_operand.vmem [shape: bf16[1152,128], index: 7, kind: input, shape index: {}]
  %s8 = inlined_call_operand.vmem [shape: f32[1,128], index: 8, kind: input, shape index: {}]
  %s9 = inlined_call_operand.vmem [shape: bf16[1152,32], index: 9, kind: input, shape index: {}]
  %s10 = inlined_call_operand.vmem [shape: bf16[32,128], index: 10, kind: input, shape index: {}]
  %s11 = inlined_call_operand.vmem [shape: bf16[1152,32], index: 11, kind: input, shape index: {}]
  %s12 = inlined_call_operand.vmem [shape: bf16[32,128], index: 12, kind: input, shape index: {}]
  %s13 = inlined_call_operand.vmem [shape: bf16[128,4], index: 13, kind: input, shape index: {}]
  %s14 = inlined_call_operand.vmem [shape: f32[1,4], index: 14, kind: input, shape index: {}]
  %s15 = inlined_call_operand.vmem [shape: f32[4,4096], index: 15, kind: input, shape index: {}]
  %s16 = inlined_call_operand.vmem [shape: f32[4,4096], index: 16, kind: input, shape index: {}]
  %s17 = inlined_call_operand.vmem [shape: f32[4,16,4], index: 17, kind: output, shape index: {}]
  %s18 = sld [smem:[#allocation0]]
  $region101: #{_lambda_.1} parent=0
    _
  %s20 = ssub.s32 1, %s18
  %s21 = scalar_select 0, %s20, %s18
  loop: start=0, step=1, limit=6
  $region2: #{_lambda_.1} parent=0 // loop_pre_header
    _
  $region3: #{_lambda_.1} parent=0 // loop_header
    %s23 = sphi 0, %s27
    %p24 = scmp.ge.s32.totalorder %s23, 6
    %s33 = sphi 0, %s35
    %s36 = sphi 0, %s33
    %s37 = sphi 0, %s36
    %s53 = sphi 0, %s37
    %s57 = sphi 0, %s57
    %s59 = sphi 0, %s57
    %s60 = sphi 0, %s59
    %s74 = sphi 0, %s60
    %s78 = sphi 0, %s78
    %s80 = sphi 0, %s78
    %s81 = sphi 0, %s80
    %s95 = sphi 0, %s81
    %s99 = sphi 0, %s99
    %s101 = sphi 0, %s99
    %s102 = sphi 0, %s101
    %s116 = sphi 0, %s102
    %s120 = sphi 0, %s120
    %s122 = sphi 0, %s120
    %s123 = sphi 0, %s122
    %s137 = sphi 0, %s123
    %s141 = sphi 0, %s141
    %s143 = sphi 0, %s141
    %s144 = sphi 0, %s143
    %s158 = sphi 0, %s144
    %s162 = sphi 0, %s162
    %s164 = sphi 0, %s162
    %s165 = sphi 0, %s164
    %s179 = sphi 0, %s165
    %s183 = sphi 0, %s183
    %s185 = sphi 0, %s183
    %s186 = sphi 0, %s185
    %s200 = sphi 0, %s186
    %s204 = sphi 0, %s204
    %s206 = sphi 0, %s204
    %s207 = sphi 0, %s206
    %s221 = sphi 0, %s207
    %s225 = sphi 0, %s225
    %s227 = sphi 0, %s225
    %s228 = sphi 0, %s227
    %s242 = sphi 0, %s228
    %s246 = sphi 0, %s246
    %s248 = sphi 0, %s246
    %s249 = sphi 0, %s248
    %s263 = sphi 0, %s249
    %s267 = sphi 0, %s267
    %s269 = sphi 0, %s267
    %s270 = sphi 0, %s269
    %s284 = sphi 0, %s270
    %s288 = sphi 0, %s288
    %s290 = sphi 0, %s288
    %s291 = sphi 0, %s290
    %s305 = sphi 0, %s291
    %s309 = sphi 0, %s309
    %s311 = sphi 0, %s309
    %s312 = sphi 0, %s311
    %s326 = sphi 0, %s312
    %s330 = sphi 0, %s330
    %s332 = sphi 0, %s330
    %s333 = sphi 0, %s332
    %s347 = sphi 0, %s333
    %s351 = sphi 0, %s351
    %s353 = sphi 0, %s351
    %s354 = sphi 0, %s353
    %s368 = sphi 0, %s354
    %s372 = sphi 0, %s372
    %s374 = sphi 0, %s372
    %s375 = sphi 0, %s374
    %s389 = sphi 0, %s375
    %s395 = sphi 0, %s397
    %s398 = sphi 0, %s395
    %s399 = sphi 0, %s398
    %s415 = sphi 0, %s399
  $region4: #{_lambda_.1} parent=0 // loop_header_branch
    %26 = sbr.rel (%p24) target = $region8
  $region5: #{_lambda_.1} parent=0 // loop_body
    %s28 = ssub.s32 %s23, 1
    %s29 = ssub.s32 %s23, 2
    %s30 = sadd.s32 %s23, 1
    %s31 = ssub.s32 %s23, %s30
    %p32 = scmp.eq.s32.totalorder %s31, 0
    %s34 = sadd.s32 %s33, 1
    %s35 = scalar_select %p32, %s33, %s34
    %p38 = pneg %p32
    %p39 = scmp.eq.s32.totalorder %s23, 3
    %p40 = por %p38, %p39
    %p41 = scmp.ne.s32.totalorder %s33, %s36
    %p42 = scmp.eq.s32.totalorder %s23, 0
    %p43 = por %p41, %p42
    %p44 = scmp.ne.s32.totalorder %s33, %s36
    %p45 = scmp.eq.s32.totalorder %s28, 3
    %p46 = por %p44, %p45
    %p47 = scmp.ne.s32.totalorder %s36, %s37
    %p48 = scmp.eq.s32.totalorder %s28, 0
    %p49 = por %p47, %p48
    %p50 = scmp.ne.s32.totalorder %s36, %s37
    %p51 = scmp.eq.s32.totalorder %s29, 3
    %p52 = por %p50, %p51
    %p54 = scmp.ne.s32.totalorder %s37, %s53
    %p55 = scmp.eq.s32.totalorder %s29, 0
    %p56 = por %p54, %p55
    %s58 = sadd.s32 %s57, 1
    %p61 = scmp.eq.s32.totalorder %s23, 3
    %p62 = scmp.ne.s32.totalorder %s57, %s59
    %p63 = scmp.eq.s32.totalorder %s23, 0
    %p64 = por %p62, %p63
    %p65 = scmp.ne.s32.totalorder %s57, %s59
    %p66 = scmp.eq.s32.totalorder %s28, 3
    %p67 = por %p65, %p66
    %p68 = scmp.ne.s32.totalorder %s59, %s60
    %p69 = scmp.eq.s32.totalorder %s28, 0
    %p70 = por %p68, %p69
    %p71 = scmp.ne.s32.totalorder %s59, %s60
    %p72 = scmp.eq.s32.totalorder %s29, 3
    %p73 = por %p71, %p72
    %p75 = scmp.ne.s32.totalorder %s60, %s74
    %p76 = scmp.eq.s32.totalorder %s29, 0
    %p77 = por %p75, %p76
    %s79 = sadd.s32 %s78, 1
    %p82 = scmp.eq.s32.totalorder %s23, 3
    %p83 = scmp.ne.s32.totalorder %s78, %s80
    %p84 = scmp.eq.s32.totalorder %s23, 0
    %p85 = por %p83, %p84
    %p86 = scmp.ne.s32.totalorder %s78, %s80
    %p87 = scmp.eq.s32.totalorder %s28, 3
    %p88 = por %p86, %p87
    %p89 = scmp.ne.s32.totalorder %s80, %s81
    %p90 = scmp.eq.s32.totalorder %s28, 0
    %p91 = por %p89, %p90
    %p92 = scmp.ne.s32.totalorder %s80, %s81
    %p93 = scmp.eq.s32.totalorder %s29, 3
    %p94 = por %p92, %p93
    %p96 = scmp.ne.s32.totalorder %s81, %s95
    %p97 = scmp.eq.s32.totalorder %s29, 0
    %p98 = por %p96, %p97
    %s100 = sadd.s32 %s99, 1
    %p103 = scmp.eq.s32.totalorder %s23, 3
    %p104 = scmp.ne.s32.totalorder %s99, %s101
    %p105 = scmp.eq.s32.totalorder %s23, 0
    %p106 = por %p104, %p105
    %p107 = scmp.ne.s32.totalorder %s99, %s101
    %p108 = scmp.eq.s32.totalorder %s28, 3
    %p109 = por %p107, %p108
    %p110 = scmp.ne.s32.totalorder %s101, %s102
    %p111 = scmp.eq.s32.totalorder %s28, 0
    %p112 = por %p110, %p111
    %p113 = scmp.ne.s32.totalorder %s101, %s102
    %p114 = scmp.eq.s32.totalorder %s29, 3
    %p115 = por %p113, %p114
    %p117 = scmp.ne.s32.totalorder %s102, %s116
    %p118 = scmp.eq.s32.totalorder %s29, 0
    %p119 = por %p117, %p118
    %s121 = sadd.s32 %s120, 1
    %p124 = scmp.eq.s32.totalorder %s23, 3
    %p125 = scmp.ne.s32.totalorder %s120, %s122
    %p126 = scmp.eq.s32.totalorder %s23, 0
    %p127 = por %p125, %p126
    %p128 = scmp.ne.s32.totalorder %s120, %s122
    %p129 = scmp.eq.s32.totalorder %s28, 3
    %p130 = por %p128, %p129
    %p131 = scmp.ne.s32.totalorder %s122, %s123
    %p132 = scmp.eq.s32.totalorder %s28, 0
    %p133 = por %p131, %p132
    %p134 = scmp.ne.s32.totalorder %s122, %s123
    %p135 = scmp.eq.s32.totalorder %s29, 3
    %p136 = por %p134, %p135
    %p138 = scmp.ne.s32.totalorder %s123, %s137
    %p139 = scmp.eq.s32.totalorder %s29, 0
    %p140 = por %p138, %p139
    %s142 = sadd.s32 %s141, 1
    %p145 = scmp.eq.s32.totalorder %s23, 3
    %p146 = scmp.ne.s32.totalorder %s141, %s143
    %p147 = scmp.eq.s32.totalorder %s23, 0
    %p148 = por %p146, %p147
    %p149 = scmp.ne.s32.totalorder %s141, %s143
    %p150 = scmp.eq.s32.totalorder %s28, 3
    %p151 = por %p149, %p150
    %p152 = scmp.ne.s32.totalorder %s143, %s144
    %p153 = scmp.eq.s32.totalorder %s28, 0
    %p154 = por %p152, %p153
    %p155 = scmp.ne.s32.totalorder %s143, %s144
    %p156 = scmp.eq.s32.totalorder %s29, 3
    %p157 = por %p155, %p156
    %p159 = scmp.ne.s32.totalorder %s144, %s158
    %p160 = scmp.eq.s32.totalorder %s29, 0
    %p161 = por %p159, %p160
    %s163 = sadd.s32 %s162, 1
    %p166 = scmp.eq.s32.totalorder %s23, 3
    %p167 = scmp.ne.s32.totalorder %s162, %s164
    %p168 = scmp.eq.s32.totalorder %s23, 0
    %p169 = por %p167, %p168
    %p170 = scmp.ne.s32.totalorder %s162, %s164
    %p171 = scmp.eq.s32.totalorder %s28, 3
    %p172 = por %p170, %p171
    %p173 = scmp.ne.s32.totalorder %s164, %s165
    %p174 = scmp.eq.s32.totalorder %s28, 0
    %p175 = por %p173, %p174
    %p176 = scmp.ne.s32.totalorder %s164, %s165
    %p177 = scmp.eq.s32.totalorder %s29, 3
    %p178 = por %p176, %p177
    %p180 = scmp.ne.s32.totalorder %s165, %s179
    %p181 = scmp.eq.s32.totalorder %s29, 0
    %p182 = por %p180, %p181
    %s184 = sadd.s32 %s183, 1
    %p187 = scmp.eq.s32.totalorder %s23, 3
    %p188 = scmp.ne.s32.totalorder %s183, %s185
    %p189 = scmp.eq.s32.totalorder %s23, 0
    %p190 = por %p188, %p189
    %p191 = scmp.ne.s32.totalorder %s183, %s185
    %p192 = scmp.eq.s32.totalorder %s28, 3
    %p193 = por %p191, %p192
    %p194 = scmp.ne.s32.totalorder %s185, %s186
    %p195 = scmp.eq.s32.totalorder %s28, 0
    %p196 = por %p194, %p195
    %p197 = scmp.ne.s32.totalorder %s185, %s186
    %p198 = scmp.eq.s32.totalorder %s29, 3
    %p199 = por %p197, %p198
    %p201 = scmp.ne.s32.totalorder %s186, %s200
    %p202 = scmp.eq.s32.totalorder %s29, 0
    %p203 = por %p201, %p202
    %s205 = sadd.s32 %s204, 1
    %p208 = scmp.eq.s32.totalorder %s23, 3
    %p209 = scmp.ne.s32.totalorder %s204, %s206
    %p210 = scmp.eq.s32.totalorder %s23, 0
    %p211 = por %p209, %p210
    %p212 = scmp.ne.s32.totalorder %s204, %s206
    %p213 = scmp.eq.s32.totalorder %s28, 3
    %p214 = por %p212, %p213
    %p215 = scmp.ne.s32.totalorder %s206, %s207
    %p216 = scmp.eq.s32.totalorder %s28, 0
    %p217 = por %p215, %p216
    %p218 = scmp.ne.s32.totalorder %s206, %s207
    %p219 = scmp.eq.s32.totalorder %s29, 3
    %p220 = por %p218, %p219
    %p222 = scmp.ne.s32.totalorder %s207, %s221
    %p223 = scmp.eq.s32.totalorder %s29, 0
    %p224 = por %p222, %p223
    %s226 = sadd.s32 %s225, 1
    %p229 = scmp.eq.s32.totalorder %s23, 3
    %p230 = scmp.ne.s32.totalorder %s225, %s227
    %p231 = scmp.eq.s32.totalorder %s23, 0
    %p232 = por %p230, %p231
    %p233 = scmp.ne.s32.totalorder %s225, %s227
    %p234 = scmp.eq.s32.totalorder %s28, 3
    %p235 = por %p233, %p234
    %p236 = scmp.ne.s32.totalorder %s227, %s228
    %p237 = scmp.eq.s32.totalorder %s28, 0
    %p238 = por %p236, %p237
    %p239 = scmp.ne.s32.totalorder %s227, %s228
    %p240 = scmp.eq.s32.totalorder %s29, 3
    %p241 = por %p239, %p240
    %p243 = scmp.ne.s32.totalorder %s228, %s242
    %p244 = scmp.eq.s32.totalorder %s29, 0
    %p245 = por %p243, %p244
    %s247 = sadd.s32 %s246, 1
    %p250 = scmp.eq.s32.totalorder %s23, 3
    %p251 = scmp.ne.s32.totalorder %s246, %s248
    %p252 = scmp.eq.s32.totalorder %s23, 0
    %p253 = por %p251, %p252
    %p254 = scmp.ne.s32.totalorder %s246, %s248
    %p255 = scmp.eq.s32.totalorder %s28, 3
    %p256 = por %p254, %p255
    %p257 = scmp.ne.s32.totalorder %s248, %s249
    %p258 = scmp.eq.s32.totalorder %s28, 0
    %p259 = por %p257, %p258
    %p260 = scmp.ne.s32.totalorder %s248, %s249
    %p261 = scmp.eq.s32.totalorder %s29, 3
    %p262 = por %p260, %p261
    %p264 = scmp.ne.s32.totalorder %s249, %s263
    %p265 = scmp.eq.s32.totalorder %s29, 0
    %p266 = por %p264, %p265
    %s268 = sadd.s32 %s267, 1
    %p271 = scmp.eq.s32.totalorder %s23, 3
    %p272 = scmp.ne.s32.totalorder %s267, %s269
    %p273 = scmp.eq.s32.totalorder %s23, 0
    %p274 = por %p272, %p273
    %p275 = scmp.ne.s32.totalorder %s267, %s269
    %p276 = scmp.eq.s32.totalorder %s28, 3
    %p277 = por %p275, %p276
    %p278 = scmp.ne.s32.totalorder %s269, %s270
    %p279 = scmp.eq.s32.totalorder %s28, 0
    %p280 = por %p278, %p279
    %p281 = scmp.ne.s32.totalorder %s269, %s270
    %p282 = scmp.eq.s32.totalorder %s29, 3
    %p283 = por %p281, %p282
    %p285 = scmp.ne.s32.totalorder %s270, %s284
    %p286 = scmp.eq.s32.totalorder %s29, 0
    %p287 = por %p285, %p286
    %s289 = sadd.s32 %s288, 1
    %p292 = scmp.eq.s32.totalorder %s23, 3
    %p293 = scmp.ne.s32.totalorder %s288, %s290
    %p294 = scmp.eq.s32.totalorder %s23, 0
    %p295 = por %p293, %p294
    %p296 = scmp.ne.s32.totalorder %s288, %s290
    %p297 = scmp.eq.s32.totalorder %s28, 3
    %p298 = por %p296, %p297
    %p299 = scmp.ne.s32.totalorder %s290, %s291
    %p300 = scmp.eq.s32.totalorder %s28, 0
    %p301 = por %p299, %p300
    %p302 = scmp.ne.s32.totalorder %s290, %s291
    %p303 = scmp.eq.s32.totalorder %s29, 3
    %p304 = por %p302, %p303
    %p306 = scmp.ne.s32.totalorder %s291, %s305
    %p307 = scmp.eq.s32.totalorder %s29, 0
    %p308 = por %p306, %p307
    %s310 = sadd.s32 %s309, 1
    %p313 = scmp.eq.s32.totalorder %s23, 3
    %p314 = scmp.ne.s32.totalorder %s309, %s311
    %p315 = scmp.eq.s32.totalorder %s23, 0
    %p316 = por %p314, %p315
    %p317 = scmp.ne.s32.totalorder %s309, %s311
    %p318 = scmp.eq.s32.totalorder %s28, 3
    %p319 = por %p317, %p318
    %p320 = scmp.ne.s32.totalorder %s311, %s312
    %p321 = scmp.eq.s32.totalorder %s28, 0
    %p322 = por %p320, %p321
    %p323 = scmp.ne.s32.totalorder %s311, %s312
    %p324 = scmp.eq.s32.totalorder %s29, 3
    %p325 = por %p323, %p324
    %p327 = scmp.ne.s32.totalorder %s312, %s326
    %p328 = scmp.eq.s32.totalorder %s29, 0
    %p329 = por %p327, %p328
    %s331 = sadd.s32 %s330, 1
    %p334 = scmp.eq.s32.totalorder %s23, 3
    %p335 = scmp.ne.s32.totalorder %s330, %s332
    %p336 = scmp.eq.s32.totalorder %s23, 0
    %p337 = por %p335, %p336
    %p338 = scmp.ne.s32.totalorder %s330, %s332
    %p339 = scmp.eq.s32.totalorder %s28, 3
    %p340 = por %p338, %p339
    %p341 = scmp.ne.s32.totalorder %s332, %s333
    %p342 = scmp.eq.s32.totalorder %s28, 0
    %p343 = por %p341, %p342
    %p344 = scmp.ne.s32.totalorder %s332, %s333
    %p345 = scmp.eq.s32.totalorder %s29, 3
    %p346 = por %p344, %p345
    %p348 = scmp.ne.s32.totalorder %s333, %s347
    %p349 = scmp.eq.s32.totalorder %s29, 0
    %p350 = por %p348, %p349
    %s352 = sadd.s32 %s351, 1
    %p355 = scmp.eq.s32.totalorder %s23, 3
    %p356 = scmp.ne.s32.totalorder %s351, %s353
    %p357 = scmp.eq.s32.totalorder %s23, 0
    %p358 = por %p356, %p357
    %p359 = scmp.ne.s32.totalorder %s351, %s353
    %p360 = scmp.eq.s32.totalorder %s28, 3
    %p361 = por %p359, %p360
    %p362 = scmp.ne.s32.totalorder %s353, %s354
    %p363 = scmp.eq.s32.totalorder %s28, 0
    %p364 = por %p362, %p363
    %p365 = scmp.ne.s32.totalorder %s353, %s354
    %p366 = scmp.eq.s32.totalorder %s29, 3
    %p367 = por %p365, %p366
    %p369 = scmp.ne.s32.totalorder %s354, %s368
    %p370 = scmp.eq.s32.totalorder %s29, 0
    %p371 = por %p369, %p370
    %s373 = sadd.s32 %s372, 1
    %p376 = scmp.eq.s32.totalorder %s23, 3
    %p377 = scmp.ne.s32.totalorder %s372, %s374
    %p378 = scmp.eq.s32.totalorder %s23, 0
    %p379 = por %p377, %p378
    %p380 = scmp.ne.s32.totalorder %s372, %s374
    %p381 = scmp.eq.s32.totalorder %s28, 3
    %p382 = por %p380, %p381
    %p383 = scmp.ne.s32.totalorder %s374, %s375
    %p384 = scmp.eq.s32.totalorder %s28, 0
    %p385 = por %p383, %p384
    %p386 = scmp.ne.s32.totalorder %s374, %s375
    %p387 = scmp.eq.s32.totalorder %s29, 3
    %p388 = por %p386, %p387
    %p390 = scmp.ne.s32.totalorder %s375, %s389
    %p391 = scmp.eq.s32.totalorder %s29, 0
    %p392 = por %p390, %p391
    %s393 = ssub.s32 %s23, %s30
    %p394 = scmp.eq.s32.totalorder %s393, 0
    %s396 = sadd.s32 %s395, 1
    %s397 = scalar_select %p394, %s395, %s396
    %p400 = pneg %p394
    %p401 = scmp.eq.s32.totalorder %s23, 3
    %p402 = por %p400, %p401
    %p403 = scmp.ne.s32.totalorder %s395, %s398
    %p404 = scmp.eq.s32.totalorder %s23, 0
    %p405 = por %p403, %p404
    %p406 = scmp.ne.s32.totalorder %s395, %s398
    %p407 = scmp.eq.s32.totalorder %s28, 3
    %p408 = por %p406, %p407
    %p409 = scmp.ne.s32.totalorder %s398, %s399
    %p410 = scmp.eq.s32.totalorder %s28, 0
    %p411 = por %p409, %p410
    %p412 = scmp.ne.s32.totalorder %s398, %s399
    %p413 = scmp.eq.s32.totalorder %s29, 3
    %p414 = por %p412, %p413
    %p416 = scmp.ne.s32.totalorder %s399, %s415
    %p417 = scmp.eq.s32.totalorder %s29, 0
    %p418 = por %p416, %p417
    %p419 = scmp.le.s32.totalorder 1, %s23
    %p420 = scmp.lt.s32.totalorder %s23, 5
    %p421 = pnand %p419, %p420
    %p422 = pneg %p421
    // Predicated region
    $region9: #{_lambda_.1} parent=5 // pred_check
      _
    $region10: #{_lambda_.1} parent=5 // pred_check_branch
      %424 = sbr.rel (%p421) target = $region12
    $region11: #{_lambda_.1} parent=5 // pred_region
      %s425 = ssub.s32 %s23, 1
      // Predicated region
      $region13: #{_lambda_.1} parent=11 // pred_check
        %p426 = pneg %p70
      $region14: #{_lambda_.1} parent=11 // pred_check_branch
        %428 = sbr.rel (%p426) target = $region16
      $region15: #{_lambda_.1} parent=11 // pred_region
        _
      $region16: #{_lambda_.1} parent=11 // pred_fallthru
        _
      // Predicated region
      $region17: #{_lambda_.1} parent=11 // pred_check
        %p429 = pneg %p91
      $region18: #{_lambda_.1} parent=11 // pred_check_branch
        %431 = sbr.rel (%p429) target = $region20
      $region19: #{_lambda_.1} parent=11 // pred_region
        _
      $region20: #{_lambda_.1} parent=11 // pred_fallthru
        _
      // Predicated region
      $region21: #{_lambda_.1} parent=11 // pred_check
        %p432 = pneg %p112
      $region22: #{_lambda_.1} parent=11 // pred_check_branch
        %434 = sbr.rel (%p432) target = $region24
      $region23: #{_lambda_.1} parent=11 // pred_region
        _
      $region24: #{_lambda_.1} parent=11 // pred_fallthru
        _
      // Predicated region
      $region25: #{_lambda_.1} parent=11 // pred_check
        %p435 = pneg %p133
      $region26: #{_lambda_.1} parent=11 // pred_check_branch
        %437 = sbr.rel (%p435) target = $region28
      $region27: #{_lambda_.1} parent=11 // pred_region
        _
      $region28: #{_lambda_.1} parent=11 // pred_fallthru
        _
      // Predicated region
      $region29: #{_lambda_.1} parent=11 // pred_check
        %p438 = pneg %p154
      $region30: #{_lambda_.1} parent=11 // pred_check_branch
        %440 = sbr.rel (%p438) target = $region32
      $region31: #{_lambda_.1} parent=11 // pred_region
        _
      $region32: #{_lambda_.1} parent=11 // pred_fallthru
        _
      // Predicated region
      $region33: #{_lambda_.1} parent=11 // pred_check
        %p441 = pneg %p175
      $region34: #{_lambda_.1} parent=11 // pred_check_branch
        %443 = sbr.rel (%p441) target = $region36
      $region35: #{_lambda_.1} parent=11 // pred_region
        _
      $region36: #{_lambda_.1} parent=11 // pred_fallthru
        _
      // Predicated region
      $region37: #{_lambda_.1} parent=11 // pred_check
        %p444 = pneg %p196
      $region38: #{_lambda_.1} parent=11 // pred_check_branch
        %446 = sbr.rel (%p444) target = $region40
      $region39: #{_lambda_.1} parent=11 // pred_region
        _
      $region40: #{_lambda_.1} parent=11 // pred_fallthru
        _
      // Predicated region
      $region41: #{_lambda_.1} parent=11 // pred_check
        %p447 = pneg %p217
      $region42: #{_lambda_.1} parent=11 // pred_check_branch
        %449 = sbr.rel (%p447) target = $region44
      $region43: #{_lambda_.1} parent=11 // pred_region
        _
      $region44: #{_lambda_.1} parent=11 // pred_fallthru
        _
      // Predicated region
      $region45: #{_lambda_.1} parent=11 // pred_check
        %p450 = pneg %p238
      $region46: #{_lambda_.1} parent=11 // pred_check_branch
        %452 = sbr.rel (%p450) target = $region48
      $region47: #{_lambda_.1} parent=11 // pred_region
        _
      $region48: #{_lambda_.1} parent=11 // pred_fallthru
        _
      // Predicated region
      $region49: #{_lambda_.1} parent=11 // pred_check
        %p453 = pneg %p259
      $region50: #{_lambda_.1} parent=11 // pred_check_branch
        %455 = sbr.rel (%p453) target = $region52
      $region51: #{_lambda_.1} parent=11 // pred_region
        _
      $region52: #{_lambda_.1} parent=11 // pred_fallthru
        _
      // Predicated region
      $region53: #{_lambda_.1} parent=11 // pred_check
        %p456 = pneg %p280
      $region54: #{_lambda_.1} parent=11 // pred_check_branch
        %458 = sbr.rel (%p456) target = $region56
      $region55: #{_lambda_.1} parent=11 // pred_region
        _
      $region56: #{_lambda_.1} parent=11 // pred_fallthru
        _
      // Predicated region
      $region57: #{_lambda_.1} parent=11 // pred_check
        %p459 = pneg %p301
      $region58: #{_lambda_.1} parent=11 // pred_check_branch
        %461 = sbr.rel (%p459) target = $region60
      $region59: #{_lambda_.1} parent=11 // pred_region
        _
      $region60: #{_lambda_.1} parent=11 // pred_fallthru
        _
      // Predicated region
      $region61: #{_lambda_.1} parent=11 // pred_check
        %p462 = pneg %p322
      $region62: #{_lambda_.1} parent=11 // pred_check_branch
        %464 = sbr.rel (%p462) target = $region64
      $region63: #{_lambda_.1} parent=11 // pred_region
        _
      $region64: #{_lambda_.1} parent=11 // pred_fallthru
        _
      // Predicated region
      $region65: #{_lambda_.1} parent=11 // pred_check
        %p465 = pneg %p343
      $region66: #{_lambda_.1} parent=11 // pred_check_branch
        %467 = sbr.rel (%p465) target = $region68
      $region67: #{_lambda_.1} parent=11 // pred_region
        _
      $region68: #{_lambda_.1} parent=11 // pred_fallthru
        _
      // Predicated region
      $region69: #{_lambda_.1} parent=11 // pred_check
        %p468 = pneg %p364
      $region70: #{_lambda_.1} parent=11 // pred_check_branch
        %470 = sbr.rel (%p468) target = $region72
      $region71: #{_lambda_.1} parent=11 // pred_region
        _
      $region72: #{_lambda_.1} parent=11 // pred_fallthru
        _
      // Predicated region
      $region73: #{_lambda_.1} parent=11 // pred_check
        %p471 = pneg %p385
      $region74: #{_lambda_.1} parent=11 // pred_check_branch
        %473 = sbr.rel (%p471) target = $region76
      $region75: #{_lambda_.1} parent=11 // pred_region
        _
      $region76: #{_lambda_.1} parent=11 // pred_fallthru
        _
    $region12: #{_lambda_.1} parent=5 // pred_fallthru
      _
    %p474 = scmp.lt.s32.totalorder %s23, 4
    // Predicated region
    $region77: #{_lambda_.1} parent=5 // pred_check
      %p475 = pneg %p474
    $region78: #{_lambda_.1} parent=5 // pred_check_branch
      %477 = sbr.rel (%p475) target = $region80
    $region79: #{_lambda_.1} parent=5 // pred_region
      // Predicated region
      $region81: #{_lambda_.1} parent=79 // pred_check
        %p478 = pneg %p43
      $region82: #{_lambda_.1} parent=79 // pred_check_branch
        %480 = sbr.rel (%p478) target = $region84
      $region83: #{_lambda_.1} parent=79 // pred_region
        %p481 = scmp.lt.s32.totalorder %s23, 3
        %s482 = scalar_select %p481, %s23, 3
        %s483 = smul.addr %s482, 8
        %s484 = smul.addr %s483, 4
        %s485 = scalar_lea.vmem %s0, %s484
      $region84: #{_lambda_.1} parent=79 // pred_fallthru
        _
    $region80: #{_lambda_.1} parent=5 // pred_fallthru
      _
    %p486 = scmp.le.s32.totalorder 1, %s23
    %p487 = scmp.lt.s32.totalorder %s23, 5
    %p488 = pnand %p486, %p487
    %p489 = pneg %p488
    // Predicated region
    $region85: #{_lambda_.1} parent=5 // pred_check
      _
    $region86: #{_lambda_.1} parent=5 // pred_check_branch
      %491 = sbr.rel (%p488) target = $region88
    $region87: #{_lambda_.1} parent=5 // pred_region
      %s492 = ssub.s32 %s23, 1
      %p493 = scmp.lt.s32.totalorder %s28, 3
      %s494 = scalar_select %p493, %s28, 3
      %s495 = smul.addr %s494, 8
      %s496 = smul.addr %s495, 4
      %s497 = scalar_lea.vmem %s0, %s496
      %p498 = pneg %p49
      %p499 = pneg %p46
      %p500 = pneg %p70
      %p501 = pneg %p67
      %p502 = pneg %p91
      %p503 = pneg %p88
      %p504 = pneg %p112
      %p505 = pneg %p109
      %p506 = pneg %p133
      %p507 = pneg %p130
      %p508 = pneg %p154
      %p509 = pneg %p151
      %p510 = pneg %p175
      %p511 = pneg %p172
      %p512 = pneg %p196
      %p513 = pneg %p193
      %p514 = pneg %p217
      %p515 = pneg %p214
      %p516 = pneg %p238
      %p517 = pneg %p235
      %p518 = pneg %p259
      %p519 = pneg %p256
      %p520 = pneg %p280
      %p521 = pneg %p277
      %p522 = pneg %p301
      %p523 = pneg %p298
      %p524 = pneg %p322
      %p525 = pneg %p319
      %p526 = pneg %p343
      %p527 = pneg %p340
      %p528 = pneg %p364
      %p529 = pneg %p361
      %p530 = pneg %p385
      %p531 = pneg %p382
      %p532 = pneg %p411
      %p533 = pneg %p408
      %p534 = scmp.lt.s32.totalorder %s28, 3
      %s535 = scalar_select %p534, %s28, 3
      %s536 = smul.addr %s535, 2
      %s537 = smul.addr %s536, 8
      %s538 = scalar_lea.vmem %s17, %s537
      %p539 = scmp.lt.s32.totalorder %s28, 3
      %s540 = scalar_select %p539, %s28, 3
      %s541 = smul.addr %s540, 8
      %s542 = smul.addr %s541, 4
      %s543 = scalar_lea.vmem %s0, %s542
      %p544 = scmp.lt.s32.totalorder %s28, 3
      %s545 = scalar_select %p544, %s28, 3
      %s546 = smul.addr %s545, 2
      %s547 = smul.addr %s546, 8
      %s548 = scalar_lea.vmem %s17, %s547
      %v550 = vld [vmem:[%s543] sm:$0xf]
      %v551 = vld [vmem:[%s543 + $0x4] sm:$0xf]
      %v552 = vld [vmem:[%s543 + $0x8] sm:$0xf]
      %v553 = vld [vmem:[%s543 + $0xc] sm:$0xf]
      %v554 = vld [vmem:[%s543 + $0x10] sm:$0xf]
      %v555 = vld [vmem:[%s543 + $0x14] sm:$0xf]
      %v556 = vld [vmem:[%s543 + $0x18] sm:$0xf]
      %v557 = vld [vmem:[%s543 + $0x1c] sm:$0xf]
      %v558 = vld [vmem:[%s1] sm:$0xf]
      %v559 = vld [vmem:[%s1 + $0x4] sm:$0xf]
      %v560 = vld [vmem:[%s2] sm:$0x1]
      %v562 = vlaneseq
      %v563 = vshrl.u32 %v562, 7
      %v564 = vsub.s32 0, %v563
      %v565 = vrot.slane %v560, %v564
      %v575 = vunpack.c.l.b16 %v550
      %v576 = vunpack.c.l.b16 %v551
      %v577 = vunpack.c.l.b16 %v552
      %v578 = vunpack.c.l.b16 %v553
      %v579 = vunpack.c.l.b16 %v554
      %v580 = vunpack.c.l.b16 %v555
      %v581 = vunpack.c.l.b16 %v556
      %v582 = vunpack.c.l.b16 %v557
      %v583 = vpack.c.b16 %v576, %v575
      %v584 = vpack.c.b16 %v578, %v577
      %v585 = vpack.c.b16 %v580, %v579
      %v586 = vpack.c.b16 %v582, %v581
      %v589 = vunpack.c.l.b16 %v558
      %v590 = vunpack.c.l.b16 %v559
      %v591 = vpack.c.b16 %v590, %v589
      %vm593 = vcmask 130048
      %v595 = vsel %vm593, %v583, 0
      %v598 = vsel %vm593, %v584, 0
      %v601 = vsel %vm593, %v585, 0
      %v604 = vsel %vm593, %v586, 0
      %606 = vmatprep.subr.bf16.mxu0 0
      %607 = vmatpush1.bf16.msra.mxu0 0
      %608 = vmatprep.subr.bf16.mxu0 0
      %609 = vmatpush1.bf16.msra.mxu0 0
      %610 = vmatprep.subr.bf16.mxu0 0
      %611 = vmatpush1.bf16.msra.mxu0 0
      %612 = vmatprep.subr.bf16.mxu0 0
      %613 = vmatpush1.bf16.msra.mxu0 0
      %614 = vmatprep.subr.bf16.mxu0 0
      %615 = vmatpush1.bf16.msra.mxu0 0
      %616 = vmatprep.subr.bf16.mxu0 0
      %617 = vmatpush1.bf16.msra.mxu0 0
      %618 = vmatprep.subr.bf16.mxu0 0
      %619 = vmatpush1.bf16.msra.mxu0 0
      %620 = vmatprep.subr.bf16.mxu0 0
      %621 = vmatpush1.bf16.msra.mxu0 %v591
      %622 = vmatprep.subr.bf16.mxu0 0
      %623 = vmatpush2.bf16.msra.mxu0 0
      %624 = vmatprep.subr.bf16.mxu0 0
      %625 = vmatpush2.bf16.msra.mxu0 0
      %626 = vmatprep.subr.bf16.mxu0 0
      %627 = vmatpush2.bf16.msra.mxu0 0
      %628 = vmatprep.subr.bf16.mxu0 0
      %629 = vmatpush2.bf16.msra.mxu0 0
      %630 = vmatprep.subr.bf16.mxu0 0
      %631 = vmatpush2.bf16.msra.mxu0 0
      %632 = vmatprep.subr.bf16.mxu0 0
      %633 = vmatpush2.bf16.msra.mxu0 0
      %634 = vmatprep.subr.bf16.mxu0 0
      %635 = vmatpush2.bf16.msra.mxu0 0
      %636 = vmatprep.subr.bf16.mxu0 0
      %637 = vmatpush2.bf16.msra.mxu0 0
      %638 = vmatprep.mubr.bf16.mxu0 0
      %639 = vmatmul.mubr.bf16.gmra.mxu0 %v595
      %v640 = vpop.f32.mrf.mxu0
      %v641 = vadd.f32 %v565, %v640
      %v642 = vpop.f32.mrf.mxu0
      %v643 = vpop.f32.mrf.mxu0
      %v644 = vadd.f32 %v565, %v643
      %v645 = vpop.f32.mrf.mxu0
      %646 = vmatprep.mubr.bf16.mxu0 0
      %647 = vmatmul.mubr.bf16.gmra.mxu0 %v598
      %v648 = vpop.f32.mrf.mxu0
      %v649 = vadd.f32 %v565, %v648
      %v650 = vpop.f32.mrf.mxu0
      %v651 = vpop.f32.mrf.mxu0
      %v652 = vadd.f32 %v565, %v651
      %v653 = vpop.f32.mrf.mxu0
      %654 = vmatprep.mubr.bf16.mxu0 0
      %655 = vmatmul.mubr.bf16.gmra.mxu0 %v601
      %v656 = vpop.f32.mrf.mxu0
      %v657 = vadd.f32 %v565, %v656
      %v658 = vpop.f32.mrf.mxu0
      %v659 = vpop.f32.mrf.mxu0
      %v660 = vadd.f32 %v565, %v659
      %v661 = vpop.f32.mrf.mxu0
      %662 = vmatprep.mubr.bf16.mxu0 0
      %663 = vmatmul.mubr.bf16.gmra.mxu0 %v604
      %v664 = vpop.f32.mrf.mxu0
      %v665 = vadd.f32 %v565, %v664
      %v666 = vpop.f32.mrf.mxu0
      %v667 = vpop.f32.mrf.mxu0
      %v668 = vadd.f32 %v565, %v667
      %v669 = vpop.f32.mrf.mxu0
      %670 = vdwg.mxu0
      %v671 = vmax.f32 %v641, 0.0
      %v672 = vmax.f32 %v644, 0.0
      %v673 = vmax.f32 %v649, 0.0
      %v674 = vmax.f32 %v652, 0.0
      %v675 = vmax.f32 %v657, 0.0
      %v676 = vmax.f32 %v660, 0.0
      %v677 = vmax.f32 %v665, 0.0
      %v678 = vmax.f32 %v668, 0.0
      %v679 = vld [vmem:[%s3] sm:$0xf]
      %v680 = vld [vmem:[%s3 + $0x4] sm:$0xf]
      %v681 = vld [vmem:[%s3 + $0x8] sm:$0xf]
      %v682 = vld [vmem:[%s3 + $0xc] sm:$0xf]
      %v683 = vld [vmem:[%s3 + $0x10] sm:$0xf]
      %v684 = vld [vmem:[%s3 + $0x14] sm:$0xf]
      %v685 = vld [vmem:[%s3 + $0x18] sm:$0xf]
      %v686 = vld [vmem:[%s3 + $0x1c] sm:$0xf]
      %v687 = vld [vmem:[%s3 + $0x20] sm:$0xf]
      %v688 = vld [vmem:[%s3 + $0x24] sm:$0xf]
      %v689 = vld [vmem:[%s3 + $0x28] sm:$0xf]
      %v690 = vld [vmem:[%s3 + $0x2c] sm:$0xf]
      %v691 = vld [vmem:[%s3 + $0x30] sm:$0xf]
      %v692 = vld [vmem:[%s3 + $0x34] sm:$0xf]
      %v693 = vld [vmem:[%s3 + $0x38] sm:$0xf]
      %v694 = vld [vmem:[%s3 + $0x3c] sm:$0xf]
      %v695 = vld [vmem:[%s3 + $0x40] sm:$0xf]
      %v696 = vld [vmem:[%s3 + $0x44] sm:$0xf]
      %v697 = vld [vmem:[%s3 + $0x48] sm:$0xf]
      %v698 = vld [vmem:[%s3 + $0x4c] sm:$0xf]
      %v699 = vld [vmem:[%s3 + $0x50] sm:$0xf]
      %v700 = vld [vmem:[%s3 + $0x54] sm:$0xf]
      %v701 = vld [vmem:[%s3 + $0x58] sm:$0xf]
      %v702 = vld [vmem:[%s3 + $0x5c] sm:$0xf]
      %v703 = vld [vmem:[%s3 + $0x60] sm:$0xf]
      %v704 = vld [vmem:[%s3 + $0x64] sm:$0xf]
      %v705 = vld [vmem:[%s3 + $0x68] sm:$0xf]
      %v706 = vld [vmem:[%s3 + $0x6c] sm:$0xf]
      %v707 = vld [vmem:[%s3 + $0x70] sm:$0xf]
      %v708 = vld [vmem:[%s3 + $0x74] sm:$0xf]
      %v709 = vld [vmem:[%s3 + $0x78] sm:$0xf]
      %v710 = vld [vmem:[%s3 + $0x7c] sm:$0xf]
      %v711 = vpack.c.bf16 %v672, %v671
      %v712 = vpack.c.bf16 %v674, %v673
      %v713 = vpack.c.bf16 %v676, %v675
      %v714 = vpack.c.bf16 %v678, %v677
      %v747 = vunpack.c.l.b16 %v679
      %v748 = vunpack.c.l.b16 %v680
      %v749 = vunpack.c.l.b16 %v681
      %v750 = vunpack.c.l.b16 %v682
      %v751 = vunpack.c.l.b16 %v683
      %v752 = vunpack.c.l.b16 %v684
      %v753 = vunpack.c.l.b16 %v685
      %v754 = vunpack.c.l.b16 %v686
      %v755 = vunpack.c.l.b16 %v687
      %v756 = vunpack.c.l.b16 %v688
      %v757 = vunpack.c.l.b16 %v689
      %v758 = vunpack.c.l.b16 %v690
      %v759 = vunpack.c.l.b16 %v691
      %v760 = vunpack.c.l.b16 %v692
      %v761 = vunpack.c.l.b16 %v693
      %v762 = vunpack.c.l.b16 %v694
      %v763 = vunpack.c.l.b16 %v695
      %v764 = vunpack.c.l.b16 %v696
      %v765 = vunpack.c.l.b16 %v697
      %v766 = vunpack.c.l.b16 %v698
      %v767 = vunpack.c.l.b16 %v699
      %v768 = vunpack.c.l.b16 %v700
      %v769 = vunpack.c.l.b16 %v701
      %v770 = vunpack.c.l.b16 %v702
      %v771 = vunpack.c.l.b16 %v703
      %v772 = vunpack.c.l.b16 %v704
      %v773 = vunpack.c.l.b16 %v705
      %v774 = vunpack.c.l.b16 %v706
      %v775 = vunpack.c.l.b16 %v707
      %v776 = vunpack.c.l.b16 %v708
      %v777 = vunpack.c.l.b16 %v709
      %v778 = vunpack.c.l.b16 %v710
      %v779 = vpack.c.b16 %v748, %v747
      %v780 = vpack.c.b16 %v750, %v749
      %v781 = vpack.c.b16 %v752, %v751
      %v782 = vpack.c.b16 %v754, %v753
      %v783 = vpack.c.b16 %v756, %v755
      %v784 = vpack.c.b16 %v758, %v757
      %v785 = vpack.c.b16 %v760, %v759
      %v786 = vpack.c.b16 %v762, %v761
      %v787 = vpack.c.b16 %v764, %v763
      %v788 = vpack.c.b16 %v766, %v765
      %v789 = vpack.c.b16 %v768, %v767
      %v790 = vpack.c.b16 %v770, %v769
      %v791 = vpack.c.b16 %v772, %v771
      %v792 = vpack.c.b16 %v774, %v773
      %v793 = vpack.c.b16 %v776, %v775
      %v794 = vpack.c.b16 %v778, %v777
      %vm795 = vcmask 523264
      %v797 = vsel %vm795, %v779, 0
      %v800 = vsel %vm795, %v780, 0
      %v803 = vsel %vm795, %v781, 0
      %v806 = vsel %vm795, %v782, 0
      %v809 = vsel %vm795, %v783, 0
      %v812 = vsel %vm795, %v784, 0
      %v815 = vsel %vm795, %v785, 0
      %v818 = vsel %vm795, %v786, 0
      %v821 = vsel %vm795, %v787, 0
      %v824 = vsel %vm795, %v788, 0
      %v827 = vsel %vm795, %v789, 0
      %v830 = vsel %vm795, %v790, 0
      %v833 = vsel %vm795, %v791, 0
      %v836 = vsel %vm795, %v792, 0
      %v839 = vsel %vm795, %v793, 0
      %v842 = vsel %vm795, %v794, 0
      %844 = vmatprep.subr.bf16.mxu0 0
      %845 = vmatpush1.bf16.msra.mxu0 0
      %846 = vmatprep.subr.bf16.mxu0 0
      %847 = vmatpush1.bf16.msra.mxu0 0
      %848 = vmatprep.subr.bf16.mxu0 0
      %849 = vmatpush1.bf16.msra.mxu0 0
      %850 = vmatprep.subr.bf16.mxu0 0
      %851 = vmatpush1.bf16.msra.mxu0 0
      %852 = vmatprep.subr.bf16.mxu0 0
      %853 = vmatpush1.bf16.msra.mxu0 %v714
      %854 = vmatprep.subr.bf16.mxu0 0
      %855 = vmatpush1.bf16.msra.mxu0 %v713
      %856 = vmatprep.subr.bf16.mxu0 0
      %857 = vmatpush1.bf16.msra.mxu0 %v712
      %858 = vmatprep.subr.bf16.mxu0 0
      %859 = vmatpush1.bf16.msra.mxu0 %v711
      %860 = vmatprep.subr.bf16.mxu0 0
      %861 = vmatpush2.bf16.msra.mxu0 0
      %862 = vmatprep.subr.bf16.mxu0 0
      %863 = vmatpush2.bf16.msra.mxu0 0
      %864 = vmatprep.subr.bf16.mxu0 0
      %865 = vmatpush2.bf16.msra.mxu0 0
      %866 = vmatprep.subr.bf16.mxu0 0
      %867 = vmatpush2.bf16.msra.mxu0 0
      %868 = vmatprep.subr.bf16.mxu0 0
      %869 = vmatpush2.bf16.msra.mxu0 0
      %870 = vmatprep.subr.bf16.mxu0 0
      %871 = vmatpush2.bf16.msra.mxu0 0
      %872 = vmatprep.subr.bf16.mxu0 0
      %873 = vmatpush2.bf16.msra.mxu0 0
      %874 = vmatprep.subr.bf16.mxu0 0
      %875 = vmatpush2.bf16.msra.mxu0 0
      %876 = vmatprep.mubr.bf16.mxu0 0
      %877 = vmatmul.mubr.bf16.gmra.mxu0 %v797
      %v878 = vpop.f32.mrf.mxu0
      %v879 = vadd.f32 0.0, %v878
      %v880 = vpop.f32.mrf.mxu0
      %v881 = vpop.f32.mrf.mxu0
      %v882 = vadd.f32 0.0, %v881
      %v883 = vpop.f32.mrf.mxu0
      %884 = vmatprep.mubr.bf16.mxu0 0
      %885 = vmatmul.mubr.bf16.gmra.mxu0 %v800
      %v886 = vpop.f32.mrf.mxu0
      %v887 = vadd.f32 0.0, %v886
      %v888 = vpop.f32.mrf.mxu0
      %v889 = vpop.f32.mrf.mxu0
      %v890 = vadd.f32 0.0, %v889
      %v891 = vpop.f32.mrf.mxu0
      %892 = vmatprep.mubr.bf16.mxu0 0
      %893 = vmatmul.mubr.bf16.gmra.mxu0 %v803
      %v894 = vpop.f32.mrf.mxu0
      %v895 = vadd.f32 0.0, %v894
      %v896 = vpop.f32.mrf.mxu0
      %v897 = vpop.f32.mrf.mxu0
      %v898 = vadd.f32 0.0, %v897
      %v899 = vpop.f32.mrf.mxu0
      %900 = vmatprep.mubr.bf16.mxu0 0
      %901 = vmatmul.mubr.bf16.gmra.mxu0 %v806
      %v902 = vpop.f32.mrf.mxu0
      %v903 = vadd.f32 0.0, %v902
      %v904 = vpop.f32.mrf.mxu0
      %v905 = vpop.f32.mrf.mxu0
      %v906 = vadd.f32 0.0, %v905
      %v907 = vpop.f32.mrf.mxu0
      %908 = vmatprep.mubr.bf16.mxu0 0
      %909 = vmatmul.mubr.bf16.gmra.mxu0 %v809
      %v910 = vpop.f32.mrf.mxu0
      %v911 = vadd.f32 0.0, %v910
      %v912 = vpop.f32.mrf.mxu0
      %v913 = vpop.f32.mrf.mxu0
      %v914 = vadd.f32 0.0, %v913
      %v915 = vpop.f32.mrf.mxu0
      %916 = vmatprep.mubr.bf16.mxu0 0
      %917 = vmatmul.mubr.bf16.gmra.mxu0 %v812
      %v918 = vpop.f32.mrf.mxu0
      %v919 = vadd.f32 0.0, %v918
      %v920 = vpop.f32.mrf.mxu0
      %v921 = vpop.f32.mrf.mxu0
      %v922 = vadd.f32 0.0, %v921
      %v923 = vpop.f32.mrf.mxu0
      %924 = vmatprep.mubr.bf16.mxu0 0
      %925 = vmatmul.mubr.bf16.gmra.mxu0 %v815
      %v926 = vpop.f32.mrf.mxu0
      %v927 = vadd.f32 0.0, %v926
      %v928 = vpop.f32.mrf.mxu0
      %v929 = vpop.f32.mrf.mxu0
      %v930 = vadd.f32 0.0, %v929
      %v931 = vpop.f32.mrf.mxu0
      %932 = vmatprep.mubr.bf16.mxu0 0
      %933 = vmatmul.mubr.bf16.gmra.mxu0 %v818
      %v934 = vpop.f32.mrf.mxu0
      %v935 = vadd.f32 0.0, %v934
      %v936 = vpop.f32.mrf.mxu0
      %v937 = vpop.f32.mrf.mxu0
      %v938 = vadd.f32 0.0, %v937
      %v939 = vpop.f32.mrf.mxu0
      %940 = vmatprep.mubr.bf16.mxu0 0
      %941 = vmatmul.mubr.bf16.gmra.mxu0 %v821
      %v942 = vpop.f32.mrf.mxu0
      %v943 = vadd.f32 0.0, %v942
      %v944 = vpop.f32.mrf.mxu0
      %v945 = vpop.f32.mrf.mxu0
      %v946 = vadd.f32 0.0, %v945
      %v947 = vpop.f32.mrf.mxu0
      %948 = vmatprep.mubr.bf16.mxu0 0
      %949 = vmatmul.mubr.bf16.gmra.mxu0 %v824
      %v950 = vpop.f32.mrf.mxu0
      %v951 = vadd.f32 0.0, %v950
      %v952 = vpop.f32.mrf.mxu0
      %v953 = vpop.f32.mrf.mxu0
      %v954 = vadd.f32 0.0, %v953
      %v955 = vpop.f32.mrf.mxu0
      %956 = vmatprep.mubr.bf16.mxu0 0
      %957 = vmatmul.mubr.bf16.gmra.mxu0 %v827
      %v958 = vpop.f32.mrf.mxu0
      %v959 = vadd.f32 0.0, %v958
      %v960 = vpop.f32.mrf.mxu0
      %v961 = vpop.f32.mrf.mxu0
      %v962 = vadd.f32 0.0, %v961
      %v963 = vpop.f32.mrf.mxu0
      %964 = vmatprep.mubr.bf16.mxu0 0
      %965 = vmatmul.mubr.bf16.gmra.mxu0 %v830
      %v966 = vpop.f32.mrf.mxu0
      %v967 = vadd.f32 0.0, %v966
      %v968 = vpop.f32.mrf.mxu0
      %v969 = vpop.f32.mrf.mxu0
      %v970 = vadd.f32 0.0, %v969
      %v971 = vpop.f32.mrf.mxu0
      %972 = vmatprep.mubr.bf16.mxu0 0
      %973 = vmatmul.mubr.bf16.gmra.mxu0 %v833
      %v974 = vpop.f32.mrf.mxu0
      %v975 = vadd.f32 0.0, %v974
      %v976 = vpop.f32.mrf.mxu0
      %v977 = vpop.f32.mrf.mxu0
      %v978 = vadd.f32 0.0, %v977
      %v979 = vpop.f32.mrf.mxu0
      %980 = vmatprep.mubr.bf16.mxu0 0
      %981 = vmatmul.mubr.bf16.gmra.mxu0 %v836
      %v982 = vpop.f32.mrf.mxu0
      %v983 = vadd.f32 0.0, %v982
      %v984 = vpop.f32.mrf.mxu0
      %v985 = vpop.f32.mrf.mxu0
      %v986 = vadd.f32 0.0, %v985
      %v987 = vpop.f32.mrf.mxu0
      %988 = vmatprep.mubr.bf16.mxu0 0
      %989 = vmatmul.mubr.bf16.gmra.mxu0 %v839
      %v990 = vpop.f32.mrf.mxu0
      %v991 = vadd.f32 0.0, %v990
      %v992 = vpop.f32.mrf.mxu0
      %v993 = vpop.f32.mrf.mxu0
      %v994 = vadd.f32 0.0, %v993
      %v995 = vpop.f32.mrf.mxu0
      %996 = vmatprep.mubr.bf16.mxu0 0
      %997 = vmatmul.mubr.bf16.gmra.mxu0 %v842
      %v998 = vpop.f32.mrf.mxu0
      %v999 = vadd.f32 0.0, %v998
      %v1000 = vpop.f32.mrf.mxu0
      %v1001 = vpop.f32.mrf.mxu0
      %v1002 = vadd.f32 0.0, %v1001
      %v1003 = vpop.f32.mrf.mxu0
      %1004 = vdwg.mxu0
      %v1005 = vpack.c.bf16 %v882, %v879
      %v1006 = vpack.c.bf16 %v890, %v887
      %v1007 = vpack.c.bf16 %v898, %v895
      %v1008 = vpack.c.bf16 %v906, %v903
      %v1009 = vpack.c.bf16 %v914, %v911
      %v1010 = vpack.c.bf16 %v922, %v919
      %v1011 = vpack.c.bf16 %v930, %v927
      %v1012 = vpack.c.bf16 %v938, %v935
      %v1013 = vpack.c.bf16 %v946, %v943
      %v1014 = vpack.c.bf16 %v954, %v951
      %v1015 = vpack.c.bf16 %v962, %v959
      %v1016 = vpack.c.bf16 %v970, %v967
      %v1017 = vpack.c.bf16 %v978, %v975
      %v1018 = vpack.c.bf16 %v986, %v983
      %v1019 = vpack.c.bf16 %v994, %v991
      %v1020 = vpack.c.bf16 %v1002, %v999
      %v1021 = vld [vmem:[%s4] sm:$0xf]
      %v1022 = vld [vmem:[%s4 + $0x4] sm:$0xf]
      %v1023 = vld [vmem:[%s4 + $0x8] sm:$0xf]
      %v1024 = vld [vmem:[%s4 + $0xc] sm:$0xf]
      %v1025 = vld [vmem:[%s4 + $0x10] sm:$0xf]
      %v1026 = vld [vmem:[%s4 + $0x14] sm:$0xf]
      %v1027 = vld [vmem:[%s4 + $0x18] sm:$0xf]
      %v1028 = vld [vmem:[%s4 + $0x1c] sm:$0xf]
      %v1029 = vld [vmem:[%s4 + $0x20] sm:$0xf]
      %v1030 = vld [vmem:[%s4 + $0x24] sm:$0xf]
      %v1031 = vld [vmem:[%s4 + $0x28] sm:$0xf]
      %v1032 = vld [vmem:[%s4 + $0x2c] sm:$0xf]
      %v1033 = vld [vmem:[%s4 + $0x30] sm:$0xf]
      %v1034 = vld [vmem:[%s4 + $0x34] sm:$0xf]
      %v1035 = vld [vmem:[%s4 + $0x38] sm:$0xf]
      %v1036 = vld [vmem:[%s4 + $0x3c] sm:$0xf]
      %v1045 = vunpack.c.l.b16 %v1029
      %v1046 = vunpack.c.l.b16 %v1030
      %v1047 = vunpack.c.l.b16 %v1031
      %v1048 = vunpack.c.l.b16 %v1032
      %v1049 = vunpack.c.l.b16 %v1033
      %v1050 = vunpack.c.l.b16 %v1034
      %v1051 = vunpack.c.l.b16 %v1035
      %v1052 = vunpack.c.l.b16 %v1036
      %v1053 = vpack.c.b16 %v1046, %v1045
      %v1054 = vpack.c.b16 %v1048, %v1047
      %v1055 = vpack.c.b16 %v1050, %v1049
      %v1056 = vpack.c.b16 %v1052, %v1051
      %v1062 = vsel %vm795, %v1006, 0
      %1064 = vmatprep.subr.bf16.mxu0 0
      %1065 = vmatpush1.bf16.msra.mxu0 0
      %1066 = vmatprep.subr.bf16.mxu0 0
      %1067 = vmatpush1.bf16.msra.mxu0 0
      %1068 = vmatprep.subr.bf16.mxu0 0
      %1069 = vmatpush1.bf16.msra.mxu0 0
      %1070 = vmatprep.subr.bf16.mxu0 0
      %1071 = vmatpush1.bf16.msra.mxu0 0
      %1072 = vmatprep.subr.bf16.mxu0 0
      %1073 = vmatpush1.bf16.msra.mxu0 %v1056
      %1074 = vmatprep.subr.bf16.mxu0 0
      %1075 = vmatpush1.bf16.msra.mxu0 %v1055
      %1076 = vmatprep.subr.bf16.mxu0 0
      %1077 = vmatpush1.bf16.msra.mxu0 %v1054
      %1078 = vmatprep.subr.bf16.mxu0 0
      %1079 = vmatpush1.bf16.msra.mxu0 %v1053
      %1080 = vmatprep.subr.bf16.mxu0 0
      %1081 = vmatpush2.bf16.msra.mxu0 0
      %1082 = vmatprep.subr.bf16.mxu0 0
      %1083 = vmatpush2.bf16.msra.mxu0 0
      %1084 = vmatprep.subr.bf16.mxu0 0
      %1085 = vmatpush2.bf16.msra.mxu0 0
      %1086 = vmatprep.subr.bf16.mxu0 0
      %1087 = vmatpush2.bf16.msra.mxu0 0
      %1088 = vmatprep.subr.bf16.mxu0 0
      %1089 = vmatpush2.bf16.msra.mxu0 0
      %1090 = vmatprep.subr.bf16.mxu0 0
      %1091 = vmatpush2.bf16.msra.mxu0 0
      %1092 = vmatprep.subr.bf16.mxu0 0
      %1093 = vmatpush2.bf16.msra.mxu0 0
      %1094 = vmatprep.subr.bf16.mxu0 0
      %1095 = vmatpush2.bf16.msra.mxu0 0
      %1096 = vmatprep.mubr.bf16.mxu0 0
      %1097 = vmatmul.mubr.bf16.gmra.mxu0 %v1062
      %v1098 = vpop.f32.mrf.mxu0
      %v1099 = vadd.f32 0.0, %v1098
      %v1100 = vpop.f32.mrf.mxu0
      %v1101 = vpop.f32.mrf.mxu0
      %v1102 = vadd.f32 0.0, %v1101
      %v1103 = vpop.f32.mrf.mxu0
      %1104 = vdwg.mxu0
      %v1113 = vunpack.c.l.b16 %v1021
      %v1114 = vunpack.c.l.b16 %v1022
      %v1115 = vunpack.c.l.b16 %v1023
      %v1116 = vunpack.c.l.b16 %v1024
      %v1117 = vunpack.c.l.b16 %v1025
      %v1118 = vunpack.c.l.b16 %v1026
      %v1119 = vunpack.c.l.b16 %v1027
      %v1120 = vunpack.c.l.b16 %v1028
      %v1121 = vpack.c.b16 %v1114, %v1113
      %v1122 = vpack.c.b16 %v1116, %v1115
      %v1123 = vpack.c.b16 %v1118, %v1117
      %v1124 = vpack.c.b16 %v1120, %v1119
      %v1130 = vsel %vm795, %v1005, 0
      %1132 = vmatprep.subr.bf16.mxu0 0
      %1133 = vmatpush1.bf16.msra.mxu0 0
      %1134 = vmatprep.subr.bf16.mxu0 0
      %1135 = vmatpush1.bf16.msra.mxu0 0
      %1136 = vmatprep.subr.bf16.mxu0 0
      %1137 = vmatpush1.bf16.msra.mxu0 0
      %1138 = vmatprep.subr.bf16.mxu0 0
      %1139 = vmatpush1.bf16.msra.mxu0 0
      %1140 = vmatprep.subr.bf16.mxu0 0
      %1141 = vmatpush1.bf16.msra.mxu0 %v1124
      %1142 = vmatprep.subr.bf16.mxu0 0
      %1143 = vmatpush1.bf16.msra.mxu0 %v1123
      %1144 = vmatprep.subr.bf16.mxu0 0
      %1145 = vmatpush1.bf16.msra.mxu0 %v1122
      %1146 = vmatprep.subr.bf16.mxu0 0
      %1147 = vmatpush1.bf16.msra.mxu0 %v1121
      %1148 = vmatprep.subr.bf16.mxu0 0
      %1149 = vmatpush2.bf16.msra.mxu0 0
      %1150 = vmatprep.subr.bf16.mxu0 0
      %1151 = vmatpush2.bf16.msra.mxu0 0
      %1152 = vmatprep.subr.bf16.mxu0 0
      %1153 = vmatpush2.bf16.msra.mxu0 0
      %1154 = vmatprep.subr.bf16.mxu0 0
      %1155 = vmatpush2.bf16.msra.mxu0 0
      %1156 = vmatprep.subr.bf16.mxu0 0
      %1157 = vmatpush2.bf16.msra.mxu0 0
      %1158 = vmatprep.subr.bf16.mxu0 0
      %1159 = vmatpush2.bf16.msra.mxu0 0
      %1160 = vmatprep.subr.bf16.mxu0 0
      %1161 = vmatpush2.bf16.msra.mxu0 0
      %1162 = vmatprep.subr.bf16.mxu0 0
      %1163 = vmatpush2.bf16.msra.mxu0 0
      %1164 = vmatprep.mubr.bf16.mxu0 0
      %1165 = vmatmul.mubr.bf16.gmra.mxu0 %v1130
      %v1166 = vpop.f32.mrf.mxu0
      %v1167 = vadd.f32 %v1099, %v1166
      %v1168 = vpop.f32.mrf.mxu0
      %v1169 = vpop.f32.mrf.mxu0
      %v1170 = vadd.f32 %v1102, %v1169
      %v1171 = vpop.f32.mrf.mxu0
      %1172 = vdwg.mxu0
      %v1173 = vld [vmem:[%s4 + $0x40] sm:$0xf]
      %v1174 = vld [vmem:[%s4 + $0x44] sm:$0xf]
      %v1175 = vld [vmem:[%s4 + $0x48] sm:$0xf]
      %v1176 = vld [vmem:[%s4 + $0x4c] sm:$0xf]
      %v1177 = vld [vmem:[%s4 + $0x50] sm:$0xf]
      %v1178 = vld [vmem:[%s4 + $0x54] sm:$0xf]
      %v1179 = vld [vmem:[%s4 + $0x58] sm:$0xf]
      %v1180 = vld [vmem:[%s4 + $0x5c] sm:$0xf]
      %v1189 = vunpack.c.l.b16 %v1173
      %v1190 = vunpack.c.l.b16 %v1174
      %v1191 = vunpack.c.l.b16 %v1175
      %v1192 = vunpack.c.l.b16 %v1176
      %v1193 = vunpack.c.l.b16 %v1177
      %v1194 = vunpack.c.l.b16 %v1178
      %v1195 = vunpack.c.l.b16 %v1179
      %v1196 = vunpack.c.l.b16 %v1180
      %v1197 = vpack.c.b16 %v1190, %v1189
      %v1198 = vpack.c.b16 %v1192, %v1191
      %v1199 = vpack.c.b16 %v1194, %v1193
      %v1200 = vpack.c.b16 %v1196, %v1195
      %v1206 = vsel %vm795, %v1007, 0
      %1208 = vmatprep.subr.bf16.mxu0 0
      %1209 = vmatpush1.bf16.msra.mxu0 0
      %1210 = vmatprep.subr.bf16.mxu0 0
      %1211 = vmatpush1.bf16.msra.mxu0 0
      %1212 = vmatprep.subr.bf16.mxu0 0
      %1213 = vmatpush1.bf16.msra.mxu0 0
      %1214 = vmatprep.subr.bf16.mxu0 0
      %1215 = vmatpush1.bf16.msra.mxu0 0
      %1216 = vmatprep.subr.bf16.mxu0 0
      %1217 = vmatpush1.bf16.msra.mxu0 %v1200
      %1218 = vmatprep.subr.bf16.mxu0 0
      %1219 = vmatpush1.bf16.msra.mxu0 %v1199
      %1220 = vmatprep.subr.bf16.mxu0 0
      %1221 = vmatpush1.bf16.msra.mxu0 %v1198
      %1222 = vmatprep.subr.bf16.mxu0 0
      %1223 = vmatpush1.bf16.msra.mxu0 %v1197
      %1224 = vmatprep.subr.bf16.mxu0 0
      %1225 = vmatpush2.bf16.msra.mxu0 0
      %1226 = vmatprep.subr.bf16.mxu0 0
      %1227 = vmatpush2.bf16.msra.mxu0 0
      %1228 = vmatprep.subr.bf16.mxu0 0
      %1229 = vmatpush2.bf16.msra.mxu0 0
      %1230 = vmatprep.subr.bf16.mxu0 0
      %1231 = vmatpush2.bf16.msra.mxu0 0
      %1232 = vmatprep.subr.bf16.mxu0 0
      %1233 = vmatpush2.bf16.msra.mxu0 0
      %1234 = vmatprep.subr.bf16.mxu0 0
      %1235 = vmatpush2.bf16.msra.mxu0 0
      %1236 = vmatprep.subr.bf16.mxu0 0
      %1237 = vmatpush2.bf16.msra.mxu0 0
      %1238 = vmatprep.subr.bf16.mxu0 0
      %1239 = vmatpush2.bf16.msra.mxu0 0
      %1240 = vmatprep.mubr.bf16.mxu0 0
      %1241 = vmatmul.mubr.bf16.gmra.mxu0 %v1206
      %v1242 = vpop.f32.mrf.mxu0
      %v1243 = vadd.f32 0.0, %v1242
      %v1244 = vpop.f32.mrf.mxu0
      %v1245 = vpop.f32.mrf.mxu0
      %v1246 = vadd.f32 0.0, %v1245
      %v1247 = vpop.f32.mrf.mxu0
      %1248 = vdwg.mxu0
      %v1249 = vadd.f32 %v1167, %v1243
      %v1250 = vadd.f32 %v1170, %v1246
      %v1251 = vld [vmem:[%s4 + $0x60] sm:$0xf]
      %v1252 = vld [vmem:[%s4 + $0x64] sm:$0xf]
      %v1253 = vld [vmem:[%s4 + $0x68] sm:$0xf]
      %v1254 = vld [vmem:[%s4 + $0x6c] sm:$0xf]
      %v1255 = vld [vmem:[%s4 + $0x70] sm:$0xf]
      %v1256 = vld [vmem:[%s4 + $0x74] sm:$0xf]
      %v1257 = vld [vmem:[%s4 + $0x78] sm:$0xf]
      %v1258 = vld [vmem:[%s4 + $0x7c] sm:$0xf]
      %v1267 = vunpack.c.l.b16 %v1251
      %v1268 = vunpack.c.l.b16 %v1252
      %v1269 = vunpack.c.l.b16 %v1253
      %v1270 = vunpack.c.l.b16 %v1254
      %v1271 = vunpack.c.l.b16 %v1255
      %v1272 = vunpack.c.l.b16 %v1256
      %v1273 = vunpack.c.l.b16 %v1257
      %v1274 = vunpack.c.l.b16 %v1258
      %v1275 = vpack.c.b16 %v1268, %v1267
      %v1276 = vpack.c.b16 %v1270, %v1269
      %v1277 = vpack.c.b16 %v1272, %v1271
      %v1278 = vpack.c.b16 %v1274, %v1273
      %v1284 = vsel %vm795, %v1008, 0
      %1286 = vmatprep.subr.bf16.mxu0 0
      %1287 = vmatpush1.bf16.msra.mxu0 0
      %1288 = vmatprep.subr.bf16.mxu0 0
      %1289 = vmatpush1.bf16.msra.mxu0 0
      %1290 = vmatprep.subr.bf16.mxu0 0
      %1291 = vmatpush1.bf16.msra.mxu0 0
      %1292 = vmatprep.subr.bf16.mxu0 0
      %1293 = vmatpush1.bf16.msra.mxu0 0
      %1294 = vmatprep.subr.bf16.mxu0 0
      %1295 = vmatpush1.bf16.msra.mxu0 %v1278
      %1296 = vmatprep.subr.bf16.mxu0 0
      %1297 = vmatpush1.bf16.msra.mxu0 %v1277
      %1298 = vmatprep.subr.bf16.mxu0 0
      %1299 = vmatpush1.bf16.msra.mxu0 %v1276
      %1300 = vmatprep.subr.bf16.mxu0 0
      %1301 = vmatpush1.bf16.msra.mxu0 %v1275
      %1302 = vmatprep.subr.bf16.mxu0 0
      %1303 = vmatpush2.bf16.msra.mxu0 0
      %1304 = vmatprep.subr.bf16.mxu0 0
      %1305 = vmatpush2.bf16.msra.mxu0 0
      %1306 = vmatprep.subr.bf16.mxu0 0
      %1307 = vmatpush2.bf16.msra.mxu0 0
      %1308 = vmatprep.subr.bf16.mxu0 0
      %1309 = vmatpush2.bf16.msra.mxu0 0
      %1310 = vmatprep.subr.bf16.mxu0 0
      %1311 = vmatpush2.bf16.msra.mxu0 0
      %1312 = vmatprep.subr.bf16.mxu0 0
      %1313 = vmatpush2.bf16.msra.mxu0 0
      %1314 = vmatprep.subr.bf16.mxu0 0
      %1315 = vmatpush2.bf16.msra.mxu0 0
      %1316 = vmatprep.subr.bf16.mxu0 0
      %1317 = vmatpush2.bf16.msra.mxu0 0
      %1318 = vmatprep.mubr.bf16.mxu0 0
      %1319 = vmatmul.mubr.bf16.gmra.mxu0 %v1284
      %v1320 = vpop.f32.mrf.mxu0
      %v1321 = vadd.f32 0.0, %v1320
      %v1322 = vpop.f32.mrf.mxu0
      %v1323 = vpop.f32.mrf.mxu0
      %v1324 = vadd.f32 0.0, %v1323
      %v1325 = vpop.f32.mrf.mxu0
      %1326 = vdwg.mxu0
      %v1327 = vadd.f32 %v1249, %v1321
      %v1328 = vadd.f32 %v1250, %v1324
      %v1329 = vld [vmem:[%s4 + $0x80] sm:$0xf]
      %v1330 = vld [vmem:[%s4 + $0x84] sm:$0xf]
      %v1331 = vld [vmem:[%s4 + $0x88] sm:$0xf]
      %v1332 = vld [vmem:[%s4 + $0x8c] sm:$0xf]
      %v1333 = vld [vmem:[%s4 + $0x90] sm:$0xf]
      %v1334 = vld [vmem:[%s4 + $0x94] sm:$0xf]
      %v1335 = vld [vmem:[%s4 + $0x98] sm:$0xf]
      %v1336 = vld [vmem:[%s4 + $0x9c] sm:$0xf]
      %v1345 = vunpack.c.l.b16 %v1329
      %v1346 = vunpack.c.l.b16 %v1330
      %v1347 = vunpack.c.l.b16 %v1331
      %v1348 = vunpack.c.l.b16 %v1332
      %v1349 = vunpack.c.l.b16 %v1333
      %v1350 = vunpack.c.l.b16 %v1334
      %v1351 = vunpack.c.l.b16 %v1335
      %v1352 = vunpack.c.l.b16 %v1336
      %v1353 = vpack.c.b16 %v1346, %v1345
      %v1354 = vpack.c.b16 %v1348, %v1347
      %v1355 = vpack.c.b16 %v1350, %v1349
      %v1356 = vpack.c.b16 %v1352, %v1351
      %v1362 = vsel %vm795, %v1009, 0
      %1364 = vmatprep.subr.bf16.mxu0 0
      %1365 = vmatpush1.bf16.msra.mxu0 0
      %1366 = vmatprep.subr.bf16.mxu0 0
      %1367 = vmatpush1.bf16.msra.mxu0 0
      %1368 = vmatprep.subr.bf16.mxu0 0
      %1369 = vmatpush1.bf16.msra.mxu0 0
      %1370 = vmatprep.subr.bf16.mxu0 0
      %1371 = vmatpush1.bf16.msra.mxu0 0
      %1372 = vmatprep.subr.bf16.mxu0 0
      %1373 = vmatpush1.bf16.msra.mxu0 %v1356
      %1374 = vmatprep.subr.bf16.mxu0 0
      %1375 = vmatpush1.bf16.msra.mxu0 %v1355
      %1376 = vmatprep.subr.bf16.mxu0 0
      %1377 = vmatpush1.bf16.msra.mxu0 %v1354
      %1378 = vmatprep.subr.bf16.mxu0 0
      %1379 = vmatpush1.bf16.msra.mxu0 %v1353
      %1380 = vmatprep.subr.bf16.mxu0 0
      %1381 = vmatpush2.bf16.msra.mxu0 0
      %1382 = vmatprep.subr.bf16.mxu0 0
      %1383 = vmatpush2.bf16.msra.mxu0 0
      %1384 = vmatprep.subr.bf16.mxu0 0
      %1385 = vmatpush2.bf16.msra.mxu0 0
      %1386 = vmatprep.subr.bf16.mxu0 0
      %1387 = vmatpush2.bf16.msra.mxu0 0
      %1388 = vmatprep.subr.bf16.mxu0 0
      %1389 = vmatpush2.bf16.msra.mxu0 0
      %1390 = vmatprep.subr.bf16.mxu0 0
      %1391 = vmatpush2.bf16.msra.mxu0 0
      %1392 = vmatprep.subr.bf16.mxu0 0
      %1393 = vmatpush2.bf16.msra.mxu0 0
      %1394 = vmatprep.subr.bf16.mxu0 0
      %1395 = vmatpush2.bf16.msra.mxu0 0
      %1396 = vmatprep.mubr.bf16.mxu0 0
      %1397 = vmatmul.mubr.bf16.gmra.mxu0 %v1362
      %v1398 = vpop.f32.mrf.mxu0
      %v1399 = vadd.f32 0.0, %v1398
      %v1400 = vpop.f32.mrf.mxu0
      %v1401 = vpop.f32.mrf.mxu0
      %v1402 = vadd.f32 0.0, %v1401
      %v1403 = vpop.f32.mrf.mxu0
      %1404 = vdwg.mxu0
      %v1405 = vadd.f32 %v1327, %v1399
      %v1406 = vadd.f32 %v1328, %v1402
      %v1407 = vld [vmem:[%s4 + $0xa0] sm:$0xf]
      %v1408 = vld [vmem:[%s4 + $0xa4] sm:$0xf]
      %v1409 = vld [vmem:[%s4 + $0xa8] sm:$0xf]
      %v1410 = vld [vmem:[%s4 + $0xac] sm:$0xf]
      %v1411 = vld [vmem:[%s4 + $0xb0] sm:$0xf]
      %v1412 = vld [vmem:[%s4 + $0xb4] sm:$0xf]
      %v1413 = vld [vmem:[%s4 + $0xb8] sm:$0xf]
      %v1414 = vld [vmem:[%s4 + $0xbc] sm:$0xf]
      %v1423 = vunpack.c.l.b16 %v1407
      %v1424 = vunpack.c.l.b16 %v1408
      %v1425 = vunpack.c.l.b16 %v1409
      %v1426 = vunpack.c.l.b16 %v1410
      %v1427 = vunpack.c.l.b16 %v1411
      %v1428 = vunpack.c.l.b16 %v1412
      %v1429 = vunpack.c.l.b16 %v1413
      %v1430 = vunpack.c.l.b16 %v1414
      %v1431 = vpack.c.b16 %v1424, %v1423
      %v1432 = vpack.c.b16 %v1426, %v1425
      %v1433 = vpack.c.b16 %v1428, %v1427
      %v1434 = vpack.c.b16 %v1430, %v1429
      %v1440 = vsel %vm795, %v1010, 0
      %1442 = vmatprep.subr.bf16.mxu0 0
      %1443 = vmatpush1.bf16.msra.mxu0 0
      %1444 = vmatprep.subr.bf16.mxu0 0
      %1445 = vmatpush1.bf16.msra.mxu0 0
      %1446 = vmatprep.subr.bf16.mxu0 0
      %1447 = vmatpush1.bf16.msra.mxu0 0
      %1448 = vmatprep.subr.bf16.mxu0 0
      %1449 = vmatpush1.bf16.msra.mxu0 0
      %1450 = vmatprep.subr.bf16.mxu0 0
      %1451 = vmatpush1.bf16.msra.mxu0 %v1434
      %1452 = vmatprep.subr.bf16.mxu0 0
      %1453 = vmatpush1.bf16.msra.mxu0 %v1433
      %1454 = vmatprep.subr.bf16.mxu0 0
      %1455 = vmatpush1.bf16.msra.mxu0 %v1432
      %1456 = vmatprep.subr.bf16.mxu0 0
      %1457 = vmatpush1.bf16.msra.mxu0 %v1431
      %1458 = vmatprep.subr.bf16.mxu0 0
      %1459 = vmatpush2.bf16.msra.mxu0 0
      %1460 = vmatprep.subr.bf16.mxu0 0
      %1461 = vmatpush2.bf16.msra.mxu0 0
      %1462 = vmatprep.subr.bf16.mxu0 0
      %1463 = vmatpush2.bf16.msra.mxu0 0
      %1464 = vmatprep.subr.bf16.mxu0 0
      %1465 = vmatpush2.bf16.msra.mxu0 0
      %1466 = vmatprep.subr.bf16.mxu0 0
      %1467 = vmatpush2.bf16.msra.mxu0 0
      %1468 = vmatprep.subr.bf16.mxu0 0
      %1469 = vmatpush2.bf16.msra.mxu0 0
      %1470 = vmatprep.subr.bf16.mxu0 0
      %1471 = vmatpush2.bf16.msra.mxu0 0
      %1472 = vmatprep.subr.bf16.mxu0 0
      %1473 = vmatpush2.bf16.msra.mxu0 0
      %1474 = vmatprep.mubr.bf16.mxu0 0
      %1475 = vmatmul.mubr.bf16.gmra.mxu0 %v1440
      %v1476 = vpop.f32.mrf.mxu0
      %v1477 = vadd.f32 0.0, %v1476
      %v1478 = vpop.f32.mrf.mxu0
      %v1479 = vpop.f32.mrf.mxu0
      %v1480 = vadd.f32 0.0, %v1479
      %v1481 = vpop.f32.mrf.mxu0
      %1482 = vdwg.mxu0
      %v1483 = vadd.f32 %v1405, %v1477
      %v1484 = vadd.f32 %v1406, %v1480
      %v1485 = vld [vmem:[%s4 + $0xc0] sm:$0xf]
      %v1486 = vld [vmem:[%s4 + $0xc4] sm:$0xf]
      %v1487 = vld [vmem:[%s4 + $0xc8] sm:$0xf]
      %v1488 = vld [vmem:[%s4 + $0xcc] sm:$0xf]
      %v1489 = vld [vmem:[%s4 + $0xd0] sm:$0xf]
      %v1490 = vld [vmem:[%s4 + $0xd4] sm:$0xf]
      %v1491 = vld [vmem:[%s4 + $0xd8] sm:$0xf]
      %v1492 = vld [vmem:[%s4 + $0xdc] sm:$0xf]
      %v1501 = vunpack.c.l.b16 %v1485
      %v1502 = vunpack.c.l.b16 %v1486
      %v1503 = vunpack.c.l.b16 %v1487
      %v1504 = vunpack.c.l.b16 %v1488
      %v1505 = vunpack.c.l.b16 %v1489
      %v1506 = vunpack.c.l.b16 %v1490
      %v1507 = vunpack.c.l.b16 %v1491
      %v1508 = vunpack.c.l.b16 %v1492
      %v1509 = vpack.c.b16 %v1502, %v1501
      %v1510 = vpack.c.b16 %v1504, %v1503
      %v1511 = vpack.c.b16 %v1506, %v1505
      %v1512 = vpack.c.b16 %v1508, %v1507
      %v1518 = vsel %vm795, %v1011, 0
      %1520 = vmatprep.subr.bf16.mxu0 0
      %1521 = vmatpush1.bf16.msra.mxu0 0
      %1522 = vmatprep.subr.bf16.mxu0 0
      %1523 = vmatpush1.bf16.msra.mxu0 0
      %1524 = vmatprep.subr.bf16.mxu0 0
      %1525 = vmatpush1.bf16.msra.mxu0 0
      %1526 = vmatprep.subr.bf16.mxu0 0
      %1527 = vmatpush1.bf16.msra.mxu0 0
      %1528 = vmatprep.subr.bf16.mxu0 0
      %1529 = vmatpush1.bf16.msra.mxu0 %v1512
      %1530 = vmatprep.subr.bf16.mxu0 0
      %1531 = vmatpush1.bf16.msra.mxu0 %v1511
      %1532 = vmatprep.subr.bf16.mxu0 0
      %1533 = vmatpush1.bf16.msra.mxu0 %v1510
      %1534 = vmatprep.subr.bf16.mxu0 0
      %1535 = vmatpush1.bf16.msra.mxu0 %v1509
      %1536 = vmatprep.subr.bf16.mxu0 0
      %1537 = vmatpush2.bf16.msra.mxu0 0
      %1538 = vmatprep.subr.bf16.mxu0 0
      %1539 = vmatpush2.bf16.msra.mxu0 0
      %1540 = vmatprep.subr.bf16.mxu0 0
      %1541 = vmatpush2.bf16.msra.mxu0 0
      %1542 = vmatprep.subr.bf16.mxu0 0
      %1543 = vmatpush2.bf16.msra.mxu0 0
      %1544 = vmatprep.subr.bf16.mxu0 0
      %1545 = vmatpush2.bf16.msra.mxu0 0
      %1546 = vmatprep.subr.bf16.mxu0 0
      %1547 = vmatpush2.bf16.msra.mxu0 0
      %1548 = vmatprep.subr.bf16.mxu0 0
      %1549 = vmatpush2.bf16.msra.mxu0 0
      %1550 = vmatprep.subr.bf16.mxu0 0
      %1551 = vmatpush2.bf16.msra.mxu0 0
      %1552 = vmatprep.mubr.bf16.mxu0 0
      %1553 = vmatmul.mubr.bf16.gmra.mxu0 %v1518
      %v1554 = vpop.f32.mrf.mxu0
      %v1555 = vadd.f32 0.0, %v1554
      %v1556 = vpop.f32.mrf.mxu0
      %v1557 = vpop.f32.mrf.mxu0
      %v1558 = vadd.f32 0.0, %v1557
      %v1559 = vpop.f32.mrf.mxu0
      %1560 = vdwg.mxu0
      %v1561 = vadd.f32 %v1483, %v1555
      %v1562 = vadd.f32 %v1484, %v1558
      %v1563 = vld [vmem:[%s4 + $0xe0] sm:$0xf]
      %v1564 = vld [vmem:[%s4 + $0xe4] sm:$0xf]
      %v1565 = vld [vmem:[%s4 + $0xe8] sm:$0xf]
      %v1566 = vld [vmem:[%s4 + $0xec] sm:$0xf]
      %v1567 = vld [vmem:[%s4 + $0xf0] sm:$0xf]
      %v1568 = vld [vmem:[%s4 + $0xf4] sm:$0xf]
      %v1569 = vld [vmem:[%s4 + $0xf8] sm:$0xf]
      %v1570 = vld [vmem:[%s4 + $0xfc] sm:$0xf]
      %v1579 = vunpack.c.l.b16 %v1563
      %v1580 = vunpack.c.l.b16 %v1564
      %v1581 = vunpack.c.l.b16 %v1565
      %v1582 = vunpack.c.l.b16 %v1566
      %v1583 = vunpack.c.l.b16 %v1567
      %v1584 = vunpack.c.l.b16 %v1568
      %v1585 = vunpack.c.l.b16 %v1569
      %v1586 = vunpack.c.l.b16 %v1570
      %v1587 = vpack.c.b16 %v1580, %v1579
      %v1588 = vpack.c.b16 %v1582, %v1581
      %v1589 = vpack.c.b16 %v1584, %v1583
      %v1590 = vpack.c.b16 %v1586, %v1585
      %v1596 = vsel %vm795, %v1012, 0
      %1598 = vmatprep.subr.bf16.mxu0 0
      %1599 = vmatpush1.bf16.msra.mxu0 0
      %1600 = vmatprep.subr.bf16.mxu0 0
      %1601 = vmatpush1.bf16.msra.mxu0 0
      %1602 = vmatprep.subr.bf16.mxu0 0
      %1603 = vmatpush1.bf16.msra.mxu0 0
      %1604 = vmatprep.subr.bf16.mxu0 0
      %1605 = vmatpush1.bf16.msra.mxu0 0
      %1606 = vmatprep.subr.bf16.mxu0 0
      %1607 = vmatpush1.bf16.msra.mxu0 %v1590
      %1608 = vmatprep.subr.bf16.mxu0 0
      %1609 = vmatpush1.bf16.msra.mxu0 %v1589
      %1610 = vmatprep.subr.bf16.mxu0 0
      %1611 = vmatpush1.bf16.msra.mxu0 %v1588
      %1612 = vmatprep.subr.bf16.mxu0 0
      %1613 = vmatpush1.bf16.msra.mxu0 %v1587
      %1614 = vmatprep.subr.bf16.mxu0 0
      %1615 = vmatpush2.bf16.msra.mxu0 0
      %1616 = vmatprep.subr.bf16.mxu0 0
      %1617 = vmatpush2.bf16.msra.mxu0 0
      %1618 = vmatprep.subr.bf16.mxu0 0
      %1619 = vmatpush2.bf16.msra.mxu0 0
      %1620 = vmatprep.subr.bf16.mxu0 0
      %1621 = vmatpush2.bf16.msra.mxu0 0
      %1622 = vmatprep.subr.bf16.mxu0 0
      %1623 = vmatpush2.bf16.msra.mxu0 0
      %1624 = vmatprep.subr.bf16.mxu0 0
      %1625 = vmatpush2.bf16.msra.mxu0 0
      %1626 = vmatprep.subr.bf16.mxu0 0
      %1627 = vmatpush2.bf16.msra.mxu0 0
      %1628 = vmatprep.subr.bf16.mxu0 0
      %1629 = vmatpush2.bf16.msra.mxu0 0
      %1630 = vmatprep.mubr.bf16.mxu0 0
      %1631 = vmatmul.mubr.bf16.gmra.mxu0 %v1596
      %v1632 = vpop.f32.mrf.mxu0
      %v1633 = vadd.f32 0.0, %v1632
      %v1634 = vpop.f32.mrf.mxu0
      %v1635 = vpop.f32.mrf.mxu0
      %v1636 = vadd.f32 0.0, %v1635
      %v1637 = vpop.f32.mrf.mxu0
      %1638 = vdwg.mxu0
      %v1639 = vadd.f32 %v1561, %v1633
      %v1640 = vadd.f32 %v1562, %v1636
      %v1641 = vld [vmem:[%s4 + $0x100] sm:$0xf]
      %v1642 = vld [vmem:[%s4 + $0x104] sm:$0xf]
      %v1643 = vld [vmem:[%s4 + $0x108] sm:$0xf]
      %v1644 = vld [vmem:[%s4 + $0x10c] sm:$0xf]
      %v1645 = vld [vmem:[%s4 + $0x110] sm:$0xf]
      %v1646 = vld [vmem:[%s4 + $0x114] sm:$0xf]
      %v1647 = vld [vmem:[%s4 + $0x118] sm:$0xf]
      %v1648 = vld [vmem:[%s4 + $0x11c] sm:$0xf]
      %v1657 = vunpack.c.l.b16 %v1641
      %v1658 = vunpack.c.l.b16 %v1642
      %v1659 = vunpack.c.l.b16 %v1643
      %v1660 = vunpack.c.l.b16 %v1644
      %v1661 = vunpack.c.l.b16 %v1645
      %v1662 = vunpack.c.l.b16 %v1646
      %v1663 = vunpack.c.l.b16 %v1647
      %v1664 = vunpack.c.l.b16 %v1648
      %v1665 = vpack.c.b16 %v1658, %v1657
      %v1666 = vpack.c.b16 %v1660, %v1659
      %v1667 = vpack.c.b16 %v1662, %v1661
      %v1668 = vpack.c.b16 %v1664, %v1663
      %v1674 = vsel %vm795, %v1013, 0
      %1676 = vmatprep.subr.bf16.mxu0 0
      %1677 = vmatpush1.bf16.msra.mxu0 0
      %1678 = vmatprep.subr.bf16.mxu0 0
      %1679 = vmatpush1.bf16.msra.mxu0 0
      %1680 = vmatprep.subr.bf16.mxu0 0
      %1681 = vmatpush1.bf16.msra.mxu0 0
      %1682 = vmatprep.subr.bf16.mxu0 0
      %1683 = vmatpush1.bf16.msra.mxu0 0
      %1684 = vmatprep.subr.bf16.mxu0 0
      %1685 = vmatpush1.bf16.msra.mxu0 %v1668
      %1686 = vmatprep.subr.bf16.mxu0 0
      %1687 = vmatpush1.bf16.msra.mxu0 %v1667
      %1688 = vmatprep.subr.bf16.mxu0 0
      %1689 = vmatpush1.bf16.msra.mxu0 %v1666
      %1690 = vmatprep.subr.bf16.mxu0 0
      %1691 = vmatpush1.bf16.msra.mxu0 %v1665
      %1692 = vmatprep.subr.bf16.mxu0 0
      %1693 = vmatpush2.bf16.msra.mxu0 0
      %1694 = vmatprep.subr.bf16.mxu0 0
      %1695 = vmatpush2.bf16.msra.mxu0 0
      %1696 = vmatprep.subr.bf16.mxu0 0
      %1697 = vmatpush2.bf16.msra.mxu0 0
      %1698 = vmatprep.subr.bf16.mxu0 0
      %1699 = vmatpush2.bf16.msra.mxu0 0
      %1700 = vmatprep.subr.bf16.mxu0 0
      %1701 = vmatpush2.bf16.msra.mxu0 0
      %1702 = vmatprep.subr.bf16.mxu0 0
      %1703 = vmatpush2.bf16.msra.mxu0 0
      %1704 = vmatprep.subr.bf16.mxu0 0
      %1705 = vmatpush2.bf16.msra.mxu0 0
      %1706 = vmatprep.subr.bf16.mxu0 0
      %1707 = vmatpush2.bf16.msra.mxu0 0
      %1708 = vmatprep.mubr.bf16.mxu0 0
      %1709 = vmatmul.mubr.bf16.gmra.mxu0 %v1674
      %v1710 = vpop.f32.mrf.mxu0
      %v1711 = vadd.f32 0.0, %v1710
      %v1712 = vpop.f32.mrf.mxu0
      %v1713 = vpop.f32.mrf.mxu0
      %v1714 = vadd.f32 0.0, %v1713
      %v1715 = vpop.f32.mrf.mxu0
      %1716 = vdwg.mxu0
      %v1717 = vadd.f32 %v1639, %v1711
      %v1718 = vadd.f32 %v1640, %v1714
      %v1719 = vld [vmem:[%s4 + $0x120] sm:$0xf]
      %v1720 = vld [vmem:[%s4 + $0x124] sm:$0xf]
      %v1721 = vld [vmem:[%s4 + $0x128] sm:$0xf]
      %v1722 = vld [vmem:[%s4 + $0x12c] sm:$0xf]
      %v1723 = vld [vmem:[%s4 + $0x130] sm:$0xf]
      %v1724 = vld [vmem:[%s4 + $0x134] sm:$0xf]
      %v1725 = vld [vmem:[%s4 + $0x138] sm:$0xf]
      %v1726 = vld [vmem:[%s4 + $0x13c] sm:$0xf]
      %v1735 = vunpack.c.l.b16 %v1719
      %v1736 = vunpack.c.l.b16 %v1720
      %v1737 = vunpack.c.l.b16 %v1721
      %v1738 = vunpack.c.l.b16 %v1722
      %v1739 = vunpack.c.l.b16 %v1723
      %v1740 = vunpack.c.l.b16 %v1724
      %v1741 = vunpack.c.l.b16 %v1725
      %v1742 = vunpack.c.l.b16 %v1726
      %v1743 = vpack.c.b16 %v1736, %v1735
      %v1744 = vpack.c.b16 %v1738, %v1737
      %v1745 = vpack.c.b16 %v1740, %v1739
      %v1746 = vpack.c.b16 %v1742, %v1741
      %v1752 = vsel %vm795, %v1014, 0
      %1754 = vmatprep.subr.bf16.mxu0 0
      %1755 = vmatpush1.bf16.msra.mxu0 0
      %1756 = vmatprep.subr.bf16.mxu0 0
      %1757 = vmatpush1.bf16.msra.mxu0 0
      %1758 = vmatprep.subr.bf16.mxu0 0
      %1759 = vmatpush1.bf16.msra.mxu0 0
      %1760 = vmatprep.subr.bf16.mxu0 0
      %1761 = vmatpush1.bf16.msra.mxu0 0
      %1762 = vmatprep.subr.bf16.mxu0 0
      %1763 = vmatpush1.bf16.msra.mxu0 %v1746
      %1764 = vmatprep.subr.bf16.mxu0 0
      %1765 = vmatpush1.bf16.msra.mxu0 %v1745
      %1766 = vmatprep.subr.bf16.mxu0 0
      %1767 = vmatpush1.bf16.msra.mxu0 %v1744
      %1768 = vmatprep.subr.bf16.mxu0 0
      %1769 = vmatpush1.bf16.msra.mxu0 %v1743
      %1770 = vmatprep.subr.bf16.mxu0 0
      %1771 = vmatpush2.bf16.msra.mxu0 0
      %1772 = vmatprep.subr.bf16.mxu0 0
      %1773 = vmatpush2.bf16.msra.mxu0 0
      %1774 = vmatprep.subr.bf16.mxu0 0
      %1775 = vmatpush2.bf16.msra.mxu0 0
      %1776 = vmatprep.subr.bf16.mxu0 0
      %1777 = vmatpush2.bf16.msra.mxu0 0
      %1778 = vmatprep.subr.bf16.mxu0 0
      %1779 = vmatpush2.bf16.msra.mxu0 0
      %1780 = vmatprep.subr.bf16.mxu0 0
      %1781 = vmatpush2.bf16.msra.mxu0 0
      %1782 = vmatprep.subr.bf16.mxu0 0
      %1783 = vmatpush2.bf16.msra.mxu0 0
      %1784 = vmatprep.subr.bf16.mxu0 0
      %1785 = vmatpush2.bf16.msra.mxu0 0
      %1786 = vmatprep.mubr.bf16.mxu0 0
      %1787 = vmatmul.mubr.bf16.gmra.mxu0 %v1752
      %v1788 = vpop.f32.mrf.mxu0
      %v1789 = vadd.f32 0.0, %v1788
      %v1790 = vpop.f32.mrf.mxu0
      %v1791 = vpop.f32.mrf.mxu0
      %v1792 = vadd.f32 0.0, %v1791
      %v1793 = vpop.f32.mrf.mxu0
      %1794 = vdwg.mxu0
      %v1795 = vadd.f32 %v1717, %v1789
      %v1796 = vadd.f32 %v1718, %v1792
      %v1797 = vld [vmem:[%s4 + $0x140] sm:$0xf]
      %v1798 = vld [vmem:[%s4 + $0x144] sm:$0xf]
      %v1799 = vld [vmem:[%s4 + $0x148] sm:$0xf]
      %v1800 = vld [vmem:[%s4 + $0x14c] sm:$0xf]
      %v1801 = vld [vmem:[%s4 + $0x150] sm:$0xf]
      %v1802 = vld [vmem:[%s4 + $0x154] sm:$0xf]
      %v1803 = vld [vmem:[%s4 + $0x158] sm:$0xf]
      %v1804 = vld [vmem:[%s4 + $0x15c] sm:$0xf]
      %v1813 = vunpack.c.l.b16 %v1797
      %v1814 = vunpack.c.l.b16 %v1798
      %v1815 = vunpack.c.l.b16 %v1799
      %v1816 = vunpack.c.l.b16 %v1800
      %v1817 = vunpack.c.l.b16 %v1801
      %v1818 = vunpack.c.l.b16 %v1802
      %v1819 = vunpack.c.l.b16 %v1803
      %v1820 = vunpack.c.l.b16 %v1804
      %v1821 = vpack.c.b16 %v1814, %v1813
      %v1822 = vpack.c.b16 %v1816, %v1815
      %v1823 = vpack.c.b16 %v1818, %v1817
      %v1824 = vpack.c.b16 %v1820, %v1819
      %v1830 = vsel %vm795, %v1015, 0
      %1832 = vmatprep.subr.bf16.mxu0 0
      %1833 = vmatpush1.bf16.msra.mxu0 0
      %1834 = vmatprep.subr.bf16.mxu0 0
      %1835 = vmatpush1.bf16.msra.mxu0 0
      %1836 = vmatprep.subr.bf16.mxu0 0
      %1837 = vmatpush1.bf16.msra.mxu0 0
      %1838 = vmatprep.subr.bf16.mxu0 0
      %1839 = vmatpush1.bf16.msra.mxu0 0
      %1840 = vmatprep.subr.bf16.mxu0 0
      %1841 = vmatpush1.bf16.msra.mxu0 %v1824
      %1842 = vmatprep.subr.bf16.mxu0 0
      %1843 = vmatpush1.bf16.msra.mxu0 %v1823
      %1844 = vmatprep.subr.bf16.mxu0 0
      %1845 = vmatpush1.bf16.msra.mxu0 %v1822
      %1846 = vmatprep.subr.bf16.mxu0 0
      %1847 = vmatpush1.bf16.msra.mxu0 %v1821
      %1848 = vmatprep.subr.bf16.mxu0 0
      %1849 = vmatpush2.bf16.msra.mxu0 0
      %1850 = vmatprep.subr.bf16.mxu0 0
      %1851 = vmatpush2.bf16.msra.mxu0 0
      %1852 = vmatprep.subr.bf16.mxu0 0
      %1853 = vmatpush2.bf16.msra.mxu0 0
      %1854 = vmatprep.subr.bf16.mxu0 0
      %1855 = vmatpush2.bf16.msra.mxu0 0
      %1856 = vmatprep.subr.bf16.mxu0 0
      %1857 = vmatpush2.bf16.msra.mxu0 0
      %1858 = vmatprep.subr.bf16.mxu0 0
      %1859 = vmatpush2.bf16.msra.mxu0 0
      %1860 = vmatprep.subr.bf16.mxu0 0
      %1861 = vmatpush2.bf16.msra.mxu0 0
      %1862 = vmatprep.subr.bf16.mxu0 0
      %1863 = vmatpush2.bf16.msra.mxu0 0
      %1864 = vmatprep.mubr.bf16.mxu0 0
      %1865 = vmatmul.mubr.bf16.gmra.mxu0 %v1830
      %v1866 = vpop.f32.mrf.mxu0
      %v1867 = vadd.f32 0.0, %v1866
      %v1868 = vpop.f32.mrf.mxu0
      %v1869 = vpop.f32.mrf.mxu0
      %v1870 = vadd.f32 0.0, %v1869
      %v1871 = vpop.f32.mrf.mxu0
      %1872 = vdwg.mxu0
      %v1873 = vadd.f32 %v1795, %v1867
      %v1874 = vadd.f32 %v1796, %v1870
      %v1875 = vld [vmem:[%s4 + $0x160] sm:$0xf]
      %v1876 = vld [vmem:[%s4 + $0x164] sm:$0xf]
      %v1877 = vld [vmem:[%s4 + $0x168] sm:$0xf]
      %v1878 = vld [vmem:[%s4 + $0x16c] sm:$0xf]
      %v1879 = vld [vmem:[%s4 + $0x170] sm:$0xf]
      %v1880 = vld [vmem:[%s4 + $0x174] sm:$0xf]
      %v1881 = vld [vmem:[%s4 + $0x178] sm:$0xf]
      %v1882 = vld [vmem:[%s4 + $0x17c] sm:$0xf]
      %v1891 = vunpack.c.l.b16 %v1875
      %v1892 = vunpack.c.l.b16 %v1876
      %v1893 = vunpack.c.l.b16 %v1877
      %v1894 = vunpack.c.l.b16 %v1878
      %v1895 = vunpack.c.l.b16 %v1879
      %v1896 = vunpack.c.l.b16 %v1880
      %v1897 = vunpack.c.l.b16 %v1881
      %v1898 = vunpack.c.l.b16 %v1882
      %v1899 = vpack.c.b16 %v1892, %v1891
      %v1900 = vpack.c.b16 %v1894, %v1893
      %v1901 = vpack.c.b16 %v1896, %v1895
      %v1902 = vpack.c.b16 %v1898, %v1897
      %v1908 = vsel %vm795, %v1016, 0
      %1910 = vmatprep.subr.bf16.mxu0 0
      %1911 = vmatpush1.bf16.msra.mxu0 0
      %1912 = vmatprep.subr.bf16.mxu0 0
      %1913 = vmatpush1.bf16.msra.mxu0 0
      %1914 = vmatprep.subr.bf16.mxu0 0
      %1915 = vmatpush1.bf16.msra.mxu0 0
      %1916 = vmatprep.subr.bf16.mxu0 0
      %1917 = vmatpush1.bf16.msra.mxu0 0
      %1918 = vmatprep.subr.bf16.mxu0 0
      %1919 = vmatpush1.bf16.msra.mxu0 %v1902
      %1920 = vmatprep.subr.bf16.mxu0 0
      %1921 = vmatpush1.bf16.msra.mxu0 %v1901
      %1922 = vmatprep.subr.bf16.mxu0 0
      %1923 = vmatpush1.bf16.msra.mxu0 %v1900
      %1924 = vmatprep.subr.bf16.mxu0 0
      %1925 = vmatpush1.bf16.msra.mxu0 %v1899
      %1926 = vmatprep.subr.bf16.mxu0 0
      %1927 = vmatpush2.bf16.msra.mxu0 0
      %1928 = vmatprep.subr.bf16.mxu0 0
      %1929 = vmatpush2.bf16.msra.mxu0 0
      %1930 = vmatprep.subr.bf16.mxu0 0
      %1931 = vmatpush2.bf16.msra.mxu0 0
      %1932 = vmatprep.subr.bf16.mxu0 0
      %1933 = vmatpush2.bf16.msra.mxu0 0
      %1934 = vmatprep.subr.bf16.mxu0 0
      %1935 = vmatpush2.bf16.msra.mxu0 0
      %1936 = vmatprep.subr.bf16.mxu0 0
      %1937 = vmatpush2.bf16.msra.mxu0 0
      %1938 = vmatprep.subr.bf16.mxu0 0
      %1939 = vmatpush2.bf16.msra.mxu0 0
      %1940 = vmatprep.subr.bf16.mxu0 0
      %1941 = vmatpush2.bf16.msra.mxu0 0
      %1942 = vmatprep.mubr.bf16.mxu0 0
      %1943 = vmatmul.mubr.bf16.gmra.mxu0 %v1908
      %v1944 = vpop.f32.mrf.mxu0
      %v1945 = vadd.f32 0.0, %v1944
      %v1946 = vpop.f32.mrf.mxu0
      %v1947 = vpop.f32.mrf.mxu0
      %v1948 = vadd.f32 0.0, %v1947
      %v1949 = vpop.f32.mrf.mxu0
      %1950 = vdwg.mxu0
      %v1951 = vadd.f32 %v1873, %v1945
      %v1952 = vadd.f32 %v1874, %v1948
      %v1953 = vld [vmem:[%s4 + $0x180] sm:$0xf]
      %v1954 = vld [vmem:[%s4 + $0x184] sm:$0xf]
      %v1955 = vld [vmem:[%s4 + $0x188] sm:$0xf]
      %v1956 = vld [vmem:[%s4 + $0x18c] sm:$0xf]
      %v1957 = vld [vmem:[%s4 + $0x190] sm:$0xf]
      %v1958 = vld [vmem:[%s4 + $0x194] sm:$0xf]
      %v1959 = vld [vmem:[%s4 + $0x198] sm:$0xf]
      %v1960 = vld [vmem:[%s4 + $0x19c] sm:$0xf]
      %v1969 = vunpack.c.l.b16 %v1953
      %v1970 = vunpack.c.l.b16 %v1954
      %v1971 = vunpack.c.l.b16 %v1955
      %v1972 = vunpack.c.l.b16 %v1956
      %v1973 = vunpack.c.l.b16 %v1957
      %v1974 = vunpack.c.l.b16 %v1958
      %v1975 = vunpack.c.l.b16 %v1959
      %v1976 = vunpack.c.l.b16 %v1960
      %v1977 = vpack.c.b16 %v1970, %v1969
      %v1978 = vpack.c.b16 %v1972, %v1971
      %v1979 = vpack.c.b16 %v1974, %v1973
      %v1980 = vpack.c.b16 %v1976, %v1975
      %v1986 = vsel %vm795, %v1017, 0
      %1988 = vmatprep.subr.bf16.mxu0 0
      %1989 = vmatpush1.bf16.msra.mxu0 0
      %1990 = vmatprep.subr.bf16.mxu0 0
      %1991 = vmatpush1.bf16.msra.mxu0 0
      %1992 = vmatprep.subr.bf16.mxu0 0
      %1993 = vmatpush1.bf16.msra.mxu0 0
      %1994 = vmatprep.subr.bf16.mxu0 0
      %1995 = vmatpush1.bf16.msra.mxu0 0
      %1996 = vmatprep.subr.bf16.mxu0 0
      %1997 = vmatpush1.bf16.msra.mxu0 %v1980
      %1998 = vmatprep.subr.bf16.mxu0 0
      %1999 = vmatpush1.bf16.msra.mxu0 %v1979
      %2000 = vmatprep.subr.bf16.mxu0 0
      %2001 = vmatpush1.bf16.msra.mxu0 %v1978
      %2002 = vmatprep.subr.bf16.mxu0 0
      %2003 = vmatpush1.bf16.msra.mxu0 %v1977
      %2004 = vmatprep.subr.bf16.mxu0 0
      %2005 = vmatpush2.bf16.msra.mxu0 0
      %2006 = vmatprep.subr.bf16.mxu0 0
      %2007 = vmatpush2.bf16.msra.mxu0 0
      %2008 = vmatprep.subr.bf16.mxu0 0
      %2009 = vmatpush2.bf16.msra.mxu0 0
      %2010 = vmatprep.subr.bf16.mxu0 0
      %2011 = vmatpush2.bf16.msra.mxu0 0
      %2012 = vmatprep.subr.bf16.mxu0 0
      %2013 = vmatpush2.bf16.msra.mxu0 0
      %2014 = vmatprep.subr.bf16.mxu0 0
      %2015 = vmatpush2.bf16.msra.mxu0 0
      %2016 = vmatprep.subr.bf16.mxu0 0
      %2017 = vmatpush2.bf16.msra.mxu0 0
      %2018 = vmatprep.subr.bf16.mxu0 0
      %2019 = vmatpush2.bf16.msra.mxu0 0
      %2020 = vmatprep.mubr.bf16.mxu0 0
      %2021 = vmatmul.mubr.bf16.gmra.mxu0 %v1986
      %v2022 = vpop.f32.mrf.mxu0
      %v2023 = vadd.f32 0.0, %v2022
      %v2024 = vpop.f32.mrf.mxu0
      %v2025 = vpop.f32.mrf.mxu0
      %v2026 = vadd.f32 0.0, %v2025
      %v2027 = vpop.f32.mrf.mxu0
      %2028 = vdwg.mxu0
      %v2029 = vadd.f32 %v1951, %v2023
      %v2030 = vadd.f32 %v1952, %v2026
      %v2031 = vld [vmem:[%s4 + $0x1a0] sm:$0xf]
      %v2032 = vld [vmem:[%s4 + $0x1a4] sm:$0xf]
      %v2033 = vld [vmem:[%s4 + $0x1a8] sm:$0xf]
      %v2034 = vld [vmem:[%s4 + $0x1ac] sm:$0xf]
      %v2035 = vld [vmem:[%s4 + $0x1b0] sm:$0xf]
      %v2036 = vld [vmem:[%s4 + $0x1b4] sm:$0xf]
      %v2037 = vld [vmem:[%s4 + $0x1b8] sm:$0xf]
      %v2038 = vld [vmem:[%s4 + $0x1bc] sm:$0xf]
      %v2047 = vunpack.c.l.b16 %v2031
      %v2048 = vunpack.c.l.b16 %v2032
      %v2049 = vunpack.c.l.b16 %v2033
      %v2050 = vunpack.c.l.b16 %v2034
      %v2051 = vunpack.c.l.b16 %v2035
      %v2052 = vunpack.c.l.b16 %v2036
      %v2053 = vunpack.c.l.b16 %v2037
      %v2054 = vunpack.c.l.b16 %v2038
      %v2055 = vpack.c.b16 %v2048, %v2047
      %v2056 = vpack.c.b16 %v2050, %v2049
      %v2057 = vpack.c.b16 %v2052, %v2051
      %v2058 = vpack.c.b16 %v2054, %v2053
      %v2064 = vsel %vm795, %v1018, 0
      %2066 = vmatprep.subr.bf16.mxu0 0
      %2067 = vmatpush1.bf16.msra.mxu0 0
      %2068 = vmatprep.subr.bf16.mxu0 0
      %2069 = vmatpush1.bf16.msra.mxu0 0
      %2070 = vmatprep.subr.bf16.mxu0 0
      %2071 = vmatpush1.bf16.msra.mxu0 0
      %2072 = vmatprep.subr.bf16.mxu0 0
      %2073 = vmatpush1.bf16.msra.mxu0 0
      %2074 = vmatprep.subr.bf16.mxu0 0
      %2075 = vmatpush1.bf16.msra.mxu0 %v2058
      %2076 = vmatprep.subr.bf16.mxu0 0
      %2077 = vmatpush1.bf16.msra.mxu0 %v2057
      %2078 = vmatprep.subr.bf16.mxu0 0
      %2079 = vmatpush1.bf16.msra.mxu0 %v2056
      %2080 = vmatprep.subr.bf16.mxu0 0
      %2081 = vmatpush1.bf16.msra.mxu0 %v2055
      %2082 = vmatprep.subr.bf16.mxu0 0
      %2083 = vmatpush2.bf16.msra.mxu0 0
      %2084 = vmatprep.subr.bf16.mxu0 0
      %2085 = vmatpush2.bf16.msra.mxu0 0
      %2086 = vmatprep.subr.bf16.mxu0 0
      %2087 = vmatpush2.bf16.msra.mxu0 0
      %2088 = vmatprep.subr.bf16.mxu0 0
      %2089 = vmatpush2.bf16.msra.mxu0 0
      %2090 = vmatprep.subr.bf16.mxu0 0
      %2091 = vmatpush2.bf16.msra.mxu0 0
      %2092 = vmatprep.subr.bf16.mxu0 0
      %2093 = vmatpush2.bf16.msra.mxu0 0
      %2094 = vmatprep.subr.bf16.mxu0 0
      %2095 = vmatpush2.bf16.msra.mxu0 0
      %2096 = vmatprep.subr.bf16.mxu0 0
      %2097 = vmatpush2.bf16.msra.mxu0 0
      %2098 = vmatprep.mubr.bf16.mxu0 0
      %2099 = vmatmul.mubr.bf16.gmra.mxu0 %v2064
      %v2100 = vpop.f32.mrf.mxu0
      %v2101 = vadd.f32 0.0, %v2100
      %v2102 = vpop.f32.mrf.mxu0
      %v2103 = vpop.f32.mrf.mxu0
      %v2104 = vadd.f32 0.0, %v2103
      %v2105 = vpop.f32.mrf.mxu0
      %2106 = vdwg.mxu0
      %v2107 = vadd.f32 %v2029, %v2101
      %v2108 = vadd.f32 %v2030, %v2104
      %v2109 = vld [vmem:[%s4 + $0x1c0] sm:$0xf]
      %v2110 = vld [vmem:[%s4 + $0x1c4] sm:$0xf]
      %v2111 = vld [vmem:[%s4 + $0x1c8] sm:$0xf]
      %v2112 = vld [vmem:[%s4 + $0x1cc] sm:$0xf]
      %v2113 = vld [vmem:[%s4 + $0x1d0] sm:$0xf]
      %v2114 = vld [vmem:[%s4 + $0x1d4] sm:$0xf]
      %v2115 = vld [vmem:[%s4 + $0x1d8] sm:$0xf]
      %v2116 = vld [vmem:[%s4 + $0x1dc] sm:$0xf]
      %v2125 = vunpack.c.l.b16 %v2109
      %v2126 = vunpack.c.l.b16 %v2110
      %v2127 = vunpack.c.l.b16 %v2111
      %v2128 = vunpack.c.l.b16 %v2112
      %v2129 = vunpack.c.l.b16 %v2113
      %v2130 = vunpack.c.l.b16 %v2114
      %v2131 = vunpack.c.l.b16 %v2115
      %v2132 = vunpack.c.l.b16 %v2116
      %v2133 = vpack.c.b16 %v2126, %v2125
      %v2134 = vpack.c.b16 %v2128, %v2127
      %v2135 = vpack.c.b16 %v2130, %v2129
      %v2136 = vpack.c.b16 %v2132, %v2131
      %v2142 = vsel %vm795, %v1019, 0
      %2144 = vmatprep.subr.bf16.mxu0 0
      %2145 = vmatpush1.bf16.msra.mxu0 0
      %2146 = vmatprep.subr.bf16.mxu0 0
      %2147 = vmatpush1.bf16.msra.mxu0 0
      %2148 = vmatprep.subr.bf16.mxu0 0
      %2149 = vmatpush1.bf16.msra.mxu0 0
      %2150 = vmatprep.subr.bf16.mxu0 0
      %2151 = vmatpush1.bf16.msra.mxu0 0
      %2152 = vmatprep.subr.bf16.mxu0 0
      %2153 = vmatpush1.bf16.msra.mxu0 %v2136
      %2154 = vmatprep.subr.bf16.mxu0 0
      %2155 = vmatpush1.bf16.msra.mxu0 %v2135
      %2156 = vmatprep.subr.bf16.mxu0 0
      %2157 = vmatpush1.bf16.msra.mxu0 %v2134
      %2158 = vmatprep.subr.bf16.mxu0 0
      %2159 = vmatpush1.bf16.msra.mxu0 %v2133
      %2160 = vmatprep.subr.bf16.mxu0 0
      %2161 = vmatpush2.bf16.msra.mxu0 0
      %2162 = vmatprep.subr.bf16.mxu0 0
      %2163 = vmatpush2.bf16.msra.mxu0 0
      %2164 = vmatprep.subr.bf16.mxu0 0
      %2165 = vmatpush2.bf16.msra.mxu0 0
      %2166 = vmatprep.subr.bf16.mxu0 0
      %2167 = vmatpush2.bf16.msra.mxu0 0
      %2168 = vmatprep.subr.bf16.mxu0 0
      %2169 = vmatpush2.bf16.msra.mxu0 0
      %2170 = vmatprep.subr.bf16.mxu0 0
      %2171 = vmatpush2.bf16.msra.mxu0 0
      %2172 = vmatprep.subr.bf16.mxu0 0
      %2173 = vmatpush2.bf16.msra.mxu0 0
      %2174 = vmatprep.subr.bf16.mxu0 0
      %2175 = vmatpush2.bf16.msra.mxu0 0
      %2176 = vmatprep.mubr.bf16.mxu0 0
      %2177 = vmatmul.mubr.bf16.gmra.mxu0 %v2142
      %v2178 = vpop.f32.mrf.mxu0
      %v2179 = vadd.f32 0.0, %v2178
      %v2180 = vpop.f32.mrf.mxu0
      %v2181 = vpop.f32.mrf.mxu0
      %v2182 = vadd.f32 0.0, %v2181
      %v2183 = vpop.f32.mrf.mxu0
      %2184 = vdwg.mxu0
      %v2185 = vadd.f32 %v2107, %v2179
      %v2186 = vadd.f32 %v2108, %v2182
      %v2187 = vld [vmem:[%s4 + $0x1e0] sm:$0xf]
      %v2188 = vld [vmem:[%s4 + $0x1e4] sm:$0xf]
      %v2189 = vld [vmem:[%s4 + $0x1e8] sm:$0xf]
      %v2190 = vld [vmem:[%s4 + $0x1ec] sm:$0xf]
      %v2191 = vld [vmem:[%s4 + $0x1f0] sm:$0xf]
      %v2192 = vld [vmem:[%s4 + $0x1f4] sm:$0xf]
      %v2193 = vld [vmem:[%s4 + $0x1f8] sm:$0xf]
      %v2194 = vld [vmem:[%s4 + $0x1fc] sm:$0xf]
      %v2203 = vunpack.c.l.b16 %v2187
      %v2204 = vunpack.c.l.b16 %v2188
      %v2205 = vunpack.c.l.b16 %v2189
      %v2206 = vunpack.c.l.b16 %v2190
      %v2207 = vunpack.c.l.b16 %v2191
      %v2208 = vunpack.c.l.b16 %v2192
      %v2209 = vunpack.c.l.b16 %v2193
      %v2210 = vunpack.c.l.b16 %v2194
      %v2211 = vpack.c.b16 %v2204, %v2203
      %v2212 = vpack.c.b16 %v2206, %v2205
      %v2213 = vpack.c.b16 %v2208, %v2207
      %v2214 = vpack.c.b16 %v2210, %v2209
      %v2220 = vsel %vm795, %v1020, 0
      %2222 = vmatprep.subr.bf16.mxu0 0
      %2223 = vmatpush1.bf16.msra.mxu0 0
      %2224 = vmatprep.subr.bf16.mxu0 0
      %2225 = vmatpush1.bf16.msra.mxu0 0
      %2226 = vmatprep.subr.bf16.mxu0 0
      %2227 = vmatpush1.bf16.msra.mxu0 0
      %2228 = vmatprep.subr.bf16.mxu0 0
      %2229 = vmatpush1.bf16.msra.mxu0 0
      %2230 = vmatprep.subr.bf16.mxu0 0
      %2231 = vmatpush1.bf16.msra.mxu0 %v2214
      %2232 = vmatprep.subr.bf16.mxu0 0
      %2233 = vmatpush1.bf16.msra.mxu0 %v2213
      %2234 = vmatprep.subr.bf16.mxu0 0
      %2235 = vmatpush1.bf16.msra.mxu0 %v2212
      %2236 = vmatprep.subr.bf16.mxu0 0
      %2237 = vmatpush1.bf16.msra.mxu0 %v2211
      %2238 = vmatprep.subr.bf16.mxu0 0
      %2239 = vmatpush2.bf16.msra.mxu0 0
      %2240 = vmatprep.subr.bf16.mxu0 0
      %2241 = vmatpush2.bf16.msra.mxu0 0
      %2242 = vmatprep.subr.bf16.mxu0 0
      %2243 = vmatpush2.bf16.msra.mxu0 0
      %2244 = vmatprep.subr.bf16.mxu0 0
      %2245 = vmatpush2.bf16.msra.mxu0 0
      %2246 = vmatprep.subr.bf16.mxu0 0
      %2247 = vmatpush2.bf16.msra.mxu0 0
      %2248 = vmatprep.subr.bf16.mxu0 0
      %2249 = vmatpush2.bf16.msra.mxu0 0
      %2250 = vmatprep.subr.bf16.mxu0 0
      %2251 = vmatpush2.bf16.msra.mxu0 0
      %2252 = vmatprep.subr.bf16.mxu0 0
      %2253 = vmatpush2.bf16.msra.mxu0 0
      %2254 = vmatprep.mubr.bf16.mxu0 0
      %2255 = vmatmul.mubr.bf16.gmra.mxu0 %v2220
      %v2256 = vpop.f32.mrf.mxu0
      %v2257 = vadd.f32 0.0, %v2256
      %v2258 = vpop.f32.mrf.mxu0
      %v2259 = vpop.f32.mrf.mxu0
      %v2260 = vadd.f32 0.0, %v2259
      %v2261 = vpop.f32.mrf.mxu0
      %2262 = vdwg.mxu0
      %v2263 = vadd.f32 %v2185, %v2257
      %v2264 = vadd.f32 %v2186, %v2260
      %v2265 = vld [vmem:[%s5] sm:$0x1]
      %v2267 = vlaneseq
      %v2268 = vshrl.u32 %v2267, 7
      %v2269 = vsub.s32 0, %v2268
      %v2270 = vrot.slane %v2265, %v2269
      %v2272 = vadd.f32 %v2263, %v2270
      %v2273 = vadd.f32 %v2264, %v2270
      %v2274 = vmax.f32 %v2272, 0.0
      %v2275 = vmax.f32 %v2273, 0.0
      %v2276 = vld [vmem:[%s6] sm:$0xf]
      %v2277 = vld [vmem:[%s6 + $0x4] sm:$0xf]
      %v2278 = vld [vmem:[%s6 + $0x8] sm:$0xf]
      %v2279 = vld [vmem:[%s6 + $0xc] sm:$0xf]
      %v2280 = vld [vmem:[%s6 + $0x10] sm:$0xf]
      %v2281 = vld [vmem:[%s6 + $0x14] sm:$0xf]
      %v2282 = vld [vmem:[%s6 + $0x18] sm:$0xf]
      %v2283 = vld [vmem:[%s6 + $0x1c] sm:$0xf]
      %v2284 = vld [vmem:[%s6 + $0x20] sm:$0xf]
      %v2285 = vld [vmem:[%s6 + $0x24] sm:$0xf]
      %v2286 = vld [vmem:[%s6 + $0x28] sm:$0xf]
      %v2287 = vld [vmem:[%s6 + $0x2c] sm:$0xf]
      %v2288 = vld [vmem:[%s6 + $0x30] sm:$0xf]
      %v2289 = vld [vmem:[%s6 + $0x34] sm:$0xf]
      %v2290 = vld [vmem:[%s6 + $0x38] sm:$0xf]
      %v2291 = vld [vmem:[%s6 + $0x3c] sm:$0xf]
      %v2292 = vld [vmem:[%s6 + $0x40] sm:$0xf]
      %v2293 = vld [vmem:[%s6 + $0x44] sm:$0xf]
      %v2294 = vpack.c.bf16 %v2275, %v2274
      %v2313 = vunpack.c.l.b16 %v2276
      %v2314 = vunpack.c.l.b16 %v2277
      %v2315 = vunpack.c.l.b16 %v2278
      %v2316 = vunpack.c.l.b16 %v2279
      %v2317 = vunpack.c.l.b16 %v2280
      %v2318 = vunpack.c.l.b16 %v2281
      %v2319 = vunpack.c.l.b16 %v2282
      %v2320 = vunpack.c.l.b16 %v2283
      %v2321 = vunpack.c.l.b16 %v2284
      %v2322 = vunpack.c.l.b16 %v2285
      %v2323 = vunpack.c.l.b16 %v2286
      %v2324 = vunpack.c.l.b16 %v2287
      %v2325 = vunpack.c.l.b16 %v2288
      %v2326 = vunpack.c.l.b16 %v2289
      %v2327 = vunpack.c.l.b16 %v2290
      %v2328 = vunpack.c.l.b16 %v2291
      %v2329 = vunpack.c.l.b16 %v2292
      %v2330 = vunpack.c.l.b16 %v2293
      %v2331 = vpack.c.b16 %v2314, %v2313
      %v2332 = vpack.c.b16 %v2316, %v2315
      %v2333 = vpack.c.b16 %v2318, %v2317
      %v2334 = vpack.c.b16 %v2320, %v2319
      %v2335 = vpack.c.b16 %v2322, %v2321
      %v2336 = vpack.c.b16 %v2324, %v2323
      %v2337 = vpack.c.b16 %v2326, %v2325
      %v2338 = vpack.c.b16 %v2328, %v2327
      %v2339 = vpack.c.b16 %v2330, %v2329
      %v2341 = vsel %vm593, %v2331, 0
      %v2344 = vsel %vm593, %v2332, 0
      %v2347 = vsel %vm593, %v2333, 0
      %v2350 = vsel %vm593, %v2334, 0
      %v2353 = vsel %vm593, %v2335, 0
      %v2356 = vsel %vm593, %v2336, 0
      %v2359 = vsel %vm593, %v2337, 0
      %v2362 = vsel %vm593, %v2338, 0
      %v2365 = vsel %vm593, %v2339, 0
      %2367 = vmatprep.subr.bf16.mxu0 0
      %2368 = vmatpush1.bf16.msra.mxu0 0
      %2369 = vmatprep.subr.bf16.mxu0 0
      %2370 = vmatpush1.bf16.msra.mxu0 0
      %2371 = vmatprep.subr.bf16.mxu0 0
      %2372 = vmatpush1.bf16.msra.mxu0 0
      %2373 = vmatprep.subr.bf16.mxu0 0
      %2374 = vmatpush1.bf16.msra.mxu0 0
      %2375 = vmatprep.subr.bf16.mxu0 0
      %2376 = vmatpush1.bf16.msra.mxu0 0
      %2377 = vmatprep.subr.bf16.mxu0 0
      %2378 = vmatpush1.bf16.msra.mxu0 0
      %2379 = vmatprep.subr.bf16.mxu0 0
      %2380 = vmatpush1.bf16.msra.mxu0 0
      %2381 = vmatprep.subr.bf16.mxu0 0
      %2382 = vmatpush1.bf16.msra.mxu0 %v2294
      %2383 = vmatprep.subr.bf16.mxu0 0
      %2384 = vmatpush2.bf16.msra.mxu0 0
      %2385 = vmatprep.subr.bf16.mxu0 0
      %2386 = vmatpush2.bf16.msra.mxu0 0
      %2387 = vmatprep.subr.bf16.mxu0 0
      %2388 = vmatpush2.bf16.msra.mxu0 0
      %2389 = vmatprep.subr.bf16.mxu0 0
      %2390 = vmatpush2.bf16.msra.mxu0 0
      %2391 = vmatprep.subr.bf16.mxu0 0
      %2392 = vmatpush2.bf16.msra.mxu0 0
      %2393 = vmatprep.subr.bf16.mxu0 0
      %2394 = vmatpush2.bf16.msra.mxu0 0
      %2395 = vmatprep.subr.bf16.mxu0 0
      %2396 = vmatpush2.bf16.msra.mxu0 0
      %2397 = vmatprep.subr.bf16.mxu0 0
      %2398 = vmatpush2.bf16.msra.mxu0 0
      %2399 = vmatprep.mubr.bf16.mxu0 0
      %2400 = vmatmul.mubr.bf16.gmra.mxu0 %v2341
      %v2401 = vpop.f32.mrf.mxu0
      %v2402 = vadd.f32 0.0, %v2401
      %v2403 = vpop.f32.mrf.mxu0
      %v2404 = vpop.f32.mrf.mxu0
      %v2405 = vadd.f32 0.0, %v2404
      %v2406 = vpop.f32.mrf.mxu0
      %2407 = vmatprep.mubr.bf16.mxu0 0
      %2408 = vmatmul.mubr.bf16.gmra.mxu0 %v2344
      %v2409 = vpop.f32.mrf.mxu0
      %v2410 = vadd.f32 0.0, %v2409
      %v2411 = vpop.f32.mrf.mxu0
      %v2412 = vpop.f32.mrf.mxu0
      %v2413 = vadd.f32 0.0, %v2412
      %v2414 = vpop.f32.mrf.mxu0
      %2415 = vmatprep.mubr.bf16.mxu0 0
      %2416 = vmatmul.mubr.bf16.gmra.mxu0 %v2347
      %v2417 = vpop.f32.mrf.mxu0
      %v2418 = vadd.f32 0.0, %v2417
      %v2419 = vpop.f32.mrf.mxu0
      %v2420 = vpop.f32.mrf.mxu0
      %v2421 = vadd.f32 0.0, %v2420
      %v2422 = vpop.f32.mrf.mxu0
      %2423 = vmatprep.mubr.bf16.mxu0 0
      %2424 = vmatmul.mubr.bf16.gmra.mxu0 %v2350
      %v2425 = vpop.f32.mrf.mxu0
      %v2426 = vadd.f32 0.0, %v2425
      %v2427 = vpop.f32.mrf.mxu0
      %v2428 = vpop.f32.mrf.mxu0
      %v2429 = vadd.f32 0.0, %v2428
      %v2430 = vpop.f32.mrf.mxu0
      %2431 = vmatprep.mubr.bf16.mxu0 0
      %2432 = vmatmul.mubr.bf16.gmra.mxu0 %v2353
      %v2433 = vpop.f32.mrf.mxu0
      %v2434 = vadd.f32 0.0, %v2433
      %v2435 = vpop.f32.mrf.mxu0
      %v2436 = vpop.f32.mrf.mxu0
      %v2437 = vadd.f32 0.0, %v2436
      %v2438 = vpop.f32.mrf.mxu0
      %2439 = vmatprep.mubr.bf16.mxu0 0
      %2440 = vmatmul.mubr.bf16.gmra.mxu0 %v2356
      %v2441 = vpop.f32.mrf.mxu0
      %v2442 = vadd.f32 0.0, %v2441
      %v2443 = vpop.f32.mrf.mxu0
      %v2444 = vpop.f32.mrf.mxu0
      %v2445 = vadd.f32 0.0, %v2444
      %v2446 = vpop.f32.mrf.mxu0
      %2447 = vmatprep.mubr.bf16.mxu0 0
      %2448 = vmatmul.mubr.bf16.gmra.mxu0 %v2359
      %v2449 = vpop.f32.mrf.mxu0
      %v2450 = vadd.f32 0.0, %v2449
      %v2451 = vpop.f32.mrf.mxu0
      %v2452 = vpop.f32.mrf.mxu0
      %v2453 = vadd.f32 0.0, %v2452
      %v2454 = vpop.f32.mrf.mxu0
      %2455 = vmatprep.mubr.bf16.mxu0 0
      %2456 = vmatmul.mubr.bf16.gmra.mxu0 %v2362
      %v2457 = vpop.f32.mrf.mxu0
      %v2458 = vadd.f32 0.0, %v2457
      %v2459 = vpop.f32.mrf.mxu0
      %v2460 = vpop.f32.mrf.mxu0
      %v2461 = vadd.f32 0.0, %v2460
      %v2462 = vpop.f32.mrf.mxu0
      %2463 = vmatprep.mubr.bf16.mxu0 0
      %2464 = vmatmul.mubr.bf16.gmra.mxu0 %v2365
      %v2465 = vpop.f32.mrf.mxu0
      %v2466 = vadd.f32 0.0, %v2465
      %v2467 = vpop.f32.mrf.mxu0
      %v2468 = vpop.f32.mrf.mxu0
      %v2469 = vadd.f32 0.0, %v2468
      %v2470 = vpop.f32.mrf.mxu0
      %2471 = vdwg.mxu0
      %v2472 = vpack.c.bf16 %v2405, %v2402
      %v2473 = vpack.c.bf16 %v2413, %v2410
      %v2474 = vpack.c.bf16 %v2421, %v2418
      %v2475 = vpack.c.bf16 %v2429, %v2426
      %v2476 = vpack.c.bf16 %v2437, %v2434
      %v2477 = vpack.c.bf16 %v2445, %v2442
      %v2478 = vpack.c.bf16 %v2453, %v2450
      %v2479 = vpack.c.bf16 %v2461, %v2458
      %v2480 = vpack.c.bf16 %v2469, %v2466
      %v2481 = vld [vmem:[%s7] sm:$0xf]
      %v2482 = vld [vmem:[%s7 + $0x4] sm:$0xf]
      %v2483 = vld [vmem:[%s7 + $0x8] sm:$0xf]
      %v2484 = vld [vmem:[%s7 + $0xc] sm:$0xf]
      %v2485 = vld [vmem:[%s7 + $0x10] sm:$0xf]
      %v2486 = vld [vmem:[%s7 + $0x14] sm:$0xf]
      %v2487 = vld [vmem:[%s7 + $0x18] sm:$0xf]
      %v2488 = vld [vmem:[%s7 + $0x1c] sm:$0xf]
      %v2489 = vld [vmem:[%s7 + $0x20] sm:$0xf]
      %v2490 = vld [vmem:[%s7 + $0x24] sm:$0xf]
      %v2491 = vld [vmem:[%s7 + $0x28] sm:$0xf]
      %v2492 = vld [vmem:[%s7 + $0x2c] sm:$0xf]
      %v2493 = vld [vmem:[%s7 + $0x30] sm:$0xf]
      %v2494 = vld [vmem:[%s7 + $0x34] sm:$0xf]
      %v2495 = vld [vmem:[%s7 + $0x38] sm:$0xf]
      %v2496 = vld [vmem:[%s7 + $0x3c] sm:$0xf]
      %v2497 = vld [vmem:[%s7 + $0x40] sm:$0xf]
      %v2498 = vld [vmem:[%s7 + $0x44] sm:$0xf]
      %v2499 = vld [vmem:[%s7 + $0x48] sm:$0xf]
      %v2500 = vld [vmem:[%s7 + $0x4c] sm:$0xf]
      %v2501 = vld [vmem:[%s7 + $0x50] sm:$0xf]
      %v2502 = vld [vmem:[%s7 + $0x54] sm:$0xf]
      %v2503 = vld [vmem:[%s7 + $0x58] sm:$0xf]
      %v2504 = vld [vmem:[%s7 + $0x5c] sm:$0xf]
      %v2505 = vld [vmem:[%s7 + $0x60] sm:$0xf]
      %v2506 = vld [vmem:[%s7 + $0x64] sm:$0xf]
      %v2507 = vld [vmem:[%s7 + $0x68] sm:$0xf]
      %v2508 = vld [vmem:[%s7 + $0x6c] sm:$0xf]
      %v2509 = vld [vmem:[%s7 + $0x70] sm:$0xf]
      %v2510 = vld [vmem:[%s7 + $0x74] sm:$0xf]
      %v2511 = vld [vmem:[%s7 + $0x78] sm:$0xf]
      %v2512 = vld [vmem:[%s7 + $0x7c] sm:$0xf]
      %v2529 = vunpack.c.l.b16 %v2497
      %v2530 = vunpack.c.l.b16 %v2498
      %v2531 = vunpack.c.l.b16 %v2499
      %v2532 = vunpack.c.l.b16 %v2500
      %v2533 = vunpack.c.l.b16 %v2501
      %v2534 = vunpack.c.l.b16 %v2502
      %v2535 = vunpack.c.l.b16 %v2503
      %v2536 = vunpack.c.l.b16 %v2504
      %v2537 = vunpack.c.l.b16 %v2505
      %v2538 = vunpack.c.l.b16 %v2506
      %v2539 = vunpack.c.l.b16 %v2507
      %v2540 = vunpack.c.l.b16 %v2508
      %v2541 = vunpack.c.l.b16 %v2509
      %v2542 = vunpack.c.l.b16 %v2510
      %v2543 = vunpack.c.l.b16 %v2511
      %v2544 = vunpack.c.l.b16 %v2512
      %v2545 = vpack.c.b16 %v2530, %v2529
      %v2546 = vpack.c.b16 %v2532, %v2531
      %v2547 = vpack.c.b16 %v2534, %v2533
      %v2548 = vpack.c.b16 %v2536, %v2535
      %v2549 = vpack.c.b16 %v2538, %v2537
      %v2550 = vpack.c.b16 %v2540, %v2539
      %v2551 = vpack.c.b16 %v2542, %v2541
      %v2552 = vpack.c.b16 %v2544, %v2543
      %2561 = vmatprep.subr.bf16.mxu0 0
      %2562 = vmatpush1.bf16.msra.mxu0 %v2552
      %2563 = vmatprep.subr.bf16.mxu0 0
      %2564 = vmatpush1.bf16.msra.mxu0 %v2551
      %2565 = vmatprep.subr.bf16.mxu0 0
      %2566 = vmatpush1.bf16.msra.mxu0 %v2550
      %2567 = vmatprep.subr.bf16.mxu0 0
      %2568 = vmatpush1.bf16.msra.mxu0 %v2549
      %2569 = vmatprep.subr.bf16.mxu0 0
      %2570 = vmatpush1.bf16.msra.mxu0 %v2548
      %2571 = vmatprep.subr.bf16.mxu0 0
      %2572 = vmatpush1.bf16.msra.mxu0 %v2547
      %2573 = vmatprep.subr.bf16.mxu0 0
      %2574 = vmatpush1.bf16.msra.mxu0 %v2546
      %2575 = vmatprep.subr.bf16.mxu0 0
      %2576 = vmatpush1.bf16.msra.mxu0 %v2545
      %2577 = vmatprep.subr.bf16.mxu0 0
      %2578 = vmatpush2.bf16.msra.mxu0 0
      %2579 = vmatprep.subr.bf16.mxu0 0
      %2580 = vmatpush2.bf16.msra.mxu0 0
      %2581 = vmatprep.subr.bf16.mxu0 0
      %2582 = vmatpush2.bf16.msra.mxu0 0
      %2583 = vmatprep.subr.bf16.mxu0 0
      %2584 = vmatpush2.bf16.msra.mxu0 0
      %2585 = vmatprep.subr.bf16.mxu0 0
      %2586 = vmatpush2.bf16.msra.mxu0 0
      %2587 = vmatprep.subr.bf16.mxu0 0
      %2588 = vmatpush2.bf16.msra.mxu0 0
      %2589 = vmatprep.subr.bf16.mxu0 0
      %2590 = vmatpush2.bf16.msra.mxu0 0
      %2591 = vmatprep.subr.bf16.mxu0 0
      %2592 = vmatpush2.bf16.msra.mxu0 0
      %2593 = vmatprep.mubr.bf16.mxu0 0
      %2594 = vmatmul.mubr.bf16.gmra.mxu0 %v2473
      %v2595 = vpop.f32.mrf.mxu0
      %v2596 = vadd.f32 0.0, %v2595
      %v2597 = vpop.f32.mrf.mxu0
      %v2598 = vpop.f32.mrf.mxu0
      %v2599 = vadd.f32 0.0, %v2598
      %v2600 = vpop.f32.mrf.mxu0
      %2601 = vdwg.mxu0
      %v2618 = vunpack.c.l.b16 %v2481
      %v2619 = vunpack.c.l.b16 %v2482
      %v2620 = vunpack.c.l.b16 %v2483
      %v2621 = vunpack.c.l.b16 %v2484
      %v2622 = vunpack.c.l.b16 %v2485
      %v2623 = vunpack.c.l.b16 %v2486
      %v2624 = vunpack.c.l.b16 %v2487
      %v2625 = vunpack.c.l.b16 %v2488
      %v2626 = vunpack.c.l.b16 %v2489
      %v2627 = vunpack.c.l.b16 %v2490
      %v2628 = vunpack.c.l.b16 %v2491
      %v2629 = vunpack.c.l.b16 %v2492
      %v2630 = vunpack.c.l.b16 %v2493
      %v2631 = vunpack.c.l.b16 %v2494
      %v2632 = vunpack.c.l.b16 %v2495
      %v2633 = vunpack.c.l.b16 %v2496
      %v2634 = vpack.c.b16 %v2619, %v2618
      %v2635 = vpack.c.b16 %v2621, %v2620
      %v2636 = vpack.c.b16 %v2623, %v2622
      %v2637 = vpack.c.b16 %v2625, %v2624
      %v2638 = vpack.c.b16 %v2627, %v2626
      %v2639 = vpack.c.b16 %v2629, %v2628
      %v2640 = vpack.c.b16 %v2631, %v2630
      %v2641 = vpack.c.b16 %v2633, %v2632
      %2650 = vmatprep.subr.bf16.mxu0 0
      %2651 = vmatpush1.bf16.msra.mxu0 %v2641
      %2652 = vmatprep.subr.bf16.mxu0 0
      %2653 = vmatpush1.bf16.msra.mxu0 %v2640
      %2654 = vmatprep.subr.bf16.mxu0 0
      %2655 = vmatpush1.bf16.msra.mxu0 %v2639
      %2656 = vmatprep.subr.bf16.mxu0 0
      %2657 = vmatpush1.bf16.msra.mxu0 %v2638
      %2658 = vmatprep.subr.bf16.mxu0 0
      %2659 = vmatpush1.bf16.msra.mxu0 %v2637
      %2660 = vmatprep.subr.bf16.mxu0 0
      %2661 = vmatpush1.bf16.msra.mxu0 %v2636
      %2662 = vmatprep.subr.bf16.mxu0 0
      %2663 = vmatpush1.bf16.msra.mxu0 %v2635
      %2664 = vmatprep.subr.bf16.mxu0 0
      %2665 = vmatpush1.bf16.msra.mxu0 %v2634
      %2666 = vmatprep.subr.bf16.mxu0 0
      %2667 = vmatpush2.bf16.msra.mxu0 0
      %2668 = vmatprep.subr.bf16.mxu0 0
      %2669 = vmatpush2.bf16.msra.mxu0 0
      %2670 = vmatprep.subr.bf16.mxu0 0
      %2671 = vmatpush2.bf16.msra.mxu0 0
      %2672 = vmatprep.subr.bf16.mxu0 0
      %2673 = vmatpush2.bf16.msra.mxu0 0
      %2674 = vmatprep.subr.bf16.mxu0 0
      %2675 = vmatpush2.bf16.msra.mxu0 0
      %2676 = vmatprep.subr.bf16.mxu0 0
      %2677 = vmatpush2.bf16.msra.mxu0 0
      %2678 = vmatprep.subr.bf16.mxu0 0
      %2679 = vmatpush2.bf16.msra.mxu0 0
      %2680 = vmatprep.subr.bf16.mxu0 0
      %2681 = vmatpush2.bf16.msra.mxu0 0
      %2682 = vmatprep.mubr.bf16.mxu0 0
      %2683 = vmatmul.mubr.bf16.gmra.mxu0 %v2472
      %v2684 = vpop.f32.mrf.mxu0
      %v2685 = vadd.f32 %v2596, %v2684
      %v2686 = vpop.f32.mrf.mxu0
      %v2687 = vpop.f32.mrf.mxu0
      %v2688 = vadd.f32 %v2599, %v2687
      %v2689 = vpop.f32.mrf.mxu0
      %2690 = vdwg.mxu0
      %v2691 = vld [vmem:[%s7 + $0x80] sm:$0xf]
      %v2692 = vld [vmem:[%s7 + $0x84] sm:$0xf]
      %v2693 = vld [vmem:[%s7 + $0x88] sm:$0xf]
      %v2694 = vld [vmem:[%s7 + $0x8c] sm:$0xf]
      %v2695 = vld [vmem:[%s7 + $0x90] sm:$0xf]
      %v2696 = vld [vmem:[%s7 + $0x94] sm:$0xf]
      %v2697 = vld [vmem:[%s7 + $0x98] sm:$0xf]
      %v2698 = vld [vmem:[%s7 + $0x9c] sm:$0xf]
      %v2699 = vld [vmem:[%s7 + $0xa0] sm:$0xf]
      %v2700 = vld [vmem:[%s7 + $0xa4] sm:$0xf]
      %v2701 = vld [vmem:[%s7 + $0xa8] sm:$0xf]
      %v2702 = vld [vmem:[%s7 + $0xac] sm:$0xf]
      %v2703 = vld [vmem:[%s7 + $0xb0] sm:$0xf]
      %v2704 = vld [vmem:[%s7 + $0xb4] sm:$0xf]
      %v2705 = vld [vmem:[%s7 + $0xb8] sm:$0xf]
      %v2706 = vld [vmem:[%s7 + $0xbc] sm:$0xf]
      %v2723 = vunpack.c.l.b16 %v2691
      %v2724 = vunpack.c.l.b16 %v2692
      %v2725 = vunpack.c.l.b16 %v2693
      %v2726 = vunpack.c.l.b16 %v2694
      %v2727 = vunpack.c.l.b16 %v2695
      %v2728 = vunpack.c.l.b16 %v2696
      %v2729 = vunpack.c.l.b16 %v2697
      %v2730 = vunpack.c.l.b16 %v2698
      %v2731 = vunpack.c.l.b16 %v2699
      %v2732 = vunpack.c.l.b16 %v2700
      %v2733 = vunpack.c.l.b16 %v2701
      %v2734 = vunpack.c.l.b16 %v2702
      %v2735 = vunpack.c.l.b16 %v2703
      %v2736 = vunpack.c.l.b16 %v2704
      %v2737 = vunpack.c.l.b16 %v2705
      %v2738 = vunpack.c.l.b16 %v2706
      %v2739 = vpack.c.b16 %v2724, %v2723
      %v2740 = vpack.c.b16 %v2726, %v2725
      %v2741 = vpack.c.b16 %v2728, %v2727
      %v2742 = vpack.c.b16 %v2730, %v2729
      %v2743 = vpack.c.b16 %v2732, %v2731
      %v2744 = vpack.c.b16 %v2734, %v2733
      %v2745 = vpack.c.b16 %v2736, %v2735
      %v2746 = vpack.c.b16 %v2738, %v2737
      %2755 = vmatprep.subr.bf16.mxu0 0
      %2756 = vmatpush1.bf16.msra.mxu0 %v2746
      %2757 = vmatprep.subr.bf16.mxu0 0
      %2758 = vmatpush1.bf16.msra.mxu0 %v2745
      %2759 = vmatprep.subr.bf16.mxu0 0
      %2760 = vmatpush1.bf16.msra.mxu0 %v2744
      %2761 = vmatprep.subr.bf16.mxu0 0
      %2762 = vmatpush1.bf16.msra.mxu0 %v2743
      %2763 = vmatprep.subr.bf16.mxu0 0
      %2764 = vmatpush1.bf16.msra.mxu0 %v2742
      %2765 = vmatprep.subr.bf16.mxu0 0
      %2766 = vmatpush1.bf16.msra.mxu0 %v2741
      %2767 = vmatprep.subr.bf16.mxu0 0
      %2768 = vmatpush1.bf16.msra.mxu0 %v2740
      %2769 = vmatprep.subr.bf16.mxu0 0
      %2770 = vmatpush1.bf16.msra.mxu0 %v2739
      %2771 = vmatprep.subr.bf16.mxu0 0
      %2772 = vmatpush2.bf16.msra.mxu0 0
      %2773 = vmatprep.subr.bf16.mxu0 0
      %2774 = vmatpush2.bf16.msra.mxu0 0
      %2775 = vmatprep.subr.bf16.mxu0 0
      %2776 = vmatpush2.bf16.msra.mxu0 0
      %2777 = vmatprep.subr.bf16.mxu0 0
      %2778 = vmatpush2.bf16.msra.mxu0 0
      %2779 = vmatprep.subr.bf16.mxu0 0
      %2780 = vmatpush2.bf16.msra.mxu0 0
      %2781 = vmatprep.subr.bf16.mxu0 0
      %2782 = vmatpush2.bf16.msra.mxu0 0
      %2783 = vmatprep.subr.bf16.mxu0 0
      %2784 = vmatpush2.bf16.msra.mxu0 0
      %2785 = vmatprep.subr.bf16.mxu0 0
      %2786 = vmatpush2.bf16.msra.mxu0 0
      %2787 = vmatprep.mubr.bf16.mxu0 0
      %2788 = vmatmul.mubr.bf16.gmra.mxu0 %v2474
      %v2789 = vpop.f32.mrf.mxu0
      %v2790 = vadd.f32 0.0, %v2789
      %v2791 = vpop.f32.mrf.mxu0
      %v2792 = vpop.f32.mrf.mxu0
      %v2793 = vadd.f32 0.0, %v2792
      %v2794 = vpop.f32.mrf.mxu0
      %2795 = vdwg.mxu0
      %v2796 = vadd.f32 %v2685, %v2790
      %v2797 = vadd.f32 %v2688, %v2793
      %v2798 = vld [vmem:[%s7 + $0xc0] sm:$0xf]
      %v2799 = vld [vmem:[%s7 + $0xc4] sm:$0xf]
      %v2800 = vld [vmem:[%s7 + $0xc8] sm:$0xf]
      %v2801 = vld [vmem:[%s7 + $0xcc] sm:$0xf]
      %v2802 = vld [vmem:[%s7 + $0xd0] sm:$0xf]
      %v2803 = vld [vmem:[%s7 + $0xd4] sm:$0xf]
      %v2804 = vld [vmem:[%s7 + $0xd8] sm:$0xf]
      %v2805 = vld [vmem:[%s7 + $0xdc] sm:$0xf]
      %v2806 = vld [vmem:[%s7 + $0xe0] sm:$0xf]
      %v2807 = vld [vmem:[%s7 + $0xe4] sm:$0xf]
      %v2808 = vld [vmem:[%s7 + $0xe8] sm:$0xf]
      %v2809 = vld [vmem:[%s7 + $0xec] sm:$0xf]
      %v2810 = vld [vmem:[%s7 + $0xf0] sm:$0xf]
      %v2811 = vld [vmem:[%s7 + $0xf4] sm:$0xf]
      %v2812 = vld [vmem:[%s7 + $0xf8] sm:$0xf]
      %v2813 = vld [vmem:[%s7 + $0xfc] sm:$0xf]
      %v2830 = vunpack.c.l.b16 %v2798
      %v2831 = vunpack.c.l.b16 %v2799
      %v2832 = vunpack.c.l.b16 %v2800
      %v2833 = vunpack.c.l.b16 %v2801
      %v2834 = vunpack.c.l.b16 %v2802
      %v2835 = vunpack.c.l.b16 %v2803
      %v2836 = vunpack.c.l.b16 %v2804
      %v2837 = vunpack.c.l.b16 %v2805
      %v2838 = vunpack.c.l.b16 %v2806
      %v2839 = vunpack.c.l.b16 %v2807
      %v2840 = vunpack.c.l.b16 %v2808
      %v2841 = vunpack.c.l.b16 %v2809
      %v2842 = vunpack.c.l.b16 %v2810
      %v2843 = vunpack.c.l.b16 %v2811
      %v2844 = vunpack.c.l.b16 %v2812
      %v2845 = vunpack.c.l.b16 %v2813
      %v2846 = vpack.c.b16 %v2831, %v2830
      %v2847 = vpack.c.b16 %v2833, %v2832
      %v2848 = vpack.c.b16 %v2835, %v2834
      %v2849 = vpack.c.b16 %v2837, %v2836
      %v2850 = vpack.c.b16 %v2839, %v2838
      %v2851 = vpack.c.b16 %v2841, %v2840
      %v2852 = vpack.c.b16 %v2843, %v2842
      %v2853 = vpack.c.b16 %v2845, %v2844
      %2862 = vmatprep.subr.bf16.mxu0 0
      %2863 = vmatpush1.bf16.msra.mxu0 %v2853
      %2864 = vmatprep.subr.bf16.mxu0 0
      %2865 = vmatpush1.bf16.msra.mxu0 %v2852
      %2866 = vmatprep.subr.bf16.mxu0 0
      %2867 = vmatpush1.bf16.msra.mxu0 %v2851
      %2868 = vmatprep.subr.bf16.mxu0 0
      %2869 = vmatpush1.bf16.msra.mxu0 %v2850
      %2870 = vmatprep.subr.bf16.mxu0 0
      %2871 = vmatpush1.bf16.msra.mxu0 %v2849
      %2872 = vmatprep.subr.bf16.mxu0 0
      %2873 = vmatpush1.bf16.msra.mxu0 %v2848
      %2874 = vmatprep.subr.bf16.mxu0 0
      %2875 = vmatpush1.bf16.msra.mxu0 %v2847
      %2876 = vmatprep.subr.bf16.mxu0 0
      %2877 = vmatpush1.bf16.msra.mxu0 %v2846
      %2878 = vmatprep.subr.bf16.mxu0 0
      %2879 = vmatpush2.bf16.msra.mxu0 0
      %2880 = vmatprep.subr.bf16.mxu0 0
      %2881 = vmatpush2.bf16.msra.mxu0 0
      %2882 = vmatprep.subr.bf16.mxu0 0
      %2883 = vmatpush2.bf16.msra.mxu0 0
      %2884 = vmatprep.subr.bf16.mxu0 0
      %2885 = vmatpush2.bf16.msra.mxu0 0
      %2886 = vmatprep.subr.bf16.mxu0 0
      %2887 = vmatpush2.bf16.msra.mxu0 0
      %2888 = vmatprep.subr.bf16.mxu0 0
      %2889 = vmatpush2.bf16.msra.mxu0 0
      %2890 = vmatprep.subr.bf16.mxu0 0
      %2891 = vmatpush2.bf16.msra.mxu0 0
      %2892 = vmatprep.subr.bf16.mxu0 0
      %2893 = vmatpush2.bf16.msra.mxu0 0
      %2894 = vmatprep.mubr.bf16.mxu0 0
      %2895 = vmatmul.mubr.bf16.gmra.mxu0 %v2475
      %v2896 = vpop.f32.mrf.mxu0
      %v2897 = vadd.f32 0.0, %v2896
      %v2898 = vpop.f32.mrf.mxu0
      %v2899 = vpop.f32.mrf.mxu0
      %v2900 = vadd.f32 0.0, %v2899
      %v2901 = vpop.f32.mrf.mxu0
      %2902 = vdwg.mxu0
      %v2903 = vadd.f32 %v2796, %v2897
      %v2904 = vadd.f32 %v2797, %v2900
      %v2905 = vld [vmem:[%s7 + $0x100] sm:$0xf]
      %v2906 = vld [vmem:[%s7 + $0x104] sm:$0xf]
      %v2907 = vld [vmem:[%s7 + $0x108] sm:$0xf]
      %v2908 = vld [vmem:[%s7 + $0x10c] sm:$0xf]
      %v2909 = vld [vmem:[%s7 + $0x110] sm:$0xf]
      %v2910 = vld [vmem:[%s7 + $0x114] sm:$0xf]
      %v2911 = vld [vmem:[%s7 + $0x118] sm:$0xf]
      %v2912 = vld [vmem:[%s7 + $0x11c] sm:$0xf]
      %v2913 = vld [vmem:[%s7 + $0x120] sm:$0xf]
      %v2914 = vld [vmem:[%s7 + $0x124] sm:$0xf]
      %v2915 = vld [vmem:[%s7 + $0x128] sm:$0xf]
      %v2916 = vld [vmem:[%s7 + $0x12c] sm:$0xf]
      %v2917 = vld [vmem:[%s7 + $0x130] sm:$0xf]
      %v2918 = vld [vmem:[%s7 + $0x134] sm:$0xf]
      %v2919 = vld [vmem:[%s7 + $0x138] sm:$0xf]
      %v2920 = vld [vmem:[%s7 + $0x13c] sm:$0xf]
      %v2937 = vunpack.c.l.b16 %v2905
      %v2938 = vunpack.c.l.b16 %v2906
      %v2939 = vunpack.c.l.b16 %v2907
      %v2940 = vunpack.c.l.b16 %v2908
      %v2941 = vunpack.c.l.b16 %v2909
      %v2942 = vunpack.c.l.b16 %v2910
      %v2943 = vunpack.c.l.b16 %v2911
      %v2944 = vunpack.c.l.b16 %v2912
      %v2945 = vunpack.c.l.b16 %v2913
      %v2946 = vunpack.c.l.b16 %v2914
      %v2947 = vunpack.c.l.b16 %v2915
      %v2948 = vunpack.c.l.b16 %v2916
      %v2949 = vunpack.c.l.b16 %v2917
      %v2950 = vunpack.c.l.b16 %v2918
      %v2951 = vunpack.c.l.b16 %v2919
      %v2952 = vunpack.c.l.b16 %v2920
      %v2953 = vpack.c.b16 %v2938, %v2937
      %v2954 = vpack.c.b16 %v2940, %v2939
      %v2955 = vpack.c.b16 %v2942, %v2941
      %v2956 = vpack.c.b16 %v2944, %v2943
      %v2957 = vpack.c.b16 %v2946, %v2945
      %v2958 = vpack.c.b16 %v2948, %v2947
      %v2959 = vpack.c.b16 %v2950, %v2949
      %v2960 = vpack.c.b16 %v2952, %v2951
      %2969 = vmatprep.subr.bf16.mxu0 0
      %2970 = vmatpush1.bf16.msra.mxu0 %v2960
      %2971 = vmatprep.subr.bf16.mxu0 0
      %2972 = vmatpush1.bf16.msra.mxu0 %v2959
      %2973 = vmatprep.subr.bf16.mxu0 0
      %2974 = vmatpush1.bf16.msra.mxu0 %v2958
      %2975 = vmatprep.subr.bf16.mxu0 0
      %2976 = vmatpush1.bf16.msra.mxu0 %v2957
      %2977 = vmatprep.subr.bf16.mxu0 0
      %2978 = vmatpush1.bf16.msra.mxu0 %v2956
      %2979 = vmatprep.subr.bf16.mxu0 0
      %2980 = vmatpush1.bf16.msra.mxu0 %v2955
      %2981 = vmatprep.subr.bf16.mxu0 0
      %2982 = vmatpush1.bf16.msra.mxu0 %v2954
      %2983 = vmatprep.subr.bf16.mxu0 0
      %2984 = vmatpush1.bf16.msra.mxu0 %v2953
      %2985 = vmatprep.subr.bf16.mxu0 0
      %2986 = vmatpush2.bf16.msra.mxu0 0
      %2987 = vmatprep.subr.bf16.mxu0 0
      %2988 = vmatpush2.bf16.msra.mxu0 0
      %2989 = vmatprep.subr.bf16.mxu0 0
      %2990 = vmatpush2.bf16.msra.mxu0 0
      %2991 = vmatprep.subr.bf16.mxu0 0
      %2992 = vmatpush2.bf16.msra.mxu0 0
      %2993 = vmatprep.subr.bf16.mxu0 0
      %2994 = vmatpush2.bf16.msra.mxu0 0
      %2995 = vmatprep.subr.bf16.mxu0 0
      %2996 = vmatpush2.bf16.msra.mxu0 0
      %2997 = vmatprep.subr.bf16.mxu0 0
      %2998 = vmatpush2.bf16.msra.mxu0 0
      %2999 = vmatprep.subr.bf16.mxu0 0
      %3000 = vmatpush2.bf16.msra.mxu0 0
      %3001 = vmatprep.mubr.bf16.mxu0 0
      %3002 = vmatmul.mubr.bf16.gmra.mxu0 %v2476
      %v3003 = vpop.f32.mrf.mxu0
      %v3004 = vadd.f32 0.0, %v3003
      %v3005 = vpop.f32.mrf.mxu0
      %v3006 = vpop.f32.mrf.mxu0
      %v3007 = vadd.f32 0.0, %v3006
      %v3008 = vpop.f32.mrf.mxu0
      %3009 = vdwg.mxu0
      %v3010 = vadd.f32 %v2903, %v3004
      %v3011 = vadd.f32 %v2904, %v3007
      %v3012 = vld [vmem:[%s7 + $0x140] sm:$0xf]
      %v3013 = vld [vmem:[%s7 + $0x144] sm:$0xf]
      %v3014 = vld [vmem:[%s7 + $0x148] sm:$0xf]
      %v3015 = vld [vmem:[%s7 + $0x14c] sm:$0xf]
      %v3016 = vld [vmem:[%s7 + $0x150] sm:$0xf]
      %v3017 = vld [vmem:[%s7 + $0x154] sm:$0xf]
      %v3018 = vld [vmem:[%s7 + $0x158] sm:$0xf]
      %v3019 = vld [vmem:[%s7 + $0x15c] sm:$0xf]
      %v3020 = vld [vmem:[%s7 + $0x160] sm:$0xf]
      %v3021 = vld [vmem:[%s7 + $0x164] sm:$0xf]
      %v3022 = vld [vmem:[%s7 + $0x168] sm:$0xf]
      %v3023 = vld [vmem:[%s7 + $0x16c] sm:$0xf]
      %v3024 = vld [vmem:[%s7 + $0x170] sm:$0xf]
      %v3025 = vld [vmem:[%s7 + $0x174] sm:$0xf]
      %v3026 = vld [vmem:[%s7 + $0x178] sm:$0xf]
      %v3027 = vld [vmem:[%s7 + $0x17c] sm:$0xf]
      %v3044 = vunpack.c.l.b16 %v3012
      %v3045 = vunpack.c.l.b16 %v3013
      %v3046 = vunpack.c.l.b16 %v3014
      %v3047 = vunpack.c.l.b16 %v3015
      %v3048 = vunpack.c.l.b16 %v3016
      %v3049 = vunpack.c.l.b16 %v3017
      %v3050 = vunpack.c.l.b16 %v3018
      %v3051 = vunpack.c.l.b16 %v3019
      %v3052 = vunpack.c.l.b16 %v3020
      %v3053 = vunpack.c.l.b16 %v3021
      %v3054 = vunpack.c.l.b16 %v3022
      %v3055 = vunpack.c.l.b16 %v3023
      %v3056 = vunpack.c.l.b16 %v3024
      %v3057 = vunpack.c.l.b16 %v3025
      %v3058 = vunpack.c.l.b16 %v3026
      %v3059 = vunpack.c.l.b16 %v3027
      %v3060 = vpack.c.b16 %v3045, %v3044
      %v3061 = vpack.c.b16 %v3047, %v3046
      %v3062 = vpack.c.b16 %v3049, %v3048
      %v3063 = vpack.c.b16 %v3051, %v3050
      %v3064 = vpack.c.b16 %v3053, %v3052
      %v3065 = vpack.c.b16 %v3055, %v3054
      %v3066 = vpack.c.b16 %v3057, %v3056
      %v3067 = vpack.c.b16 %v3059, %v3058
      %3076 = vmatprep.subr.bf16.mxu0 0
      %3077 = vmatpush1.bf16.msra.mxu0 %v3067
      %3078 = vmatprep.subr.bf16.mxu0 0
      %3079 = vmatpush1.bf16.msra.mxu0 %v3066
      %3080 = vmatprep.subr.bf16.mxu0 0
      %3081 = vmatpush1.bf16.msra.mxu0 %v3065
      %3082 = vmatprep.subr.bf16.mxu0 0
      %3083 = vmatpush1.bf16.msra.mxu0 %v3064
      %3084 = vmatprep.subr.bf16.mxu0 0
      %3085 = vmatpush1.bf16.msra.mxu0 %v3063
      %3086 = vmatprep.subr.bf16.mxu0 0
      %3087 = vmatpush1.bf16.msra.mxu0 %v3062
      %3088 = vmatprep.subr.bf16.mxu0 0
      %3089 = vmatpush1.bf16.msra.mxu0 %v3061
      %3090 = vmatprep.subr.bf16.mxu0 0
      %3091 = vmatpush1.bf16.msra.mxu0 %v3060
      %3092 = vmatprep.subr.bf16.mxu0 0
      %3093 = vmatpush2.bf16.msra.mxu0 0
      %3094 = vmatprep.subr.bf16.mxu0 0
      %3095 = vmatpush2.bf16.msra.mxu0 0
      %3096 = vmatprep.subr.bf16.mxu0 0
      %3097 = vmatpush2.bf16.msra.mxu0 0
      %3098 = vmatprep.subr.bf16.mxu0 0
      %3099 = vmatpush2.bf16.msra.mxu0 0
      %3100 = vmatprep.subr.bf16.mxu0 0
      %3101 = vmatpush2.bf16.msra.mxu0 0
      %3102 = vmatprep.subr.bf16.mxu0 0
      %3103 = vmatpush2.bf16.msra.mxu0 0
      %3104 = vmatprep.subr.bf16.mxu0 0
      %3105 = vmatpush2.bf16.msra.mxu0 0
      %3106 = vmatprep.subr.bf16.mxu0 0
      %3107 = vmatpush2.bf16.msra.mxu0 0
      %3108 = vmatprep.mubr.bf16.mxu0 0
      %3109 = vmatmul.mubr.bf16.gmra.mxu0 %v2477
      %v3110 = vpop.f32.mrf.mxu0
      %v3111 = vadd.f32 0.0, %v3110
      %v3112 = vpop.f32.mrf.mxu0
      %v3113 = vpop.f32.mrf.mxu0
      %v3114 = vadd.f32 0.0, %v3113
      %v3115 = vpop.f32.mrf.mxu0
      %3116 = vdwg.mxu0
      %v3117 = vadd.f32 %v3010, %v3111
      %v3118 = vadd.f32 %v3011, %v3114
      %v3119 = vld [vmem:[%s7 + $0x180] sm:$0xf]
      %v3120 = vld [vmem:[%s7 + $0x184] sm:$0xf]
      %v3121 = vld [vmem:[%s7 + $0x188] sm:$0xf]
      %v3122 = vld [vmem:[%s7 + $0x18c] sm:$0xf]
      %v3123 = vld [vmem:[%s7 + $0x190] sm:$0xf]
      %v3124 = vld [vmem:[%s7 + $0x194] sm:$0xf]
      %v3125 = vld [vmem:[%s7 + $0x198] sm:$0xf]
      %v3126 = vld [vmem:[%s7 + $0x19c] sm:$0xf]
      %v3127 = vld [vmem:[%s7 + $0x1a0] sm:$0xf]
      %v3128 = vld [vmem:[%s7 + $0x1a4] sm:$0xf]
      %v3129 = vld [vmem:[%s7 + $0x1a8] sm:$0xf]
      %v3130 = vld [vmem:[%s7 + $0x1ac] sm:$0xf]
      %v3131 = vld [vmem:[%s7 + $0x1b0] sm:$0xf]
      %v3132 = vld [vmem:[%s7 + $0x1b4] sm:$0xf]
      %v3133 = vld [vmem:[%s7 + $0x1b8] sm:$0xf]
      %v3134 = vld [vmem:[%s7 + $0x1bc] sm:$0xf]
      %v3151 = vunpack.c.l.b16 %v3119
      %v3152 = vunpack.c.l.b16 %v3120
      %v3153 = vunpack.c.l.b16 %v3121
      %v3154 = vunpack.c.l.b16 %v3122
      %v3155 = vunpack.c.l.b16 %v3123
      %v3156 = vunpack.c.l.b16 %v3124
      %v3157 = vunpack.c.l.b16 %v3125
      %v3158 = vunpack.c.l.b16 %v3126
      %v3159 = vunpack.c.l.b16 %v3127
      %v3160 = vunpack.c.l.b16 %v3128
      %v3161 = vunpack.c.l.b16 %v3129
      %v3162 = vunpack.c.l.b16 %v3130
      %v3163 = vunpack.c.l.b16 %v3131
      %v3164 = vunpack.c.l.b16 %v3132
      %v3165 = vunpack.c.l.b16 %v3133
      %v3166 = vunpack.c.l.b16 %v3134
      %v3167 = vpack.c.b16 %v3152, %v3151
      %v3168 = vpack.c.b16 %v3154, %v3153
      %v3169 = vpack.c.b16 %v3156, %v3155
      %v3170 = vpack.c.b16 %v3158, %v3157
      %v3171 = vpack.c.b16 %v3160, %v3159
      %v3172 = vpack.c.b16 %v3162, %v3161
      %v3173 = vpack.c.b16 %v3164, %v3163
      %v3174 = vpack.c.b16 %v3166, %v3165
      %3183 = vmatprep.subr.bf16.mxu0 0
      %3184 = vmatpush1.bf16.msra.mxu0 %v3174
      %3185 = vmatprep.subr.bf16.mxu0 0
      %3186 = vmatpush1.bf16.msra.mxu0 %v3173
      %3187 = vmatprep.subr.bf16.mxu0 0
      %3188 = vmatpush1.bf16.msra.mxu0 %v3172
      %3189 = vmatprep.subr.bf16.mxu0 0
      %3190 = vmatpush1.bf16.msra.mxu0 %v3171
      %3191 = vmatprep.subr.bf16.mxu0 0
      %3192 = vmatpush1.bf16.msra.mxu0 %v3170
      %3193 = vmatprep.subr.bf16.mxu0 0
      %3194 = vmatpush1.bf16.msra.mxu0 %v3169
      %3195 = vmatprep.subr.bf16.mxu0 0
      %3196 = vmatpush1.bf16.msra.mxu0 %v3168
      %3197 = vmatprep.subr.bf16.mxu0 0
      %3198 = vmatpush1.bf16.msra.mxu0 %v3167
      %3199 = vmatprep.subr.bf16.mxu0 0
      %3200 = vmatpush2.bf16.msra.mxu0 0
      %3201 = vmatprep.subr.bf16.mxu0 0
      %3202 = vmatpush2.bf16.msra.mxu0 0
      %3203 = vmatprep.subr.bf16.mxu0 0
      %3204 = vmatpush2.bf16.msra.mxu0 0
      %3205 = vmatprep.subr.bf16.mxu0 0
      %3206 = vmatpush2.bf16.msra.mxu0 0
      %3207 = vmatprep.subr.bf16.mxu0 0
      %3208 = vmatpush2.bf16.msra.mxu0 0
      %3209 = vmatprep.subr.bf16.mxu0 0
      %3210 = vmatpush2.bf16.msra.mxu0 0
      %3211 = vmatprep.subr.bf16.mxu0 0
      %3212 = vmatpush2.bf16.msra.mxu0 0
      %3213 = vmatprep.subr.bf16.mxu0 0
      %3214 = vmatpush2.bf16.msra.mxu0 0
      %3215 = vmatprep.mubr.bf16.mxu0 0
      %3216 = vmatmul.mubr.bf16.gmra.mxu0 %v2478
      %v3217 = vpop.f32.mrf.mxu0
      %v3218 = vadd.f32 0.0, %v3217
      %v3219 = vpop.f32.mrf.mxu0
      %v3220 = vpop.f32.mrf.mxu0
      %v3221 = vadd.f32 0.0, %v3220
      %v3222 = vpop.f32.mrf.mxu0
      %3223 = vdwg.mxu0
      %v3224 = vadd.f32 %v3117, %v3218
      %v3225 = vadd.f32 %v3118, %v3221
      %v3226 = vld [vmem:[%s7 + $0x1c0] sm:$0xf]
      %v3227 = vld [vmem:[%s7 + $0x1c4] sm:$0xf]
      %v3228 = vld [vmem:[%s7 + $0x1c8] sm:$0xf]
      %v3229 = vld [vmem:[%s7 + $0x1cc] sm:$0xf]
      %v3230 = vld [vmem:[%s7 + $0x1d0] sm:$0xf]
      %v3231 = vld [vmem:[%s7 + $0x1d4] sm:$0xf]
      %v3232 = vld [vmem:[%s7 + $0x1d8] sm:$0xf]
      %v3233 = vld [vmem:[%s7 + $0x1dc] sm:$0xf]
      %v3234 = vld [vmem:[%s7 + $0x1e0] sm:$0xf]
      %v3235 = vld [vmem:[%s7 + $0x1e4] sm:$0xf]
      %v3236 = vld [vmem:[%s7 + $0x1e8] sm:$0xf]
      %v3237 = vld [vmem:[%s7 + $0x1ec] sm:$0xf]
      %v3238 = vld [vmem:[%s7 + $0x1f0] sm:$0xf]
      %v3239 = vld [vmem:[%s7 + $0x1f4] sm:$0xf]
      %v3240 = vld [vmem:[%s7 + $0x1f8] sm:$0xf]
      %v3241 = vld [vmem:[%s7 + $0x1fc] sm:$0xf]
      %v3258 = vunpack.c.l.b16 %v3226
      %v3259 = vunpack.c.l.b16 %v3227
      %v3260 = vunpack.c.l.b16 %v3228
      %v3261 = vunpack.c.l.b16 %v3229
      %v3262 = vunpack.c.l.b16 %v3230
      %v3263 = vunpack.c.l.b16 %v3231
      %v3264 = vunpack.c.l.b16 %v3232
      %v3265 = vunpack.c.l.b16 %v3233
      %v3266 = vunpack.c.l.b16 %v3234
      %v3267 = vunpack.c.l.b16 %v3235
      %v3268 = vunpack.c.l.b16 %v3236
      %v3269 = vunpack.c.l.b16 %v3237
      %v3270 = vunpack.c.l.b16 %v3238
      %v3271 = vunpack.c.l.b16 %v3239
      %v3272 = vunpack.c.l.b16 %v3240
      %v3273 = vunpack.c.l.b16 %v3241
      %v3274 = vpack.c.b16 %v3259, %v3258
      %v3275 = vpack.c.b16 %v3261, %v3260
      %v3276 = vpack.c.b16 %v3263, %v3262
      %v3277 = vpack.c.b16 %v3265, %v3264
      %v3278 = vpack.c.b16 %v3267, %v3266
      %v3279 = vpack.c.b16 %v3269, %v3268
      %v3280 = vpack.c.b16 %v3271, %v3270
      %v3281 = vpack.c.b16 %v3273, %v3272
      %3290 = vmatprep.subr.bf16.mxu0 0
      %3291 = vmatpush1.bf16.msra.mxu0 %v3281
      %3292 = vmatprep.subr.bf16.mxu0 0
      %3293 = vmatpush1.bf16.msra.mxu0 %v3280
      %3294 = vmatprep.subr.bf16.mxu0 0
      %3295 = vmatpush1.bf16.msra.mxu0 %v3279
      %3296 = vmatprep.subr.bf16.mxu0 0
      %3297 = vmatpush1.bf16.msra.mxu0 %v3278
      %3298 = vmatprep.subr.bf16.mxu0 0
      %3299 = vmatpush1.bf16.msra.mxu0 %v3277
      %3300 = vmatprep.subr.bf16.mxu0 0
      %3301 = vmatpush1.bf16.msra.mxu0 %v3276
      %3302 = vmatprep.subr.bf16.mxu0 0
      %3303 = vmatpush1.bf16.msra.mxu0 %v3275
      %3304 = vmatprep.subr.bf16.mxu0 0
      %3305 = vmatpush1.bf16.msra.mxu0 %v3274
      %3306 = vmatprep.subr.bf16.mxu0 0
      %3307 = vmatpush2.bf16.msra.mxu0 0
      %3308 = vmatprep.subr.bf16.mxu0 0
      %3309 = vmatpush2.bf16.msra.mxu0 0
      %3310 = vmatprep.subr.bf16.mxu0 0
      %3311 = vmatpush2.bf16.msra.mxu0 0
      %3312 = vmatprep.subr.bf16.mxu0 0
      %3313 = vmatpush2.bf16.msra.mxu0 0
      %3314 = vmatprep.subr.bf16.mxu0 0
      %3315 = vmatpush2.bf16.msra.mxu0 0
      %3316 = vmatprep.subr.bf16.mxu0 0
      %3317 = vmatpush2.bf16.msra.mxu0 0
      %3318 = vmatprep.subr.bf16.mxu0 0
      %3319 = vmatpush2.bf16.msra.mxu0 0
      %3320 = vmatprep.subr.bf16.mxu0 0
      %3321 = vmatpush2.bf16.msra.mxu0 0
      %3322 = vmatprep.mubr.bf16.mxu0 0
      %3323 = vmatmul.mubr.bf16.gmra.mxu0 %v2479
      %v3324 = vpop.f32.mrf.mxu0
      %v3325 = vadd.f32 0.0, %v3324
      %v3326 = vpop.f32.mrf.mxu0
      %v3327 = vpop.f32.mrf.mxu0
      %v3328 = vadd.f32 0.0, %v3327
      %v3329 = vpop.f32.mrf.mxu0
      %3330 = vdwg.mxu0
      %v3331 = vadd.f32 %v3224, %v3325
      %v3332 = vadd.f32 %v3225, %v3328
      %v3333 = vld [vmem:[%s7 + $0x200] sm:$0xf]
      %v3334 = vld [vmem:[%s7 + $0x204] sm:$0xf]
      %v3335 = vld [vmem:[%s7 + $0x208] sm:$0xf]
      %v3336 = vld [vmem:[%s7 + $0x20c] sm:$0xf]
      %v3337 = vld [vmem:[%s7 + $0x210] sm:$0xf]
      %v3338 = vld [vmem:[%s7 + $0x214] sm:$0xf]
      %v3339 = vld [vmem:[%s7 + $0x218] sm:$0xf]
      %v3340 = vld [vmem:[%s7 + $0x21c] sm:$0xf]
      %v3341 = vld [vmem:[%s7 + $0x220] sm:$0xf]
      %v3342 = vld [vmem:[%s7 + $0x224] sm:$0xf]
      %v3343 = vld [vmem:[%s7 + $0x228] sm:$0xf]
      %v3344 = vld [vmem:[%s7 + $0x22c] sm:$0xf]
      %v3345 = vld [vmem:[%s7 + $0x230] sm:$0xf]
      %v3346 = vld [vmem:[%s7 + $0x234] sm:$0xf]
      %v3347 = vld [vmem:[%s7 + $0x238] sm:$0xf]
      %v3348 = vld [vmem:[%s7 + $0x23c] sm:$0xf]
      %v3365 = vunpack.c.l.b16 %v3333
      %v3366 = vunpack.c.l.b16 %v3334
      %v3367 = vunpack.c.l.b16 %v3335
      %v3368 = vunpack.c.l.b16 %v3336
      %v3369 = vunpack.c.l.b16 %v3337
      %v3370 = vunpack.c.l.b16 %v3338
      %v3371 = vunpack.c.l.b16 %v3339
      %v3372 = vunpack.c.l.b16 %v3340
      %v3373 = vunpack.c.l.b16 %v3341
      %v3374 = vunpack.c.l.b16 %v3342
      %v3375 = vunpack.c.l.b16 %v3343
      %v3376 = vunpack.c.l.b16 %v3344
      %v3377 = vunpack.c.l.b16 %v3345
      %v3378 = vunpack.c.l.b16 %v3346
      %v3379 = vunpack.c.l.b16 %v3347
      %v3380 = vunpack.c.l.b16 %v3348
      %v3381 = vpack.c.b16 %v3366, %v3365
      %v3382 = vpack.c.b16 %v3368, %v3367
      %v3383 = vpack.c.b16 %v3370, %v3369
      %v3384 = vpack.c.b16 %v3372, %v3371
      %v3385 = vpack.c.b16 %v3374, %v3373
      %v3386 = vpack.c.b16 %v3376, %v3375
      %v3387 = vpack.c.b16 %v3378, %v3377
      %v3388 = vpack.c.b16 %v3380, %v3379
      %3397 = vmatprep.subr.bf16.mxu0 0
      %3398 = vmatpush1.bf16.msra.mxu0 %v3388
      %3399 = vmatprep.subr.bf16.mxu0 0
      %3400 = vmatpush1.bf16.msra.mxu0 %v3387
      %3401 = vmatprep.subr.bf16.mxu0 0
      %3402 = vmatpush1.bf16.msra.mxu0 %v3386
      %3403 = vmatprep.subr.bf16.mxu0 0
      %3404 = vmatpush1.bf16.msra.mxu0 %v3385
      %3405 = vmatprep.subr.bf16.mxu0 0
      %3406 = vmatpush1.bf16.msra.mxu0 %v3384
      %3407 = vmatprep.subr.bf16.mxu0 0
      %3408 = vmatpush1.bf16.msra.mxu0 %v3383
      %3409 = vmatprep.subr.bf16.mxu0 0
      %3410 = vmatpush1.bf16.msra.mxu0 %v3382
      %3411 = vmatprep.subr.bf16.mxu0 0
      %3412 = vmatpush1.bf16.msra.mxu0 %v3381
      %3413 = vmatprep.subr.bf16.mxu0 0
      %3414 = vmatpush2.bf16.msra.mxu0 0
      %3415 = vmatprep.subr.bf16.mxu0 0
      %3416 = vmatpush2.bf16.msra.mxu0 0
      %3417 = vmatprep.subr.bf16.mxu0 0
      %3418 = vmatpush2.bf16.msra.mxu0 0
      %3419 = vmatprep.subr.bf16.mxu0 0
      %3420 = vmatpush2.bf16.msra.mxu0 0
      %3421 = vmatprep.subr.bf16.mxu0 0
      %3422 = vmatpush2.bf16.msra.mxu0 0
      %3423 = vmatprep.subr.bf16.mxu0 0
      %3424 = vmatpush2.bf16.msra.mxu0 0
      %3425 = vmatprep.subr.bf16.mxu0 0
      %3426 = vmatpush2.bf16.msra.mxu0 0
      %3427 = vmatprep.subr.bf16.mxu0 0
      %3428 = vmatpush2.bf16.msra.mxu0 0
      %3429 = vmatprep.mubr.bf16.mxu0 0
      %3430 = vmatmul.mubr.bf16.gmra.mxu0 %v2480
      %v3431 = vpop.f32.mrf.mxu0
      %v3432 = vadd.f32 0.0, %v3431
      %v3433 = vpop.f32.mrf.mxu0
      %v3434 = vpop.f32.mrf.mxu0
      %v3435 = vadd.f32 0.0, %v3434
      %v3436 = vpop.f32.mrf.mxu0
      %3437 = vdwg.mxu0
      %v3438 = vadd.f32 %v3331, %v3432
      %v3439 = vadd.f32 %v3332, %v3435
      %v3440 = vld [vmem:[%s8] sm:$0x1]
      %v3442 = vlaneseq
      %v3443 = vshrl.u32 %v3442, 7
      %v3444 = vsub.s32 0, %v3443
      %v3445 = vrot.slane %v3440, %v3444
      %v3447 = vadd.f32 %v3438, %v3445
      %v3448 = vadd.f32 %v3439, %v3445
      %v3449 = vmax.f32 %v3447, 0.0
      %v3450 = vmax.f32 %v3448, 0.0
      %v3451 = vpack.c.bf16 %v3450, %v3449
      %3452 = vmatprep.subr.bf16.mxu0 0
      %3453 = vmatpush1.bf16.msra.mxu0 0
      %3454 = vmatprep.subr.bf16.mxu0 0
      %3455 = vmatpush1.bf16.msra.mxu0 0
      %3456 = vmatprep.subr.bf16.mxu0 0
      %3457 = vmatpush1.bf16.msra.mxu0 0
      %3458 = vmatprep.subr.bf16.mxu0 0
      %3459 = vmatpush1.bf16.msra.mxu0 0
      %3460 = vmatprep.subr.bf16.mxu0 0
      %3461 = vmatpush1.bf16.msra.mxu0 0
      %3462 = vmatprep.subr.bf16.mxu0 0
      %3463 = vmatpush1.bf16.msra.mxu0 0
      %3464 = vmatprep.subr.bf16.mxu0 0
      %3465 = vmatpush1.bf16.msra.mxu0 0
      %3466 = vmatprep.subr.bf16.mxu0 0
      %3467 = vmatpush1.bf16.msra.mxu0 %v3451
      %3468 = vmatprep.subr.bf16.mxu0 0
      %3469 = vmatpush2.bf16.msra.mxu0 0
      %3470 = vmatprep.subr.bf16.mxu0 0
      %3471 = vmatpush2.bf16.msra.mxu0 0
      %3472 = vmatprep.subr.bf16.mxu0 0
      %3473 = vmatpush2.bf16.msra.mxu0 0
      %3474 = vmatprep.subr.bf16.mxu0 0
      %3475 = vmatpush2.bf16.msra.mxu0 0
      %3476 = vmatprep.subr.bf16.mxu0 0
      %3477 = vmatpush2.bf16.msra.mxu0 0
      %3478 = vmatprep.subr.bf16.mxu0 0
      %3479 = vmatpush2.bf16.msra.mxu0 0
      %3480 = vmatprep.subr.bf16.mxu0 0
      %3481 = vmatpush2.bf16.msra.mxu0 0
      %3482 = vmatprep.subr.bf16.mxu0 0
      %3483 = vmatpush2.bf16.msra.mxu0 0
      %3484 = vmatprep.mubr.bf16.mxu0 0
      %3485 = vmatmul.mubr.bf16.gmra.mxu0 %v2341
      %v3486 = vpop.f32.mrf.mxu0
      %v3487 = vadd.f32 0.0, %v3486
      %v3488 = vpop.f32.mrf.mxu0
      %v3489 = vpop.f32.mrf.mxu0
      %v3490 = vadd.f32 0.0, %v3489
      %v3491 = vpop.f32.mrf.mxu0
      %3492 = vmatprep.mubr.bf16.mxu0 0
      %3493 = vmatmul.mubr.bf16.gmra.mxu0 %v2344
      %v3494 = vpop.f32.mrf.mxu0
      %v3495 = vadd.f32 0.0, %v3494
      %v3496 = vpop.f32.mrf.mxu0
      %v3497 = vpop.f32.mrf.mxu0
      %v3498 = vadd.f32 0.0, %v3497
      %v3499 = vpop.f32.mrf.mxu0
      %3500 = vmatprep.mubr.bf16.mxu0 0
      %3501 = vmatmul.mubr.bf16.gmra.mxu0 %v2347
      %v3502 = vpop.f32.mrf.mxu0
      %v3503 = vadd.f32 0.0, %v3502
      %v3504 = vpop.f32.mrf.mxu0
      %v3505 = vpop.f32.mrf.mxu0
      %v3506 = vadd.f32 0.0, %v3505
      %v3507 = vpop.f32.mrf.mxu0
      %3508 = vmatprep.mubr.bf16.mxu0 0
      %3509 = vmatmul.mubr.bf16.gmra.mxu0 %v2350
      %v3510 = vpop.f32.mrf.mxu0
      %v3511 = vadd.f32 0.0, %v3510
      %v3512 = vpop.f32.mrf.mxu0
      %v3513 = vpop.f32.mrf.mxu0
      %v3514 = vadd.f32 0.0, %v3513
      %v3515 = vpop.f32.mrf.mxu0
      %3516 = vmatprep.mubr.bf16.mxu0 0
      %3517 = vmatmul.mubr.bf16.gmra.mxu0 %v2353
      %v3518 = vpop.f32.mrf.mxu0
      %v3519 = vadd.f32 0.0, %v3518
      %v3520 = vpop.f32.mrf.mxu0
      %v3521 = vpop.f32.mrf.mxu0
      %v3522 = vadd.f32 0.0, %v3521
      %v3523 = vpop.f32.mrf.mxu0
      %3524 = vmatprep.mubr.bf16.mxu0 0
      %3525 = vmatmul.mubr.bf16.gmra.mxu0 %v2356
      %v3526 = vpop.f32.mrf.mxu0
      %v3527 = vadd.f32 0.0, %v3526
      %v3528 = vpop.f32.mrf.mxu0
      %v3529 = vpop.f32.mrf.mxu0
      %v3530 = vadd.f32 0.0, %v3529
      %v3531 = vpop.f32.mrf.mxu0
      %3532 = vmatprep.mubr.bf16.mxu0 0
      %3533 = vmatmul.mubr.bf16.gmra.mxu0 %v2359
      %v3534 = vpop.f32.mrf.mxu0
      %v3535 = vadd.f32 0.0, %v3534
      %v3536 = vpop.f32.mrf.mxu0
      %v3537 = vpop.f32.mrf.mxu0
      %v3538 = vadd.f32 0.0, %v3537
      %v3539 = vpop.f32.mrf.mxu0
      %3540 = vmatprep.mubr.bf16.mxu0 0
      %3541 = vmatmul.mubr.bf16.gmra.mxu0 %v2362
      %v3542 = vpop.f32.mrf.mxu0
      %v3543 = vadd.f32 0.0, %v3542
      %v3544 = vpop.f32.mrf.mxu0
      %v3545 = vpop.f32.mrf.mxu0
      %v3546 = vadd.f32 0.0, %v3545
      %v3547 = vpop.f32.mrf.mxu0
      %3548 = vmatprep.mubr.bf16.mxu0 0
      %3549 = vmatmul.mubr.bf16.gmra.mxu0 %v2365
      %v3550 = vpop.f32.mrf.mxu0
      %v3551 = vadd.f32 0.0, %v3550
      %v3552 = vpop.f32.mrf.mxu0
      %v3553 = vpop.f32.mrf.mxu0
      %v3554 = vadd.f32 0.0, %v3553
      %v3555 = vpop.f32.mrf.mxu0
      %3556 = vdwg.mxu0
      %v3557 = vpack.c.bf16 %v3490, %v3487
      %v3558 = vpack.c.bf16 %v3498, %v3495
      %v3559 = vpack.c.bf16 %v3506, %v3503
      %v3560 = vpack.c.bf16 %v3514, %v3511
      %v3561 = vpack.c.bf16 %v3522, %v3519
      %v3562 = vpack.c.bf16 %v3530, %v3527
      %v3563 = vpack.c.bf16 %v3538, %v3535
      %v3564 = vpack.c.bf16 %v3546, %v3543
      %v3565 = vpack.c.bf16 %v3554, %v3551
      %v3566 = vld [vmem:[%s9] sm:$0xf]
      %v3567 = vld [vmem:[%s9 + $0x4] sm:$0xf]
      %v3568 = vld [vmem:[%s9 + $0x8] sm:$0xf]
      %v3569 = vld [vmem:[%s9 + $0xc] sm:$0xf]
      %v3570 = vld [vmem:[%s9 + $0x10] sm:$0xf]
      %v3571 = vld [vmem:[%s9 + $0x14] sm:$0xf]
      %v3572 = vld [vmem:[%s9 + $0x18] sm:$0xf]
      %v3573 = vld [vmem:[%s9 + $0x1c] sm:$0xf]
      %v3574 = vld [vmem:[%s9 + $0x20] sm:$0xf]
      %v3575 = vld [vmem:[%s9 + $0x24] sm:$0xf]
      %v3576 = vld [vmem:[%s9 + $0x28] sm:$0xf]
      %v3577 = vld [vmem:[%s9 + $0x2c] sm:$0xf]
      %v3578 = vld [vmem:[%s9 + $0x30] sm:$0xf]
      %v3579 = vld [vmem:[%s9 + $0x34] sm:$0xf]
      %v3580 = vld [vmem:[%s9 + $0x38] sm:$0xf]
      %v3581 = vld [vmem:[%s9 + $0x3c] sm:$0xf]
      %v3582 = vld [vmem:[%s9 + $0x40] sm:$0xf]
      %v3583 = vld [vmem:[%s9 + $0x44] sm:$0xf]
      %v3584 = vld [vmem:[%s9 + $0x48] sm:$0xf]
      %v3585 = vld [vmem:[%s9 + $0x4c] sm:$0xf]
      %v3586 = vld [vmem:[%s9 + $0x50] sm:$0xf]
      %v3587 = vld [vmem:[%s9 + $0x54] sm:$0xf]
      %v3588 = vld [vmem:[%s9 + $0x58] sm:$0xf]
      %v3589 = vld [vmem:[%s9 + $0x5c] sm:$0xf]
      %v3590 = vld [vmem:[%s9 + $0x60] sm:$0xf]
      %v3591 = vld [vmem:[%s9 + $0x64] sm:$0xf]
      %v3592 = vld [vmem:[%s9 + $0x68] sm:$0xf]
      %v3593 = vld [vmem:[%s9 + $0x6c] sm:$0xf]
      %v3594 = vld [vmem:[%s9 + $0x70] sm:$0xf]
      %v3595 = vld [vmem:[%s9 + $0x74] sm:$0xf]
      %v3596 = vld [vmem:[%s9 + $0x78] sm:$0xf]
      %v3597 = vld [vmem:[%s9 + $0x7c] sm:$0xf]
      %v3614 = vunpack.c.l.b16 %v3582
      %v3615 = vunpack.c.l.b16 %v3583
      %v3616 = vunpack.c.l.b16 %v3584
      %v3617 = vunpack.c.l.b16 %v3585
      %v3618 = vunpack.c.l.b16 %v3586
      %v3619 = vunpack.c.l.b16 %v3587
      %v3620 = vunpack.c.l.b16 %v3588
      %v3621 = vunpack.c.l.b16 %v3589
      %v3622 = vunpack.c.l.b16 %v3590
      %v3623 = vunpack.c.l.b16 %v3591
      %v3624 = vunpack.c.l.b16 %v3592
      %v3625 = vunpack.c.l.b16 %v3593
      %v3626 = vunpack.c.l.b16 %v3594
      %v3627 = vunpack.c.l.b16 %v3595
      %v3628 = vunpack.c.l.b16 %v3596
      %v3629 = vunpack.c.l.b16 %v3597
      %v3630 = vpack.c.b16 %v3615, %v3614
      %v3631 = vpack.c.b16 %v3617, %v3616
      %v3632 = vpack.c.b16 %v3619, %v3618
      %v3633 = vpack.c.b16 %v3621, %v3620
      %v3634 = vpack.c.b16 %v3623, %v3622
      %v3635 = vpack.c.b16 %v3625, %v3624
      %v3636 = vpack.c.b16 %v3627, %v3626
      %v3637 = vpack.c.b16 %v3629, %v3628
      %3646 = vmatprep.subr.bf16.mxu0 0
      %3647 = vmatpush1.bf16.msra.mxu0 %v3637
      %3648 = vmatprep.subr.bf16.mxu0 0
      %3649 = vmatpush1.bf16.msra.mxu0 %v3636
      %3650 = vmatprep.subr.bf16.mxu0 0
      %3651 = vmatpush1.bf16.msra.mxu0 %v3635
      %3652 = vmatprep.subr.bf16.mxu0 0
      %3653 = vmatpush1.bf16.msra.mxu0 %v3634
      %3654 = vmatprep.subr.bf16.mxu0 0
      %3655 = vmatpush1.bf16.msra.mxu0 %v3633
      %3656 = vmatprep.subr.bf16.mxu0 0
      %3657 = vmatpush1.bf16.msra.mxu0 %v3632
      %3658 = vmatprep.subr.bf16.mxu0 0
      %3659 = vmatpush1.bf16.msra.mxu0 %v3631
      %3660 = vmatprep.subr.bf16.mxu0 0
      %3661 = vmatpush1.bf16.msra.mxu0 %v3630
      %3662 = vmatprep.subr.bf16.mxu0 0
      %3663 = vmatpush2.bf16.msra.mxu0 0
      %3664 = vmatprep.subr.bf16.mxu0 0
      %3665 = vmatpush2.bf16.msra.mxu0 0
      %3666 = vmatprep.subr.bf16.mxu0 0
      %3667 = vmatpush2.bf16.msra.mxu0 0
      %3668 = vmatprep.subr.bf16.mxu0 0
      %3669 = vmatpush2.bf16.msra.mxu0 0
      %3670 = vmatprep.subr.bf16.mxu0 0
      %3671 = vmatpush2.bf16.msra.mxu0 0
      %3672 = vmatprep.subr.bf16.mxu0 0
      %3673 = vmatpush2.bf16.msra.mxu0 0
      %3674 = vmatprep.subr.bf16.mxu0 0
      %3675 = vmatpush2.bf16.msra.mxu0 0
      %3676 = vmatprep.subr.bf16.mxu0 0
      %3677 = vmatpush2.bf16.msra.mxu0 0
      %3678 = vmatprep.mubr.bf16.mxu0 0
      %3679 = vmatmul.mubr.bf16.gmra.mxu0 %v3558
      %v3680 = vpop.f32.mrf.mxu0
      %v3681 = vadd.f32 0.0, %v3680
      %v3682 = vpop.f32.mrf.mxu0
      %v3683 = vpop.f32.mrf.mxu0
      %v3684 = vadd.f32 0.0, %v3683
      %v3685 = vpop.f32.mrf.mxu0
      %3686 = vdwg.mxu0
      %v3703 = vunpack.c.l.b16 %v3566
      %v3704 = vunpack.c.l.b16 %v3567
      %v3705 = vunpack.c.l.b16 %v3568
      %v3706 = vunpack.c.l.b16 %v3569
      %v3707 = vunpack.c.l.b16 %v3570
      %v3708 = vunpack.c.l.b16 %v3571
      %v3709 = vunpack.c.l.b16 %v3572
      %v3710 = vunpack.c.l.b16 %v3573
      %v3711 = vunpack.c.l.b16 %v3574
      %v3712 = vunpack.c.l.b16 %v3575
      %v3713 = vunpack.c.l.b16 %v3576
      %v3714 = vunpack.c.l.b16 %v3577
      %v3715 = vunpack.c.l.b16 %v3578
      %v3716 = vunpack.c.l.b16 %v3579
      %v3717 = vunpack.c.l.b16 %v3580
      %v3718 = vunpack.c.l.b16 %v3581
      %v3719 = vpack.c.b16 %v3704, %v3703
      %v3720 = vpack.c.b16 %v3706, %v3705
      %v3721 = vpack.c.b16 %v3708, %v3707
      %v3722 = vpack.c.b16 %v3710, %v3709
      %v3723 = vpack.c.b16 %v3712, %v3711
      %v3724 = vpack.c.b16 %v3714, %v3713
      %v3725 = vpack.c.b16 %v3716, %v3715
      %v3726 = vpack.c.b16 %v3718, %v3717
      %3735 = vmatprep.subr.bf16.mxu0 0
      %3736 = vmatpush1.bf16.msra.mxu0 %v3726
      %3737 = vmatprep.subr.bf16.mxu0 0
      %3738 = vmatpush1.bf16.msra.mxu0 %v3725
      %3739 = vmatprep.subr.bf16.mxu0 0
      %3740 = vmatpush1.bf16.msra.mxu0 %v3724
      %3741 = vmatprep.subr.bf16.mxu0 0
      %3742 = vmatpush1.bf16.msra.mxu0 %v3723
      %3743 = vmatprep.subr.bf16.mxu0 0
      %3744 = vmatpush1.bf16.msra.mxu0 %v3722
      %3745 = vmatprep.subr.bf16.mxu0 0
      %3746 = vmatpush1.bf16.msra.mxu0 %v3721
      %3747 = vmatprep.subr.bf16.mxu0 0
      %3748 = vmatpush1.bf16.msra.mxu0 %v3720
      %3749 = vmatprep.subr.bf16.mxu0 0
      %3750 = vmatpush1.bf16.msra.mxu0 %v3719
      %3751 = vmatprep.subr.bf16.mxu0 0
      %3752 = vmatpush2.bf16.msra.mxu0 0
      %3753 = vmatprep.subr.bf16.mxu0 0
      %3754 = vmatpush2.bf16.msra.mxu0 0
      %3755 = vmatprep.subr.bf16.mxu0 0
      %3756 = vmatpush2.bf16.msra.mxu0 0
      %3757 = vmatprep.subr.bf16.mxu0 0
      %3758 = vmatpush2.bf16.msra.mxu0 0
      %3759 = vmatprep.subr.bf16.mxu0 0
      %3760 = vmatpush2.bf16.msra.mxu0 0
      %3761 = vmatprep.subr.bf16.mxu0 0
      %3762 = vmatpush2.bf16.msra.mxu0 0
      %3763 = vmatprep.subr.bf16.mxu0 0
      %3764 = vmatpush2.bf16.msra.mxu0 0
      %3765 = vmatprep.subr.bf16.mxu0 0
      %3766 = vmatpush2.bf16.msra.mxu0 0
      %3767 = vmatprep.mubr.bf16.mxu0 0
      %3768 = vmatmul.mubr.bf16.gmra.mxu0 %v3557
      %v3769 = vpop.f32.mrf.mxu0
      %v3770 = vadd.f32 %v3681, %v3769
      %v3771 = vpop.f32.mrf.mxu0
      %v3772 = vpop.f32.mrf.mxu0
      %v3773 = vadd.f32 %v3684, %v3772
      %v3774 = vpop.f32.mrf.mxu0
      %3775 = vdwg.mxu0
      %v3776 = vld [vmem:[%s9 + $0x80] sm:$0xf]
      %v3777 = vld [vmem:[%s9 + $0x84] sm:$0xf]
      %v3778 = vld [vmem:[%s9 + $0x88] sm:$0xf]
      %v3779 = vld [vmem:[%s9 + $0x8c] sm:$0xf]
      %v3780 = vld [vmem:[%s9 + $0x90] sm:$0xf]
      %v3781 = vld [vmem:[%s9 + $0x94] sm:$0xf]
      %v3782 = vld [vmem:[%s9 + $0x98] sm:$0xf]
      %v3783 = vld [vmem:[%s9 + $0x9c] sm:$0xf]
      %v3784 = vld [vmem:[%s9 + $0xa0] sm:$0xf]
      %v3785 = vld [vmem:[%s9 + $0xa4] sm:$0xf]
      %v3786 = vld [vmem:[%s9 + $0xa8] sm:$0xf]
      %v3787 = vld [vmem:[%s9 + $0xac] sm:$0xf]
      %v3788 = vld [vmem:[%s9 + $0xb0] sm:$0xf]
      %v3789 = vld [vmem:[%s9 + $0xb4] sm:$0xf]
      %v3790 = vld [vmem:[%s9 + $0xb8] sm:$0xf]
      %v3791 = vld [vmem:[%s9 + $0xbc] sm:$0xf]
      %v3808 = vunpack.c.l.b16 %v3776
      %v3809 = vunpack.c.l.b16 %v3777
      %v3810 = vunpack.c.l.b16 %v3778
      %v3811 = vunpack.c.l.b16 %v3779
      %v3812 = vunpack.c.l.b16 %v3780
      %v3813 = vunpack.c.l.b16 %v3781
      %v3814 = vunpack.c.l.b16 %v3782
      %v3815 = vunpack.c.l.b16 %v3783
      %v3816 = vunpack.c.l.b16 %v3784
      %v3817 = vunpack.c.l.b16 %v3785
      %v3818 = vunpack.c.l.b16 %v3786
      %v3819 = vunpack.c.l.b16 %v3787
      %v3820 = vunpack.c.l.b16 %v3788
      %v3821 = vunpack.c.l.b16 %v3789
      %v3822 = vunpack.c.l.b16 %v3790
      %v3823 = vunpack.c.l.b16 %v3791
      %v3824 = vpack.c.b16 %v3809, %v3808
      %v3825 = vpack.c.b16 %v3811, %v3810
      %v3826 = vpack.c.b16 %v3813, %v3812
      %v3827 = vpack.c.b16 %v3815, %v3814
      %v3828 = vpack.c.b16 %v3817, %v3816
      %v3829 = vpack.c.b16 %v3819, %v3818
      %v3830 = vpack.c.b16 %v3821, %v3820
      %v3831 = vpack.c.b16 %v3823, %v3822
      %3840 = vmatprep.subr.bf16.mxu0 0
      %3841 = vmatpush1.bf16.msra.mxu0 %v3831
      %3842 = vmatprep.subr.bf16.mxu0 0
      %3843 = vmatpush1.bf16.msra.mxu0 %v3830
      %3844 = vmatprep.subr.bf16.mxu0 0
      %3845 = vmatpush1.bf16.msra.mxu0 %v3829
      %3846 = vmatprep.subr.bf16.mxu0 0
      %3847 = vmatpush1.bf16.msra.mxu0 %v3828
      %3848 = vmatprep.subr.bf16.mxu0 0
      %3849 = vmatpush1.bf16.msra.mxu0 %v3827
      %3850 = vmatprep.subr.bf16.mxu0 0
      %3851 = vmatpush1.bf16.msra.mxu0 %v3826
      %3852 = vmatprep.subr.bf16.mxu0 0
      %3853 = vmatpush1.bf16.msra.mxu0 %v3825
      %3854 = vmatprep.subr.bf16.mxu0 0
      %3855 = vmatpush1.bf16.msra.mxu0 %v3824
      %3856 = vmatprep.subr.bf16.mxu0 0
      %3857 = vmatpush2.bf16.msra.mxu0 0
      %3858 = vmatprep.subr.bf16.mxu0 0
      %3859 = vmatpush2.bf16.msra.mxu0 0
      %3860 = vmatprep.subr.bf16.mxu0 0
      %3861 = vmatpush2.bf16.msra.mxu0 0
      %3862 = vmatprep.subr.bf16.mxu0 0
      %3863 = vmatpush2.bf16.msra.mxu0 0
      %3864 = vmatprep.subr.bf16.mxu0 0
      %3865 = vmatpush2.bf16.msra.mxu0 0
      %3866 = vmatprep.subr.bf16.mxu0 0
      %3867 = vmatpush2.bf16.msra.mxu0 0
      %3868 = vmatprep.subr.bf16.mxu0 0
      %3869 = vmatpush2.bf16.msra.mxu0 0
      %3870 = vmatprep.subr.bf16.mxu0 0
      %3871 = vmatpush2.bf16.msra.mxu0 0
      %3872 = vmatprep.mubr.bf16.mxu0 0
      %3873 = vmatmul.mubr.bf16.gmra.mxu0 %v3559
      %v3874 = vpop.f32.mrf.mxu0
      %v3875 = vadd.f32 0.0, %v3874
      %v3876 = vpop.f32.mrf.mxu0
      %v3877 = vpop.f32.mrf.mxu0
      %v3878 = vadd.f32 0.0, %v3877
      %v3879 = vpop.f32.mrf.mxu0
      %3880 = vdwg.mxu0
      %v3881 = vadd.f32 %v3770, %v3875
      %v3882 = vadd.f32 %v3773, %v3878
      %v3883 = vld [vmem:[%s9 + $0xc0] sm:$0xf]
      %v3884 = vld [vmem:[%s9 + $0xc4] sm:$0xf]
      %v3885 = vld [vmem:[%s9 + $0xc8] sm:$0xf]
      %v3886 = vld [vmem:[%s9 + $0xcc] sm:$0xf]
      %v3887 = vld [vmem:[%s9 + $0xd0] sm:$0xf]
      %v3888 = vld [vmem:[%s9 + $0xd4] sm:$0xf]
      %v3889 = vld [vmem:[%s9 + $0xd8] sm:$0xf]
      %v3890 = vld [vmem:[%s9 + $0xdc] sm:$0xf]
      %v3891 = vld [vmem:[%s9 + $0xe0] sm:$0xf]
      %v3892 = vld [vmem:[%s9 + $0xe4] sm:$0xf]
      %v3893 = vld [vmem:[%s9 + $0xe8] sm:$0xf]
      %v3894 = vld [vmem:[%s9 + $0xec] sm:$0xf]
      %v3895 = vld [vmem:[%s9 + $0xf0] sm:$0xf]
      %v3896 = vld [vmem:[%s9 + $0xf4] sm:$0xf]
      %v3897 = vld [vmem:[%s9 + $0xf8] sm:$0xf]
      %v3898 = vld [vmem:[%s9 + $0xfc] sm:$0xf]
      %v3915 = vunpack.c.l.b16 %v3883
      %v3916 = vunpack.c.l.b16 %v3884
      %v3917 = vunpack.c.l.b16 %v3885
      %v3918 = vunpack.c.l.b16 %v3886
      %v3919 = vunpack.c.l.b16 %v3887
      %v3920 = vunpack.c.l.b16 %v3888
      %v3921 = vunpack.c.l.b16 %v3889
      %v3922 = vunpack.c.l.b16 %v3890
      %v3923 = vunpack.c.l.b16 %v3891
      %v3924 = vunpack.c.l.b16 %v3892
      %v3925 = vunpack.c.l.b16 %v3893
      %v3926 = vunpack.c.l.b16 %v3894
      %v3927 = vunpack.c.l.b16 %v3895
      %v3928 = vunpack.c.l.b16 %v3896
      %v3929 = vunpack.c.l.b16 %v3897
      %v3930 = vunpack.c.l.b16 %v3898
      %v3931 = vpack.c.b16 %v3916, %v3915
      %v3932 = vpack.c.b16 %v3918, %v3917
      %v3933 = vpack.c.b16 %v3920, %v3919
      %v3934 = vpack.c.b16 %v3922, %v3921
      %v3935 = vpack.c.b16 %v3924, %v3923
      %v3936 = vpack.c.b16 %v3926, %v3925
      %v3937 = vpack.c.b16 %v3928, %v3927
      %v3938 = vpack.c.b16 %v3930, %v3929
      %3947 = vmatprep.subr.bf16.mxu0 0
      %3948 = vmatpush1.bf16.msra.mxu0 %v3938
      %3949 = vmatprep.subr.bf16.mxu0 0
      %3950 = vmatpush1.bf16.msra.mxu0 %v3937
      %3951 = vmatprep.subr.bf16.mxu0 0
      %3952 = vmatpush1.bf16.msra.mxu0 %v3936
      %3953 = vmatprep.subr.bf16.mxu0 0
      %3954 = vmatpush1.bf16.msra.mxu0 %v3935
      %3955 = vmatprep.subr.bf16.mxu0 0
      %3956 = vmatpush1.bf16.msra.mxu0 %v3934
      %3957 = vmatprep.subr.bf16.mxu0 0
      %3958 = vmatpush1.bf16.msra.mxu0 %v3933
      %3959 = vmatprep.subr.bf16.mxu0 0
      %3960 = vmatpush1.bf16.msra.mxu0 %v3932
      %3961 = vmatprep.subr.bf16.mxu0 0
      %3962 = vmatpush1.bf16.msra.mxu0 %v3931
      %3963 = vmatprep.subr.bf16.mxu0 0
      %3964 = vmatpush2.bf16.msra.mxu0 0
      %3965 = vmatprep.subr.bf16.mxu0 0
      %3966 = vmatpush2.bf16.msra.mxu0 0
      %3967 = vmatprep.subr.bf16.mxu0 0
      %3968 = vmatpush2.bf16.msra.mxu0 0
      %3969 = vmatprep.subr.bf16.mxu0 0
      %3970 = vmatpush2.bf16.msra.mxu0 0
      %3971 = vmatprep.subr.bf16.mxu0 0
      %3972 = vmatpush2.bf16.msra.mxu0 0
      %3973 = vmatprep.subr.bf16.mxu0 0
      %3974 = vmatpush2.bf16.msra.mxu0 0
      %3975 = vmatprep.subr.bf16.mxu0 0
      %3976 = vmatpush2.bf16.msra.mxu0 0
      %3977 = vmatprep.subr.bf16.mxu0 0
      %3978 = vmatpush2.bf16.msra.mxu0 0
      %3979 = vmatprep.mubr.bf16.mxu0 0
      %3980 = vmatmul.mubr.bf16.gmra.mxu0 %v3560
      %v3981 = vpop.f32.mrf.mxu0
      %v3982 = vadd.f32 0.0, %v3981
      %v3983 = vpop.f32.mrf.mxu0
      %v3984 = vpop.f32.mrf.mxu0
      %v3985 = vadd.f32 0.0, %v3984
      %v3986 = vpop.f32.mrf.mxu0
      %3987 = vdwg.mxu0
      %v3988 = vadd.f32 %v3881, %v3982
      %v3989 = vadd.f32 %v3882, %v3985
      %v3990 = vld [vmem:[%s9 + $0x100] sm:$0xf]
      %v3991 = vld [vmem:[%s9 + $0x104] sm:$0xf]
      %v3992 = vld [vmem:[%s9 + $0x108] sm:$0xf]
      %v3993 = vld [vmem:[%s9 + $0x10c] sm:$0xf]
      %v3994 = vld [vmem:[%s9 + $0x110] sm:$0xf]
      %v3995 = vld [vmem:[%s9 + $0x114] sm:$0xf]
      %v3996 = vld [vmem:[%s9 + $0x118] sm:$0xf]
      %v3997 = vld [vmem:[%s9 + $0x11c] sm:$0xf]
      %v3998 = vld [vmem:[%s9 + $0x120] sm:$0xf]
      %v3999 = vld [vmem:[%s9 + $0x124] sm:$0xf]
      %v4000 = vld [vmem:[%s9 + $0x128] sm:$0xf]
      %v4001 = vld [vmem:[%s9 + $0x12c] sm:$0xf]
      %v4002 = vld [vmem:[%s9 + $0x130] sm:$0xf]
      %v4003 = vld [vmem:[%s9 + $0x134] sm:$0xf]
      %v4004 = vld [vmem:[%s9 + $0x138] sm:$0xf]
      %v4005 = vld [vmem:[%s9 + $0x13c] sm:$0xf]
      %v4022 = vunpack.c.l.b16 %v3990
      %v4023 = vunpack.c.l.b16 %v3991
      %v4024 = vunpack.c.l.b16 %v3992
      %v4025 = vunpack.c.l.b16 %v3993
      %v4026 = vunpack.c.l.b16 %v3994
      %v4027 = vunpack.c.l.b16 %v3995
      %v4028 = vunpack.c.l.b16 %v3996
      %v4029 = vunpack.c.l.b16 %v3997
      %v4030 = vunpack.c.l.b16 %v3998
      %v4031 = vunpack.c.l.b16 %v3999
      %v4032 = vunpack.c.l.b16 %v4000
      %v4033 = vunpack.c.l.b16 %v4001
      %v4034 = vunpack.c.l.b16 %v4002
      %v4035 = vunpack.c.l.b16 %v4003
      %v4036 = vunpack.c.l.b16 %v4004
      %v4037 = vunpack.c.l.b16 %v4005
      %v4038 = vpack.c.b16 %v4023, %v4022
      %v4039 = vpack.c.b16 %v4025, %v4024
      %v4040 = vpack.c.b16 %v4027, %v4026
      %v4041 = vpack.c.b16 %v4029, %v4028
      %v4042 = vpack.c.b16 %v4031, %v4030
      %v4043 = vpack.c.b16 %v4033, %v4032
      %v4044 = vpack.c.b16 %v4035, %v4034
      %v4045 = vpack.c.b16 %v4037, %v4036
      %4054 = vmatprep.subr.bf16.mxu0 0
      %4055 = vmatpush1.bf16.msra.mxu0 %v4045
      %4056 = vmatprep.subr.bf16.mxu0 0
      %4057 = vmatpush1.bf16.msra.mxu0 %v4044
      %4058 = vmatprep.subr.bf16.mxu0 0
      %4059 = vmatpush1.bf16.msra.mxu0 %v4043
      %4060 = vmatprep.subr.bf16.mxu0 0
      %4061 = vmatpush1.bf16.msra.mxu0 %v4042
      %4062 = vmatprep.subr.bf16.mxu0 0
      %4063 = vmatpush1.bf16.msra.mxu0 %v4041
      %4064 = vmatprep.subr.bf16.mxu0 0
      %4065 = vmatpush1.bf16.msra.mxu0 %v4040
      %4066 = vmatprep.subr.bf16.mxu0 0
      %4067 = vmatpush1.bf16.msra.mxu0 %v4039
      %4068 = vmatprep.subr.bf16.mxu0 0
      %4069 = vmatpush1.bf16.msra.mxu0 %v4038
      %4070 = vmatprep.subr.bf16.mxu0 0
      %4071 = vmatpush2.bf16.msra.mxu0 0
      %4072 = vmatprep.subr.bf16.mxu0 0
      %4073 = vmatpush2.bf16.msra.mxu0 0
      %4074 = vmatprep.subr.bf16.mxu0 0
      %4075 = vmatpush2.bf16.msra.mxu0 0
      %4076 = vmatprep.subr.bf16.mxu0 0
      %4077 = vmatpush2.bf16.msra.mxu0 0
      %4078 = vmatprep.subr.bf16.mxu0 0
      %4079 = vmatpush2.bf16.msra.mxu0 0
      %4080 = vmatprep.subr.bf16.mxu0 0
      %4081 = vmatpush2.bf16.msra.mxu0 0
      %4082 = vmatprep.subr.bf16.mxu0 0
      %4083 = vmatpush2.bf16.msra.mxu0 0
      %4084 = vmatprep.subr.bf16.mxu0 0
      %4085 = vmatpush2.bf16.msra.mxu0 0
      %4086 = vmatprep.mubr.bf16.mxu0 0
      %4087 = vmatmul.mubr.bf16.gmra.mxu0 %v3561
      %v4088 = vpop.f32.mrf.mxu0
      %v4089 = vadd.f32 0.0, %v4088
      %v4090 = vpop.f32.mrf.mxu0
      %v4091 = vpop.f32.mrf.mxu0
      %v4092 = vadd.f32 0.0, %v4091
      %v4093 = vpop.f32.mrf.mxu0
      %4094 = vdwg.mxu0
      %v4095 = vadd.f32 %v3988, %v4089
      %v4096 = vadd.f32 %v3989, %v4092
      %v4097 = vld [vmem:[%s9 + $0x140] sm:$0xf]
      %v4098 = vld [vmem:[%s9 + $0x144] sm:$0xf]
      %v4099 = vld [vmem:[%s9 + $0x148] sm:$0xf]
      %v4100 = vld [vmem:[%s9 + $0x14c] sm:$0xf]
      %v4101 = vld [vmem:[%s9 + $0x150] sm:$0xf]
      %v4102 = vld [vmem:[%s9 + $0x154] sm:$0xf]
      %v4103 = vld [vmem:[%s9 + $0x158] sm:$0xf]
      %v4104 = vld [vmem:[%s9 + $0x15c] sm:$0xf]
      %v4105 = vld [vmem:[%s9 + $0x160] sm:$0xf]
      %v4106 = vld [vmem:[%s9 + $0x164] sm:$0xf]
      %v4107 = vld [vmem:[%s9 + $0x168] sm:$0xf]
      %v4108 = vld [vmem:[%s9 + $0x16c] sm:$0xf]
      %v4109 = vld [vmem:[%s9 + $0x170] sm:$0xf]
      %v4110 = vld [vmem:[%s9 + $0x174] sm:$0xf]
      %v4111 = vld [vmem:[%s9 + $0x178] sm:$0xf]
      %v4112 = vld [vmem:[%s9 + $0x17c] sm:$0xf]
      %v4129 = vunpack.c.l.b16 %v4097
      %v4130 = vunpack.c.l.b16 %v4098
      %v4131 = vunpack.c.l.b16 %v4099
      %v4132 = vunpack.c.l.b16 %v4100
      %v4133 = vunpack.c.l.b16 %v4101
      %v4134 = vunpack.c.l.b16 %v4102
      %v4135 = vunpack.c.l.b16 %v4103
      %v4136 = vunpack.c.l.b16 %v4104
      %v4137 = vunpack.c.l.b16 %v4105
      %v4138 = vunpack.c.l.b16 %v4106
      %v4139 = vunpack.c.l.b16 %v4107
      %v4140 = vunpack.c.l.b16 %v4108
      %v4141 = vunpack.c.l.b16 %v4109
      %v4142 = vunpack.c.l.b16 %v4110
      %v4143 = vunpack.c.l.b16 %v4111
      %v4144 = vunpack.c.l.b16 %v4112
      %v4145 = vpack.c.b16 %v4130, %v4129
      %v4146 = vpack.c.b16 %v4132, %v4131
      %v4147 = vpack.c.b16 %v4134, %v4133
      %v4148 = vpack.c.b16 %v4136, %v4135
      %v4149 = vpack.c.b16 %v4138, %v4137
      %v4150 = vpack.c.b16 %v4140, %v4139
      %v4151 = vpack.c.b16 %v4142, %v4141
      %v4152 = vpack.c.b16 %v4144, %v4143
      %4161 = vmatprep.subr.bf16.mxu0 0
      %4162 = vmatpush1.bf16.msra.mxu0 %v4152
      %4163 = vmatprep.subr.bf16.mxu0 0
      %4164 = vmatpush1.bf16.msra.mxu0 %v4151
      %4165 = vmatprep.subr.bf16.mxu0 0
      %4166 = vmatpush1.bf16.msra.mxu0 %v4150
      %4167 = vmatprep.subr.bf16.mxu0 0
      %4168 = vmatpush1.bf16.msra.mxu0 %v4149
      %4169 = vmatprep.subr.bf16.mxu0 0
      %4170 = vmatpush1.bf16.msra.mxu0 %v4148
      %4171 = vmatprep.subr.bf16.mxu0 0
      %4172 = vmatpush1.bf16.msra.mxu0 %v4147
      %4173 = vmatprep.subr.bf16.mxu0 0
      %4174 = vmatpush1.bf16.msra.mxu0 %v4146
      %4175 = vmatprep.subr.bf16.mxu0 0
      %4176 = vmatpush1.bf16.msra.mxu0 %v4145
      %4177 = vmatprep.subr.bf16.mxu0 0
      %4178 = vmatpush2.bf16.msra.mxu0 0
      %4179 = vmatprep.subr.bf16.mxu0 0
      %4180 = vmatpush2.bf16.msra.mxu0 0
      %4181 = vmatprep.subr.bf16.mxu0 0
      %4182 = vmatpush2.bf16.msra.mxu0 0
      %4183 = vmatprep.subr.bf16.mxu0 0
      %4184 = vmatpush2.bf16.msra.mxu0 0
      %4185 = vmatprep.subr.bf16.mxu0 0
      %4186 = vmatpush2.bf16.msra.mxu0 0
      %4187 = vmatprep.subr.bf16.mxu0 0
      %4188 = vmatpush2.bf16.msra.mxu0 0
      %4189 = vmatprep.subr.bf16.mxu0 0
      %4190 = vmatpush2.bf16.msra.mxu0 0
      %4191 = vmatprep.subr.bf16.mxu0 0
      %4192 = vmatpush2.bf16.msra.mxu0 0
      %4193 = vmatprep.mubr.bf16.mxu0 0
      %4194 = vmatmul.mubr.bf16.gmra.mxu0 %v3562
      %v4195 = vpop.f32.mrf.mxu0
      %v4196 = vadd.f32 0.0, %v4195
      %v4197 = vpop.f32.mrf.mxu0
      %v4198 = vpop.f32.mrf.mxu0
      %v4199 = vadd.f32 0.0, %v4198
      %v4200 = vpop.f32.mrf.mxu0
      %4201 = vdwg.mxu0
      %v4202 = vadd.f32 %v4095, %v4196
      %v4203 = vadd.f32 %v4096, %v4199
      %v4204 = vld [vmem:[%s9 + $0x180] sm:$0xf]
      %v4205 = vld [vmem:[%s9 + $0x184] sm:$0xf]
      %v4206 = vld [vmem:[%s9 + $0x188] sm:$0xf]
      %v4207 = vld [vmem:[%s9 + $0x18c] sm:$0xf]
      %v4208 = vld [vmem:[%s9 + $0x190] sm:$0xf]
      %v4209 = vld [vmem:[%s9 + $0x194] sm:$0xf]
      %v4210 = vld [vmem:[%s9 + $0x198] sm:$0xf]
      %v4211 = vld [vmem:[%s9 + $0x19c] sm:$0xf]
      %v4212 = vld [vmem:[%s9 + $0x1a0] sm:$0xf]
      %v4213 = vld [vmem:[%s9 + $0x1a4] sm:$0xf]
      %v4214 = vld [vmem:[%s9 + $0x1a8] sm:$0xf]
      %v4215 = vld [vmem:[%s9 + $0x1ac] sm:$0xf]
      %v4216 = vld [vmem:[%s9 + $0x1b0] sm:$0xf]
      %v4217 = vld [vmem:[%s9 + $0x1b4] sm:$0xf]
      %v4218 = vld [vmem:[%s9 + $0x1b8] sm:$0xf]
      %v4219 = vld [vmem:[%s9 + $0x1bc] sm:$0xf]
      %v4236 = vunpack.c.l.b16 %v4204
      %v4237 = vunpack.c.l.b16 %v4205
      %v4238 = vunpack.c.l.b16 %v4206
      %v4239 = vunpack.c.l.b16 %v4207
      %v4240 = vunpack.c.l.b16 %v4208
      %v4241 = vunpack.c.l.b16 %v4209
      %v4242 = vunpack.c.l.b16 %v4210
      %v4243 = vunpack.c.l.b16 %v4211
      %v4244 = vunpack.c.l.b16 %v4212
      %v4245 = vunpack.c.l.b16 %v4213
      %v4246 = vunpack.c.l.b16 %v4214
      %v4247 = vunpack.c.l.b16 %v4215
      %v4248 = vunpack.c.l.b16 %v4216
      %v4249 = vunpack.c.l.b16 %v4217
      %v4250 = vunpack.c.l.b16 %v4218
      %v4251 = vunpack.c.l.b16 %v4219
      %v4252 = vpack.c.b16 %v4237, %v4236
      %v4253 = vpack.c.b16 %v4239, %v4238
      %v4254 = vpack.c.b16 %v4241, %v4240
      %v4255 = vpack.c.b16 %v4243, %v4242
      %v4256 = vpack.c.b16 %v4245, %v4244
      %v4257 = vpack.c.b16 %v4247, %v4246
      %v4258 = vpack.c.b16 %v4249, %v4248
      %v4259 = vpack.c.b16 %v4251, %v4250
      %4268 = vmatprep.subr.bf16.mxu0 0
      %4269 = vmatpush1.bf16.msra.mxu0 %v4259
      %4270 = vmatprep.subr.bf16.mxu0 0
      %4271 = vmatpush1.bf16.msra.mxu0 %v4258
      %4272 = vmatprep.subr.bf16.mxu0 0
      %4273 = vmatpush1.bf16.msra.mxu0 %v4257
      %4274 = vmatprep.subr.bf16.mxu0 0
      %4275 = vmatpush1.bf16.msra.mxu0 %v4256
      %4276 = vmatprep.subr.bf16.mxu0 0
      %4277 = vmatpush1.bf16.msra.mxu0 %v4255
      %4278 = vmatprep.subr.bf16.mxu0 0
      %4279 = vmatpush1.bf16.msra.mxu0 %v4254
      %4280 = vmatprep.subr.bf16.mxu0 0
      %4281 = vmatpush1.bf16.msra.mxu0 %v4253
      %4282 = vmatprep.subr.bf16.mxu0 0
      %4283 = vmatpush1.bf16.msra.mxu0 %v4252
      %4284 = vmatprep.subr.bf16.mxu0 0
      %4285 = vmatpush2.bf16.msra.mxu0 0
      %4286 = vmatprep.subr.bf16.mxu0 0
      %4287 = vmatpush2.bf16.msra.mxu0 0
      %4288 = vmatprep.subr.bf16.mxu0 0
      %4289 = vmatpush2.bf16.msra.mxu0 0
      %4290 = vmatprep.subr.bf16.mxu0 0
      %4291 = vmatpush2.bf16.msra.mxu0 0
      %4292 = vmatprep.subr.bf16.mxu0 0
      %4293 = vmatpush2.bf16.msra.mxu0 0
      %4294 = vmatprep.subr.bf16.mxu0 0
      %4295 = vmatpush2.bf16.msra.mxu0 0
      %4296 = vmatprep.subr.bf16.mxu0 0
      %4297 = vmatpush2.bf16.msra.mxu0 0
      %4298 = vmatprep.subr.bf16.mxu0 0
      %4299 = vmatpush2.bf16.msra.mxu0 0
      %4300 = vmatprep.mubr.bf16.mxu0 0
      %4301 = vmatmul.mubr.bf16.gmra.mxu0 %v3563
      %v4302 = vpop.f32.mrf.mxu0
      %v4303 = vadd.f32 0.0, %v4302
      %v4304 = vpop.f32.mrf.mxu0
      %v4305 = vpop.f32.mrf.mxu0
      %v4306 = vadd.f32 0.0, %v4305
      %v4307 = vpop.f32.mrf.mxu0
      %4308 = vdwg.mxu0
      %v4309 = vadd.f32 %v4202, %v4303
      %v4310 = vadd.f32 %v4203, %v4306
      %v4311 = vld [vmem:[%s9 + $0x1c0] sm:$0xf]
      %v4312 = vld [vmem:[%s9 + $0x1c4] sm:$0xf]
      %v4313 = vld [vmem:[%s9 + $0x1c8] sm:$0xf]
      %v4314 = vld [vmem:[%s9 + $0x1cc] sm:$0xf]
      %v4315 = vld [vmem:[%s9 + $0x1d0] sm:$0xf]
      %v4316 = vld [vmem:[%s9 + $0x1d4] sm:$0xf]
      %v4317 = vld [vmem:[%s9 + $0x1d8] sm:$0xf]
      %v4318 = vld [vmem:[%s9 + $0x1dc] sm:$0xf]
      %v4319 = vld [vmem:[%s9 + $0x1e0] sm:$0xf]
      %v4320 = vld [vmem:[%s9 + $0x1e4] sm:$0xf]
      %v4321 = vld [vmem:[%s9 + $0x1e8] sm:$0xf]
      %v4322 = vld [vmem:[%s9 + $0x1ec] sm:$0xf]
      %v4323 = vld [vmem:[%s9 + $0x1f0] sm:$0xf]
      %v4324 = vld [vmem:[%s9 + $0x1f4] sm:$0xf]
      %v4325 = vld [vmem:[%s9 + $0x1f8] sm:$0xf]
      %v4326 = vld [vmem:[%s9 + $0x1fc] sm:$0xf]
      %v4343 = vunpack.c.l.b16 %v4311
      %v4344 = vunpack.c.l.b16 %v4312
      %v4345 = vunpack.c.l.b16 %v4313
      %v4346 = vunpack.c.l.b16 %v4314
      %v4347 = vunpack.c.l.b16 %v4315
      %v4348 = vunpack.c.l.b16 %v4316
      %v4349 = vunpack.c.l.b16 %v4317
      %v4350 = vunpack.c.l.b16 %v4318
      %v4351 = vunpack.c.l.b16 %v4319
      %v4352 = vunpack.c.l.b16 %v4320
      %v4353 = vunpack.c.l.b16 %v4321
      %v4354 = vunpack.c.l.b16 %v4322
      %v4355 = vunpack.c.l.b16 %v4323
      %v4356 = vunpack.c.l.b16 %v4324
      %v4357 = vunpack.c.l.b16 %v4325
      %v4358 = vunpack.c.l.b16 %v4326
      %v4359 = vpack.c.b16 %v4344, %v4343
      %v4360 = vpack.c.b16 %v4346, %v4345
      %v4361 = vpack.c.b16 %v4348, %v4347
      %v4362 = vpack.c.b16 %v4350, %v4349
      %v4363 = vpack.c.b16 %v4352, %v4351
      %v4364 = vpack.c.b16 %v4354, %v4353
      %v4365 = vpack.c.b16 %v4356, %v4355
      %v4366 = vpack.c.b16 %v4358, %v4357
      %4375 = vmatprep.subr.bf16.mxu0 0
      %4376 = vmatpush1.bf16.msra.mxu0 %v4366
      %4377 = vmatprep.subr.bf16.mxu0 0
      %4378 = vmatpush1.bf16.msra.mxu0 %v4365
      %4379 = vmatprep.subr.bf16.mxu0 0
      %4380 = vmatpush1.bf16.msra.mxu0 %v4364
      %4381 = vmatprep.subr.bf16.mxu0 0
      %4382 = vmatpush1.bf16.msra.mxu0 %v4363
      %4383 = vmatprep.subr.bf16.mxu0 0
      %4384 = vmatpush1.bf16.msra.mxu0 %v4362
      %4385 = vmatprep.subr.bf16.mxu0 0
      %4386 = vmatpush1.bf16.msra.mxu0 %v4361
      %4387 = vmatprep.subr.bf16.mxu0 0
      %4388 = vmatpush1.bf16.msra.mxu0 %v4360
      %4389 = vmatprep.subr.bf16.mxu0 0
      %4390 = vmatpush1.bf16.msra.mxu0 %v4359
      %4391 = vmatprep.subr.bf16.mxu0 0
      %4392 = vmatpush2.bf16.msra.mxu0 0
      %4393 = vmatprep.subr.bf16.mxu0 0
      %4394 = vmatpush2.bf16.msra.mxu0 0
      %4395 = vmatprep.subr.bf16.mxu0 0
      %4396 = vmatpush2.bf16.msra.mxu0 0
      %4397 = vmatprep.subr.bf16.mxu0 0
      %4398 = vmatpush2.bf16.msra.mxu0 0
      %4399 = vmatprep.subr.bf16.mxu0 0
      %4400 = vmatpush2.bf16.msra.mxu0 0
      %4401 = vmatprep.subr.bf16.mxu0 0
      %4402 = vmatpush2.bf16.msra.mxu0 0
      %4403 = vmatprep.subr.bf16.mxu0 0
      %4404 = vmatpush2.bf16.msra.mxu0 0
      %4405 = vmatprep.subr.bf16.mxu0 0
      %4406 = vmatpush2.bf16.msra.mxu0 0
      %4407 = vmatprep.mubr.bf16.mxu0 0
      %4408 = vmatmul.mubr.bf16.gmra.mxu0 %v3564
      %v4409 = vpop.f32.mrf.mxu0
      %v4410 = vadd.f32 0.0, %v4409
      %v4411 = vpop.f32.mrf.mxu0
      %v4412 = vpop.f32.mrf.mxu0
      %v4413 = vadd.f32 0.0, %v4412
      %v4414 = vpop.f32.mrf.mxu0
      %4415 = vdwg.mxu0
      %v4416 = vadd.f32 %v4309, %v4410
      %v4417 = vadd.f32 %v4310, %v4413
      %v4418 = vld [vmem:[%s9 + $0x200] sm:$0xf]
      %v4419 = vld [vmem:[%s9 + $0x204] sm:$0xf]
      %v4420 = vld [vmem:[%s9 + $0x208] sm:$0xf]
      %v4421 = vld [vmem:[%s9 + $0x20c] sm:$0xf]
      %v4422 = vld [vmem:[%s9 + $0x210] sm:$0xf]
      %v4423 = vld [vmem:[%s9 + $0x214] sm:$0xf]
      %v4424 = vld [vmem:[%s9 + $0x218] sm:$0xf]
      %v4425 = vld [vmem:[%s9 + $0x21c] sm:$0xf]
      %v4426 = vld [vmem:[%s9 + $0x220] sm:$0xf]
      %v4427 = vld [vmem:[%s9 + $0x224] sm:$0xf]
      %v4428 = vld [vmem:[%s9 + $0x228] sm:$0xf]
      %v4429 = vld [vmem:[%s9 + $0x22c] sm:$0xf]
      %v4430 = vld [vmem:[%s9 + $0x230] sm:$0xf]
      %v4431 = vld [vmem:[%s9 + $0x234] sm:$0xf]
      %v4432 = vld [vmem:[%s9 + $0x238] sm:$0xf]
      %v4433 = vld [vmem:[%s9 + $0x23c] sm:$0xf]
      %v4450 = vunpack.c.l.b16 %v4418
      %v4451 = vunpack.c.l.b16 %v4419
      %v4452 = vunpack.c.l.b16 %v4420
      %v4453 = vunpack.c.l.b16 %v4421
      %v4454 = vunpack.c.l.b16 %v4422
      %v4455 = vunpack.c.l.b16 %v4423
      %v4456 = vunpack.c.l.b16 %v4424
      %v4457 = vunpack.c.l.b16 %v4425
      %v4458 = vunpack.c.l.b16 %v4426
      %v4459 = vunpack.c.l.b16 %v4427
      %v4460 = vunpack.c.l.b16 %v4428
      %v4461 = vunpack.c.l.b16 %v4429
      %v4462 = vunpack.c.l.b16 %v4430
      %v4463 = vunpack.c.l.b16 %v4431
      %v4464 = vunpack.c.l.b16 %v4432
      %v4465 = vunpack.c.l.b16 %v4433
      %v4466 = vpack.c.b16 %v4451, %v4450
      %v4467 = vpack.c.b16 %v4453, %v4452
      %v4468 = vpack.c.b16 %v4455, %v4454
      %v4469 = vpack.c.b16 %v4457, %v4456
      %v4470 = vpack.c.b16 %v4459, %v4458
      %v4471 = vpack.c.b16 %v4461, %v4460
      %v4472 = vpack.c.b16 %v4463, %v4462
      %v4473 = vpack.c.b16 %v4465, %v4464
      %4482 = vmatprep.subr.bf16.mxu0 0
      %4483 = vmatpush1.bf16.msra.mxu0 %v4473
      %4484 = vmatprep.subr.bf16.mxu0 0
      %4485 = vmatpush1.bf16.msra.mxu0 %v4472
      %4486 = vmatprep.subr.bf16.mxu0 0
      %4487 = vmatpush1.bf16.msra.mxu0 %v4471
      %4488 = vmatprep.subr.bf16.mxu0 0
      %4489 = vmatpush1.bf16.msra.mxu0 %v4470
      %4490 = vmatprep.subr.bf16.mxu0 0
      %4491 = vmatpush1.bf16.msra.mxu0 %v4469
      %4492 = vmatprep.subr.bf16.mxu0 0
      %4493 = vmatpush1.bf16.msra.mxu0 %v4468
      %4494 = vmatprep.subr.bf16.mxu0 0
      %4495 = vmatpush1.bf16.msra.mxu0 %v4467
      %4496 = vmatprep.subr.bf16.mxu0 0
      %4497 = vmatpush1.bf16.msra.mxu0 %v4466
      %4498 = vmatprep.subr.bf16.mxu0 0
      %4499 = vmatpush2.bf16.msra.mxu0 0
      %4500 = vmatprep.subr.bf16.mxu0 0
      %4501 = vmatpush2.bf16.msra.mxu0 0
      %4502 = vmatprep.subr.bf16.mxu0 0
      %4503 = vmatpush2.bf16.msra.mxu0 0
      %4504 = vmatprep.subr.bf16.mxu0 0
      %4505 = vmatpush2.bf16.msra.mxu0 0
      %4506 = vmatprep.subr.bf16.mxu0 0
      %4507 = vmatpush2.bf16.msra.mxu0 0
      %4508 = vmatprep.subr.bf16.mxu0 0
      %4509 = vmatpush2.bf16.msra.mxu0 0
      %4510 = vmatprep.subr.bf16.mxu0 0
      %4511 = vmatpush2.bf16.msra.mxu0 0
      %4512 = vmatprep.subr.bf16.mxu0 0
      %4513 = vmatpush2.bf16.msra.mxu0 0
      %4514 = vmatprep.mubr.bf16.mxu0 0
      %4515 = vmatmul.mubr.bf16.gmra.mxu0 %v3565
      %v4516 = vpop.f32.mrf.mxu0
      %v4517 = vadd.f32 0.0, %v4516
      %v4518 = vpop.f32.mrf.mxu0
      %v4519 = vpop.f32.mrf.mxu0
      %v4520 = vadd.f32 0.0, %v4519
      %v4521 = vpop.f32.mrf.mxu0
      %4522 = vdwg.mxu0
      %v4523 = vadd.f32 %v4416, %v4517
      %v4524 = vadd.f32 %v4417, %v4520
      %v4525 = vmax.f32 %v4523, 0.0
      %v4526 = vmax.f32 %v4524, 0.0
      %v4527 = vpack.c.bf16 %v4526, %v4525
      %v4528 = vld [vmem:[%s10] sm:$0xf]
      %v4529 = vld [vmem:[%s10 + $0x4] sm:$0xf]
      %v4530 = vld [vmem:[%s10 + $0x8] sm:$0xf]
      %v4531 = vld [vmem:[%s10 + $0xc] sm:$0xf]
      %v4536 = vunpack.c.l.b16 %v4528
      %v4537 = vunpack.c.l.b16 %v4529
      %v4538 = vunpack.c.l.b16 %v4530
      %v4539 = vunpack.c.l.b16 %v4531
      %v4540 = vpack.c.b16 %v4537, %v4536
      %v4541 = vpack.c.b16 %v4539, %v4538
      %vm4544 = vcmask 261120
      %v4546 = vsel %vm4544, %v4527, 0
      %4548 = vmatprep.subr.bf16.mxu0 0
      %4549 = vmatpush1.bf16.msra.mxu0 0
      %4550 = vmatprep.subr.bf16.mxu0 0
      %4551 = vmatpush1.bf16.msra.mxu0 0
      %4552 = vmatprep.subr.bf16.mxu0 0
      %4553 = vmatpush1.bf16.msra.mxu0 0
      %4554 = vmatprep.subr.bf16.mxu0 0
      %4555 = vmatpush1.bf16.msra.mxu0 0
      %4556 = vmatprep.subr.bf16.mxu0 0
      %4557 = vmatpush1.bf16.msra.mxu0 0
      %4558 = vmatprep.subr.bf16.mxu0 0
      %4559 = vmatpush1.bf16.msra.mxu0 0
      %4560 = vmatprep.subr.bf16.mxu0 0
      %4561 = vmatpush1.bf16.msra.mxu0 %v4541
      %4562 = vmatprep.subr.bf16.mxu0 0
      %4563 = vmatpush1.bf16.msra.mxu0 %v4540
      %4564 = vmatprep.subr.bf16.mxu0 0
      %4565 = vmatpush2.bf16.msra.mxu0 0
      %4566 = vmatprep.subr.bf16.mxu0 0
      %4567 = vmatpush2.bf16.msra.mxu0 0
      %4568 = vmatprep.subr.bf16.mxu0 0
      %4569 = vmatpush2.bf16.msra.mxu0 0
      %4570 = vmatprep.subr.bf16.mxu0 0
      %4571 = vmatpush2.bf16.msra.mxu0 0
      %4572 = vmatprep.subr.bf16.mxu0 0
      %4573 = vmatpush2.bf16.msra.mxu0 0
      %4574 = vmatprep.subr.bf16.mxu0 0
      %4575 = vmatpush2.bf16.msra.mxu0 0
      %4576 = vmatprep.subr.bf16.mxu0 0
      %4577 = vmatpush2.bf16.msra.mxu0 0
      %4578 = vmatprep.subr.bf16.mxu0 0
      %4579 = vmatpush2.bf16.msra.mxu0 0
      %4580 = vmatprep.mubr.bf16.mxu0 0
      %4581 = vmatmul.mubr.bf16.gmra.mxu0 %v4546
      %v4582 = vpop.f32.mrf.mxu0
      %v4583 = vadd.f32 0.0, %v4582
      %v4584 = vpop.f32.mrf.mxu0
      %v4585 = vpop.f32.mrf.mxu0
      %v4586 = vadd.f32 0.0, %v4585
      %v4587 = vpop.f32.mrf.mxu0
      %4588 = vdwg.mxu0
      %v4589 = vadd.f32 %v3447, %v4583
      %v4590 = vadd.f32 %v3448, %v4586
      %v4591 = vmax.f32 %v4589, 0.0
      %v4592 = vmax.f32 %v4590, 0.0
      %v4593 = vpack.c.bf16 %v4592, %v4591
      %4594 = vmatprep.subr.bf16.mxu0 0
      %4595 = vmatpush1.bf16.msra.mxu0 0
      %4596 = vmatprep.subr.bf16.mxu0 0
      %4597 = vmatpush1.bf16.msra.mxu0 0
      %4598 = vmatprep.subr.bf16.mxu0 0
      %4599 = vmatpush1.bf16.msra.mxu0 0
      %4600 = vmatprep.subr.bf16.mxu0 0
      %4601 = vmatpush1.bf16.msra.mxu0 0
      %4602 = vmatprep.subr.bf16.mxu0 0
      %4603 = vmatpush1.bf16.msra.mxu0 0
      %4604 = vmatprep.subr.bf16.mxu0 0
      %4605 = vmatpush1.bf16.msra.mxu0 0
      %4606 = vmatprep.subr.bf16.mxu0 0
      %4607 = vmatpush1.bf16.msra.mxu0 0
      %4608 = vmatprep.subr.bf16.mxu0 0
      %4609 = vmatpush1.bf16.msra.mxu0 %v4593
      %4610 = vmatprep.subr.bf16.mxu0 0
      %4611 = vmatpush2.bf16.msra.mxu0 0
      %4612 = vmatprep.subr.bf16.mxu0 0
      %4613 = vmatpush2.bf16.msra.mxu0 0
      %4614 = vmatprep.subr.bf16.mxu0 0
      %4615 = vmatpush2.bf16.msra.mxu0 0
      %4616 = vmatprep.subr.bf16.mxu0 0
      %4617 = vmatpush2.bf16.msra.mxu0 0
      %4618 = vmatprep.subr.bf16.mxu0 0
      %4619 = vmatpush2.bf16.msra.mxu0 0
      %4620 = vmatprep.subr.bf16.mxu0 0
      %4621 = vmatpush2.bf16.msra.mxu0 0
      %4622 = vmatprep.subr.bf16.mxu0 0
      %4623 = vmatpush2.bf16.msra.mxu0 0
      %4624 = vmatprep.subr.bf16.mxu0 0
      %4625 = vmatpush2.bf16.msra.mxu0 0
      %4626 = vmatprep.mubr.bf16.mxu0 0
      %4627 = vmatmul.mubr.bf16.gmra.mxu0 %v2341
      %v4628 = vpop.f32.mrf.mxu0
      %v4629 = vadd.f32 0.0, %v4628
      %v4630 = vpop.f32.mrf.mxu0
      %v4631 = vpop.f32.mrf.mxu0
      %v4632 = vadd.f32 0.0, %v4631
      %v4633 = vpop.f32.mrf.mxu0
      %4634 = vmatprep.mubr.bf16.mxu0 0
      %4635 = vmatmul.mubr.bf16.gmra.mxu0 %v2344
      %v4636 = vpop.f32.mrf.mxu0
      %v4637 = vadd.f32 0.0, %v4636
      %v4638 = vpop.f32.mrf.mxu0
      %v4639 = vpop.f32.mrf.mxu0
      %v4640 = vadd.f32 0.0, %v4639
      %v4641 = vpop.f32.mrf.mxu0
      %4642 = vmatprep.mubr.bf16.mxu0 0
      %4643 = vmatmul.mubr.bf16.gmra.mxu0 %v2347
      %v4644 = vpop.f32.mrf.mxu0
      %v4645 = vadd.f32 0.0, %v4644
      %v4646 = vpop.f32.mrf.mxu0
      %v4647 = vpop.f32.mrf.mxu0
      %v4648 = vadd.f32 0.0, %v4647
      %v4649 = vpop.f32.mrf.mxu0
      %4650 = vmatprep.mubr.bf16.mxu0 0
      %4651 = vmatmul.mubr.bf16.gmra.mxu0 %v2350
      %v4652 = vpop.f32.mrf.mxu0
      %v4653 = vadd.f32 0.0, %v4652
      %v4654 = vpop.f32.mrf.mxu0
      %v4655 = vpop.f32.mrf.mxu0
      %v4656 = vadd.f32 0.0, %v4655
      %v4657 = vpop.f32.mrf.mxu0
      %4658 = vmatprep.mubr.bf16.mxu0 0
      %4659 = vmatmul.mubr.bf16.gmra.mxu0 %v2353
      %v4660 = vpop.f32.mrf.mxu0
      %v4661 = vadd.f32 0.0, %v4660
      %v4662 = vpop.f32.mrf.mxu0
      %v4663 = vpop.f32.mrf.mxu0
      %v4664 = vadd.f32 0.0, %v4663
      %v4665 = vpop.f32.mrf.mxu0
      %4666 = vmatprep.mubr.bf16.mxu0 0
      %4667 = vmatmul.mubr.bf16.gmra.mxu0 %v2356
      %v4668 = vpop.f32.mrf.mxu0
      %v4669 = vadd.f32 0.0, %v4668
      %v4670 = vpop.f32.mrf.mxu0
      %v4671 = vpop.f32.mrf.mxu0
      %v4672 = vadd.f32 0.0, %v4671
      %v4673 = vpop.f32.mrf.mxu0
      %4674 = vmatprep.mubr.bf16.mxu0 0
      %4675 = vmatmul.mubr.bf16.gmra.mxu0 %v2359
      %v4676 = vpop.f32.mrf.mxu0
      %v4677 = vadd.f32 0.0, %v4676
      %v4678 = vpop.f32.mrf.mxu0
      %v4679 = vpop.f32.mrf.mxu0
      %v4680 = vadd.f32 0.0, %v4679
      %v4681 = vpop.f32.mrf.mxu0
      %4682 = vmatprep.mubr.bf16.mxu0 0
      %4683 = vmatmul.mubr.bf16.gmra.mxu0 %v2362
      %v4684 = vpop.f32.mrf.mxu0
      %v4685 = vadd.f32 0.0, %v4684
      %v4686 = vpop.f32.mrf.mxu0
      %v4687 = vpop.f32.mrf.mxu0
      %v4688 = vadd.f32 0.0, %v4687
      %v4689 = vpop.f32.mrf.mxu0
      %4690 = vmatprep.mubr.bf16.mxu0 0
      %4691 = vmatmul.mubr.bf16.gmra.mxu0 %v2365
      %v4692 = vpop.f32.mrf.mxu0
      %v4693 = vadd.f32 0.0, %v4692
      %v4694 = vpop.f32.mrf.mxu0
      %v4695 = vpop.f32.mrf.mxu0
      %v4696 = vadd.f32 0.0, %v4695
      %v4697 = vpop.f32.mrf.mxu0
      %4698 = vdwg.mxu0
      %v4699 = vpack.c.bf16 %v4632, %v4629
      %v4700 = vpack.c.bf16 %v4640, %v4637
      %v4701 = vpack.c.bf16 %v4648, %v4645
      %v4702 = vpack.c.bf16 %v4656, %v4653
      %v4703 = vpack.c.bf16 %v4664, %v4661
      %v4704 = vpack.c.bf16 %v4672, %v4669
      %v4705 = vpack.c.bf16 %v4680, %v4677
      %v4706 = vpack.c.bf16 %v4688, %v4685
      %v4707 = vpack.c.bf16 %v4696, %v4693
      %v4708 = vld [vmem:[%s11] sm:$0xf]
      %v4709 = vld [vmem:[%s11 + $0x4] sm:$0xf]
      %v4710 = vld [vmem:[%s11 + $0x8] sm:$0xf]
      %v4711 = vld [vmem:[%s11 + $0xc] sm:$0xf]
      %v4712 = vld [vmem:[%s11 + $0x10] sm:$0xf]
      %v4713 = vld [vmem:[%s11 + $0x14] sm:$0xf]
      %v4714 = vld [vmem:[%s11 + $0x18] sm:$0xf]
      %v4715 = vld [vmem:[%s11 + $0x1c] sm:$0xf]
      %v4716 = vld [vmem:[%s11 + $0x20] sm:$0xf]
      %v4717 = vld [vmem:[%s11 + $0x24] sm:$0xf]
      %v4718 = vld [vmem:[%s11 + $0x28] sm:$0xf]
      %v4719 = vld [vmem:[%s11 + $0x2c] sm:$0xf]
      %v4720 = vld [vmem:[%s11 + $0x30] sm:$0xf]
      %v4721 = vld [vmem:[%s11 + $0x34] sm:$0xf]
      %v4722 = vld [vmem:[%s11 + $0x38] sm:$0xf]
      %v4723 = vld [vmem:[%s11 + $0x3c] sm:$0xf]
      %v4724 = vld [vmem:[%s11 + $0x40] sm:$0xf]
      %v4725 = vld [vmem:[%s11 + $0x44] sm:$0xf]
      %v4726 = vld [vmem:[%s11 + $0x48] sm:$0xf]
      %v4727 = vld [vmem:[%s11 + $0x4c] sm:$0xf]
      %v4728 = vld [vmem:[%s11 + $0x50] sm:$0xf]
      %v4729 = vld [vmem:[%s11 + $0x54] sm:$0xf]
      %v4730 = vld [vmem:[%s11 + $0x58] sm:$0xf]
      %v4731 = vld [vmem:[%s11 + $0x5c] sm:$0xf]
      %v4732 = vld [vmem:[%s11 + $0x60] sm:$0xf]
      %v4733 = vld [vmem:[%s11 + $0x64] sm:$0xf]
      %v4734 = vld [vmem:[%s11 + $0x68] sm:$0xf]
      %v4735 = vld [vmem:[%s11 + $0x6c] sm:$0xf]
      %v4736 = vld [vmem:[%s11 + $0x70] sm:$0xf]
      %v4737 = vld [vmem:[%s11 + $0x74] sm:$0xf]
      %v4738 = vld [vmem:[%s11 + $0x78] sm:$0xf]
      %v4739 = vld [vmem:[%s11 + $0x7c] sm:$0xf]
      %v4756 = vunpack.c.l.b16 %v4724
      %v4757 = vunpack.c.l.b16 %v4725
      %v4758 = vunpack.c.l.b16 %v4726
      %v4759 = vunpack.c.l.b16 %v4727
      %v4760 = vunpack.c.l.b16 %v4728
      %v4761 = vunpack.c.l.b16 %v4729
      %v4762 = vunpack.c.l.b16 %v4730
      %v4763 = vunpack.c.l.b16 %v4731
      %v4764 = vunpack.c.l.b16 %v4732
      %v4765 = vunpack.c.l.b16 %v4733
      %v4766 = vunpack.c.l.b16 %v4734
      %v4767 = vunpack.c.l.b16 %v4735
      %v4768 = vunpack.c.l.b16 %v4736
      %v4769 = vunpack.c.l.b16 %v4737
      %v4770 = vunpack.c.l.b16 %v4738
      %v4771 = vunpack.c.l.b16 %v4739
      %v4772 = vpack.c.b16 %v4757, %v4756
      %v4773 = vpack.c.b16 %v4759, %v4758
      %v4774 = vpack.c.b16 %v4761, %v4760
      %v4775 = vpack.c.b16 %v4763, %v4762
      %v4776 = vpack.c.b16 %v4765, %v4764
      %v4777 = vpack.c.b16 %v4767, %v4766
      %v4778 = vpack.c.b16 %v4769, %v4768
      %v4779 = vpack.c.b16 %v4771, %v4770
      %4788 = vmatprep.subr.bf16.mxu0 0
      %4789 = vmatpush1.bf16.msra.mxu0 %v4779
      %4790 = vmatprep.subr.bf16.mxu0 0
      %4791 = vmatpush1.bf16.msra.mxu0 %v4778
      %4792 = vmatprep.subr.bf16.mxu0 0
      %4793 = vmatpush1.bf16.msra.mxu0 %v4777
      %4794 = vmatprep.subr.bf16.mxu0 0
      %4795 = vmatpush1.bf16.msra.mxu0 %v4776
      %4796 = vmatprep.subr.bf16.mxu0 0
      %4797 = vmatpush1.bf16.msra.mxu0 %v4775
      %4798 = vmatprep.subr.bf16.mxu0 0
      %4799 = vmatpush1.bf16.msra.mxu0 %v4774
      %4800 = vmatprep.subr.bf16.mxu0 0
      %4801 = vmatpush1.bf16.msra.mxu0 %v4773
      %4802 = vmatprep.subr.bf16.mxu0 0
      %4803 = vmatpush1.bf16.msra.mxu0 %v4772
      %4804 = vmatprep.subr.bf16.mxu0 0
      %4805 = vmatpush2.bf16.msra.mxu0 0
      %4806 = vmatprep.subr.bf16.mxu0 0
      %4807 = vmatpush2.bf16.msra.mxu0 0
      %4808 = vmatprep.subr.bf16.mxu0 0
      %4809 = vmatpush2.bf16.msra.mxu0 0
      %4810 = vmatprep.subr.bf16.mxu0 0
      %4811 = vmatpush2.bf16.msra.mxu0 0
      %4812 = vmatprep.subr.bf16.mxu0 0
      %4813 = vmatpush2.bf16.msra.mxu0 0
      %4814 = vmatprep.subr.bf16.mxu0 0
      %4815 = vmatpush2.bf16.msra.mxu0 0
      %4816 = vmatprep.subr.bf16.mxu0 0
      %4817 = vmatpush2.bf16.msra.mxu0 0
      %4818 = vmatprep.subr.bf16.mxu0 0
      %4819 = vmatpush2.bf16.msra.mxu0 0
      %4820 = vmatprep.mubr.bf16.mxu0 0
      %4821 = vmatmul.mubr.bf16.gmra.mxu0 %v4700
      %v4822 = vpop.f32.mrf.mxu0
      %v4823 = vadd.f32 0.0, %v4822
      %v4824 = vpop.f32.mrf.mxu0
      %v4825 = vpop.f32.mrf.mxu0
      %v4826 = vadd.f32 0.0, %v4825
      %v4827 = vpop.f32.mrf.mxu0
      %4828 = vdwg.mxu0
      %v4845 = vunpack.c.l.b16 %v4708
      %v4846 = vunpack.c.l.b16 %v4709
      %v4847 = vunpack.c.l.b16 %v4710
      %v4848 = vunpack.c.l.b16 %v4711
      %v4849 = vunpack.c.l.b16 %v4712
      %v4850 = vunpack.c.l.b16 %v4713
      %v4851 = vunpack.c.l.b16 %v4714
      %v4852 = vunpack.c.l.b16 %v4715
      %v4853 = vunpack.c.l.b16 %v4716
      %v4854 = vunpack.c.l.b16 %v4717
      %v4855 = vunpack.c.l.b16 %v4718
      %v4856 = vunpack.c.l.b16 %v4719
      %v4857 = vunpack.c.l.b16 %v4720
      %v4858 = vunpack.c.l.b16 %v4721
      %v4859 = vunpack.c.l.b16 %v4722
      %v4860 = vunpack.c.l.b16 %v4723
      %v4861 = vpack.c.b16 %v4846, %v4845
      %v4862 = vpack.c.b16 %v4848, %v4847
      %v4863 = vpack.c.b16 %v4850, %v4849
      %v4864 = vpack.c.b16 %v4852, %v4851
      %v4865 = vpack.c.b16 %v4854, %v4853
      %v4866 = vpack.c.b16 %v4856, %v4855
      %v4867 = vpack.c.b16 %v4858, %v4857
      %v4868 = vpack.c.b16 %v4860, %v4859
      %4877 = vmatprep.subr.bf16.mxu0 0
      %4878 = vmatpush1.bf16.msra.mxu0 %v4868
      %4879 = vmatprep.subr.bf16.mxu0 0
      %4880 = vmatpush1.bf16.msra.mxu0 %v4867
      %4881 = vmatprep.subr.bf16.mxu0 0
      %4882 = vmatpush1.bf16.msra.mxu0 %v4866
      %4883 = vmatprep.subr.bf16.mxu0 0
      %4884 = vmatpush1.bf16.msra.mxu0 %v4865
      %4885 = vmatprep.subr.bf16.mxu0 0
      %4886 = vmatpush1.bf16.msra.mxu0 %v4864
      %4887 = vmatprep.subr.bf16.mxu0 0
      %4888 = vmatpush1.bf16.msra.mxu0 %v4863
      %4889 = vmatprep.subr.bf16.mxu0 0
      %4890 = vmatpush1.bf16.msra.mxu0 %v4862
      %4891 = vmatprep.subr.bf16.mxu0 0
      %4892 = vmatpush1.bf16.msra.mxu0 %v4861
      %4893 = vmatprep.subr.bf16.mxu0 0
      %4894 = vmatpush2.bf16.msra.mxu0 0
      %4895 = vmatprep.subr.bf16.mxu0 0
      %4896 = vmatpush2.bf16.msra.mxu0 0
      %4897 = vmatprep.subr.bf16.mxu0 0
      %4898 = vmatpush2.bf16.msra.mxu0 0
      %4899 = vmatprep.subr.bf16.mxu0 0
      %4900 = vmatpush2.bf16.msra.mxu0 0
      %4901 = vmatprep.subr.bf16.mxu0 0
      %4902 = vmatpush2.bf16.msra.mxu0 0
      %4903 = vmatprep.subr.bf16.mxu0 0
      %4904 = vmatpush2.bf16.msra.mxu0 0
      %4905 = vmatprep.subr.bf16.mxu0 0
      %4906 = vmatpush2.bf16.msra.mxu0 0
      %4907 = vmatprep.subr.bf16.mxu0 0
      %4908 = vmatpush2.bf16.msra.mxu0 0
      %4909 = vmatprep.mubr.bf16.mxu0 0
      %4910 = vmatmul.mubr.bf16.gmra.mxu0 %v4699
      %v4911 = vpop.f32.mrf.mxu0
      %v4912 = vadd.f32 %v4823, %v4911
      %v4913 = vpop.f32.mrf.mxu0
      %v4914 = vpop.f32.mrf.mxu0
      %v4915 = vadd.f32 %v4826, %v4914
      %v4916 = vpop.f32.mrf.mxu0
      %4917 = vdwg.mxu0
      %v4918 = vld [vmem:[%s11 + $0x80] sm:$0xf]
      %v4919 = vld [vmem:[%s11 + $0x84] sm:$0xf]
      %v4920 = vld [vmem:[%s11 + $0x88] sm:$0xf]
      %v4921 = vld [vmem:[%s11 + $0x8c] sm:$0xf]
      %v4922 = vld [vmem:[%s11 + $0x90] sm:$0xf]
      %v4923 = vld [vmem:[%s11 + $0x94] sm:$0xf]
      %v4924 = vld [vmem:[%s11 + $0x98] sm:$0xf]
      %v4925 = vld [vmem:[%s11 + $0x9c] sm:$0xf]
      %v4926 = vld [vmem:[%s11 + $0xa0] sm:$0xf]
      %v4927 = vld [vmem:[%s11 + $0xa4] sm:$0xf]
      %v4928 = vld [vmem:[%s11 + $0xa8] sm:$0xf]
      %v4929 = vld [vmem:[%s11 + $0xac] sm:$0xf]
      %v4930 = vld [vmem:[%s11 + $0xb0] sm:$0xf]
      %v4931 = vld [vmem:[%s11 + $0xb4] sm:$0xf]
      %v4932 = vld [vmem:[%s11 + $0xb8] sm:$0xf]
      %v4933 = vld [vmem:[%s11 + $0xbc] sm:$0xf]
      %v4950 = vunpack.c.l.b16 %v4918
      %v4951 = vunpack.c.l.b16 %v4919
      %v4952 = vunpack.c.l.b16 %v4920
      %v4953 = vunpack.c.l.b16 %v4921
      %v4954 = vunpack.c.l.b16 %v4922
      %v4955 = vunpack.c.l.b16 %v4923
      %v4956 = vunpack.c.l.b16 %v4924
      %v4957 = vunpack.c.l.b16 %v4925
      %v4958 = vunpack.c.l.b16 %v4926
      %v4959 = vunpack.c.l.b16 %v4927
      %v4960 = vunpack.c.l.b16 %v4928
      %v4961 = vunpack.c.l.b16 %v4929
      %v4962 = vunpack.c.l.b16 %v4930
      %v4963 = vunpack.c.l.b16 %v4931
      %v4964 = vunpack.c.l.b16 %v4932
      %v4965 = vunpack.c.l.b16 %v4933
      %v4966 = vpack.c.b16 %v4951, %v4950
      %v4967 = vpack.c.b16 %v4953, %v4952
      %v4968 = vpack.c.b16 %v4955, %v4954
      %v4969 = vpack.c.b16 %v4957, %v4956
      %v4970 = vpack.c.b16 %v4959, %v4958
      %v4971 = vpack.c.b16 %v4961, %v4960
      %v4972 = vpack.c.b16 %v4963, %v4962
      %v4973 = vpack.c.b16 %v4965, %v4964
      %4982 = vmatprep.subr.bf16.mxu0 0
      %4983 = vmatpush1.bf16.msra.mxu0 %v4973
      %4984 = vmatprep.subr.bf16.mxu0 0
      %4985 = vmatpush1.bf16.msra.mxu0 %v4972
      %4986 = vmatprep.subr.bf16.mxu0 0
      %4987 = vmatpush1.bf16.msra.mxu0 %v4971
      %4988 = vmatprep.subr.bf16.mxu0 0
      %4989 = vmatpush1.bf16.msra.mxu0 %v4970
      %4990 = vmatprep.subr.bf16.mxu0 0
      %4991 = vmatpush1.bf16.msra.mxu0 %v4969
      %4992 = vmatprep.subr.bf16.mxu0 0
      %4993 = vmatpush1.bf16.msra.mxu0 %v4968
      %4994 = vmatprep.subr.bf16.mxu0 0
      %4995 = vmatpush1.bf16.msra.mxu0 %v4967
      %4996 = vmatprep.subr.bf16.mxu0 0
      %4997 = vmatpush1.bf16.msra.mxu0 %v4966
      %4998 = vmatprep.subr.bf16.mxu0 0
      %4999 = vmatpush2.bf16.msra.mxu0 0
      %5000 = vmatprep.subr.bf16.mxu0 0
      %5001 = vmatpush2.bf16.msra.mxu0 0
      %5002 = vmatprep.subr.bf16.mxu0 0
      %5003 = vmatpush2.bf16.msra.mxu0 0
      %5004 = vmatprep.subr.bf16.mxu0 0
      %5005 = vmatpush2.bf16.msra.mxu0 0
      %5006 = vmatprep.subr.bf16.mxu0 0
      %5007 = vmatpush2.bf16.msra.mxu0 0
      %5008 = vmatprep.subr.bf16.mxu0 0
      %5009 = vmatpush2.bf16.msra.mxu0 0
      %5010 = vmatprep.subr.bf16.mxu0 0
      %5011 = vmatpush2.bf16.msra.mxu0 0
      %5012 = vmatprep.subr.bf16.mxu0 0
      %5013 = vmatpush2.bf16.msra.mxu0 0
      %5014 = vmatprep.mubr.bf16.mxu0 0
      %5015 = vmatmul.mubr.bf16.gmra.mxu0 %v4701
      %v5016 = vpop.f32.mrf.mxu0
      %v5017 = vadd.f32 0.0, %v5016
      %v5018 = vpop.f32.mrf.mxu0
      %v5019 = vpop.f32.mrf.mxu0
      %v5020 = vadd.f32 0.0, %v5019
      %v5021 = vpop.f32.mrf.mxu0
      %5022 = vdwg.mxu0
      %v5023 = vadd.f32 %v4912, %v5017
      %v5024 = vadd.f32 %v4915, %v5020
      %v5025 = vld [vmem:[%s11 + $0xc0] sm:$0xf]
      %v5026 = vld [vmem:[%s11 + $0xc4] sm:$0xf]
      %v5027 = vld [vmem:[%s11 + $0xc8] sm:$0xf]
      %v5028 = vld [vmem:[%s11 + $0xcc] sm:$0xf]
      %v5029 = vld [vmem:[%s11 + $0xd0] sm:$0xf]
      %v5030 = vld [vmem:[%s11 + $0xd4] sm:$0xf]
      %v5031 = vld [vmem:[%s11 + $0xd8] sm:$0xf]
      %v5032 = vld [vmem:[%s11 + $0xdc] sm:$0xf]
      %v5033 = vld [vmem:[%s11 + $0xe0] sm:$0xf]
      %v5034 = vld [vmem:[%s11 + $0xe4] sm:$0xf]
      %v5035 = vld [vmem:[%s11 + $0xe8] sm:$0xf]
      %v5036 = vld [vmem:[%s11 + $0xec] sm:$0xf]
      %v5037 = vld [vmem:[%s11 + $0xf0] sm:$0xf]
      %v5038 = vld [vmem:[%s11 + $0xf4] sm:$0xf]
      %v5039 = vld [vmem:[%s11 + $0xf8] sm:$0xf]
      %v5040 = vld [vmem:[%s11 + $0xfc] sm:$0xf]
      %v5057 = vunpack.c.l.b16 %v5025
      %v5058 = vunpack.c.l.b16 %v5026
      %v5059 = vunpack.c.l.b16 %v5027
      %v5060 = vunpack.c.l.b16 %v5028
      %v5061 = vunpack.c.l.b16 %v5029
      %v5062 = vunpack.c.l.b16 %v5030
      %v5063 = vunpack.c.l.b16 %v5031
      %v5064 = vunpack.c.l.b16 %v5032
      %v5065 = vunpack.c.l.b16 %v5033
      %v5066 = vunpack.c.l.b16 %v5034
      %v5067 = vunpack.c.l.b16 %v5035
      %v5068 = vunpack.c.l.b16 %v5036
      %v5069 = vunpack.c.l.b16 %v5037
      %v5070 = vunpack.c.l.b16 %v5038
      %v5071 = vunpack.c.l.b16 %v5039
      %v5072 = vunpack.c.l.b16 %v5040
      %v5073 = vpack.c.b16 %v5058, %v5057
      %v5074 = vpack.c.b16 %v5060, %v5059
      %v5075 = vpack.c.b16 %v5062, %v5061
      %v5076 = vpack.c.b16 %v5064, %v5063
      %v5077 = vpack.c.b16 %v5066, %v5065
      %v5078 = vpack.c.b16 %v5068, %v5067
      %v5079 = vpack.c.b16 %v5070, %v5069
      %v5080 = vpack.c.b16 %v5072, %v5071
      %5089 = vmatprep.subr.bf16.mxu0 0
      %5090 = vmatpush1.bf16.msra.mxu0 %v5080
      %5091 = vmatprep.subr.bf16.mxu0 0
      %5092 = vmatpush1.bf16.msra.mxu0 %v5079
      %5093 = vmatprep.subr.bf16.mxu0 0
      %5094 = vmatpush1.bf16.msra.mxu0 %v5078
      %5095 = vmatprep.subr.bf16.mxu0 0
      %5096 = vmatpush1.bf16.msra.mxu0 %v5077
      %5097 = vmatprep.subr.bf16.mxu0 0
      %5098 = vmatpush1.bf16.msra.mxu0 %v5076
      %5099 = vmatprep.subr.bf16.mxu0 0
      %5100 = vmatpush1.bf16.msra.mxu0 %v5075
      %5101 = vmatprep.subr.bf16.mxu0 0
      %5102 = vmatpush1.bf16.msra.mxu0 %v5074
      %5103 = vmatprep.subr.bf16.mxu0 0
      %5104 = vmatpush1.bf16.msra.mxu0 %v5073
      %5105 = vmatprep.subr.bf16.mxu0 0
      %5106 = vmatpush2.bf16.msra.mxu0 0
      %5107 = vmatprep.subr.bf16.mxu0 0
      %5108 = vmatpush2.bf16.msra.mxu0 0
      %5109 = vmatprep.subr.bf16.mxu0 0
      %5110 = vmatpush2.bf16.msra.mxu0 0
      %5111 = vmatprep.subr.bf16.mxu0 0
      %5112 = vmatpush2.bf16.msra.mxu0 0
      %5113 = vmatprep.subr.bf16.mxu0 0
      %5114 = vmatpush2.bf16.msra.mxu0 0
      %5115 = vmatprep.subr.bf16.mxu0 0
      %5116 = vmatpush2.bf16.msra.mxu0 0
      %5117 = vmatprep.subr.bf16.mxu0 0
      %5118 = vmatpush2.bf16.msra.mxu0 0
      %5119 = vmatprep.subr.bf16.mxu0 0
      %5120 = vmatpush2.bf16.msra.mxu0 0
      %5121 = vmatprep.mubr.bf16.mxu0 0
      %5122 = vmatmul.mubr.bf16.gmra.mxu0 %v4702
      %v5123 = vpop.f32.mrf.mxu0
      %v5124 = vadd.f32 0.0, %v5123
      %v5125 = vpop.f32.mrf.mxu0
      %v5126 = vpop.f32.mrf.mxu0
      %v5127 = vadd.f32 0.0, %v5126
      %v5128 = vpop.f32.mrf.mxu0
      %5129 = vdwg.mxu0
      %v5130 = vadd.f32 %v5023, %v5124
      %v5131 = vadd.f32 %v5024, %v5127
      %v5132 = vld [vmem:[%s11 + $0x100] sm:$0xf]
      %v5133 = vld [vmem:[%s11 + $0x104] sm:$0xf]
      %v5134 = vld [vmem:[%s11 + $0x108] sm:$0xf]
      %v5135 = vld [vmem:[%s11 + $0x10c] sm:$0xf]
      %v5136 = vld [vmem:[%s11 + $0x110] sm:$0xf]
      %v5137 = vld [vmem:[%s11 + $0x114] sm:$0xf]
      %v5138 = vld [vmem:[%s11 + $0x118] sm:$0xf]
      %v5139 = vld [vmem:[%s11 + $0x11c] sm:$0xf]
      %v5140 = vld [vmem:[%s11 + $0x120] sm:$0xf]
      %v5141 = vld [vmem:[%s11 + $0x124] sm:$0xf]
      %v5142 = vld [vmem:[%s11 + $0x128] sm:$0xf]
      %v5143 = vld [vmem:[%s11 + $0x12c] sm:$0xf]
      %v5144 = vld [vmem:[%s11 + $0x130] sm:$0xf]
      %v5145 = vld [vmem:[%s11 + $0x134] sm:$0xf]
      %v5146 = vld [vmem:[%s11 + $0x138] sm:$0xf]
      %v5147 = vld [vmem:[%s11 + $0x13c] sm:$0xf]
      %v5164 = vunpack.c.l.b16 %v5132
      %v5165 = vunpack.c.l.b16 %v5133
      %v5166 = vunpack.c.l.b16 %v5134
      %v5167 = vunpack.c.l.b16 %v5135
      %v5168 = vunpack.c.l.b16 %v5136
      %v5169 = vunpack.c.l.b16 %v5137
      %v5170 = vunpack.c.l.b16 %v5138
      %v5171 = vunpack.c.l.b16 %v5139
      %v5172 = vunpack.c.l.b16 %v5140
      %v5173 = vunpack.c.l.b16 %v5141
      %v5174 = vunpack.c.l.b16 %v5142
      %v5175 = vunpack.c.l.b16 %v5143
      %v5176 = vunpack.c.l.b16 %v5144
      %v5177 = vunpack.c.l.b16 %v5145
      %v5178 = vunpack.c.l.b16 %v5146
      %v5179 = vunpack.c.l.b16 %v5147
      %v5180 = vpack.c.b16 %v5165, %v5164
      %v5181 = vpack.c.b16 %v5167, %v5166
      %v5182 = vpack.c.b16 %v5169, %v5168
      %v5183 = vpack.c.b16 %v5171, %v5170
      %v5184 = vpack.c.b16 %v5173, %v5172
      %v5185 = vpack.c.b16 %v5175, %v5174
      %v5186 = vpack.c.b16 %v5177, %v5176
      %v5187 = vpack.c.b16 %v5179, %v5178
      %5196 = vmatprep.subr.bf16.mxu0 0
      %5197 = vmatpush1.bf16.msra.mxu0 %v5187
      %5198 = vmatprep.subr.bf16.mxu0 0
      %5199 = vmatpush1.bf16.msra.mxu0 %v5186
      %5200 = vmatprep.subr.bf16.mxu0 0
      %5201 = vmatpush1.bf16.msra.mxu0 %v5185
      %5202 = vmatprep.subr.bf16.mxu0 0
      %5203 = vmatpush1.bf16.msra.mxu0 %v5184
      %5204 = vmatprep.subr.bf16.mxu0 0
      %5205 = vmatpush1.bf16.msra.mxu0 %v5183
      %5206 = vmatprep.subr.bf16.mxu0 0
      %5207 = vmatpush1.bf16.msra.mxu0 %v5182
      %5208 = vmatprep.subr.bf16.mxu0 0
      %5209 = vmatpush1.bf16.msra.mxu0 %v5181
      %5210 = vmatprep.subr.bf16.mxu0 0
      %5211 = vmatpush1.bf16.msra.mxu0 %v5180
      %5212 = vmatprep.subr.bf16.mxu0 0
      %5213 = vmatpush2.bf16.msra.mxu0 0
      %5214 = vmatprep.subr.bf16.mxu0 0
      %5215 = vmatpush2.bf16.msra.mxu0 0
      %5216 = vmatprep.subr.bf16.mxu0 0
      %5217 = vmatpush2.bf16.msra.mxu0 0
      %5218 = vmatprep.subr.bf16.mxu0 0
      %5219 = vmatpush2.bf16.msra.mxu0 0
      %5220 = vmatprep.subr.bf16.mxu0 0
      %5221 = vmatpush2.bf16.msra.mxu0 0
      %5222 = vmatprep.subr.bf16.mxu0 0
      %5223 = vmatpush2.bf16.msra.mxu0 0
      %5224 = vmatprep.subr.bf16.mxu0 0
      %5225 = vmatpush2.bf16.msra.mxu0 0
      %5226 = vmatprep.subr.bf16.mxu0 0
      %5227 = vmatpush2.bf16.msra.mxu0 0
      %5228 = vmatprep.mubr.bf16.mxu0 0
      %5229 = vmatmul.mubr.bf16.gmra.mxu0 %v4703
      %v5230 = vpop.f32.mrf.mxu0
      %v5231 = vadd.f32 0.0, %v5230
      %v5232 = vpop.f32.mrf.mxu0
      %v5233 = vpop.f32.mrf.mxu0
      %v5234 = vadd.f32 0.0, %v5233
      %v5235 = vpop.f32.mrf.mxu0
      %5236 = vdwg.mxu0
      %v5237 = vadd.f32 %v5130, %v5231
      %v5238 = vadd.f32 %v5131, %v5234
      %v5239 = vld [vmem:[%s11 + $0x140] sm:$0xf]
      %v5240 = vld [vmem:[%s11 + $0x144] sm:$0xf]
      %v5241 = vld [vmem:[%s11 + $0x148] sm:$0xf]
      %v5242 = vld [vmem:[%s11 + $0x14c] sm:$0xf]
      %v5243 = vld [vmem:[%s11 + $0x150] sm:$0xf]
      %v5244 = vld [vmem:[%s11 + $0x154] sm:$0xf]
      %v5245 = vld [vmem:[%s11 + $0x158] sm:$0xf]
      %v5246 = vld [vmem:[%s11 + $0x15c] sm:$0xf]
      %v5247 = vld [vmem:[%s11 + $0x160] sm:$0xf]
      %v5248 = vld [vmem:[%s11 + $0x164] sm:$0xf]
      %v5249 = vld [vmem:[%s11 + $0x168] sm:$0xf]
      %v5250 = vld [vmem:[%s11 + $0x16c] sm:$0xf]
      %v5251 = vld [vmem:[%s11 + $0x170] sm:$0xf]
      %v5252 = vld [vmem:[%s11 + $0x174] sm:$0xf]
      %v5253 = vld [vmem:[%s11 + $0x178] sm:$0xf]
      %v5254 = vld [vmem:[%s11 + $0x17c] sm:$0xf]
      %v5271 = vunpack.c.l.b16 %v5239
      %v5272 = vunpack.c.l.b16 %v5240
      %v5273 = vunpack.c.l.b16 %v5241
      %v5274 = vunpack.c.l.b16 %v5242
      %v5275 = vunpack.c.l.b16 %v5243
      %v5276 = vunpack.c.l.b16 %v5244
      %v5277 = vunpack.c.l.b16 %v5245
      %v5278 = vunpack.c.l.b16 %v5246
      %v5279 = vunpack.c.l.b16 %v5247
      %v5280 = vunpack.c.l.b16 %v5248
      %v5281 = vunpack.c.l.b16 %v5249
      %v5282 = vunpack.c.l.b16 %v5250
      %v5283 = vunpack.c.l.b16 %v5251
      %v5284 = vunpack.c.l.b16 %v5252
      %v5285 = vunpack.c.l.b16 %v5253
      %v5286 = vunpack.c.l.b16 %v5254
      %v5287 = vpack.c.b16 %v5272, %v5271
      %v5288 = vpack.c.b16 %v5274, %v5273
      %v5289 = vpack.c.b16 %v5276, %v5275
      %v5290 = vpack.c.b16 %v5278, %v5277
      %v5291 = vpack.c.b16 %v5280, %v5279
      %v5292 = vpack.c.b16 %v5282, %v5281
      %v5293 = vpack.c.b16 %v5284, %v5283
      %v5294 = vpack.c.b16 %v5286, %v5285
      %5303 = vmatprep.subr.bf16.mxu0 0
      %5304 = vmatpush1.bf16.msra.mxu0 %v5294
      %5305 = vmatprep.subr.bf16.mxu0 0
      %5306 = vmatpush1.bf16.msra.mxu0 %v5293
      %5307 = vmatprep.subr.bf16.mxu0 0
      %5308 = vmatpush1.bf16.msra.mxu0 %v5292
      %5309 = vmatprep.subr.bf16.mxu0 0
      %5310 = vmatpush1.bf16.msra.mxu0 %v5291
      %5311 = vmatprep.subr.bf16.mxu0 0
      %5312 = vmatpush1.bf16.msra.mxu0 %v5290
      %5313 = vmatprep.subr.bf16.mxu0 0
      %5314 = vmatpush1.bf16.msra.mxu0 %v5289
      %5315 = vmatprep.subr.bf16.mxu0 0
      %5316 = vmatpush1.bf16.msra.mxu0 %v5288
      %5317 = vmatprep.subr.bf16.mxu0 0
      %5318 = vmatpush1.bf16.msra.mxu0 %v5287
      %5319 = vmatprep.subr.bf16.mxu0 0
      %5320 = vmatpush2.bf16.msra.mxu0 0
      %5321 = vmatprep.subr.bf16.mxu0 0
      %5322 = vmatpush2.bf16.msra.mxu0 0
      %5323 = vmatprep.subr.bf16.mxu0 0
      %5324 = vmatpush2.bf16.msra.mxu0 0
      %5325 = vmatprep.subr.bf16.mxu0 0
      %5326 = vmatpush2.bf16.msra.mxu0 0
      %5327 = vmatprep.subr.bf16.mxu0 0
      %5328 = vmatpush2.bf16.msra.mxu0 0
      %5329 = vmatprep.subr.bf16.mxu0 0
      %5330 = vmatpush2.bf16.msra.mxu0 0
      %5331 = vmatprep.subr.bf16.mxu0 0
      %5332 = vmatpush2.bf16.msra.mxu0 0
      %5333 = vmatprep.subr.bf16.mxu0 0
      %5334 = vmatpush2.bf16.msra.mxu0 0
      %5335 = vmatprep.mubr.bf16.mxu0 0
      %5336 = vmatmul.mubr.bf16.gmra.mxu0 %v4704
      %v5337 = vpop.f32.mrf.mxu0
      %v5338 = vadd.f32 0.0, %v5337
      %v5339 = vpop.f32.mrf.mxu0
      %v5340 = vpop.f32.mrf.mxu0
      %v5341 = vadd.f32 0.0, %v5340
      %v5342 = vpop.f32.mrf.mxu0
      %5343 = vdwg.mxu0
      %v5344 = vadd.f32 %v5237, %v5338
      %v5345 = vadd.f32 %v5238, %v5341
      %v5346 = vld [vmem:[%s11 + $0x180] sm:$0xf]
      %v5347 = vld [vmem:[%s11 + $0x184] sm:$0xf]
      %v5348 = vld [vmem:[%s11 + $0x188] sm:$0xf]
      %v5349 = vld [vmem:[%s11 + $0x18c] sm:$0xf]
      %v5350 = vld [vmem:[%s11 + $0x190] sm:$0xf]
      %v5351 = vld [vmem:[%s11 + $0x194] sm:$0xf]
      %v5352 = vld [vmem:[%s11 + $0x198] sm:$0xf]
      %v5353 = vld [vmem:[%s11 + $0x19c] sm:$0xf]
      %v5354 = vld [vmem:[%s11 + $0x1a0] sm:$0xf]
      %v5355 = vld [vmem:[%s11 + $0x1a4] sm:$0xf]
      %v5356 = vld [vmem:[%s11 + $0x1a8] sm:$0xf]
      %v5357 = vld [vmem:[%s11 + $0x1ac] sm:$0xf]
      %v5358 = vld [vmem:[%s11 + $0x1b0] sm:$0xf]
      %v5359 = vld [vmem:[%s11 + $0x1b4] sm:$0xf]
      %v5360 = vld [vmem:[%s11 + $0x1b8] sm:$0xf]
      %v5361 = vld [vmem:[%s11 + $0x1bc] sm:$0xf]
      %v5378 = vunpack.c.l.b16 %v5346
      %v5379 = vunpack.c.l.b16 %v5347
      %v5380 = vunpack.c.l.b16 %v5348
      %v5381 = vunpack.c.l.b16 %v5349
      %v5382 = vunpack.c.l.b16 %v5350
      %v5383 = vunpack.c.l.b16 %v5351
      %v5384 = vunpack.c.l.b16 %v5352
      %v5385 = vunpack.c.l.b16 %v5353
      %v5386 = vunpack.c.l.b16 %v5354
      %v5387 = vunpack.c.l.b16 %v5355
      %v5388 = vunpack.c.l.b16 %v5356
      %v5389 = vunpack.c.l.b16 %v5357
      %v5390 = vunpack.c.l.b16 %v5358
      %v5391 = vunpack.c.l.b16 %v5359
      %v5392 = vunpack.c.l.b16 %v5360
      %v5393 = vunpack.c.l.b16 %v5361
      %v5394 = vpack.c.b16 %v5379, %v5378
      %v5395 = vpack.c.b16 %v5381, %v5380
      %v5396 = vpack.c.b16 %v5383, %v5382
      %v5397 = vpack.c.b16 %v5385, %v5384
      %v5398 = vpack.c.b16 %v5387, %v5386
      %v5399 = vpack.c.b16 %v5389, %v5388
      %v5400 = vpack.c.b16 %v5391, %v5390
      %v5401 = vpack.c.b16 %v5393, %v5392
      %5410 = vmatprep.subr.bf16.mxu0 0
      %5411 = vmatpush1.bf16.msra.mxu0 %v5401
      %5412 = vmatprep.subr.bf16.mxu0 0
      %5413 = vmatpush1.bf16.msra.mxu0 %v5400
      %5414 = vmatprep.subr.bf16.mxu0 0
      %5415 = vmatpush1.bf16.msra.mxu0 %v5399
      %5416 = vmatprep.subr.bf16.mxu0 0
      %5417 = vmatpush1.bf16.msra.mxu0 %v5398
      %5418 = vmatprep.subr.bf16.mxu0 0
      %5419 = vmatpush1.bf16.msra.mxu0 %v5397
      %5420 = vmatprep.subr.bf16.mxu0 0
      %5421 = vmatpush1.bf16.msra.mxu0 %v5396
      %5422 = vmatprep.subr.bf16.mxu0 0
      %5423 = vmatpush1.bf16.msra.mxu0 %v5395
      %5424 = vmatprep.subr.bf16.mxu0 0
      %5425 = vmatpush1.bf16.msra.mxu0 %v5394
      %5426 = vmatprep.subr.bf16.mxu0 0
      %5427 = vmatpush2.bf16.msra.mxu0 0
      %5428 = vmatprep.subr.bf16.mxu0 0
      %5429 = vmatpush2.bf16.msra.mxu0 0
      %5430 = vmatprep.subr.bf16.mxu0 0
      %5431 = vmatpush2.bf16.msra.mxu0 0
      %5432 = vmatprep.subr.bf16.mxu0 0
      %5433 = vmatpush2.bf16.msra.mxu0 0
      %5434 = vmatprep.subr.bf16.mxu0 0
      %5435 = vmatpush2.bf16.msra.mxu0 0
      %5436 = vmatprep.subr.bf16.mxu0 0
      %5437 = vmatpush2.bf16.msra.mxu0 0
      %5438 = vmatprep.subr.bf16.mxu0 0
      %5439 = vmatpush2.bf16.msra.mxu0 0
      %5440 = vmatprep.subr.bf16.mxu0 0
      %5441 = vmatpush2.bf16.msra.mxu0 0
      %5442 = vmatprep.mubr.bf16.mxu0 0
      %5443 = vmatmul.mubr.bf16.gmra.mxu0 %v4705
      %v5444 = vpop.f32.mrf.mxu0
      %v5445 = vadd.f32 0.0, %v5444
      %v5446 = vpop.f32.mrf.mxu0
      %v5447 = vpop.f32.mrf.mxu0
      %v5448 = vadd.f32 0.0, %v5447
      %v5449 = vpop.f32.mrf.mxu0
      %5450 = vdwg.mxu0
      %v5451 = vadd.f32 %v5344, %v5445
      %v5452 = vadd.f32 %v5345, %v5448
      %v5453 = vld [vmem:[%s11 + $0x1c0] sm:$0xf]
      %v5454 = vld [vmem:[%s11 + $0x1c4] sm:$0xf]
      %v5455 = vld [vmem:[%s11 + $0x1c8] sm:$0xf]
      %v5456 = vld [vmem:[%s11 + $0x1cc] sm:$0xf]
      %v5457 = vld [vmem:[%s11 + $0x1d0] sm:$0xf]
      %v5458 = vld [vmem:[%s11 + $0x1d4] sm:$0xf]
      %v5459 = vld [vmem:[%s11 + $0x1d8] sm:$0xf]
      %v5460 = vld [vmem:[%s11 + $0x1dc] sm:$0xf]
      %v5461 = vld [vmem:[%s11 + $0x1e0] sm:$0xf]
      %v5462 = vld [vmem:[%s11 + $0x1e4] sm:$0xf]
      %v5463 = vld [vmem:[%s11 + $0x1e8] sm:$0xf]
      %v5464 = vld [vmem:[%s11 + $0x1ec] sm:$0xf]
      %v5465 = vld [vmem:[%s11 + $0x1f0] sm:$0xf]
      %v5466 = vld [vmem:[%s11 + $0x1f4] sm:$0xf]
      %v5467 = vld [vmem:[%s11 + $0x1f8] sm:$0xf]
      %v5468 = vld [vmem:[%s11 + $0x1fc] sm:$0xf]
      %v5485 = vunpack.c.l.b16 %v5453
      %v5486 = vunpack.c.l.b16 %v5454
      %v5487 = vunpack.c.l.b16 %v5455
      %v5488 = vunpack.c.l.b16 %v5456
      %v5489 = vunpack.c.l.b16 %v5457
      %v5490 = vunpack.c.l.b16 %v5458
      %v5491 = vunpack.c.l.b16 %v5459
      %v5492 = vunpack.c.l.b16 %v5460
      %v5493 = vunpack.c.l.b16 %v5461
      %v5494 = vunpack.c.l.b16 %v5462
      %v5495 = vunpack.c.l.b16 %v5463
      %v5496 = vunpack.c.l.b16 %v5464
      %v5497 = vunpack.c.l.b16 %v5465
      %v5498 = vunpack.c.l.b16 %v5466
      %v5499 = vunpack.c.l.b16 %v5467
      %v5500 = vunpack.c.l.b16 %v5468
      %v5501 = vpack.c.b16 %v5486, %v5485
      %v5502 = vpack.c.b16 %v5488, %v5487
      %v5503 = vpack.c.b16 %v5490, %v5489
      %v5504 = vpack.c.b16 %v5492, %v5491
      %v5505 = vpack.c.b16 %v5494, %v5493
      %v5506 = vpack.c.b16 %v5496, %v5495
      %v5507 = vpack.c.b16 %v5498, %v5497
      %v5508 = vpack.c.b16 %v5500, %v5499
      %5517 = vmatprep.subr.bf16.mxu0 0
      %5518 = vmatpush1.bf16.msra.mxu0 %v5508
      %5519 = vmatprep.subr.bf16.mxu0 0
      %5520 = vmatpush1.bf16.msra.mxu0 %v5507
      %5521 = vmatprep.subr.bf16.mxu0 0
      %5522 = vmatpush1.bf16.msra.mxu0 %v5506
      %5523 = vmatprep.subr.bf16.mxu0 0
      %5524 = vmatpush1.bf16.msra.mxu0 %v5505
      %5525 = vmatprep.subr.bf16.mxu0 0
      %5526 = vmatpush1.bf16.msra.mxu0 %v5504
      %5527 = vmatprep.subr.bf16.mxu0 0
      %5528 = vmatpush1.bf16.msra.mxu0 %v5503
      %5529 = vmatprep.subr.bf16.mxu0 0
      %5530 = vmatpush1.bf16.msra.mxu0 %v5502
      %5531 = vmatprep.subr.bf16.mxu0 0
      %5532 = vmatpush1.bf16.msra.mxu0 %v5501
      %5533 = vmatprep.subr.bf16.mxu0 0
      %5534 = vmatpush2.bf16.msra.mxu0 0
      %5535 = vmatprep.subr.bf16.mxu0 0
      %5536 = vmatpush2.bf16.msra.mxu0 0
      %5537 = vmatprep.subr.bf16.mxu0 0
      %5538 = vmatpush2.bf16.msra.mxu0 0
      %5539 = vmatprep.subr.bf16.mxu0 0
      %5540 = vmatpush2.bf16.msra.mxu0 0
      %5541 = vmatprep.subr.bf16.mxu0 0
      %5542 = vmatpush2.bf16.msra.mxu0 0
      %5543 = vmatprep.subr.bf16.mxu0 0
      %5544 = vmatpush2.bf16.msra.mxu0 0
      %5545 = vmatprep.subr.bf16.mxu0 0
      %5546 = vmatpush2.bf16.msra.mxu0 0
      %5547 = vmatprep.subr.bf16.mxu0 0
      %5548 = vmatpush2.bf16.msra.mxu0 0
      %5549 = vmatprep.mubr.bf16.mxu0 0
      %5550 = vmatmul.mubr.bf16.gmra.mxu0 %v4706
      %v5551 = vpop.f32.mrf.mxu0
      %v5552 = vadd.f32 0.0, %v5551
      %v5553 = vpop.f32.mrf.mxu0
      %v5554 = vpop.f32.mrf.mxu0
      %v5555 = vadd.f32 0.0, %v5554
      %v5556 = vpop.f32.mrf.mxu0
      %5557 = vdwg.mxu0
      %v5558 = vadd.f32 %v5451, %v5552
      %v5559 = vadd.f32 %v5452, %v5555
      %v5560 = vld [vmem:[%s11 + $0x200] sm:$0xf]
      %v5561 = vld [vmem:[%s11 + $0x204] sm:$0xf]
      %v5562 = vld [vmem:[%s11 + $0x208] sm:$0xf]
      %v5563 = vld [vmem:[%s11 + $0x20c] sm:$0xf]
      %v5564 = vld [vmem:[%s11 + $0x210] sm:$0xf]
      %v5565 = vld [vmem:[%s11 + $0x214] sm:$0xf]
      %v5566 = vld [vmem:[%s11 + $0x218] sm:$0xf]
      %v5567 = vld [vmem:[%s11 + $0x21c] sm:$0xf]
      %v5568 = vld [vmem:[%s11 + $0x220] sm:$0xf]
      %v5569 = vld [vmem:[%s11 + $0x224] sm:$0xf]
      %v5570 = vld [vmem:[%s11 + $0x228] sm:$0xf]
      %v5571 = vld [vmem:[%s11 + $0x22c] sm:$0xf]
      %v5572 = vld [vmem:[%s11 + $0x230] sm:$0xf]
      %v5573 = vld [vmem:[%s11 + $0x234] sm:$0xf]
      %v5574 = vld [vmem:[%s11 + $0x238] sm:$0xf]
      %v5575 = vld [vmem:[%s11 + $0x23c] sm:$0xf]
      %v5592 = vunpack.c.l.b16 %v5560
      %v5593 = vunpack.c.l.b16 %v5561
      %v5594 = vunpack.c.l.b16 %v5562
      %v5595 = vunpack.c.l.b16 %v5563
      %v5596 = vunpack.c.l.b16 %v5564
      %v5597 = vunpack.c.l.b16 %v5565
      %v5598 = vunpack.c.l.b16 %v5566
      %v5599 = vunpack.c.l.b16 %v5567
      %v5600 = vunpack.c.l.b16 %v5568
      %v5601 = vunpack.c.l.b16 %v5569
      %v5602 = vunpack.c.l.b16 %v5570
      %v5603 = vunpack.c.l.b16 %v5571
      %v5604 = vunpack.c.l.b16 %v5572
      %v5605 = vunpack.c.l.b16 %v5573
      %v5606 = vunpack.c.l.b16 %v5574
      %v5607 = vunpack.c.l.b16 %v5575
      %v5608 = vpack.c.b16 %v5593, %v5592
      %v5609 = vpack.c.b16 %v5595, %v5594
      %v5610 = vpack.c.b16 %v5597, %v5596
      %v5611 = vpack.c.b16 %v5599, %v5598
      %v5612 = vpack.c.b16 %v5601, %v5600
      %v5613 = vpack.c.b16 %v5603, %v5602
      %v5614 = vpack.c.b16 %v5605, %v5604
      %v5615 = vpack.c.b16 %v5607, %v5606
      %5624 = vmatprep.subr.bf16.mxu0 0
      %5625 = vmatpush1.bf16.msra.mxu0 %v5615
      %5626 = vmatprep.subr.bf16.mxu0 0
      %5627 = vmatpush1.bf16.msra.mxu0 %v5614
      %5628 = vmatprep.subr.bf16.mxu0 0
      %5629 = vmatpush1.bf16.msra.mxu0 %v5613
      %5630 = vmatprep.subr.bf16.mxu0 0
      %5631 = vmatpush1.bf16.msra.mxu0 %v5612
      %5632 = vmatprep.subr.bf16.mxu0 0
      %5633 = vmatpush1.bf16.msra.mxu0 %v5611
      %5634 = vmatprep.subr.bf16.mxu0 0
      %5635 = vmatpush1.bf16.msra.mxu0 %v5610
      %5636 = vmatprep.subr.bf16.mxu0 0
      %5637 = vmatpush1.bf16.msra.mxu0 %v5609
      %5638 = vmatprep.subr.bf16.mxu0 0
      %5639 = vmatpush1.bf16.msra.mxu0 %v5608
      %5640 = vmatprep.subr.bf16.mxu0 0
      %5641 = vmatpush2.bf16.msra.mxu0 0
      %5642 = vmatprep.subr.bf16.mxu0 0
      %5643 = vmatpush2.bf16.msra.mxu0 0
      %5644 = vmatprep.subr.bf16.mxu0 0
      %5645 = vmatpush2.bf16.msra.mxu0 0
      %5646 = vmatprep.subr.bf16.mxu0 0
      %5647 = vmatpush2.bf16.msra.mxu0 0
      %5648 = vmatprep.subr.bf16.mxu0 0
      %5649 = vmatpush2.bf16.msra.mxu0 0
      %5650 = vmatprep.subr.bf16.mxu0 0
      %5651 = vmatpush2.bf16.msra.mxu0 0
      %5652 = vmatprep.subr.bf16.mxu0 0
      %5653 = vmatpush2.bf16.msra.mxu0 0
      %5654 = vmatprep.subr.bf16.mxu0 0
      %5655 = vmatpush2.bf16.msra.mxu0 0
      %5656 = vmatprep.mubr.bf16.mxu0 0
      %5657 = vmatmul.mubr.bf16.gmra.mxu0 %v4707
      %v5658 = vpop.f32.mrf.mxu0
      %v5659 = vadd.f32 0.0, %v5658
      %v5660 = vpop.f32.mrf.mxu0
      %v5661 = vpop.f32.mrf.mxu0
      %v5662 = vadd.f32 0.0, %v5661
      %v5663 = vpop.f32.mrf.mxu0
      %5664 = vdwg.mxu0
      %v5665 = vadd.f32 %v5558, %v5659
      %v5666 = vadd.f32 %v5559, %v5662
      %v5667 = vmax.f32 %v5665, 0.0
      %v5668 = vmax.f32 %v5666, 0.0
      %v5669 = vpack.c.bf16 %v5668, %v5667
      %v5670 = vld [vmem:[%s12] sm:$0xf]
      %v5671 = vld [vmem:[%s12 + $0x4] sm:$0xf]
      %v5672 = vld [vmem:[%s12 + $0x8] sm:$0xf]
      %v5673 = vld [vmem:[%s12 + $0xc] sm:$0xf]
      %v5678 = vunpack.c.l.b16 %v5670
      %v5679 = vunpack.c.l.b16 %v5671
      %v5680 = vunpack.c.l.b16 %v5672
      %v5681 = vunpack.c.l.b16 %v5673
      %v5682 = vpack.c.b16 %v5679, %v5678
      %v5683 = vpack.c.b16 %v5681, %v5680
      %v5687 = vsel %vm4544, %v5669, 0
      %5689 = vmatprep.subr.bf16.mxu0 0
      %5690 = vmatpush1.bf16.msra.mxu0 0
      %5691 = vmatprep.subr.bf16.mxu0 0
      %5692 = vmatpush1.bf16.msra.mxu0 0
      %5693 = vmatprep.subr.bf16.mxu0 0
      %5694 = vmatpush1.bf16.msra.mxu0 0
      %5695 = vmatprep.subr.bf16.mxu0 0
      %5696 = vmatpush1.bf16.msra.mxu0 0
      %5697 = vmatprep.subr.bf16.mxu0 0
      %5698 = vmatpush1.bf16.msra.mxu0 0
      %5699 = vmatprep.subr.bf16.mxu0 0
      %5700 = vmatpush1.bf16.msra.mxu0 0
      %5701 = vmatprep.subr.bf16.mxu0 0
      %5702 = vmatpush1.bf16.msra.mxu0 %v5683
      %5703 = vmatprep.subr.bf16.mxu0 0
      %5704 = vmatpush1.bf16.msra.mxu0 %v5682
      %5705 = vmatprep.subr.bf16.mxu0 0
      %5706 = vmatpush2.bf16.msra.mxu0 0
      %5707 = vmatprep.subr.bf16.mxu0 0
      %5708 = vmatpush2.bf16.msra.mxu0 0
      %5709 = vmatprep.subr.bf16.mxu0 0
      %5710 = vmatpush2.bf16.msra.mxu0 0
      %5711 = vmatprep.subr.bf16.mxu0 0
      %5712 = vmatpush2.bf16.msra.mxu0 0
      %5713 = vmatprep.subr.bf16.mxu0 0
      %5714 = vmatpush2.bf16.msra.mxu0 0
      %5715 = vmatprep.subr.bf16.mxu0 0
      %5716 = vmatpush2.bf16.msra.mxu0 0
      %5717 = vmatprep.subr.bf16.mxu0 0
      %5718 = vmatpush2.bf16.msra.mxu0 0
      %5719 = vmatprep.subr.bf16.mxu0 0
      %5720 = vmatpush2.bf16.msra.mxu0 0
      %5721 = vmatprep.mubr.bf16.mxu0 0
      %5722 = vmatmul.mubr.bf16.gmra.mxu0 %v5687
      %v5723 = vpop.f32.mrf.mxu0
      %v5724 = vadd.f32 0.0, %v5723
      %v5725 = vpop.f32.mrf.mxu0
      %v5726 = vpop.f32.mrf.mxu0
      %v5727 = vadd.f32 0.0, %v5726
      %v5728 = vpop.f32.mrf.mxu0
      %5729 = vdwg.mxu0
      %v5730 = vadd.f32 %v4589, %v5724
      %v5731 = vadd.f32 %v4590, %v5727
      %v5732 = vmax.f32 %v5730, 0.0
      %v5733 = vmax.f32 %v5731, 0.0
      %v5734 = vpack.c.bf16 %v5733, %v5732
      %v5735 = vld [vmem:[%s13] sm:$0xf]
      %v5736 = vld [vmem:[%s13 + $0x4] sm:$0xf]
      %v5737 = vld [vmem:[%s13 + $0x8] sm:$0xf]
      %v5738 = vld [vmem:[%s13 + $0xc] sm:$0xf]
      %v5739 = vld [vmem:[%s13 + $0x10] sm:$0xf]
      %v5740 = vld [vmem:[%s13 + $0x14] sm:$0xf]
      %v5741 = vld [vmem:[%s13 + $0x18] sm:$0xf]
      %v5742 = vld [vmem:[%s13 + $0x1c] sm:$0xf]
      %v5743 = vld [vmem:[%s13 + $0x20] sm:$0xf]
      %v5744 = vld [vmem:[%s13 + $0x24] sm:$0xf]
      %v5745 = vld [vmem:[%s13 + $0x28] sm:$0xf]
      %v5746 = vld [vmem:[%s13 + $0x2c] sm:$0xf]
      %v5747 = vld [vmem:[%s13 + $0x30] sm:$0xf]
      %v5748 = vld [vmem:[%s13 + $0x34] sm:$0xf]
      %v5749 = vld [vmem:[%s13 + $0x38] sm:$0xf]
      %v5750 = vld [vmem:[%s13 + $0x3c] sm:$0xf]
      %v5751 = vld [vmem:[%s14] sm:$0x1]
      %v5753 = vlaneseq
      %v5754 = vshrl.u32 %v5753, 7
      %v5755 = vsub.s32 0, %v5754
      %v5756 = vrot.slane %v5751, %v5755
      %v5774 = vunpack.c.l.b16 %v5735
      %v5775 = vunpack.c.l.b16 %v5736
      %v5776 = vunpack.c.l.b16 %v5737
      %v5777 = vunpack.c.l.b16 %v5738
      %v5778 = vunpack.c.l.b16 %v5739
      %v5779 = vunpack.c.l.b16 %v5740
      %v5780 = vunpack.c.l.b16 %v5741
      %v5781 = vunpack.c.l.b16 %v5742
      %v5782 = vunpack.c.l.b16 %v5743
      %v5783 = vunpack.c.l.b16 %v5744
      %v5784 = vunpack.c.l.b16 %v5745
      %v5785 = vunpack.c.l.b16 %v5746
      %v5786 = vunpack.c.l.b16 %v5747
      %v5787 = vunpack.c.l.b16 %v5748
      %v5788 = vunpack.c.l.b16 %v5749
      %v5789 = vunpack.c.l.b16 %v5750
      %v5790 = vpack.c.b16 %v5775, %v5774
      %v5791 = vpack.c.b16 %v5777, %v5776
      %v5792 = vpack.c.b16 %v5779, %v5778
      %v5793 = vpack.c.b16 %v5781, %v5780
      %v5794 = vpack.c.b16 %v5783, %v5782
      %v5795 = vpack.c.b16 %v5785, %v5784
      %v5796 = vpack.c.b16 %v5787, %v5786
      %v5797 = vpack.c.b16 %v5789, %v5788
      %5806 = vmatprep.subr.bf16.mxu0 0
      %5807 = vmatpush1.bf16.msra.mxu0 %v5797
      %5808 = vmatprep.subr.bf16.mxu0 0
      %5809 = vmatpush1.bf16.msra.mxu0 %v5796
      %5810 = vmatprep.subr.bf16.mxu0 0
      %5811 = vmatpush1.bf16.msra.mxu0 %v5795
      %5812 = vmatprep.subr.bf16.mxu0 0
      %5813 = vmatpush1.bf16.msra.mxu0 %v5794
      %5814 = vmatprep.subr.bf16.mxu0 0
      %5815 = vmatpush1.bf16.msra.mxu0 %v5793
      %5816 = vmatprep.subr.bf16.mxu0 0
      %5817 = vmatpush1.bf16.msra.mxu0 %v5792
      %5818 = vmatprep.subr.bf16.mxu0 0
      %5819 = vmatpush1.bf16.msra.mxu0 %v5791
      %5820 = vmatprep.subr.bf16.mxu0 0
      %5821 = vmatpush1.bf16.msra.mxu0 %v5790
      %5822 = vmatprep.subr.bf16.mxu0 0
      %5823 = vmatpush2.bf16.msra.mxu0 0
      %5824 = vmatprep.subr.bf16.mxu0 0
      %5825 = vmatpush2.bf16.msra.mxu0 0
      %5826 = vmatprep.subr.bf16.mxu0 0
      %5827 = vmatpush2.bf16.msra.mxu0 0
      %5828 = vmatprep.subr.bf16.mxu0 0
      %5829 = vmatpush2.bf16.msra.mxu0 0
      %5830 = vmatprep.subr.bf16.mxu0 0
      %5831 = vmatpush2.bf16.msra.mxu0 0
      %5832 = vmatprep.subr.bf16.mxu0 0
      %5833 = vmatpush2.bf16.msra.mxu0 0
      %5834 = vmatprep.subr.bf16.mxu0 0
      %5835 = vmatpush2.bf16.msra.mxu0 0
      %5836 = vmatprep.subr.bf16.mxu0 0
      %5837 = vmatpush2.bf16.msra.mxu0 0
      %5838 = vmatprep.mubr.bf16.mxu0 0
      %5839 = vmatmul.mubr.bf16.gmra.mxu0 %v5734
      %v5840 = vpop.f32.mrf.mxu0
      %v5841 = vadd.f32 %v5756, %v5840
      %v5842 = vpop.f32.mrf.mxu0
      %v5843 = vpop.f32.mrf.mxu0
      %v5844 = vadd.f32 %v5756, %v5843
      %v5845 = vpop.f32.mrf.mxu0
      %5846 = vdwg.mxu0
      %v5847 = vmul.f32 %v5841, %v5841
      %v5848 = vmul.f32 %v5844, %v5844
      %vm5849 = vcmask 31744
      %v5850 = vsel %vm5849, %v5847, 0.0
      %5851 = vadd.xlane.f32.xlu0 %v5850
      %v5852 = vpop.xlane.xlu0 %5851
      %v5853 = vsel %vm5849, %v5848, 0.0
      %5854 = vadd.xlane.f32.xlu0 %v5853
      %v5855 = vpop.xlane.xlu0 %5854
      %v5856 = vadd.f32 %v5852, 1e-10
      %v5857 = vadd.f32 %v5855, 1e-10
      %v5858 = vrsqrt.pop %v5856
      %v5859 = vrsqrt.pop %v5857
      %v5860 = vmul.f32 %v5841, %v5858
      %v5861 = vmul.f32 %v5844, %v5859
      %v5862 = vld [vmem:[%s15] sm:$0xff]
      %v5863 = vld [vmem:[%s15 + $0x8] sm:$0xff]
      %v5864 = vld [vmem:[%s15 + $0x10] sm:$0xff]
      %v5865 = vld [vmem:[%s15 + $0x18] sm:$0xff]
      %v5866 = vld [vmem:[%s15 + $0x20] sm:$0xff]
      %v5867 = vld [vmem:[%s15 + $0x28] sm:$0xff]
      %v5868 = vld [vmem:[%s15 + $0x30] sm:$0xff]
      %v5869 = vld [vmem:[%s15 + $0x38] sm:$0xff]
      %v5870 = vld [vmem:[%s15 + $0x40] sm:$0xff]
      %v5871 = vld [vmem:[%s15 + $0x48] sm:$0xff]
      %v5872 = vld [vmem:[%s15 + $0x50] sm:$0xff]
      %v5873 = vld [vmem:[%s15 + $0x58] sm:$0xff]
      %v5874 = vld [vmem:[%s15 + $0x60] sm:$0xff]
      %v5875 = vld [vmem:[%s15 + $0x68] sm:$0xff]
      %v5876 = vld [vmem:[%s15 + $0x70] sm:$0xff]
      %v5877 = vld [vmem:[%s15 + $0x78] sm:$0xff]
      %v5894 = vcombine.high %v5862, %v5862
      %v5895 = vcombine.high %v5863, %v5863
      %v5896 = vcombine.high %v5864, %v5864
      %v5897 = vcombine.high %v5865, %v5865
      %v5898 = vcombine.high %v5866, %v5866
      %v5899 = vcombine.high %v5867, %v5867
      %v5900 = vcombine.high %v5868, %v5868
      %v5901 = vcombine.high %v5869, %v5869
      %v5902 = vcombine.high %v5870, %v5870
      %v5903 = vcombine.high %v5871, %v5871
      %v5904 = vcombine.high %v5872, %v5872
      %v5905 = vcombine.high %v5873, %v5873
      %v5906 = vcombine.high %v5874, %v5874
      %v5907 = vcombine.high %v5875, %v5875
      %v5908 = vcombine.high %v5876, %v5876
      %v5909 = vcombine.high %v5877, %v5877
      %v5911 = vsel %vm5849, %v5860, 0
      %v5914 = vsel %vm5849, %v5861, 0
      %vm5916 = vcmask 1043456
      %v5917 = vsel %vm5916, %v5862, 0
      %v5919 = vsel %vm5916, %v5894, 0
      %v5921 = vsel %vm5916, %v5863, 0
      %v5923 = vsel %vm5916, %v5895, 0
      %v5925 = vsel %vm5916, %v5864, 0
      %v5927 = vsel %vm5916, %v5896, 0
      %v5929 = vsel %vm5916, %v5865, 0
      %v5931 = vsel %vm5916, %v5897, 0
      %v5933 = vsel %vm5916, %v5866, 0
      %v5935 = vsel %vm5916, %v5898, 0
      %v5937 = vsel %vm5916, %v5867, 0
      %v5939 = vsel %vm5916, %v5899, 0
      %v5941 = vsel %vm5916, %v5868, 0
      %v5943 = vsel %vm5916, %v5900, 0
      %v5945 = vsel %vm5916, %v5869, 0
      %v5947 = vsel %vm5916, %v5901, 0
      %v5949 = vsel %vm5916, %v5870, 0
      %v5951 = vsel %vm5916, %v5902, 0
      %v5953 = vsel %vm5916, %v5871, 0
      %v5955 = vsel %vm5916, %v5903, 0
      %v5957 = vsel %vm5916, %v5872, 0
      %v5959 = vsel %vm5916, %v5904, 0
      %v5961 = vsel %vm5916, %v5873, 0
      %v5963 = vsel %vm5916, %v5905, 0
      %v5965 = vsel %vm5916, %v5874, 0
      %v5967 = vsel %vm5916, %v5906, 0
      %v5969 = vsel %vm5916, %v5875, 0
      %v5971 = vsel %vm5916, %v5907, 0
      %v5973 = vsel %vm5916, %v5876, 0
      %v5975 = vsel %vm5916, %v5908, 0
      %v5977 = vsel %vm5916, %v5877, 0
      %v5979 = vsel %vm5916, %v5909, 0
      %5981 = vmatprep.subr.mxu0 0.0
      %5982 = vmatpush1.msra.mxu0 0.0
      %5983 = vmatprep.subr.mxu0 0.0
      %5984 = vmatpush1.msra.mxu0 0.0
      %5985 = vmatprep.subr.mxu0 0.0
      %5986 = vmatpush1.msra.mxu0 0.0
      %5987 = vmatprep.subr.mxu0 0.0
      %5988 = vmatpush1.msra.mxu0 0.0
      %5989 = vmatprep.subr.mxu0 0.0
      %5990 = vmatpush1.msra.mxu0 0.0
      %5991 = vmatprep.subr.mxu0 0.0
      %5992 = vmatpush1.msra.mxu0 0.0
      %5993 = vmatprep.subr.mxu0 0.0
      %5994 = vmatpush1.msra.mxu0 0.0
      %5995 = vmatprep.subr.mxu0 0.0
      %5996 = vmatpush1.msra.mxu0 0.0
      %5997 = vmatprep.subr.mxu0 0.0
      %5998 = vmatpush1.msra.mxu0 0.0
      %5999 = vmatprep.subr.mxu0 0.0
      %6000 = vmatpush1.msra.mxu0 0.0
      %6001 = vmatprep.subr.mxu0 0.0
      %6002 = vmatpush1.msra.mxu0 0.0
      %6003 = vmatprep.subr.mxu0 0.0
      %6004 = vmatpush1.msra.mxu0 0.0
      %6005 = vmatprep.subr.mxu0 0.0
      %6006 = vmatpush1.msra.mxu0 0.0
      %6007 = vmatprep.subr.mxu0 0.0
      %6008 = vmatpush1.msra.mxu0 0.0
      %6009 = vmatprep.subr.mxu0 0.0
      %6010 = vmatpush1.msra.mxu0 0.0
      %6011 = vmatprep.subr.mxu0 %v5919
      %6012 = vmatpush1.msra.mxu0 %v5917
      %6013 = vmatprep.subr.mxu0 0.0
      %6014 = vmatpush2.msra.mxu0 0.0
      %6015 = vmatprep.subr.mxu0 0.0
      %6016 = vmatpush2.msra.mxu0 0.0
      %6017 = vmatprep.subr.mxu0 0.0
      %6018 = vmatpush2.msra.mxu0 0.0
      %6019 = vmatprep.subr.mxu0 0.0
      %6020 = vmatpush2.msra.mxu0 0.0
      %6021 = vmatprep.subr.mxu0 0.0
      %6022 = vmatpush2.msra.mxu0 0.0
      %6023 = vmatprep.subr.mxu0 0.0
      %6024 = vmatpush2.msra.mxu0 0.0
      %6025 = vmatprep.subr.mxu0 0.0
      %6026 = vmatpush2.msra.mxu0 0.0
      %6027 = vmatprep.subr.mxu0 0.0
      %6028 = vmatpush2.msra.mxu0 0.0
      %6029 = vmatprep.subr.mxu0 0.0
      %6030 = vmatpush2.msra.mxu0 0.0
      %6031 = vmatprep.subr.mxu0 0.0
      %6032 = vmatpush2.msra.mxu0 0.0
      %6033 = vmatprep.subr.mxu0 0.0
      %6034 = vmatpush2.msra.mxu0 0.0
      %6035 = vmatprep.subr.mxu0 0.0
      %6036 = vmatpush2.msra.mxu0 0.0
      %6037 = vmatprep.subr.mxu0 0.0
      %6038 = vmatpush2.msra.mxu0 0.0
      %6039 = vmatprep.subr.mxu0 0.0
      %6040 = vmatpush2.msra.mxu0 0.0
      %6041 = vmatprep.subr.mxu0 0.0
      %6042 = vmatpush2.msra.mxu0 0.0
      %6043 = vmatprep.subr.mxu0 0.0
      %6044 = vmatpush2.msra.mxu0 0.0
      %6045 = vmatprep.mubr.f32.mxu0 0.0
      %6046 = vmatmul.mubr.f32.gmra.mxu0 %v5911
      %v6047 = vpop.f32.mrf.mxu0
      %v6048 = vadd.f32 0.0, %v6047
      %v6049 = vpop.f32.mrf.mxu0
      %v6050 = vadd.f32 0.0, %v6049
      %6051 = vmatprep.mubr.f32.mxu0 0.0
      %6052 = vmatmul.mubr.f32.gmra.mxu0 %v5914
      %v6053 = vpop.f32.mrf.mxu0
      %v6054 = vadd.f32 0.0, %v6053
      %v6055 = vpop.f32.mrf.mxu0
      %v6056 = vadd.f32 0.0, %v6055
      %6057 = vdwg.mxu0
      %6058 = vmatprep.subr.mxu0 0.0
      %6059 = vmatpush1.msra.mxu0 0.0
      %6060 = vmatprep.subr.mxu0 0.0
      %6061 = vmatpush1.msra.mxu0 0.0
      %6062 = vmatprep.subr.mxu0 0.0
      %6063 = vmatpush1.msra.mxu0 0.0
      %6064 = vmatprep.subr.mxu0 0.0
      %6065 = vmatpush1.msra.mxu0 0.0
      %6066 = vmatprep.subr.mxu0 0.0
      %6067 = vmatpush1.msra.mxu0 0.0
      %6068 = vmatprep.subr.mxu0 0.0
      %6069 = vmatpush1.msra.mxu0 0.0
      %6070 = vmatprep.subr.mxu0 0.0
      %6071 = vmatpush1.msra.mxu0 0.0
      %6072 = vmatprep.subr.mxu0 0.0
      %6073 = vmatpush1.msra.mxu0 0.0
      %6074 = vmatprep.subr.mxu0 0.0
      %6075 = vmatpush1.msra.mxu0 0.0
      %6076 = vmatprep.subr.mxu0 0.0
      %6077 = vmatpush1.msra.mxu0 0.0
      %6078 = vmatprep.subr.mxu0 0.0
      %6079 = vmatpush1.msra.mxu0 0.0
      %6080 = vmatprep.subr.mxu0 0.0
      %6081 = vmatpush1.msra.mxu0 0.0
      %6082 = vmatprep.subr.mxu0 0.0
      %6083 = vmatpush1.msra.mxu0 0.0
      %6084 = vmatprep.subr.mxu0 0.0
      %6085 = vmatpush1.msra.mxu0 0.0
      %6086 = vmatprep.subr.mxu0 0.0
      %6087 = vmatpush1.msra.mxu0 0.0
      %6088 = vmatprep.subr.mxu0 %v5923
      %6089 = vmatpush1.msra.mxu0 %v5921
      %6090 = vmatprep.subr.mxu0 0.0
      %6091 = vmatpush2.msra.mxu0 0.0
      %6092 = vmatprep.subr.mxu0 0.0
      %6093 = vmatpush2.msra.mxu0 0.0
      %6094 = vmatprep.subr.mxu0 0.0
      %6095 = vmatpush2.msra.mxu0 0.0
      %6096 = vmatprep.subr.mxu0 0.0
      %6097 = vmatpush2.msra.mxu0 0.0
      %6098 = vmatprep.subr.mxu0 0.0
      %6099 = vmatpush2.msra.mxu0 0.0
      %6100 = vmatprep.subr.mxu0 0.0
      %6101 = vmatpush2.msra.mxu0 0.0
      %6102 = vmatprep.subr.mxu0 0.0
      %6103 = vmatpush2.msra.mxu0 0.0
      %6104 = vmatprep.subr.mxu0 0.0
      %6105 = vmatpush2.msra.mxu0 0.0
      %6106 = vmatprep.subr.mxu0 0.0
      %6107 = vmatpush2.msra.mxu0 0.0
      %6108 = vmatprep.subr.mxu0 0.0
      %6109 = vmatpush2.msra.mxu0 0.0
      %6110 = vmatprep.subr.mxu0 0.0
      %6111 = vmatpush2.msra.mxu0 0.0
      %6112 = vmatprep.subr.mxu0 0.0
      %6113 = vmatpush2.msra.mxu0 0.0
      %6114 = vmatprep.subr.mxu0 0.0
      %6115 = vmatpush2.msra.mxu0 0.0
      %6116 = vmatprep.subr.mxu0 0.0
      %6117 = vmatpush2.msra.mxu0 0.0
      %6118 = vmatprep.subr.mxu0 0.0
      %6119 = vmatpush2.msra.mxu0 0.0
      %6120 = vmatprep.subr.mxu0 0.0
      %6121 = vmatpush2.msra.mxu0 0.0
      %6122 = vmatprep.mubr.f32.mxu0 0.0
      %6123 = vmatmul.mubr.f32.gmra.mxu0 %v5911
      %v6124 = vpop.f32.mrf.mxu0
      %v6125 = vadd.f32 0.0, %v6124
      %v6126 = vpop.f32.mrf.mxu0
      %v6127 = vadd.f32 0.0, %v6126
      %6128 = vmatprep.mubr.f32.mxu0 0.0
      %6129 = vmatmul.mubr.f32.gmra.mxu0 %v5914
      %v6130 = vpop.f32.mrf.mxu0
      %v6131 = vadd.f32 0.0, %v6130
      %v6132 = vpop.f32.mrf.mxu0
      %v6133 = vadd.f32 0.0, %v6132
      %6134 = vdwg.mxu0
      %6135 = vmatprep.subr.mxu0 0.0
      %6136 = vmatpush1.msra.mxu0 0.0
      %6137 = vmatprep.subr.mxu0 0.0
      %6138 = vmatpush1.msra.mxu0 0.0
      %6139 = vmatprep.subr.mxu0 0.0
      %6140 = vmatpush1.msra.mxu0 0.0
      %6141 = vmatprep.subr.mxu0 0.0
      %6142 = vmatpush1.msra.mxu0 0.0
      %6143 = vmatprep.subr.mxu0 0.0
      %6144 = vmatpush1.msra.mxu0 0.0
      %6145 = vmatprep.subr.mxu0 0.0
      %6146 = vmatpush1.msra.mxu0 0.0
      %6147 = vmatprep.subr.mxu0 0.0
      %6148 = vmatpush1.msra.mxu0 0.0
      %6149 = vmatprep.subr.mxu0 0.0
      %6150 = vmatpush1.msra.mxu0 0.0
      %6151 = vmatprep.subr.mxu0 0.0
      %6152 = vmatpush1.msra.mxu0 0.0
      %6153 = vmatprep.subr.mxu0 0.0
      %6154 = vmatpush1.msra.mxu0 0.0
      %6155 = vmatprep.subr.mxu0 0.0
      %6156 = vmatpush1.msra.mxu0 0.0
      %6157 = vmatprep.subr.mxu0 0.0
      %6158 = vmatpush1.msra.mxu0 0.0
      %6159 = vmatprep.subr.mxu0 0.0
      %6160 = vmatpush1.msra.mxu0 0.0
      %6161 = vmatprep.subr.mxu0 0.0
      %6162 = vmatpush1.msra.mxu0 0.0
      %6163 = vmatprep.subr.mxu0 0.0
      %6164 = vmatpush1.msra.mxu0 0.0
      %6165 = vmatprep.subr.mxu0 %v5927
      %6166 = vmatpush1.msra.mxu0 %v5925
      %6167 = vmatprep.subr.mxu0 0.0
      %6168 = vmatpush2.msra.mxu0 0.0
      %6169 = vmatprep.subr.mxu0 0.0
      %6170 = vmatpush2.msra.mxu0 0.0
      %6171 = vmatprep.subr.mxu0 0.0
      %6172 = vmatpush2.msra.mxu0 0.0
      %6173 = vmatprep.subr.mxu0 0.0
      %6174 = vmatpush2.msra.mxu0 0.0
      %6175 = vmatprep.subr.mxu0 0.0
      %6176 = vmatpush2.msra.mxu0 0.0
      %6177 = vmatprep.subr.mxu0 0.0
      %6178 = vmatpush2.msra.mxu0 0.0
      %6179 = vmatprep.subr.mxu0 0.0
      %6180 = vmatpush2.msra.mxu0 0.0
      %6181 = vmatprep.subr.mxu0 0.0
      %6182 = vmatpush2.msra.mxu0 0.0
      %6183 = vmatprep.subr.mxu0 0.0
      %6184 = vmatpush2.msra.mxu0 0.0
      %6185 = vmatprep.subr.mxu0 0.0
      %6186 = vmatpush2.msra.mxu0 0.0
      %6187 = vmatprep.subr.mxu0 0.0
      %6188 = vmatpush2.msra.mxu0 0.0
      %6189 = vmatprep.subr.mxu0 0.0
      %6190 = vmatpush2.msra.mxu0 0.0
      %6191 = vmatprep.subr.mxu0 0.0
      %6192 = vmatpush2.msra.mxu0 0.0
      %6193 = vmatprep.subr.mxu0 0.0
      %6194 = vmatpush2.msra.mxu0 0.0
      %6195 = vmatprep.subr.mxu0 0.0
      %6196 = vmatpush2.msra.mxu0 0.0
      %6197 = vmatprep.subr.mxu0 0.0
      %6198 = vmatpush2.msra.mxu0 0.0
      %6199 = vmatprep.mubr.f32.mxu0 0.0
      %6200 = vmatmul.mubr.f32.gmra.mxu0 %v5911
      %v6201 = vpop.f32.mrf.mxu0
      %v6202 = vadd.f32 0.0, %v6201
      %v6203 = vpop.f32.mrf.mxu0
      %v6204 = vadd.f32 0.0, %v6203
      %6205 = vmatprep.mubr.f32.mxu0 0.0
      %6206 = vmatmul.mubr.f32.gmra.mxu0 %v5914
      %v6207 = vpop.f32.mrf.mxu0
      %v6208 = vadd.f32 0.0, %v6207
      %v6209 = vpop.f32.mrf.mxu0
      %v6210 = vadd.f32 0.0, %v6209
      %6211 = vdwg.mxu0
      %6212 = vmatprep.subr.mxu0 0.0
      %6213 = vmatpush1.msra.mxu0 0.0
      %6214 = vmatprep.subr.mxu0 0.0
      %6215 = vmatpush1.msra.mxu0 0.0
      %6216 = vmatprep.subr.mxu0 0.0
      %6217 = vmatpush1.msra.mxu0 0.0
      %6218 = vmatprep.subr.mxu0 0.0
      %6219 = vmatpush1.msra.mxu0 0.0
      %6220 = vmatprep.subr.mxu0 0.0
      %6221 = vmatpush1.msra.mxu0 0.0
      %6222 = vmatprep.subr.mxu0 0.0
      %6223 = vmatpush1.msra.mxu0 0.0
      %6224 = vmatprep.subr.mxu0 0.0
      %6225 = vmatpush1.msra.mxu0 0.0
      %6226 = vmatprep.subr.mxu0 0.0
      %6227 = vmatpush1.msra.mxu0 0.0
      %6228 = vmatprep.subr.mxu0 0.0
      %6229 = vmatpush1.msra.mxu0 0.0
      %6230 = vmatprep.subr.mxu0 0.0
      %6231 = vmatpush1.msra.mxu0 0.0
      %6232 = vmatprep.subr.mxu0 0.0
      %6233 = vmatpush1.msra.mxu0 0.0
      %6234 = vmatprep.subr.mxu0 0.0
      %6235 = vmatpush1.msra.mxu0 0.0
      %6236 = vmatprep.subr.mxu0 0.0
      %6237 = vmatpush1.msra.mxu0 0.0
      %6238 = vmatprep.subr.mxu0 0.0
      %6239 = vmatpush1.msra.mxu0 0.0
      %6240 = vmatprep.subr.mxu0 0.0
      %6241 = vmatpush1.msra.mxu0 0.0
      %6242 = vmatprep.subr.mxu0 %v5931
      %6243 = vmatpush1.msra.mxu0 %v5929
      %6244 = vmatprep.subr.mxu0 0.0
      %6245 = vmatpush2.msra.mxu0 0.0
      %6246 = vmatprep.subr.mxu0 0.0
      %6247 = vmatpush2.msra.mxu0 0.0
      %6248 = vmatprep.subr.mxu0 0.0
      %6249 = vmatpush2.msra.mxu0 0.0
      %6250 = vmatprep.subr.mxu0 0.0
      %6251 = vmatpush2.msra.mxu0 0.0
      %6252 = vmatprep.subr.mxu0 0.0
      %6253 = vmatpush2.msra.mxu0 0.0
      %6254 = vmatprep.subr.mxu0 0.0
      %6255 = vmatpush2.msra.mxu0 0.0
      %6256 = vmatprep.subr.mxu0 0.0
      %6257 = vmatpush2.msra.mxu0 0.0
      %6258 = vmatprep.subr.mxu0 0.0
      %6259 = vmatpush2.msra.mxu0 0.0
      %6260 = vmatprep.subr.mxu0 0.0
      %6261 = vmatpush2.msra.mxu0 0.0
      %6262 = vmatprep.subr.mxu0 0.0
      %6263 = vmatpush2.msra.mxu0 0.0
      %6264 = vmatprep.subr.mxu0 0.0
      %6265 = vmatpush2.msra.mxu0 0.0
      %6266 = vmatprep.subr.mxu0 0.0
      %6267 = vmatpush2.msra.mxu0 0.0
      %6268 = vmatprep.subr.mxu0 0.0
      %6269 = vmatpush2.msra.mxu0 0.0
      %6270 = vmatprep.subr.mxu0 0.0
      %6271 = vmatpush2.msra.mxu0 0.0
      %6272 = vmatprep.subr.mxu0 0.0
      %6273 = vmatpush2.msra.mxu0 0.0
      %6274 = vmatprep.subr.mxu0 0.0
      %6275 = vmatpush2.msra.mxu0 0.0
      %6276 = vmatprep.mubr.f32.mxu0 0.0
      %6277 = vmatmul.mubr.f32.gmra.mxu0 %v5911
      %v6278 = vpop.f32.mrf.mxu0
      %v6279 = vadd.f32 0.0, %v6278
      %v6280 = vpop.f32.mrf.mxu0
      %v6281 = vadd.f32 0.0, %v6280
      %6282 = vmatprep.mubr.f32.mxu0 0.0
      %6283 = vmatmul.mubr.f32.gmra.mxu0 %v5914
      %v6284 = vpop.f32.mrf.mxu0
      %v6285 = vadd.f32 0.0, %v6284
      %v6286 = vpop.f32.mrf.mxu0
      %v6287 = vadd.f32 0.0, %v6286
      %6288 = vdwg.mxu0
      %6289 = vmatprep.subr.mxu0 0.0
      %6290 = vmatpush1.msra.mxu0 0.0
      %6291 = vmatprep.subr.mxu0 0.0
      %6292 = vmatpush1.msra.mxu0 0.0
      %6293 = vmatprep.subr.mxu0 0.0
      %6294 = vmatpush1.msra.mxu0 0.0
      %6295 = vmatprep.subr.mxu0 0.0
      %6296 = vmatpush1.msra.mxu0 0.0
      %6297 = vmatprep.subr.mxu0 0.0
      %6298 = vmatpush1.msra.mxu0 0.0
      %6299 = vmatprep.subr.mxu0 0.0
      %6300 = vmatpush1.msra.mxu0 0.0
      %6301 = vmatprep.subr.mxu0 0.0
      %6302 = vmatpush1.msra.mxu0 0.0
      %6303 = vmatprep.subr.mxu0 0.0
      %6304 = vmatpush1.msra.mxu0 0.0
      %6305 = vmatprep.subr.mxu0 0.0
      %6306 = vmatpush1.msra.mxu0 0.0
      %6307 = vmatprep.subr.mxu0 0.0
      %6308 = vmatpush1.msra.mxu0 0.0
      %6309 = vmatprep.subr.mxu0 0.0
      %6310 = vmatpush1.msra.mxu0 0.0
      %6311 = vmatprep.subr.mxu0 0.0
      %6312 = vmatpush1.msra.mxu0 0.0
      %6313 = vmatprep.subr.mxu0 0.0
      %6314 = vmatpush1.msra.mxu0 0.0
      %6315 = vmatprep.subr.mxu0 0.0
      %6316 = vmatpush1.msra.mxu0 0.0
      %6317 = vmatprep.subr.mxu0 0.0
      %6318 = vmatpush1.msra.mxu0 0.0
      %6319 = vmatprep.subr.mxu0 %v5935
      %6320 = vmatpush1.msra.mxu0 %v5933
      %6321 = vmatprep.subr.mxu0 0.0
      %6322 = vmatpush2.msra.mxu0 0.0
      %6323 = vmatprep.subr.mxu0 0.0
      %6324 = vmatpush2.msra.mxu0 0.0
      %6325 = vmatprep.subr.mxu0 0.0
      %6326 = vmatpush2.msra.mxu0 0.0
      %6327 = vmatprep.subr.mxu0 0.0
      %6328 = vmatpush2.msra.mxu0 0.0
      %6329 = vmatprep.subr.mxu0 0.0
      %6330 = vmatpush2.msra.mxu0 0.0
      %6331 = vmatprep.subr.mxu0 0.0
      %6332 = vmatpush2.msra.mxu0 0.0
      %6333 = vmatprep.subr.mxu0 0.0
      %6334 = vmatpush2.msra.mxu0 0.0
      %6335 = vmatprep.subr.mxu0 0.0
      %6336 = vmatpush2.msra.mxu0 0.0
      %6337 = vmatprep.subr.mxu0 0.0
      %6338 = vmatpush2.msra.mxu0 0.0
      %6339 = vmatprep.subr.mxu0 0.0
      %6340 = vmatpush2.msra.mxu0 0.0
      %6341 = vmatprep.subr.mxu0 0.0
      %6342 = vmatpush2.msra.mxu0 0.0
      %6343 = vmatprep.subr.mxu0 0.0
      %6344 = vmatpush2.msra.mxu0 0.0
      %6345 = vmatprep.subr.mxu0 0.0
      %6346 = vmatpush2.msra.mxu0 0.0
      %6347 = vmatprep.subr.mxu0 0.0
      %6348 = vmatpush2.msra.mxu0 0.0
      %6349 = vmatprep.subr.mxu0 0.0
      %6350 = vmatpush2.msra.mxu0 0.0
      %6351 = vmatprep.subr.mxu0 0.0
      %6352 = vmatpush2.msra.mxu0 0.0
      %6353 = vmatprep.mubr.f32.mxu0 0.0
      %6354 = vmatmul.mubr.f32.gmra.mxu0 %v5911
      %v6355 = vpop.f32.mrf.mxu0
      %v6356 = vadd.f32 0.0, %v6355
      %v6357 = vpop.f32.mrf.mxu0
      %v6358 = vadd.f32 0.0, %v6357
      %6359 = vmatprep.mubr.f32.mxu0 0.0
      %6360 = vmatmul.mubr.f32.gmra.mxu0 %v5914
      %v6361 = vpop.f32.mrf.mxu0
      %v6362 = vadd.f32 0.0, %v6361
      %v6363 = vpop.f32.mrf.mxu0
      %v6364 = vadd.f32 0.0, %v6363
      %6365 = vdwg.mxu0
      %6366 = vmatprep.subr.mxu0 0.0
      %6367 = vmatpush1.msra.mxu0 0.0
      %6368 = vmatprep.subr.mxu0 0.0
      %6369 = vmatpush1.msra.mxu0 0.0
      %6370 = vmatprep.subr.mxu0 0.0
      %6371 = vmatpush1.msra.mxu0 0.0
      %6372 = vmatprep.subr.mxu0 0.0
      %6373 = vmatpush1.msra.mxu0 0.0
      %6374 = vmatprep.subr.mxu0 0.0
      %6375 = vmatpush1.msra.mxu0 0.0
      %6376 = vmatprep.subr.mxu0 0.0
      %6377 = vmatpush1.msra.mxu0 0.0
      %6378 = vmatprep.subr.mxu0 0.0
      %6379 = vmatpush1.msra.mxu0 0.0
      %6380 = vmatprep.subr.mxu0 0.0
      %6381 = vmatpush1.msra.mxu0 0.0
      %6382 = vmatprep.subr.mxu0 0.0
      %6383 = vmatpush1.msra.mxu0 0.0
      %6384 = vmatprep.subr.mxu0 0.0
      %6385 = vmatpush1.msra.mxu0 0.0
      %6386 = vmatprep.subr.mxu0 0.0
      %6387 = vmatpush1.msra.mxu0 0.0
      %6388 = vmatprep.subr.mxu0 0.0
      %6389 = vmatpush1.msra.mxu0 0.0
      %6390 = vmatprep.subr.mxu0 0.0
      %6391 = vmatpush1.msra.mxu0 0.0
      %6392 = vmatprep.subr.mxu0 0.0
      %6393 = vmatpush1.msra.mxu0 0.0
      %6394 = vmatprep.subr.mxu0 0.0
      %6395 = vmatpush1.msra.mxu0 0.0
      %6396 = vmatprep.subr.mxu0 %v5939
      %6397 = vmatpush1.msra.mxu0 %v5937
      %6398 = vmatprep.subr.mxu0 0.0
      %6399 = vmatpush2.msra.mxu0 0.0
      %6400 = vmatprep.subr.mxu0 0.0
      %6401 = vmatpush2.msra.mxu0 0.0
      %6402 = vmatprep.subr.mxu0 0.0
      %6403 = vmatpush2.msra.mxu0 0.0
      %6404 = vmatprep.subr.mxu0 0.0
      %6405 = vmatpush2.msra.mxu0 0.0
      %6406 = vmatprep.subr.mxu0 0.0
      %6407 = vmatpush2.msra.mxu0 0.0
      %6408 = vmatprep.subr.mxu0 0.0
      %6409 = vmatpush2.msra.mxu0 0.0
      %6410 = vmatprep.subr.mxu0 0.0
      %6411 = vmatpush2.msra.mxu0 0.0
      %6412 = vmatprep.subr.mxu0 0.0
      %6413 = vmatpush2.msra.mxu0 0.0
      %6414 = vmatprep.subr.mxu0 0.0
      %6415 = vmatpush2.msra.mxu0 0.0
      %6416 = vmatprep.subr.mxu0 0.0
      %6417 = vmatpush2.msra.mxu0 0.0
      %6418 = vmatprep.subr.mxu0 0.0
      %6419 = vmatpush2.msra.mxu0 0.0
      %6420 = vmatprep.subr.mxu0 0.0
      %6421 = vmatpush2.msra.mxu0 0.0
      %6422 = vmatprep.subr.mxu0 0.0
      %6423 = vmatpush2.msra.mxu0 0.0
      %6424 = vmatprep.subr.mxu0 0.0
      %6425 = vmatpush2.msra.mxu0 0.0
      %6426 = vmatprep.subr.mxu0 0.0
      %6427 = vmatpush2.msra.mxu0 0.0
      %6428 = vmatprep.subr.mxu0 0.0
      %6429 = vmatpush2.msra.mxu0 0.0
      %6430 = vmatprep.mubr.f32.mxu0 0.0
      %6431 = vmatmul.mubr.f32.gmra.mxu0 %v5911
      %v6432 = vpop.f32.mrf.mxu0
      %v6433 = vadd.f32 0.0, %v6432
      %v6434 = vpop.f32.mrf.mxu0
      %v6435 = vadd.f32 0.0, %v6434
      %6436 = vmatprep.mubr.f32.mxu0 0.0
      %6437 = vmatmul.mubr.f32.gmra.mxu0 %v5914
      %v6438 = vpop.f32.mrf.mxu0
      %v6439 = vadd.f32 0.0, %v6438
      %v6440 = vpop.f32.mrf.mxu0
      %v6441 = vadd.f32 0.0, %v6440
      %6442 = vdwg.mxu0
      %6443 = vmatprep.subr.mxu0 0.0
      %6444 = vmatpush1.msra.mxu0 0.0
      %6445 = vmatprep.subr.mxu0 0.0
      %6446 = vmatpush1.msra.mxu0 0.0
      %6447 = vmatprep.subr.mxu0 0.0
      %6448 = vmatpush1.msra.mxu0 0.0
      %6449 = vmatprep.subr.mxu0 0.0
      %6450 = vmatpush1.msra.mxu0 0.0
      %6451 = vmatprep.subr.mxu0 0.0
      %6452 = vmatpush1.msra.mxu0 0.0
      %6453 = vmatprep.subr.mxu0 0.0
      %6454 = vmatpush1.msra.mxu0 0.0
      %6455 = vmatprep.subr.mxu0 0.0
      %6456 = vmatpush1.msra.mxu0 0.0
      %6457 = vmatprep.subr.mxu0 0.0
      %6458 = vmatpush1.msra.mxu0 0.0
      %6459 = vmatprep.subr.mxu0 0.0
      %6460 = vmatpush1.msra.mxu0 0.0
      %6461 = vmatprep.subr.mxu0 0.0
      %6462 = vmatpush1.msra.mxu0 0.0
      %6463 = vmatprep.subr.mxu0 0.0
      %6464 = vmatpush1.msra.mxu0 0.0
      %6465 = vmatprep.subr.mxu0 0.0
      %6466 = vmatpush1.msra.mxu0 0.0
      %6467 = vmatprep.subr.mxu0 0.0
      %6468 = vmatpush1.msra.mxu0 0.0
      %6469 = vmatprep.subr.mxu0 0.0
      %6470 = vmatpush1.msra.mxu0 0.0
      %6471 = vmatprep.subr.mxu0 0.0
      %6472 = vmatpush1.msra.mxu0 0.0
      %6473 = vmatprep.subr.mxu0 %v5943
      %6474 = vmatpush1.msra.mxu0 %v5941
      %6475 = vmatprep.subr.mxu0 0.0
      %6476 = vmatpush2.msra.mxu0 0.0
      %6477 = vmatprep.subr.mxu0 0.0
      %6478 = vmatpush2.msra.mxu0 0.0
      %6479 = vmatprep.subr.mxu0 0.0
      %6480 = vmatpush2.msra.mxu0 0.0
      %6481 = vmatprep.subr.mxu0 0.0
      %6482 = vmatpush2.msra.mxu0 0.0
      %6483 = vmatprep.subr.mxu0 0.0
      %6484 = vmatpush2.msra.mxu0 0.0
      %6485 = vmatprep.subr.mxu0 0.0
      %6486 = vmatpush2.msra.mxu0 0.0
      %6487 = vmatprep.subr.mxu0 0.0
      %6488 = vmatpush2.msra.mxu0 0.0
      %6489 = vmatprep.subr.mxu0 0.0
      %6490 = vmatpush2.msra.mxu0 0.0
      %6491 = vmatprep.subr.mxu0 0.0
      %6492 = vmatpush2.msra.mxu0 0.0
      %6493 = vmatprep.subr.mxu0 0.0
      %6494 = vmatpush2.msra.mxu0 0.0
      %6495 = vmatprep.subr.mxu0 0.0
      %6496 = vmatpush2.msra.mxu0 0.0
      %6497 = vmatprep.subr.mxu0 0.0
      %6498 = vmatpush2.msra.mxu0 0.0
      %6499 = vmatprep.subr.mxu0 0.0
      %6500 = vmatpush2.msra.mxu0 0.0
      %6501 = vmatprep.subr.mxu0 0.0
      %6502 = vmatpush2.msra.mxu0 0.0
      %6503 = vmatprep.subr.mxu0 0.0
      %6504 = vmatpush2.msra.mxu0 0.0
      %6505 = vmatprep.subr.mxu0 0.0
      %6506 = vmatpush2.msra.mxu0 0.0
      %6507 = vmatprep.mubr.f32.mxu0 0.0
      %6508 = vmatmul.mubr.f32.gmra.mxu0 %v5911
      %v6509 = vpop.f32.mrf.mxu0
      %v6510 = vadd.f32 0.0, %v6509
      %v6511 = vpop.f32.mrf.mxu0
      %v6512 = vadd.f32 0.0, %v6511
      %6513 = vmatprep.mubr.f32.mxu0 0.0
      %6514 = vmatmul.mubr.f32.gmra.mxu0 %v5914
      %v6515 = vpop.f32.mrf.mxu0
      %v6516 = vadd.f32 0.0, %v6515
      %v6517 = vpop.f32.mrf.mxu0
      %v6518 = vadd.f32 0.0, %v6517
      %6519 = vdwg.mxu0
      %6520 = vmatprep.subr.mxu0 0.0
      %6521 = vmatpush1.msra.mxu0 0.0
      %6522 = vmatprep.subr.mxu0 0.0
      %6523 = vmatpush1.msra.mxu0 0.0
      %6524 = vmatprep.subr.mxu0 0.0
      %6525 = vmatpush1.msra.mxu0 0.0
      %6526 = vmatprep.subr.mxu0 0.0
      %6527 = vmatpush1.msra.mxu0 0.0
      %6528 = vmatprep.subr.mxu0 0.0
      %6529 = vmatpush1.msra.mxu0 0.0
      %6530 = vmatprep.subr.mxu0 0.0
      %6531 = vmatpush1.msra.mxu0 0.0
      %6532 = vmatprep.subr.mxu0 0.0
      %6533 = vmatpush1.msra.mxu0 0.0
      %6534 = vmatprep.subr.mxu0 0.0
      %6535 = vmatpush1.msra.mxu0 0.0
      %6536 = vmatprep.subr.mxu0 0.0
      %6537 = vmatpush1.msra.mxu0 0.0
      %6538 = vmatprep.subr.mxu0 0.0
      %6539 = vmatpush1.msra.mxu0 0.0
      %6540 = vmatprep.subr.mxu0 0.0
      %6541 = vmatpush1.msra.mxu0 0.0
      %6542 = vmatprep.subr.mxu0 0.0
      %6543 = vmatpush1.msra.mxu0 0.0
      %6544 = vmatprep.subr.mxu0 0.0
      %6545 = vmatpush1.msra.mxu0 0.0
      %6546 = vmatprep.subr.mxu0 0.0
      %6547 = vmatpush1.msra.mxu0 0.0
      %6548 = vmatprep.subr.mxu0 0.0
      %6549 = vmatpush1.msra.mxu0 0.0
      %6550 = vmatprep.subr.mxu0 %v5947
      %6551 = vmatpush1.msra.mxu0 %v5945
      %6552 = vmatprep.subr.mxu0 0.0
      %6553 = vmatpush2.msra.mxu0 0.0
      %6554 = vmatprep.subr.mxu0 0.0
      %6555 = vmatpush2.msra.mxu0 0.0
      %6556 = vmatprep.subr.mxu0 0.0
      %6557 = vmatpush2.msra.mxu0 0.0
      %6558 = vmatprep.subr.mxu0 0.0
      %6559 = vmatpush2.msra.mxu0 0.0
      %6560 = vmatprep.subr.mxu0 0.0
      %6561 = vmatpush2.msra.mxu0 0.0
      %6562 = vmatprep.subr.mxu0 0.0
      %6563 = vmatpush2.msra.mxu0 0.0
      %6564 = vmatprep.subr.mxu0 0.0
      %6565 = vmatpush2.msra.mxu0 0.0
      %6566 = vmatprep.subr.mxu0 0.0
      %6567 = vmatpush2.msra.mxu0 0.0
      %6568 = vmatprep.subr.mxu0 0.0
      %6569 = vmatpush2.msra.mxu0 0.0
      %6570 = vmatprep.subr.mxu0 0.0
      %6571 = vmatpush2.msra.mxu0 0.0
      %6572 = vmatprep.subr.mxu0 0.0
      %6573 = vmatpush2.msra.mxu0 0.0
      %6574 = vmatprep.subr.mxu0 0.0
      %6575 = vmatpush2.msra.mxu0 0.0
      %6576 = vmatprep.subr.mxu0 0.0
      %6577 = vmatpush2.msra.mxu0 0.0
      %6578 = vmatprep.subr.mxu0 0.0
      %6579 = vmatpush2.msra.mxu0 0.0
      %6580 = vmatprep.subr.mxu0 0.0
      %6581 = vmatpush2.msra.mxu0 0.0
      %6582 = vmatprep.subr.mxu0 0.0
      %6583 = vmatpush2.msra.mxu0 0.0
      %6584 = vmatprep.mubr.f32.mxu0 0.0
      %6585 = vmatmul.mubr.f32.gmra.mxu0 %v5911
      %v6586 = vpop.f32.mrf.mxu0
      %v6587 = vadd.f32 0.0, %v6586
      %v6588 = vpop.f32.mrf.mxu0
      %v6589 = vadd.f32 0.0, %v6588
      %6590 = vmatprep.mubr.f32.mxu0 0.0
      %6591 = vmatmul.mubr.f32.gmra.mxu0 %v5914
      %v6592 = vpop.f32.mrf.mxu0
      %v6593 = vadd.f32 0.0, %v6592
      %v6594 = vpop.f32.mrf.mxu0
      %v6595 = vadd.f32 0.0, %v6594
      %6596 = vdwg.mxu0
      %6597 = vmatprep.subr.mxu0 0.0
      %6598 = vmatpush1.msra.mxu0 0.0
      %6599 = vmatprep.subr.mxu0 0.0
      %6600 = vmatpush1.msra.mxu0 0.0
      %6601 = vmatprep.subr.mxu0 0.0
      %6602 = vmatpush1.msra.mxu0 0.0
      %6603 = vmatprep.subr.mxu0 0.0
      %6604 = vmatpush1.msra.mxu0 0.0
      %6605 = vmatprep.subr.mxu0 0.0
      %6606 = vmatpush1.msra.mxu0 0.0
      %6607 = vmatprep.subr.mxu0 0.0
      %6608 = vmatpush1.msra.mxu0 0.0
      %6609 = vmatprep.subr.mxu0 0.0
      %6610 = vmatpush1.msra.mxu0 0.0
      %6611 = vmatprep.subr.mxu0 0.0
      %6612 = vmatpush1.msra.mxu0 0.0
      %6613 = vmatprep.subr.mxu0 0.0
      %6614 = vmatpush1.msra.mxu0 0.0
      %6615 = vmatprep.subr.mxu0 0.0
      %6616 = vmatpush1.msra.mxu0 0.0
      %6617 = vmatprep.subr.mxu0 0.0
      %6618 = vmatpush1.msra.mxu0 0.0
      %6619 = vmatprep.subr.mxu0 0.0
      %6620 = vmatpush1.msra.mxu0 0.0
      %6621 = vmatprep.subr.mxu0 0.0
      %6622 = vmatpush1.msra.mxu0 0.0
      %6623 = vmatprep.subr.mxu0 0.0
      %6624 = vmatpush1.msra.mxu0 0.0
      %6625 = vmatprep.subr.mxu0 0.0
      %6626 = vmatpush1.msra.mxu0 0.0
      %6627 = vmatprep.subr.mxu0 %v5951
      %6628 = vmatpush1.msra.mxu0 %v5949
      %6629 = vmatprep.subr.mxu0 0.0
      %6630 = vmatpush2.msra.mxu0 0.0
      %6631 = vmatprep.subr.mxu0 0.0
      %6632 = vmatpush2.msra.mxu0 0.0
      %6633 = vmatprep.subr.mxu0 0.0
      %6634 = vmatpush2.msra.mxu0 0.0
      %6635 = vmatprep.subr.mxu0 0.0
      %6636 = vmatpush2.msra.mxu0 0.0
      %6637 = vmatprep.subr.mxu0 0.0
      %6638 = vmatpush2.msra.mxu0 0.0
      %6639 = vmatprep.subr.mxu0 0.0
      %6640 = vmatpush2.msra.mxu0 0.0
      %6641 = vmatprep.subr.mxu0 0.0
      %6642 = vmatpush2.msra.mxu0 0.0
      %6643 = vmatprep.subr.mxu0 0.0
      %6644 = vmatpush2.msra.mxu0 0.0
      %6645 = vmatprep.subr.mxu0 0.0
      %6646 = vmatpush2.msra.mxu0 0.0
      %6647 = vmatprep.subr.mxu0 0.0
      %6648 = vmatpush2.msra.mxu0 0.0
      %6649 = vmatprep.subr.mxu0 0.0
      %6650 = vmatpush2.msra.mxu0 0.0
      %6651 = vmatprep.subr.mxu0 0.0
      %6652 = vmatpush2.msra.mxu0 0.0
      %6653 = vmatprep.subr.mxu0 0.0
      %6654 = vmatpush2.msra.mxu0 0.0
      %6655 = vmatprep.subr.mxu0 0.0
      %6656 = vmatpush2.msra.mxu0 0.0
      %6657 = vmatprep.subr.mxu0 0.0
      %6658 = vmatpush2.msra.mxu0 0.0
      %6659 = vmatprep.subr.mxu0 0.0
      %6660 = vmatpush2.msra.mxu0 0.0
      %6661 = vmatprep.mubr.f32.mxu0 0.0
      %6662 = vmatmul.mubr.f32.gmra.mxu0 %v5911
      %v6663 = vpop.f32.mrf.mxu0
      %v6664 = vadd.f32 0.0, %v6663
      %v6665 = vpop.f32.mrf.mxu0
      %v6666 = vadd.f32 0.0, %v6665
      %6667 = vmatprep.mubr.f32.mxu0 0.0
      %6668 = vmatmul.mubr.f32.gmra.mxu0 %v5914
      %v6669 = vpop.f32.mrf.mxu0
      %v6670 = vadd.f32 0.0, %v6669
      %v6671 = vpop.f32.mrf.mxu0
      %v6672 = vadd.f32 0.0, %v6671
      %6673 = vdwg.mxu0
      %6674 = vmatprep.subr.mxu0 0.0
      %6675 = vmatpush1.msra.mxu0 0.0
      %6676 = vmatprep.subr.mxu0 0.0
      %6677 = vmatpush1.msra.mxu0 0.0
      %6678 = vmatprep.subr.mxu0 0.0
      %6679 = vmatpush1.msra.mxu0 0.0
      %6680 = vmatprep.subr.mxu0 0.0
      %6681 = vmatpush1.msra.mxu0 0.0
      %6682 = vmatprep.subr.mxu0 0.0
      %6683 = vmatpush1.msra.mxu0 0.0
      %6684 = vmatprep.subr.mxu0 0.0
      %6685 = vmatpush1.msra.mxu0 0.0
      %6686 = vmatprep.subr.mxu0 0.0
      %6687 = vmatpush1.msra.mxu0 0.0
      %6688 = vmatprep.subr.mxu0 0.0
      %6689 = vmatpush1.msra.mxu0 0.0
      %6690 = vmatprep.subr.mxu0 0.0
      %6691 = vmatpush1.msra.mxu0 0.0
      %6692 = vmatprep.subr.mxu0 0.0
      %6693 = vmatpush1.msra.mxu0 0.0
      %6694 = vmatprep.subr.mxu0 0.0
      %6695 = vmatpush1.msra.mxu0 0.0
      %6696 = vmatprep.subr.mxu0 0.0
      %6697 = vmatpush1.msra.mxu0 0.0
      %6698 = vmatprep.subr.mxu0 0.0
      %6699 = vmatpush1.msra.mxu0 0.0
      %6700 = vmatprep.subr.mxu0 0.0
      %6701 = vmatpush1.msra.mxu0 0.0
      %6702 = vmatprep.subr.mxu0 0.0
      %6703 = vmatpush1.msra.mxu0 0.0
      %6704 = vmatprep.subr.mxu0 %v5955
      %6705 = vmatpush1.msra.mxu0 %v5953
      %6706 = vmatprep.subr.mxu0 0.0
      %6707 = vmatpush2.msra.mxu0 0.0
      %6708 = vmatprep.subr.mxu0 0.0
      %6709 = vmatpush2.msra.mxu0 0.0
      %6710 = vmatprep.subr.mxu0 0.0
      %6711 = vmatpush2.msra.mxu0 0.0
      %6712 = vmatprep.subr.mxu0 0.0
      %6713 = vmatpush2.msra.mxu0 0.0
      %6714 = vmatprep.subr.mxu0 0.0
      %6715 = vmatpush2.msra.mxu0 0.0
      %6716 = vmatprep.subr.mxu0 0.0
      %6717 = vmatpush2.msra.mxu0 0.0
      %6718 = vmatprep.subr.mxu0 0.0
      %6719 = vmatpush2.msra.mxu0 0.0
      %6720 = vmatprep.subr.mxu0 0.0
      %6721 = vmatpush2.msra.mxu0 0.0
      %6722 = vmatprep.subr.mxu0 0.0
      %6723 = vmatpush2.msra.mxu0 0.0
      %6724 = vmatprep.subr.mxu0 0.0
      %6725 = vmatpush2.msra.mxu0 0.0
      %6726 = vmatprep.subr.mxu0 0.0
      %6727 = vmatpush2.msra.mxu0 0.0
      %6728 = vmatprep.subr.mxu0 0.0
      %6729 = vmatpush2.msra.mxu0 0.0
      %6730 = vmatprep.subr.mxu0 0.0
      %6731 = vmatpush2.msra.mxu0 0.0
      %6732 = vmatprep.subr.mxu0 0.0
      %6733 = vmatpush2.msra.mxu0 0.0
      %6734 = vmatprep.subr.mxu0 0.0
      %6735 = vmatpush2.msra.mxu0 0.0
      %6736 = vmatprep.subr.mxu0 0.0
      %6737 = vmatpush2.msra.mxu0 0.0
      %6738 = vmatprep.mubr.f32.mxu0 0.0
      %6739 = vmatmul.mubr.f32.gmra.mxu0 %v5911
      %v6740 = vpop.f32.mrf.mxu0
      %v6741 = vadd.f32 0.0, %v6740
      %v6742 = vpop.f32.mrf.mxu0
      %v6743 = vadd.f32 0.0, %v6742
      %6744 = vmatprep.mubr.f32.mxu0 0.0
      %6745 = vmatmul.mubr.f32.gmra.mxu0 %v5914
      %v6746 = vpop.f32.mrf.mxu0
      %v6747 = vadd.f32 0.0, %v6746
      %v6748 = vpop.f32.mrf.mxu0
      %v6749 = vadd.f32 0.0, %v6748
      %6750 = vdwg.mxu0
      %6751 = vmatprep.subr.mxu0 0.0
      %6752 = vmatpush1.msra.mxu0 0.0
      %6753 = vmatprep.subr.mxu0 0.0
      %6754 = vmatpush1.msra.mxu0 0.0
      %6755 = vmatprep.subr.mxu0 0.0
      %6756 = vmatpush1.msra.mxu0 0.0
      %6757 = vmatprep.subr.mxu0 0.0
      %6758 = vmatpush1.msra.mxu0 0.0
      %6759 = vmatprep.subr.mxu0 0.0
      %6760 = vmatpush1.msra.mxu0 0.0
      %6761 = vmatprep.subr.mxu0 0.0
      %6762 = vmatpush1.msra.mxu0 0.0
      %6763 = vmatprep.subr.mxu0 0.0
      %6764 = vmatpush1.msra.mxu0 0.0
      %6765 = vmatprep.subr.mxu0 0.0
      %6766 = vmatpush1.msra.mxu0 0.0
      %6767 = vmatprep.subr.mxu0 0.0
      %6768 = vmatpush1.msra.mxu0 0.0
      %6769 = vmatprep.subr.mxu0 0.0
      %6770 = vmatpush1.msra.mxu0 0.0
      %6771 = vmatprep.subr.mxu0 0.0
      %6772 = vmatpush1.msra.mxu0 0.0
      %6773 = vmatprep.subr.mxu0 0.0
      %6774 = vmatpush1.msra.mxu0 0.0
      %6775 = vmatprep.subr.mxu0 0.0
      %6776 = vmatpush1.msra.mxu0 0.0
      %6777 = vmatprep.subr.mxu0 0.0
      %6778 = vmatpush1.msra.mxu0 0.0
      %6779 = vmatprep.subr.mxu0 0.0
      %6780 = vmatpush1.msra.mxu0 0.0
      %6781 = vmatprep.subr.mxu0 %v5959
      %6782 = vmatpush1.msra.mxu0 %v5957
      %6783 = vmatprep.subr.mxu0 0.0
      %6784 = vmatpush2.msra.mxu0 0.0
      %6785 = vmatprep.subr.mxu0 0.0
      %6786 = vmatpush2.msra.mxu0 0.0
      %6787 = vmatprep.subr.mxu0 0.0
      %6788 = vmatpush2.msra.mxu0 0.0
      %6789 = vmatprep.subr.mxu0 0.0
      %6790 = vmatpush2.msra.mxu0 0.0
      %6791 = vmatprep.subr.mxu0 0.0
      %6792 = vmatpush2.msra.mxu0 0.0
      %6793 = vmatprep.subr.mxu0 0.0
      %6794 = vmatpush2.msra.mxu0 0.0
      %6795 = vmatprep.subr.mxu0 0.0
      %6796 = vmatpush2.msra.mxu0 0.0
      %6797 = vmatprep.subr.mxu0 0.0
      %6798 = vmatpush2.msra.mxu0 0.0
      %6799 = vmatprep.subr.mxu0 0.0
      %6800 = vmatpush2.msra.mxu0 0.0
      %6801 = vmatprep.subr.mxu0 0.0
      %6802 = vmatpush2.msra.mxu0 0.0
      %6803 = vmatprep.subr.mxu0 0.0
      %6804 = vmatpush2.msra.mxu0 0.0
      %6805 = vmatprep.subr.mxu0 0.0
      %6806 = vmatpush2.msra.mxu0 0.0
      %6807 = vmatprep.subr.mxu0 0.0
      %6808 = vmatpush2.msra.mxu0 0.0
      %6809 = vmatprep.subr.mxu0 0.0
      %6810 = vmatpush2.msra.mxu0 0.0
      %6811 = vmatprep.subr.mxu0 0.0
      %6812 = vmatpush2.msra.mxu0 0.0
      %6813 = vmatprep.subr.mxu0 0.0
      %6814 = vmatpush2.msra.mxu0 0.0
      %6815 = vmatprep.mubr.f32.mxu0 0.0
      %6816 = vmatmul.mubr.f32.gmra.mxu0 %v5911
      %v6817 = vpop.f32.mrf.mxu0
      %v6818 = vadd.f32 0.0, %v6817
      %v6819 = vpop.f32.mrf.mxu0
      %v6820 = vadd.f32 0.0, %v6819
      %6821 = vmatprep.mubr.f32.mxu0 0.0
      %6822 = vmatmul.mubr.f32.gmra.mxu0 %v5914
      %v6823 = vpop.f32.mrf.mxu0
      %v6824 = vadd.f32 0.0, %v6823
      %v6825 = vpop.f32.mrf.mxu0
      %v6826 = vadd.f32 0.0, %v6825
      %6827 = vdwg.mxu0
      %6828 = vmatprep.subr.mxu0 0.0
      %6829 = vmatpush1.msra.mxu0 0.0
      %6830 = vmatprep.subr.mxu0 0.0
      %6831 = vmatpush1.msra.mxu0 0.0
      %6832 = vmatprep.subr.mxu0 0.0
      %6833 = vmatpush1.msra.mxu0 0.0
      %6834 = vmatprep.subr.mxu0 0.0
      %6835 = vmatpush1.msra.mxu0 0.0
      %6836 = vmatprep.subr.mxu0 0.0
      %6837 = vmatpush1.msra.mxu0 0.0
      %6838 = vmatprep.subr.mxu0 0.0
      %6839 = vmatpush1.msra.mxu0 0.0
      %6840 = vmatprep.subr.mxu0 0.0
      %6841 = vmatpush1.msra.mxu0 0.0
      %6842 = vmatprep.subr.mxu0 0.0
      %6843 = vmatpush1.msra.mxu0 0.0
      %6844 = vmatprep.subr.mxu0 0.0
      %6845 = vmatpush1.msra.mxu0 0.0
      %6846 = vmatprep.subr.mxu0 0.0
      %6847 = vmatpush1.msra.mxu0 0.0
      %6848 = vmatprep.subr.mxu0 0.0
      %6849 = vmatpush1.msra.mxu0 0.0
      %6850 = vmatprep.subr.mxu0 0.0
      %6851 = vmatpush1.msra.mxu0 0.0
      %6852 = vmatprep.subr.mxu0 0.0
      %6853 = vmatpush1.msra.mxu0 0.0
      %6854 = vmatprep.subr.mxu0 0.0
      %6855 = vmatpush1.msra.mxu0 0.0
      %6856 = vmatprep.subr.mxu0 0.0
      %6857 = vmatpush1.msra.mxu0 0.0
      %6858 = vmatprep.subr.mxu0 %v5963
      %6859 = vmatpush1.msra.mxu0 %v5961
      %6860 = vmatprep.subr.mxu0 0.0
      %6861 = vmatpush2.msra.mxu0 0.0
      %6862 = vmatprep.subr.mxu0 0.0
      %6863 = vmatpush2.msra.mxu0 0.0
      %6864 = vmatprep.subr.mxu0 0.0
      %6865 = vmatpush2.msra.mxu0 0.0
      %6866 = vmatprep.subr.mxu0 0.0
      %6867 = vmatpush2.msra.mxu0 0.0
      %6868 = vmatprep.subr.mxu0 0.0
      %6869 = vmatpush2.msra.mxu0 0.0
      %6870 = vmatprep.subr.mxu0 0.0
      %6871 = vmatpush2.msra.mxu0 0.0
      %6872 = vmatprep.subr.mxu0 0.0
      %6873 = vmatpush2.msra.mxu0 0.0
      %6874 = vmatprep.subr.mxu0 0.0
      %6875 = vmatpush2.msra.mxu0 0.0
      %6876 = vmatprep.subr.mxu0 0.0
      %6877 = vmatpush2.msra.mxu0 0.0
      %6878 = vmatprep.subr.mxu0 0.0
      %6879 = vmatpush2.msra.mxu0 0.0
      %6880 = vmatprep.subr.mxu0 0.0
      %6881 = vmatpush2.msra.mxu0 0.0
      %6882 = vmatprep.subr.mxu0 0.0
      %6883 = vmatpush2.msra.mxu0 0.0
      %6884 = vmatprep.subr.mxu0 0.0
      %6885 = vmatpush2.msra.mxu0 0.0
      %6886 = vmatprep.subr.mxu0 0.0
      %6887 = vmatpush2.msra.mxu0 0.0
      %6888 = vmatprep.subr.mxu0 0.0
      %6889 = vmatpush2.msra.mxu0 0.0
      %6890 = vmatprep.subr.mxu0 0.0
      %6891 = vmatpush2.msra.mxu0 0.0
      %6892 = vmatprep.mubr.f32.mxu0 0.0
      %6893 = vmatmul.mubr.f32.gmra.mxu0 %v5911
      %v6894 = vpop.f32.mrf.mxu0
      %v6895 = vadd.f32 0.0, %v6894
      %v6896 = vpop.f32.mrf.mxu0
      %v6897 = vadd.f32 0.0, %v6896
      %6898 = vmatprep.mubr.f32.mxu0 0.0
      %6899 = vmatmul.mubr.f32.gmra.mxu0 %v5914
      %v6900 = vpop.f32.mrf.mxu0
      %v6901 = vadd.f32 0.0, %v6900
      %v6902 = vpop.f32.mrf.mxu0
      %v6903 = vadd.f32 0.0, %v6902
      %6904 = vdwg.mxu0
      %6905 = vmatprep.subr.mxu0 0.0
      %6906 = vmatpush1.msra.mxu0 0.0
      %6907 = vmatprep.subr.mxu0 0.0
      %6908 = vmatpush1.msra.mxu0 0.0
      %6909 = vmatprep.subr.mxu0 0.0
      %6910 = vmatpush1.msra.mxu0 0.0
      %6911 = vmatprep.subr.mxu0 0.0
      %6912 = vmatpush1.msra.mxu0 0.0
      %6913 = vmatprep.subr.mxu0 0.0
      %6914 = vmatpush1.msra.mxu0 0.0
      %6915 = vmatprep.subr.mxu0 0.0
      %6916 = vmatpush1.msra.mxu0 0.0
      %6917 = vmatprep.subr.mxu0 0.0
      %6918 = vmatpush1.msra.mxu0 0.0
      %6919 = vmatprep.subr.mxu0 0.0
      %6920 = vmatpush1.msra.mxu0 0.0
      %6921 = vmatprep.subr.mxu0 0.0
      %6922 = vmatpush1.msra.mxu0 0.0
      %6923 = vmatprep.subr.mxu0 0.0
      %6924 = vmatpush1.msra.mxu0 0.0
      %6925 = vmatprep.subr.mxu0 0.0
      %6926 = vmatpush1.msra.mxu0 0.0
      %6927 = vmatprep.subr.mxu0 0.0
      %6928 = vmatpush1.msra.mxu0 0.0
      %6929 = vmatprep.subr.mxu0 0.0
      %6930 = vmatpush1.msra.mxu0 0.0
      %6931 = vmatprep.subr.mxu0 0.0
      %6932 = vmatpush1.msra.mxu0 0.0
      %6933 = vmatprep.subr.mxu0 0.0
      %6934 = vmatpush1.msra.mxu0 0.0
      %6935 = vmatprep.subr.mxu0 %v5967
      %6936 = vmatpush1.msra.mxu0 %v5965
      %6937 = vmatprep.subr.mxu0 0.0
      %6938 = vmatpush2.msra.mxu0 0.0
      %6939 = vmatprep.subr.mxu0 0.0
      %6940 = vmatpush2.msra.mxu0 0.0
      %6941 = vmatprep.subr.mxu0 0.0
      %6942 = vmatpush2.msra.mxu0 0.0
      %6943 = vmatprep.subr.mxu0 0.0
      %6944 = vmatpush2.msra.mxu0 0.0
      %6945 = vmatprep.subr.mxu0 0.0
      %6946 = vmatpush2.msra.mxu0 0.0
      %6947 = vmatprep.subr.mxu0 0.0
      %6948 = vmatpush2.msra.mxu0 0.0
      %6949 = vmatprep.subr.mxu0 0.0
      %6950 = vmatpush2.msra.mxu0 0.0
      %6951 = vmatprep.subr.mxu0 0.0
      %6952 = vmatpush2.msra.mxu0 0.0
      %6953 = vmatprep.subr.mxu0 0.0
      %6954 = vmatpush2.msra.mxu0 0.0
      %6955 = vmatprep.subr.mxu0 0.0
      %6956 = vmatpush2.msra.mxu0 0.0
      %6957 = vmatprep.subr.mxu0 0.0
      %6958 = vmatpush2.msra.mxu0 0.0
      %6959 = vmatprep.subr.mxu0 0.0
      %6960 = vmatpush2.msra.mxu0 0.0
      %6961 = vmatprep.subr.mxu0 0.0
      %6962 = vmatpush2.msra.mxu0 0.0
      %6963 = vmatprep.subr.mxu0 0.0
      %6964 = vmatpush2.msra.mxu0 0.0
      %6965 = vmatprep.subr.mxu0 0.0
      %6966 = vmatpush2.msra.mxu0 0.0
      %6967 = vmatprep.subr.mxu0 0.0
      %6968 = vmatpush2.msra.mxu0 0.0
      %6969 = vmatprep.mubr.f32.mxu0 0.0
      %6970 = vmatmul.mubr.f32.gmra.mxu0 %v5911
      %v6971 = vpop.f32.mrf.mxu0
      %v6972 = vadd.f32 0.0, %v6971
      %v6973 = vpop.f32.mrf.mxu0
      %v6974 = vadd.f32 0.0, %v6973
      %6975 = vmatprep.mubr.f32.mxu0 0.0
      %6976 = vmatmul.mubr.f32.gmra.mxu0 %v5914
      %v6977 = vpop.f32.mrf.mxu0
      %v6978 = vadd.f32 0.0, %v6977
      %v6979 = vpop.f32.mrf.mxu0
      %v6980 = vadd.f32 0.0, %v6979
      %6981 = vdwg.mxu0
      %6982 = vmatprep.subr.mxu0 0.0
      %6983 = vmatpush1.msra.mxu0 0.0
      %6984 = vmatprep.subr.mxu0 0.0
      %6985 = vmatpush1.msra.mxu0 0.0
      %6986 = vmatprep.subr.mxu0 0.0
      %6987 = vmatpush1.msra.mxu0 0.0
      %6988 = vmatprep.subr.mxu0 0.0
      %6989 = vmatpush1.msra.mxu0 0.0
      %6990 = vmatprep.subr.mxu0 0.0
      %6991 = vmatpush1.msra.mxu0 0.0
      %6992 = vmatprep.subr.mxu0 0.0
      %6993 = vmatpush1.msra.mxu0 0.0
      %6994 = vmatprep.subr.mxu0 0.0
      %6995 = vmatpush1.msra.mxu0 0.0
      %6996 = vmatprep.subr.mxu0 0.0
      %6997 = vmatpush1.msra.mxu0 0.0
      %6998 = vmatprep.subr.mxu0 0.0
      %6999 = vmatpush1.msra.mxu0 0.0
      %7000 = vmatprep.subr.mxu0 0.0
      %7001 = vmatpush1.msra.mxu0 0.0
      %7002 = vmatprep.subr.mxu0 0.0
      %7003 = vmatpush1.msra.mxu0 0.0
      %7004 = vmatprep.subr.mxu0 0.0
      %7005 = vmatpush1.msra.mxu0 0.0
      %7006 = vmatprep.subr.mxu0 0.0
      %7007 = vmatpush1.msra.mxu0 0.0
      %7008 = vmatprep.subr.mxu0 0.0
      %7009 = vmatpush1.msra.mxu0 0.0
      %7010 = vmatprep.subr.mxu0 0.0
      %7011 = vmatpush1.msra.mxu0 0.0
      %7012 = vmatprep.subr.mxu0 %v5971
      %7013 = vmatpush1.msra.mxu0 %v5969
      %7014 = vmatprep.subr.mxu0 0.0
      %7015 = vmatpush2.msra.mxu0 0.0
      %7016 = vmatprep.subr.mxu0 0.0
      %7017 = vmatpush2.msra.mxu0 0.0
      %7018 = vmatprep.subr.mxu0 0.0
      %7019 = vmatpush2.msra.mxu0 0.0
      %7020 = vmatprep.subr.mxu0 0.0
      %7021 = vmatpush2.msra.mxu0 0.0
      %7022 = vmatprep.subr.mxu0 0.0
      %7023 = vmatpush2.msra.mxu0 0.0
      %7024 = vmatprep.subr.mxu0 0.0
      %7025 = vmatpush2.msra.mxu0 0.0
      %7026 = vmatprep.subr.mxu0 0.0
      %7027 = vmatpush2.msra.mxu0 0.0
      %7028 = vmatprep.subr.mxu0 0.0
      %7029 = vmatpush2.msra.mxu0 0.0
      %7030 = vmatprep.subr.mxu0 0.0
      %7031 = vmatpush2.msra.mxu0 0.0
      %7032 = vmatprep.subr.mxu0 0.0
      %7033 = vmatpush2.msra.mxu0 0.0
      %7034 = vmatprep.subr.mxu0 0.0
      %7035 = vmatpush2.msra.mxu0 0.0
      %7036 = vmatprep.subr.mxu0 0.0
      %7037 = vmatpush2.msra.mxu0 0.0
      %7038 = vmatprep.subr.mxu0 0.0
      %7039 = vmatpush2.msra.mxu0 0.0
      %7040 = vmatprep.subr.mxu0 0.0
      %7041 = vmatpush2.msra.mxu0 0.0
      %7042 = vmatprep.subr.mxu0 0.0
      %7043 = vmatpush2.msra.mxu0 0.0
      %7044 = vmatprep.subr.mxu0 0.0
      %7045 = vmatpush2.msra.mxu0 0.0
      %7046 = vmatprep.mubr.f32.mxu0 0.0
      %7047 = vmatmul.mubr.f32.gmra.mxu0 %v5911
      %v7048 = vpop.f32.mrf.mxu0
      %v7049 = vadd.f32 0.0, %v7048
      %v7050 = vpop.f32.mrf.mxu0
      %v7051 = vadd.f32 0.0, %v7050
      %7052 = vmatprep.mubr.f32.mxu0 0.0
      %7053 = vmatmul.mubr.f32.gmra.mxu0 %v5914
      %v7054 = vpop.f32.mrf.mxu0
      %v7055 = vadd.f32 0.0, %v7054
      %v7056 = vpop.f32.mrf.mxu0
      %v7057 = vadd.f32 0.0, %v7056
      %7058 = vdwg.mxu0
      %7059 = vmatprep.subr.mxu0 0.0
      %7060 = vmatpush1.msra.mxu0 0.0
      %7061 = vmatprep.subr.mxu0 0.0
      %7062 = vmatpush1.msra.mxu0 0.0
      %7063 = vmatprep.subr.mxu0 0.0
      %7064 = vmatpush1.msra.mxu0 0.0
      %7065 = vmatprep.subr.mxu0 0.0
      %7066 = vmatpush1.msra.mxu0 0.0
      %7067 = vmatprep.subr.mxu0 0.0
      %7068 = vmatpush1.msra.mxu0 0.0
      %7069 = vmatprep.subr.mxu0 0.0
      %7070 = vmatpush1.msra.mxu0 0.0
      %7071 = vmatprep.subr.mxu0 0.0
      %7072 = vmatpush1.msra.mxu0 0.0
      %7073 = vmatprep.subr.mxu0 0.0
      %7074 = vmatpush1.msra.mxu0 0.0
      %7075 = vmatprep.subr.mxu0 0.0
      %7076 = vmatpush1.msra.mxu0 0.0
      %7077 = vmatprep.subr.mxu0 0.0
      %7078 = vmatpush1.msra.mxu0 0.0
      %7079 = vmatprep.subr.mxu0 0.0
      %7080 = vmatpush1.msra.mxu0 0.0
      %7081 = vmatprep.subr.mxu0 0.0
      %7082 = vmatpush1.msra.mxu0 0.0
      %7083 = vmatprep.subr.mxu0 0.0
      %7084 = vmatpush1.msra.mxu0 0.0
      %7085 = vmatprep.subr.mxu0 0.0
      %7086 = vmatpush1.msra.mxu0 0.0
      %7087 = vmatprep.subr.mxu0 0.0
      %7088 = vmatpush1.msra.mxu0 0.0
      %7089 = vmatprep.subr.mxu0 %v5975
      %7090 = vmatpush1.msra.mxu0 %v5973
      %7091 = vmatprep.subr.mxu0 0.0
      %7092 = vmatpush2.msra.mxu0 0.0
      %7093 = vmatprep.subr.mxu0 0.0
      %7094 = vmatpush2.msra.mxu0 0.0
      %7095 = vmatprep.subr.mxu0 0.0
      %7096 = vmatpush2.msra.mxu0 0.0
      %7097 = vmatprep.subr.mxu0 0.0
      %7098 = vmatpush2.msra.mxu0 0.0
      %7099 = vmatprep.subr.mxu0 0.0
      %7100 = vmatpush2.msra.mxu0 0.0
      %7101 = vmatprep.subr.mxu0 0.0
      %7102 = vmatpush2.msra.mxu0 0.0
      %7103 = vmatprep.subr.mxu0 0.0
      %7104 = vmatpush2.msra.mxu0 0.0
      %7105 = vmatprep.subr.mxu0 0.0
      %7106 = vmatpush2.msra.mxu0 0.0
      %7107 = vmatprep.subr.mxu0 0.0
      %7108 = vmatpush2.msra.mxu0 0.0
      %7109 = vmatprep.subr.mxu0 0.0
      %7110 = vmatpush2.msra.mxu0 0.0
      %7111 = vmatprep.subr.mxu0 0.0
      %7112 = vmatpush2.msra.mxu0 0.0
      %7113 = vmatprep.subr.mxu0 0.0
      %7114 = vmatpush2.msra.mxu0 0.0
      %7115 = vmatprep.subr.mxu0 0.0
      %7116 = vmatpush2.msra.mxu0 0.0
      %7117 = vmatprep.subr.mxu0 0.0
      %7118 = vmatpush2.msra.mxu0 0.0
      %7119 = vmatprep.subr.mxu0 0.0
      %7120 = vmatpush2.msra.mxu0 0.0
      %7121 = vmatprep.subr.mxu0 0.0
      %7122 = vmatpush2.msra.mxu0 0.0
      %7123 = vmatprep.mubr.f32.mxu0 0.0
      %7124 = vmatmul.mubr.f32.gmra.mxu0 %v5911
      %v7125 = vpop.f32.mrf.mxu0
      %v7126 = vadd.f32 0.0, %v7125
      %v7127 = vpop.f32.mrf.mxu0
      %v7128 = vadd.f32 0.0, %v7127
      %7129 = vmatprep.mubr.f32.mxu0 0.0
      %7130 = vmatmul.mubr.f32.gmra.mxu0 %v5914
      %v7131 = vpop.f32.mrf.mxu0
      %v7132 = vadd.f32 0.0, %v7131
      %v7133 = vpop.f32.mrf.mxu0
      %v7134 = vadd.f32 0.0, %v7133
      %7135 = vdwg.mxu0
      %7136 = vmatprep.subr.mxu0 0.0
      %7137 = vmatpush1.msra.mxu0 0.0
      %7138 = vmatprep.subr.mxu0 0.0
      %7139 = vmatpush1.msra.mxu0 0.0
      %7140 = vmatprep.subr.mxu0 0.0
      %7141 = vmatpush1.msra.mxu0 0.0
      %7142 = vmatprep.subr.mxu0 0.0
      %7143 = vmatpush1.msra.mxu0 0.0
      %7144 = vmatprep.subr.mxu0 0.0
      %7145 = vmatpush1.msra.mxu0 0.0
      %7146 = vmatprep.subr.mxu0 0.0
      %7147 = vmatpush1.msra.mxu0 0.0
      %7148 = vmatprep.subr.mxu0 0.0
      %7149 = vmatpush1.msra.mxu0 0.0
      %7150 = vmatprep.subr.mxu0 0.0
      %7151 = vmatpush1.msra.mxu0 0.0
      %7152 = vmatprep.subr.mxu0 0.0
      %7153 = vmatpush1.msra.mxu0 0.0
      %7154 = vmatprep.subr.mxu0 0.0
      %7155 = vmatpush1.msra.mxu0 0.0
      %7156 = vmatprep.subr.mxu0 0.0
      %7157 = vmatpush1.msra.mxu0 0.0
      %7158 = vmatprep.subr.mxu0 0.0
      %7159 = vmatpush1.msra.mxu0 0.0
      %7160 = vmatprep.subr.mxu0 0.0
      %7161 = vmatpush1.msra.mxu0 0.0
      %7162 = vmatprep.subr.mxu0 0.0
      %7163 = vmatpush1.msra.mxu0 0.0
      %7164 = vmatprep.subr.mxu0 0.0
      %7165 = vmatpush1.msra.mxu0 0.0
      %7166 = vmatprep.subr.mxu0 %v5979
      %7167 = vmatpush1.msra.mxu0 %v5977
      %7168 = vmatprep.subr.mxu0 0.0
      %7169 = vmatpush2.msra.mxu0 0.0
      %7170 = vmatprep.subr.mxu0 0.0
      %7171 = vmatpush2.msra.mxu0 0.0
      %7172 = vmatprep.subr.mxu0 0.0
      %7173 = vmatpush2.msra.mxu0 0.0
      %7174 = vmatprep.subr.mxu0 0.0
      %7175 = vmatpush2.msra.mxu0 0.0
      %7176 = vmatprep.subr.mxu0 0.0
      %7177 = vmatpush2.msra.mxu0 0.0
      %7178 = vmatprep.subr.mxu0 0.0
      %7179 = vmatpush2.msra.mxu0 0.0
      %7180 = vmatprep.subr.mxu0 0.0
      %7181 = vmatpush2.msra.mxu0 0.0
      %7182 = vmatprep.subr.mxu0 0.0
      %7183 = vmatpush2.msra.mxu0 0.0
      %7184 = vmatprep.subr.mxu0 0.0
      %7185 = vmatpush2.msra.mxu0 0.0
      %7186 = vmatprep.subr.mxu0 0.0
      %7187 = vmatpush2.msra.mxu0 0.0
      %7188 = vmatprep.subr.mxu0 0.0
      %7189 = vmatpush2.msra.mxu0 0.0
      %7190 = vmatprep.subr.mxu0 0.0
      %7191 = vmatpush2.msra.mxu0 0.0
      %7192 = vmatprep.subr.mxu0 0.0
      %7193 = vmatpush2.msra.mxu0 0.0
      %7194 = vmatprep.subr.mxu0 0.0
      %7195 = vmatpush2.msra.mxu0 0.0
      %7196 = vmatprep.subr.mxu0 0.0
      %7197 = vmatpush2.msra.mxu0 0.0
      %7198 = vmatprep.subr.mxu0 0.0
      %7199 = vmatpush2.msra.mxu0 0.0
      %7200 = vmatprep.mubr.f32.mxu0 0.0
      %7201 = vmatmul.mubr.f32.gmra.mxu0 %v5911
      %v7202 = vpop.f32.mrf.mxu0
      %v7203 = vadd.f32 0.0, %v7202
      %v7204 = vpop.f32.mrf.mxu0
      %v7205 = vadd.f32 0.0, %v7204
      %7206 = vmatprep.mubr.f32.mxu0 0.0
      %7207 = vmatmul.mubr.f32.gmra.mxu0 %v5914
      %v7208 = vpop.f32.mrf.mxu0
      %v7209 = vadd.f32 0.0, %v7208
      %v7210 = vpop.f32.mrf.mxu0
      %v7211 = vadd.f32 0.0, %v7210
      %7212 = vdwg.mxu0
      %v7213 = vmax.f32 %v6048, %v6125
      %v7214 = vmax.f32 %v6050, %v6127
      %v7215 = vmax.f32 %v7213, %v6202
      %v7216 = vmax.f32 %v7214, %v6204
      %v7217 = vmax.f32 %v7215, %v6279
      %v7218 = vmax.f32 %v7216, %v6281
      %v7219 = vmax.f32 %v7217, %v6356
      %v7220 = vmax.f32 %v7218, %v6358
      %v7221 = vmax.f32 %v7219, %v6433
      %v7222 = vmax.f32 %v7220, %v6435
      %v7223 = vmax.f32 %v7221, %v6510
      %v7224 = vmax.f32 %v7222, %v6512
      %v7225 = vmax.f32 %v7223, %v6587
      %v7226 = vmax.f32 %v7224, %v6589
      %v7227 = vmax.f32 %v7225, %v6664
      %v7228 = vmax.f32 %v7226, %v6666
      %v7229 = vmax.f32 %v7227, %v6741
      %v7230 = vmax.f32 %v7228, %v6743
      %v7231 = vmax.f32 %v7229, %v6818
      %v7232 = vmax.f32 %v7230, %v6820
      %v7233 = vmax.f32 %v7231, %v6895
      %v7234 = vmax.f32 %v7232, %v6897
      %v7235 = vmax.f32 %v7233, %v6972
      %v7236 = vmax.f32 %v7234, %v6974
      %v7237 = vmax.f32 %v7235, %v7049
      %v7238 = vmax.f32 %v7236, %v7051
      %v7239 = vmax.f32 %v7237, %v7126
      %v7240 = vmax.f32 %v7238, %v7128
      %v7241 = vmax.f32 %v7239, %v7203
      %v7242 = vmax.f32 %v7240, %v7205
      %v7243 = vmax.f32 %v7241, %v7242
      %7244 = vmax.xlane.f32.xlu0 %v7243
      %v7245 = vpop.xlane.xlu0 %7244
      %v7246 = vmax.f32 %v6054, %v6131
      %v7247 = vmax.f32 %v6056, %v6133
      %v7248 = vmax.f32 %v7246, %v6208
      %v7249 = vmax.f32 %v7247, %v6210
      %v7250 = vmax.f32 %v7248, %v6285
      %v7251 = vmax.f32 %v7249, %v6287
      %v7252 = vmax.f32 %v7250, %v6362
      %v7253 = vmax.f32 %v7251, %v6364
      %v7254 = vmax.f32 %v7252, %v6439
      %v7255 = vmax.f32 %v7253, %v6441
      %v7256 = vmax.f32 %v7254, %v6516
      %v7257 = vmax.f32 %v7255, %v6518
      %v7258 = vmax.f32 %v7256, %v6593
      %v7259 = vmax.f32 %v7257, %v6595
      %v7260 = vmax.f32 %v7258, %v6670
      %v7261 = vmax.f32 %v7259, %v6672
      %v7262 = vmax.f32 %v7260, %v6747
      %v7263 = vmax.f32 %v7261, %v6749
      %v7264 = vmax.f32 %v7262, %v6824
      %v7265 = vmax.f32 %v7263, %v6826
      %v7266 = vmax.f32 %v7264, %v6901
      %v7267 = vmax.f32 %v7265, %v6903
      %v7268 = vmax.f32 %v7266, %v6978
      %v7269 = vmax.f32 %v7267, %v6980
      %v7270 = vmax.f32 %v7268, %v7055
      %v7271 = vmax.f32 %v7269, %v7057
      %v7272 = vmax.f32 %v7270, %v7132
      %v7273 = vmax.f32 %v7271, %v7134
      %v7274 = vmax.f32 %v7272, %v7209
      %v7275 = vmax.f32 %v7273, %v7211
      %v7276 = vmax.f32 %v7274, %v7275
      %7277 = vmax.xlane.f32.xlu0 %v7276
      %v7278 = vpop.xlane.xlu0 %7277
      %v7279 = vlaneseq
      %v7280 = vand.u32 %v7279, 127
      %v7281 = vadd.s32 %v7280, 128
      %v7282 = vadd.s32 %v7280, 256
      %v7283 = vadd.s32 %v7280, 384
      %v7284 = vadd.s32 %v7280, 512
      %v7285 = vadd.s32 %v7280, 640
      %v7286 = vadd.s32 %v7280, 768
      %v7287 = vadd.s32 %v7280, 896
      %v7288 = vadd.s32 %v7280, 1024
      %v7289 = vadd.s32 %v7280, 1152
      %v7290 = vadd.s32 %v7280, 1280
      %v7291 = vadd.s32 %v7280, 1408
      %v7292 = vadd.s32 %v7280, 1536
      %v7293 = vadd.s32 %v7280, 1664
      %v7294 = vadd.s32 %v7280, 1792
      %v7295 = vadd.s32 %v7280, 1920
      %v7296 = vadd.s32 %v7280, 2048
      %v7297 = vadd.s32 %v7280, 2176
      %v7298 = vadd.s32 %v7280, 2304
      %v7299 = vadd.s32 %v7280, 2432
      %v7300 = vadd.s32 %v7280, 2560
      %v7301 = vadd.s32 %v7280, 2688
      %v7302 = vadd.s32 %v7280, 2816
      %v7303 = vadd.s32 %v7280, 2944
      %v7304 = vadd.s32 %v7280, 3072
      %v7305 = vadd.s32 %v7280, 3200
      %v7306 = vadd.s32 %v7280, 3328
      %v7307 = vadd.s32 %v7280, 3456
      %v7308 = vadd.s32 %v7280, 3584
      %v7309 = vadd.s32 %v7280, 3712
      %v7310 = vadd.s32 %v7280, 3840
      %v7311 = vadd.s32 %v7280, 3968
      %vm7312 = vcmp.ge.f32.partialorder %v6048, %v7245
      %vm7313 = vcmp.ge.f32.partialorder %v6050, %v7245
      %vm7314 = vcmp.ge.f32.partialorder %v6125, %v7245
      %vm7315 = vcmp.ge.f32.partialorder %v6127, %v7245
      %vm7316 = vcmp.ge.f32.partialorder %v6202, %v7245
      %vm7317 = vcmp.ge.f32.partialorder %v6204, %v7245
      %vm7318 = vcmp.ge.f32.partialorder %v6279, %v7245
      %vm7319 = vcmp.ge.f32.partialorder %v6281, %v7245
      %vm7320 = vcmp.ge.f32.partialorder %v6356, %v7245
      %vm7321 = vcmp.ge.f32.partialorder %v6358, %v7245
      %vm7322 = vcmp.ge.f32.partialorder %v6433, %v7245
      %vm7323 = vcmp.ge.f32.partialorder %v6435, %v7245
      %vm7324 = vcmp.ge.f32.partialorder %v6510, %v7245
      %vm7325 = vcmp.ge.f32.partialorder %v6512, %v7245
      %vm7326 = vcmp.ge.f32.partialorder %v6587, %v7245
      %vm7327 = vcmp.ge.f32.partialorder %v6589, %v7245
      %vm7328 = vcmp.ge.f32.partialorder %v6664, %v7245
      %vm7329 = vcmp.ge.f32.partialorder %v6666, %v7245
      %vm7330 = vcmp.ge.f32.partialorder %v6741, %v7245
      %vm7331 = vcmp.ge.f32.partialorder %v6743, %v7245
      %vm7332 = vcmp.ge.f32.partialorder %v6818, %v7245
      %vm7333 = vcmp.ge.f32.partialorder %v6820, %v7245
      %vm7334 = vcmp.ge.f32.partialorder %v6895, %v7245
      %vm7335 = vcmp.ge.f32.partialorder %v6897, %v7245
      %vm7336 = vcmp.ge.f32.partialorder %v6972, %v7245
      %vm7337 = vcmp.ge.f32.partialorder %v6974, %v7245
      %vm7338 = vcmp.ge.f32.partialorder %v7049, %v7245
      %vm7339 = vcmp.ge.f32.partialorder %v7051, %v7245
      %vm7340 = vcmp.ge.f32.partialorder %v7126, %v7245
      %vm7341 = vcmp.ge.f32.partialorder %v7128, %v7245
      %vm7342 = vcmp.ge.f32.partialorder %v7203, %v7245
      %vm7343 = vcmp.ge.f32.partialorder %v7205, %v7245
      %vm7344 = vcmp.ge.f32.partialorder %v6054, %v7278
      %vm7345 = vcmp.ge.f32.partialorder %v6056, %v7278
      %vm7346 = vcmp.ge.f32.partialorder %v6131, %v7278
      %vm7347 = vcmp.ge.f32.partialorder %v6133, %v7278
      %vm7348 = vcmp.ge.f32.partialorder %v6208, %v7278
      %vm7349 = vcmp.ge.f32.partialorder %v6210, %v7278
      %vm7350 = vcmp.ge.f32.partialorder %v6285, %v7278
      %vm7351 = vcmp.ge.f32.partialorder %v6287, %v7278
      %vm7352 = vcmp.ge.f32.partialorder %v6362, %v7278
      %vm7353 = vcmp.ge.f32.partialorder %v6364, %v7278
      %vm7354 = vcmp.ge.f32.partialorder %v6439, %v7278
      %vm7355 = vcmp.ge.f32.partialorder %v6441, %v7278
      %vm7356 = vcmp.ge.f32.partialorder %v6516, %v7278
      %vm7357 = vcmp.ge.f32.partialorder %v6518, %v7278
      %vm7358 = vcmp.ge.f32.partialorder %v6593, %v7278
      %vm7359 = vcmp.ge.f32.partialorder %v6595, %v7278
      %vm7360 = vcmp.ge.f32.partialorder %v6670, %v7278
      %vm7361 = vcmp.ge.f32.partialorder %v6672, %v7278
      %vm7362 = vcmp.ge.f32.partialorder %v6747, %v7278
      %vm7363 = vcmp.ge.f32.partialorder %v6749, %v7278
      %vm7364 = vcmp.ge.f32.partialorder %v6824, %v7278
      %vm7365 = vcmp.ge.f32.partialorder %v6826, %v7278
      %vm7366 = vcmp.ge.f32.partialorder %v6901, %v7278
      %vm7367 = vcmp.ge.f32.partialorder %v6903, %v7278
      %vm7368 = vcmp.ge.f32.partialorder %v6978, %v7278
      %vm7369 = vcmp.ge.f32.partialorder %v6980, %v7278
      %vm7370 = vcmp.ge.f32.partialorder %v7055, %v7278
      %vm7371 = vcmp.ge.f32.partialorder %v7057, %v7278
      %vm7372 = vcmp.ge.f32.partialorder %v7132, %v7278
      %vm7373 = vcmp.ge.f32.partialorder %v7134, %v7278
      %vm7374 = vcmp.ge.f32.partialorder %v7209, %v7278
      %vm7375 = vcmp.ge.f32.partialorder %v7211, %v7278
      %v7376 = vsel %vm7312, %v7280, 4096
      %v7377 = vsel %vm7313, %v7281, 4096
      %v7378 = vsel %vm7314, %v7282, 4096
      %v7379 = vsel %vm7315, %v7283, 4096
      %v7380 = vsel %vm7316, %v7284, 4096
      %v7381 = vsel %vm7317, %v7285, 4096
      %v7382 = vsel %vm7318, %v7286, 4096
      %v7383 = vsel %vm7319, %v7287, 4096
      %v7384 = vsel %vm7320, %v7288, 4096
      %v7385 = vsel %vm7321, %v7289, 4096
      %v7386 = vsel %vm7322, %v7290, 4096
      %v7387 = vsel %vm7323, %v7291, 4096
      %v7388 = vsel %vm7324, %v7292, 4096
      %v7389 = vsel %vm7325, %v7293, 4096
      %v7390 = vsel %vm7326, %v7294, 4096
      %v7391 = vsel %vm7327, %v7295, 4096
      %v7392 = vsel %vm7328, %v7296, 4096
      %v7393 = vsel %vm7329, %v7297, 4096
      %v7394 = vsel %vm7330, %v7298, 4096
      %v7395 = vsel %vm7331, %v7299, 4096
      %v7396 = vsel %vm7332, %v7300, 4096
      %v7397 = vsel %vm7333, %v7301, 4096
      %v7398 = vsel %vm7334, %v7302, 4096
      %v7399 = vsel %vm7335, %v7303, 4096
      %v7400 = vsel %vm7336, %v7304, 4096
      %v7401 = vsel %vm7337, %v7305, 4096
      %v7402 = vsel %vm7338, %v7306, 4096
      %v7403 = vsel %vm7339, %v7307, 4096
      %v7404 = vsel %vm7340, %v7308, 4096
      %v7405 = vsel %vm7341, %v7309, 4096
      %v7406 = vsel %vm7342, %v7310, 4096
      %v7407 = vsel %vm7343, %v7311, 4096
      %v7408 = vsel %vm7344, %v7280, 4096
      %v7409 = vsel %vm7345, %v7281, 4096
      %v7410 = vsel %vm7346, %v7282, 4096
      %v7411 = vsel %vm7347, %v7283, 4096
      %v7412 = vsel %vm7348, %v7284, 4096
      %v7413 = vsel %vm7349, %v7285, 4096
      %v7414 = vsel %vm7350, %v7286, 4096
      %v7415 = vsel %vm7351, %v7287, 4096
      %v7416 = vsel %vm7352, %v7288, 4096
      %v7417 = vsel %vm7353, %v7289, 4096
      %v7418 = vsel %vm7354, %v7290, 4096
      %v7419 = vsel %vm7355, %v7291, 4096
      %v7420 = vsel %vm7356, %v7292, 4096
      %v7421 = vsel %vm7357, %v7293, 4096
      %v7422 = vsel %vm7358, %v7294, 4096
      %v7423 = vsel %vm7359, %v7295, 4096
      %v7424 = vsel %vm7360, %v7296, 4096
      %v7425 = vsel %vm7361, %v7297, 4096
      %v7426 = vsel %vm7362, %v7298, 4096
      %v7427 = vsel %vm7363, %v7299, 4096
      %v7428 = vsel %vm7364, %v7300, 4096
      %v7429 = vsel %vm7365, %v7301, 4096
      %v7430 = vsel %vm7366, %v7302, 4096
      %v7431 = vsel %vm7367, %v7303, 4096
      %v7432 = vsel %vm7368, %v7304, 4096
      %v7433 = vsel %vm7369, %v7305, 4096
      %v7434 = vsel %vm7370, %v7306, 4096
      %v7435 = vsel %vm7371, %v7307, 4096
      %v7436 = vsel %vm7372, %v7308, 4096
      %v7437 = vsel %vm7373, %v7309, 4096
      %v7438 = vsel %vm7374, %v7310, 4096
      %v7439 = vsel %vm7375, %v7311, 4096
      %vm7440 = vcmp.lt.s32.totalorder %v7376, %v7378
      %v7441 = vsel %vm7440, %v7376, %v7378
      %vm7442 = vcmp.lt.s32.totalorder %v7377, %v7379
      %v7443 = vsel %vm7442, %v7377, %v7379
      %vm7444 = vcmp.lt.s32.totalorder %v7441, %v7380
      %v7445 = vsel %vm7444, %v7441, %v7380
      %vm7446 = vcmp.lt.s32.totalorder %v7443, %v7381
      %v7447 = vsel %vm7446, %v7443, %v7381
      %vm7448 = vcmp.lt.s32.totalorder %v7445, %v7382
      %v7449 = vsel %vm7448, %v7445, %v7382
      %vm7450 = vcmp.lt.s32.totalorder %v7447, %v7383
      %v7451 = vsel %vm7450, %v7447, %v7383
      %vm7452 = vcmp.lt.s32.totalorder %v7449, %v7384
      %v7453 = vsel %vm7452, %v7449, %v7384
      %vm7454 = vcmp.lt.s32.totalorder %v7451, %v7385
      %v7455 = vsel %vm7454, %v7451, %v7385
      %vm7456 = vcmp.lt.s32.totalorder %v7453, %v7386
      %v7457 = vsel %vm7456, %v7453, %v7386
      %vm7458 = vcmp.lt.s32.totalorder %v7455, %v7387
      %v7459 = vsel %vm7458, %v7455, %v7387
      %vm7460 = vcmp.lt.s32.totalorder %v7457, %v7388
      %v7461 = vsel %vm7460, %v7457, %v7388
      %vm7462 = vcmp.lt.s32.totalorder %v7459, %v7389
      %v7463 = vsel %vm7462, %v7459, %v7389
      %vm7464 = vcmp.lt.s32.totalorder %v7461, %v7390
      %v7465 = vsel %vm7464, %v7461, %v7390
      %vm7466 = vcmp.lt.s32.totalorder %v7463, %v7391
      %v7467 = vsel %vm7466, %v7463, %v7391
      %vm7468 = vcmp.lt.s32.totalorder %v7465, %v7392
      %v7469 = vsel %vm7468, %v7465, %v7392
      %vm7470 = vcmp.lt.s32.totalorder %v7467, %v7393
      %v7471 = vsel %vm7470, %v7467, %v7393
      %vm7472 = vcmp.lt.s32.totalorder %v7469, %v7394
      %v7473 = vsel %vm7472, %v7469, %v7394
      %vm7474 = vcmp.lt.s32.totalorder %v7471, %v7395
      %v7475 = vsel %vm7474, %v7471, %v7395
      %vm7476 = vcmp.lt.s32.totalorder %v7473, %v7396
      %v7477 = vsel %vm7476, %v7473, %v7396
      %vm7478 = vcmp.lt.s32.totalorder %v7475, %v7397
      %v7479 = vsel %vm7478, %v7475, %v7397
      %vm7480 = vcmp.lt.s32.totalorder %v7477, %v7398
      %v7481 = vsel %vm7480, %v7477, %v7398
      %vm7482 = vcmp.lt.s32.totalorder %v7479, %v7399
      %v7483 = vsel %vm7482, %v7479, %v7399
      %vm7484 = vcmp.lt.s32.totalorder %v7481, %v7400
      %v7485 = vsel %vm7484, %v7481, %v7400
      %vm7486 = vcmp.lt.s32.totalorder %v7483, %v7401
      %v7487 = vsel %vm7486, %v7483, %v7401
      %vm7488 = vcmp.lt.s32.totalorder %v7485, %v7402
      %v7489 = vsel %vm7488, %v7485, %v7402
      %vm7490 = vcmp.lt.s32.totalorder %v7487, %v7403
      %v7491 = vsel %vm7490, %v7487, %v7403
      %vm7492 = vcmp.lt.s32.totalorder %v7489, %v7404
      %v7493 = vsel %vm7492, %v7489, %v7404
      %vm7494 = vcmp.lt.s32.totalorder %v7491, %v7405
      %v7495 = vsel %vm7494, %v7491, %v7405
      %vm7496 = vcmp.lt.s32.totalorder %v7493, %v7406
      %v7497 = vsel %vm7496, %v7493, %v7406
      %vm7498 = vcmp.lt.s32.totalorder %v7495, %v7407
      %v7499 = vsel %vm7498, %v7495, %v7407
      %vm7500 = vcmp.lt.s32.totalorder %v7497, %v7499
      %v7501 = vsel %vm7500, %v7497, %v7499
      %v7502 = vand.u32 %v7501, 65535
      %v7503 = vshra.s32 %v7501, 16
      %v7504 = vcvt.s32.f32 %v7502
      %v7505 = vcvt.s32.f32 %v7503
      %7506 = vmin.xlane.f32.xlu0 %v7505
      %v7507 = vpop.xlane.xlu0 %7506
      %vm7508 = vcmp.eq.f32.partialorder %v7505, %v7507
      %v7509 = vsel %vm7508, %v7504, inf
      %7510 = vmin.xlane.f32.xlu0 %v7509
      %v7511 = vpop.xlane.xlu0 %7510
      %v7512 = vcvt.f32.s32 %v7511
      %v7513 = vcvt.f32.s32 %v7507
      %v7514 = vshll.u32 %v7513, 16
      %v7515 = vadd.s32 %v7514, %v7512
      %vm7516 = vcmp.lt.s32.totalorder %v7408, %v7410
      %v7517 = vsel %vm7516, %v7408, %v7410
      %vm7518 = vcmp.lt.s32.totalorder %v7409, %v7411
      %v7519 = vsel %vm7518, %v7409, %v7411
      %vm7520 = vcmp.lt.s32.totalorder %v7517, %v7412
      %v7521 = vsel %vm7520, %v7517, %v7412
      %vm7522 = vcmp.lt.s32.totalorder %v7519, %v7413
      %v7523 = vsel %vm7522, %v7519, %v7413
      %vm7524 = vcmp.lt.s32.totalorder %v7521, %v7414
      %v7525 = vsel %vm7524, %v7521, %v7414
      %vm7526 = vcmp.lt.s32.totalorder %v7523, %v7415
      %v7527 = vsel %vm7526, %v7523, %v7415
      %vm7528 = vcmp.lt.s32.totalorder %v7525, %v7416
      %v7529 = vsel %vm7528, %v7525, %v7416
      %vm7530 = vcmp.lt.s32.totalorder %v7527, %v7417
      %v7531 = vsel %vm7530, %v7527, %v7417
      %vm7532 = vcmp.lt.s32.totalorder %v7529, %v7418
      %v7533 = vsel %vm7532, %v7529, %v7418
      %vm7534 = vcmp.lt.s32.totalorder %v7531, %v7419
      %v7535 = vsel %vm7534, %v7531, %v7419
      %vm7536 = vcmp.lt.s32.totalorder %v7533, %v7420
      %v7537 = vsel %vm7536, %v7533, %v7420
      %vm7538 = vcmp.lt.s32.totalorder %v7535, %v7421
      %v7539 = vsel %vm7538, %v7535, %v7421
      %vm7540 = vcmp.lt.s32.totalorder %v7537, %v7422
      %v7541 = vsel %vm7540, %v7537, %v7422
      %vm7542 = vcmp.lt.s32.totalorder %v7539, %v7423
      %v7543 = vsel %vm7542, %v7539, %v7423
      %vm7544 = vcmp.lt.s32.totalorder %v7541, %v7424
      %v7545 = vsel %vm7544, %v7541, %v7424
      %vm7546 = vcmp.lt.s32.totalorder %v7543, %v7425
      %v7547 = vsel %vm7546, %v7543, %v7425
      %vm7548 = vcmp.lt.s32.totalorder %v7545, %v7426
      %v7549 = vsel %vm7548, %v7545, %v7426
      %vm7550 = vcmp.lt.s32.totalorder %v7547, %v7427
      %v7551 = vsel %vm7550, %v7547, %v7427
      %vm7552 = vcmp.lt.s32.totalorder %v7549, %v7428
      %v7553 = vsel %vm7552, %v7549, %v7428
      %vm7554 = vcmp.lt.s32.totalorder %v7551, %v7429
      %v7555 = vsel %vm7554, %v7551, %v7429
      %vm7556 = vcmp.lt.s32.totalorder %v7553, %v7430
      %v7557 = vsel %vm7556, %v7553, %v7430
      %vm7558 = vcmp.lt.s32.totalorder %v7555, %v7431
      %v7559 = vsel %vm7558, %v7555, %v7431
      %vm7560 = vcmp.lt.s32.totalorder %v7557, %v7432
      %v7561 = vsel %vm7560, %v7557, %v7432
      %vm7562 = vcmp.lt.s32.totalorder %v7559, %v7433
      %v7563 = vsel %vm7562, %v7559, %v7433
      %vm7564 = vcmp.lt.s32.totalorder %v7561, %v7434
      %v7565 = vsel %vm7564, %v7561, %v7434
      %vm7566 = vcmp.lt.s32.totalorder %v7563, %v7435
      %v7567 = vsel %vm7566, %v7563, %v7435
      %vm7568 = vcmp.lt.s32.totalorder %v7565, %v7436
      %v7569 = vsel %vm7568, %v7565, %v7436
      %vm7570 = vcmp.lt.s32.totalorder %v7567, %v7437
      %v7571 = vsel %vm7570, %v7567, %v7437
      %vm7572 = vcmp.lt.s32.totalorder %v7569, %v7438
      %v7573 = vsel %vm7572, %v7569, %v7438
      %vm7574 = vcmp.lt.s32.totalorder %v7571, %v7439
      %v7575 = vsel %vm7574, %v7571, %v7439
      %vm7576 = vcmp.lt.s32.totalorder %v7573, %v7575
      %v7577 = vsel %vm7576, %v7573, %v7575
      %v7578 = vand.u32 %v7577, 65535
      %v7579 = vshra.s32 %v7577, 16
      %v7580 = vcvt.s32.f32 %v7578
      %v7581 = vcvt.s32.f32 %v7579
      %7582 = vmin.xlane.f32.xlu0 %v7581
      %v7583 = vpop.xlane.xlu0 %7582
      %vm7584 = vcmp.eq.f32.partialorder %v7581, %v7583
      %v7585 = vsel %vm7584, %v7580, inf
      %7586 = vmin.xlane.f32.xlu0 %v7585
      %v7587 = vpop.xlane.xlu0 %7586
      %v7588 = vcvt.f32.s32 %v7587
      %v7589 = vcvt.f32.s32 %v7583
      %v7590 = vshll.u32 %v7589, 16
      %v7591 = vadd.s32 %v7590, %v7588
      %vm7592 = vcmp.eq.s32.totalorder %v7280, %v7515
      %vm7593 = vcmp.eq.s32.totalorder %v7281, %v7515
      %vm7594 = vcmp.eq.s32.totalorder %v7282, %v7515
      %vm7595 = vcmp.eq.s32.totalorder %v7283, %v7515
      %vm7596 = vcmp.eq.s32.totalorder %v7284, %v7515
      %vm7597 = vcmp.eq.s32.totalorder %v7285, %v7515
      %vm7598 = vcmp.eq.s32.totalorder %v7286, %v7515
      %vm7599 = vcmp.eq.s32.totalorder %v7287, %v7515
      %vm7600 = vcmp.eq.s32.totalorder %v7288, %v7515
      %vm7601 = vcmp.eq.s32.totalorder %v7289, %v7515
      %vm7602 = vcmp.eq.s32.totalorder %v7290, %v7515
      %vm7603 = vcmp.eq.s32.totalorder %v7291, %v7515
      %vm7604 = vcmp.eq.s32.totalorder %v7292, %v7515
      %vm7605 = vcmp.eq.s32.totalorder %v7293, %v7515
      %vm7606 = vcmp.eq.s32.totalorder %v7294, %v7515
      %vm7607 = vcmp.eq.s32.totalorder %v7295, %v7515
      %vm7608 = vcmp.eq.s32.totalorder %v7296, %v7515
      %vm7609 = vcmp.eq.s32.totalorder %v7297, %v7515
      %vm7610 = vcmp.eq.s32.totalorder %v7298, %v7515
      %vm7611 = vcmp.eq.s32.totalorder %v7299, %v7515
      %vm7612 = vcmp.eq.s32.totalorder %v7300, %v7515
      %vm7613 = vcmp.eq.s32.totalorder %v7301, %v7515
      %vm7614 = vcmp.eq.s32.totalorder %v7302, %v7515
      %vm7615 = vcmp.eq.s32.totalorder %v7303, %v7515
      %vm7616 = vcmp.eq.s32.totalorder %v7304, %v7515
      %vm7617 = vcmp.eq.s32.totalorder %v7305, %v7515
      %vm7618 = vcmp.eq.s32.totalorder %v7306, %v7515
      %vm7619 = vcmp.eq.s32.totalorder %v7307, %v7515
      %vm7620 = vcmp.eq.s32.totalorder %v7308, %v7515
      %vm7621 = vcmp.eq.s32.totalorder %v7309, %v7515
      %vm7622 = vcmp.eq.s32.totalorder %v7310, %v7515
      %vm7623 = vcmp.eq.s32.totalorder %v7311, %v7515
      %vm7624 = vcmp.eq.s32.totalorder %v7280, %v7591
      %vm7625 = vcmp.eq.s32.totalorder %v7281, %v7591
      %vm7626 = vcmp.eq.s32.totalorder %v7282, %v7591
      %vm7627 = vcmp.eq.s32.totalorder %v7283, %v7591
      %vm7628 = vcmp.eq.s32.totalorder %v7284, %v7591
      %vm7629 = vcmp.eq.s32.totalorder %v7285, %v7591
      %vm7630 = vcmp.eq.s32.totalorder %v7286, %v7591
      %vm7631 = vcmp.eq.s32.totalorder %v7287, %v7591
      %vm7632 = vcmp.eq.s32.totalorder %v7288, %v7591
      %vm7633 = vcmp.eq.s32.totalorder %v7289, %v7591
      %vm7634 = vcmp.eq.s32.totalorder %v7290, %v7591
      %vm7635 = vcmp.eq.s32.totalorder %v7291, %v7591
      %vm7636 = vcmp.eq.s32.totalorder %v7292, %v7591
      %vm7637 = vcmp.eq.s32.totalorder %v7293, %v7591
      %vm7638 = vcmp.eq.s32.totalorder %v7294, %v7591
      %vm7639 = vcmp.eq.s32.totalorder %v7295, %v7591
      %vm7640 = vcmp.eq.s32.totalorder %v7296, %v7591
      %vm7641 = vcmp.eq.s32.totalorder %v7297, %v7591
      %vm7642 = vcmp.eq.s32.totalorder %v7298, %v7591
      %vm7643 = vcmp.eq.s32.totalorder %v7299, %v7591
      %vm7644 = vcmp.eq.s32.totalorder %v7300, %v7591
      %vm7645 = vcmp.eq.s32.totalorder %v7301, %v7591
      %vm7646 = vcmp.eq.s32.totalorder %v7302, %v7591
      %vm7647 = vcmp.eq.s32.totalorder %v7303, %v7591
      %vm7648 = vcmp.eq.s32.totalorder %v7304, %v7591
      %vm7649 = vcmp.eq.s32.totalorder %v7305, %v7591
      %vm7650 = vcmp.eq.s32.totalorder %v7306, %v7591
      %vm7651 = vcmp.eq.s32.totalorder %v7307, %v7591
      %vm7652 = vcmp.eq.s32.totalorder %v7308, %v7591
      %vm7653 = vcmp.eq.s32.totalorder %v7309, %v7591
      %vm7654 = vcmp.eq.s32.totalorder %v7310, %v7591
      %vm7655 = vcmp.eq.s32.totalorder %v7311, %v7591
      %v7656 = vld [vmem:[%s16] ss:$4 sm:$0xff]
      %s7657 = scalar_lea.vmem %s16, 32
      %v7658 = vld [vmem:[%s7657] ss:$4 sm:$0xff]
      %s7659 = scalar_lea.vmem %s16, 64
      %v7660 = vld [vmem:[%s7659] ss:$4 sm:$0xff]
      %s7661 = scalar_lea.vmem %s16, 96
      %v7662 = vld [vmem:[%s7661] ss:$4 sm:$0xff]
      %v7667 = vlaneseq
      %v7668 = vshrl.u32 %v7667, 7
      %v7669 = vsub.s32 0, %v7668
      %v7670 = vrot.slane %v7656, %v7669
      %v7671 = vlaneseq
      %v7672 = vshrl.u32 %v7671, 7
      %v7673 = vsub.s32 1, %v7672
      %v7674 = vrot.slane %v7656, %v7673
      %v7675 = vlaneseq
      %v7676 = vshrl.u32 %v7675, 7
      %v7677 = vsub.s32 2, %v7676
      %v7678 = vrot.slane %v7656, %v7677
      %v7679 = vlaneseq
      %v7680 = vshrl.u32 %v7679, 7
      %v7681 = vsub.s32 3, %v7680
      %v7682 = vrot.slane %v7656, %v7681
      %v7683 = vlaneseq
      %v7684 = vshrl.u32 %v7683, 7
      %v7685 = vsub.s32 4, %v7684
      %v7686 = vrot.slane %v7656, %v7685
      %v7687 = vlaneseq
      %v7688 = vshrl.u32 %v7687, 7
      %v7689 = vsub.s32 5, %v7688
      %v7690 = vrot.slane %v7656, %v7689
      %v7691 = vlaneseq
      %v7692 = vshrl.u32 %v7691, 7
      %v7693 = vsub.s32 6, %v7692
      %v7694 = vrot.slane %v7656, %v7693
      %v7695 = vlaneseq
      %v7696 = vshrl.u32 %v7695, 7
      %v7697 = vsub.s32 7, %v7696
      %v7698 = vrot.slane %v7656, %v7697
      %v7699 = vlaneseq
      %v7700 = vshrl.u32 %v7699, 7
      %v7701 = vsub.s32 0, %v7700
      %v7702 = vrot.slane %v7658, %v7701
      %v7703 = vlaneseq
      %v7704 = vshrl.u32 %v7703, 7
      %v7705 = vsub.s32 1, %v7704
      %v7706 = vrot.slane %v7658, %v7705
      %v7707 = vlaneseq
      %v7708 = vshrl.u32 %v7707, 7
      %v7709 = vsub.s32 2, %v7708
      %v7710 = vrot.slane %v7658, %v7709
      %v7711 = vlaneseq
      %v7712 = vshrl.u32 %v7711, 7
      %v7713 = vsub.s32 3, %v7712
      %v7714 = vrot.slane %v7658, %v7713
      %v7715 = vlaneseq
      %v7716 = vshrl.u32 %v7715, 7
      %v7717 = vsub.s32 4, %v7716
      %v7718 = vrot.slane %v7658, %v7717
      %v7719 = vlaneseq
      %v7720 = vshrl.u32 %v7719, 7
      %v7721 = vsub.s32 5, %v7720
      %v7722 = vrot.slane %v7658, %v7721
      %v7723 = vlaneseq
      %v7724 = vshrl.u32 %v7723, 7
      %v7725 = vsub.s32 6, %v7724
      %v7726 = vrot.slane %v7658, %v7725
      %v7727 = vlaneseq
      %v7728 = vshrl.u32 %v7727, 7
      %v7729 = vsub.s32 7, %v7728
      %v7730 = vrot.slane %v7658, %v7729
      %v7731 = vlaneseq
      %v7732 = vshrl.u32 %v7731, 7
      %v7733 = vsub.s32 0, %v7732
      %v7734 = vrot.slane %v7660, %v7733
      %v7735 = vlaneseq
      %v7736 = vshrl.u32 %v7735, 7
      %v7737 = vsub.s32 1, %v7736
      %v7738 = vrot.slane %v7660, %v7737
      %v7739 = vlaneseq
      %v7740 = vshrl.u32 %v7739, 7
      %v7741 = vsub.s32 2, %v7740
      %v7742 = vrot.slane %v7660, %v7741
      %v7743 = vlaneseq
      %v7744 = vshrl.u32 %v7743, 7
      %v7745 = vsub.s32 3, %v7744
      %v7746 = vrot.slane %v7660, %v7745
      %v7747 = vlaneseq
      %v7748 = vshrl.u32 %v7747, 7
      %v7749 = vsub.s32 4, %v7748
      %v7750 = vrot.slane %v7660, %v7749
      %v7751 = vlaneseq
      %v7752 = vshrl.u32 %v7751, 7
      %v7753 = vsub.s32 5, %v7752
      %v7754 = vrot.slane %v7660, %v7753
      %v7755 = vlaneseq
      %v7756 = vshrl.u32 %v7755, 7
      %v7757 = vsub.s32 6, %v7756
      %v7758 = vrot.slane %v7660, %v7757
      %v7759 = vlaneseq
      %v7760 = vshrl.u32 %v7759, 7
      %v7761 = vsub.s32 7, %v7760
      %v7762 = vrot.slane %v7660, %v7761
      %v7763 = vlaneseq
      %v7764 = vshrl.u32 %v7763, 7
      %v7765 = vsub.s32 0, %v7764
      %v7766 = vrot.slane %v7662, %v7765
      %v7767 = vlaneseq
      %v7768 = vshrl.u32 %v7767, 7
      %v7769 = vsub.s32 1, %v7768
      %v7770 = vrot.slane %v7662, %v7769
      %v7771 = vlaneseq
      %v7772 = vshrl.u32 %v7771, 7
      %v7773 = vsub.s32 2, %v7772
      %v7774 = vrot.slane %v7662, %v7773
      %v7775 = vlaneseq
      %v7776 = vshrl.u32 %v7775, 7
      %v7777 = vsub.s32 3, %v7776
      %v7778 = vrot.slane %v7662, %v7777
      %v7779 = vlaneseq
      %v7780 = vshrl.u32 %v7779, 7
      %v7781 = vsub.s32 4, %v7780
      %v7782 = vrot.slane %v7662, %v7781
      %v7783 = vlaneseq
      %v7784 = vshrl.u32 %v7783, 7
      %v7785 = vsub.s32 5, %v7784
      %v7786 = vrot.slane %v7662, %v7785
      %v7787 = vlaneseq
      %v7788 = vshrl.u32 %v7787, 7
      %v7789 = vsub.s32 6, %v7788
      %v7790 = vrot.slane %v7662, %v7789
      %v7791 = vlaneseq
      %v7792 = vshrl.u32 %v7791, 7
      %v7793 = vsub.s32 7, %v7792
      %v7794 = vrot.slane %v7662, %v7793
      %v7827 = vsel %vm7592, %v7670, 0.0
      %v7828 = vsel %vm7593, %v7674, 0.0
      %v7829 = vsel %vm7594, %v7678, 0.0
      %v7830 = vsel %vm7595, %v7682, 0.0
      %v7831 = vsel %vm7596, %v7686, 0.0
      %v7832 = vsel %vm7597, %v7690, 0.0
      %v7833 = vsel %vm7598, %v7694, 0.0
      %v7834 = vsel %vm7599, %v7698, 0.0
      %v7835 = vsel %vm7600, %v7702, 0.0
      %v7836 = vsel %vm7601, %v7706, 0.0
      %v7837 = vsel %vm7602, %v7710, 0.0
      %v7838 = vsel %vm7603, %v7714, 0.0
      %v7839 = vsel %vm7604, %v7718, 0.0
      %v7840 = vsel %vm7605, %v7722, 0.0
      %v7841 = vsel %vm7606, %v7726, 0.0
      %v7842 = vsel %vm7607, %v7730, 0.0
      %v7843 = vsel %vm7608, %v7734, 0.0
      %v7844 = vsel %vm7609, %v7738, 0.0
      %v7845 = vsel %vm7610, %v7742, 0.0
      %v7846 = vsel %vm7611, %v7746, 0.0
      %v7847 = vsel %vm7612, %v7750, 0.0
      %v7848 = vsel %vm7613, %v7754, 0.0
      %v7849 = vsel %vm7614, %v7758, 0.0
      %v7850 = vsel %vm7615, %v7762, 0.0
      %v7851 = vsel %vm7616, %v7766, 0.0
      %v7852 = vsel %vm7617, %v7770, 0.0
      %v7853 = vsel %vm7618, %v7774, 0.0
      %v7854 = vsel %vm7619, %v7778, 0.0
      %v7855 = vsel %vm7620, %v7782, 0.0
      %v7856 = vsel %vm7621, %v7786, 0.0
      %v7857 = vsel %vm7622, %v7790, 0.0
      %v7858 = vsel %vm7623, %v7794, 0.0
      %v7859 = vsel %vm7624, %v7670, 0.0
      %v7860 = vsel %vm7625, %v7674, 0.0
      %v7861 = vsel %vm7626, %v7678, 0.0
      %v7862 = vsel %vm7627, %v7682, 0.0
      %v7863 = vsel %vm7628, %v7686, 0.0
      %v7864 = vsel %vm7629, %v7690, 0.0
      %v7865 = vsel %vm7630, %v7694, 0.0
      %v7866 = vsel %vm7631, %v7698, 0.0
      %v7867 = vsel %vm7632, %v7702, 0.0
      %v7868 = vsel %vm7633, %v7706, 0.0
      %v7869 = vsel %vm7634, %v7710, 0.0
      %v7870 = vsel %vm7635, %v7714, 0.0
      %v7871 = vsel %vm7636, %v7718, 0.0
      %v7872 = vsel %vm7637, %v7722, 0.0
      %v7873 = vsel %vm7638, %v7726, 0.0
      %v7874 = vsel %vm7639, %v7730, 0.0
      %v7875 = vsel %vm7640, %v7734, 0.0
      %v7876 = vsel %vm7641, %v7738, 0.0
      %v7877 = vsel %vm7642, %v7742, 0.0
      %v7878 = vsel %vm7643, %v7746, 0.0
      %v7879 = vsel %vm7644, %v7750, 0.0
      %v7880 = vsel %vm7645, %v7754, 0.0
      %v7881 = vsel %vm7646, %v7758, 0.0
      %v7882 = vsel %vm7647, %v7762, 0.0
      %v7883 = vsel %vm7648, %v7766, 0.0
      %v7884 = vsel %vm7649, %v7770, 0.0
      %v7885 = vsel %vm7650, %v7774, 0.0
      %v7886 = vsel %vm7651, %v7778, 0.0
      %v7887 = vsel %vm7652, %v7782, 0.0
      %v7888 = vsel %vm7653, %v7786, 0.0
      %v7889 = vsel %vm7654, %v7790, 0.0
      %v7890 = vsel %vm7655, %v7794, 0.0
      %v7891 = vadd.f32 %v7827, %v7828
      %v7892 = vadd.f32 %v7891, %v7829
      %v7893 = vadd.f32 %v7892, %v7830
      %v7894 = vadd.f32 %v7893, %v7831
      %v7895 = vadd.f32 %v7894, %v7832
      %v7896 = vadd.f32 %v7895, %v7833
      %v7897 = vadd.f32 %v7896, %v7834
      %v7898 = vadd.f32 %v7897, %v7835
      %v7899 = vadd.f32 %v7898, %v7836
      %v7900 = vadd.f32 %v7899, %v7837
      %v7901 = vadd.f32 %v7900, %v7838
      %v7902 = vadd.f32 %v7901, %v7839
      %v7903 = vadd.f32 %v7902, %v7840
      %v7904 = vadd.f32 %v7903, %v7841
      %v7905 = vadd.f32 %v7904, %v7842
      %v7906 = vadd.f32 %v7905, %v7843
      %v7907 = vadd.f32 %v7906, %v7844
      %v7908 = vadd.f32 %v7907, %v7845
      %v7909 = vadd.f32 %v7908, %v7846
      %v7910 = vadd.f32 %v7909, %v7847
      %v7911 = vadd.f32 %v7910, %v7848
      %v7912 = vadd.f32 %v7911, %v7849
      %v7913 = vadd.f32 %v7912, %v7850
      %v7914 = vadd.f32 %v7913, %v7851
      %v7915 = vadd.f32 %v7914, %v7852
      %v7916 = vadd.f32 %v7915, %v7853
      %v7917 = vadd.f32 %v7916, %v7854
      %v7918 = vadd.f32 %v7917, %v7855
      %v7919 = vadd.f32 %v7918, %v7856
      %v7920 = vadd.f32 %v7919, %v7857
      %v7921 = vadd.f32 %v7920, %v7858
      %7922 = vadd.xlane.f32.xlu0 %v7921
      %v7923 = vpop.xlane.xlu0 %7922
      %v7924 = vadd.f32 %v7859, %v7860
      %v7925 = vadd.f32 %v7924, %v7861
      %v7926 = vadd.f32 %v7925, %v7862
      %v7927 = vadd.f32 %v7926, %v7863
      %v7928 = vadd.f32 %v7927, %v7864
      %v7929 = vadd.f32 %v7928, %v7865
      %v7930 = vadd.f32 %v7929, %v7866
      %v7931 = vadd.f32 %v7930, %v7867
      %v7932 = vadd.f32 %v7931, %v7868
      %v7933 = vadd.f32 %v7932, %v7869
      %v7934 = vadd.f32 %v7933, %v7870
      %v7935 = vadd.f32 %v7934, %v7871
      %v7936 = vadd.f32 %v7935, %v7872
      %v7937 = vadd.f32 %v7936, %v7873
      %v7938 = vadd.f32 %v7937, %v7874
      %v7939 = vadd.f32 %v7938, %v7875
      %v7940 = vadd.f32 %v7939, %v7876
      %v7941 = vadd.f32 %v7940, %v7877
      %v7942 = vadd.f32 %v7941, %v7878
      %v7943 = vadd.f32 %v7942, %v7879
      %v7944 = vadd.f32 %v7943, %v7880
      %v7945 = vadd.f32 %v7944, %v7881
      %v7946 = vadd.f32 %v7945, %v7882
      %v7947 = vadd.f32 %v7946, %v7883
      %v7948 = vadd.f32 %v7947, %v7884
      %v7949 = vadd.f32 %v7948, %v7885
      %v7950 = vadd.f32 %v7949, %v7886
      %v7951 = vadd.f32 %v7950, %v7887
      %v7952 = vadd.f32 %v7951, %v7888
      %v7953 = vadd.f32 %v7952, %v7889
      %v7954 = vadd.f32 %v7953, %v7890
      %7955 = vadd.xlane.f32.xlu0 %v7954
      %v7956 = vpop.xlane.xlu0 %7955
      %vm7957 = vcmp.eq.s32.totalorder %v7280, 0
      %v7958 = vsel %vm7957, 1, 0
      %vm7959 = vcmp.eq.s32.totalorder %v7958, 1
      %v7960 = vsel %vm7959, %v7923, 0.0
      %v7961 = vsel %vm7959, %v7956, 0.0
      %v7962 = vadd.f32 %v7960, 0.0
      %v7963 = vadd.f32 %v7961, 0.0
      %s7964 = scalar_lea.vmem %s16, 1
      %v7965 = vld [vmem:[%s7964] ss:$4 sm:$0xff]
      %s7966 = scalar_lea.vmem %s16, 33
      %v7967 = vld [vmem:[%s7966] ss:$4 sm:$0xff]
      %s7968 = scalar_lea.vmem %s16, 65
      %v7969 = vld [vmem:[%s7968] ss:$4 sm:$0xff]
      %s7970 = scalar_lea.vmem %s16, 97
      %v7971 = vld [vmem:[%s7970] ss:$4 sm:$0xff]
      %v7976 = vlaneseq
      %v7977 = vshrl.u32 %v7976, 7
      %v7978 = vsub.s32 0, %v7977
      %v7979 = vrot.slane %v7965, %v7978
      %v7980 = vlaneseq
      %v7981 = vshrl.u32 %v7980, 7
      %v7982 = vsub.s32 1, %v7981
      %v7983 = vrot.slane %v7965, %v7982
      %v7984 = vlaneseq
      %v7985 = vshrl.u32 %v7984, 7
      %v7986 = vsub.s32 2, %v7985
      %v7987 = vrot.slane %v7965, %v7986
      %v7988 = vlaneseq
      %v7989 = vshrl.u32 %v7988, 7
      %v7990 = vsub.s32 3, %v7989
      %v7991 = vrot.slane %v7965, %v7990
      %v7992 = vlaneseq
      %v7993 = vshrl.u32 %v7992, 7
      %v7994 = vsub.s32 4, %v7993
      %v7995 = vrot.slane %v7965, %v7994
      %v7996 = vlaneseq
      %v7997 = vshrl.u32 %v7996, 7
      %v7998 = vsub.s32 5, %v7997
      %v7999 = vrot.slane %v7965, %v7998
      %v8000 = vlaneseq
      %v8001 = vshrl.u32 %v8000, 7
      %v8002 = vsub.s32 6, %v8001
      %v8003 = vrot.slane %v7965, %v8002
      %v8004 = vlaneseq
      %v8005 = vshrl.u32 %v8004, 7
      %v8006 = vsub.s32 7, %v8005
      %v8007 = vrot.slane %v7965, %v8006
      %v8008 = vlaneseq
      %v8009 = vshrl.u32 %v8008, 7
      %v8010 = vsub.s32 0, %v8009
      %v8011 = vrot.slane %v7967, %v8010
      %v8012 = vlaneseq
      %v8013 = vshrl.u32 %v8012, 7
      %v8014 = vsub.s32 1, %v8013
      %v8015 = vrot.slane %v7967, %v8014
      %v8016 = vlaneseq
      %v8017 = vshrl.u32 %v8016, 7
      %v8018 = vsub.s32 2, %v8017
      %v8019 = vrot.slane %v7967, %v8018
      %v8020 = vlaneseq
      %v8021 = vshrl.u32 %v8020, 7
      %v8022 = vsub.s32 3, %v8021
      %v8023 = vrot.slane %v7967, %v8022
      %v8024 = vlaneseq
      %v8025 = vshrl.u32 %v8024, 7
      %v8026 = vsub.s32 4, %v8025
      %v8027 = vrot.slane %v7967, %v8026
      %v8028 = vlaneseq
      %v8029 = vshrl.u32 %v8028, 7
      %v8030 = vsub.s32 5, %v8029
      %v8031 = vrot.slane %v7967, %v8030
      %v8032 = vlaneseq
      %v8033 = vshrl.u32 %v8032, 7
      %v8034 = vsub.s32 6, %v8033
      %v8035 = vrot.slane %v7967, %v8034
      %v8036 = vlaneseq
      %v8037 = vshrl.u32 %v8036, 7
      %v8038 = vsub.s32 7, %v8037
      %v8039 = vrot.slane %v7967, %v8038
      %v8040 = vlaneseq
      %v8041 = vshrl.u32 %v8040, 7
      %v8042 = vsub.s32 0, %v8041
      %v8043 = vrot.slane %v7969, %v8042
      %v8044 = vlaneseq
      %v8045 = vshrl.u32 %v8044, 7
      %v8046 = vsub.s32 1, %v8045
      %v8047 = vrot.slane %v7969, %v8046
      %v8048 = vlaneseq
      %v8049 = vshrl.u32 %v8048, 7
      %v8050 = vsub.s32 2, %v8049
      %v8051 = vrot.slane %v7969, %v8050
      %v8052 = vlaneseq
      %v8053 = vshrl.u32 %v8052, 7
      %v8054 = vsub.s32 3, %v8053
      %v8055 = vrot.slane %v7969, %v8054
      %v8056 = vlaneseq
      %v8057 = vshrl.u32 %v8056, 7
      %v8058 = vsub.s32 4, %v8057
      %v8059 = vrot.slane %v7969, %v8058
      %v8060 = vlaneseq
      %v8061 = vshrl.u32 %v8060, 7
      %v8062 = vsub.s32 5, %v8061
      %v8063 = vrot.slane %v7969, %v8062
      %v8064 = vlaneseq
      %v8065 = vshrl.u32 %v8064, 7
      %v8066 = vsub.s32 6, %v8065
      %v8067 = vrot.slane %v7969, %v8066
      %v8068 = vlaneseq
      %v8069 = vshrl.u32 %v8068, 7
      %v8070 = vsub.s32 7, %v8069
      %v8071 = vrot.slane %v7969, %v8070
      %v8072 = vlaneseq
      %v8073 = vshrl.u32 %v8072, 7
      %v8074 = vsub.s32 0, %v8073
      %v8075 = vrot.slane %v7971, %v8074
      %v8076 = vlaneseq
      %v8077 = vshrl.u32 %v8076, 7
      %v8078 = vsub.s32 1, %v8077
      %v8079 = vrot.slane %v7971, %v8078
      %v8080 = vlaneseq
      %v8081 = vshrl.u32 %v8080, 7
      %v8082 = vsub.s32 2, %v8081
      %v8083 = vrot.slane %v7971, %v8082
      %v8084 = vlaneseq
      %v8085 = vshrl.u32 %v8084, 7
      %v8086 = vsub.s32 3, %v8085
      %v8087 = vrot.slane %v7971, %v8086
      %v8088 = vlaneseq
      %v8089 = vshrl.u32 %v8088, 7
      %v8090 = vsub.s32 4, %v8089
      %v8091 = vrot.slane %v7971, %v8090
      %v8092 = vlaneseq
      %v8093 = vshrl.u32 %v8092, 7
      %v8094 = vsub.s32 5, %v8093
      %v8095 = vrot.slane %v7971, %v8094
      %v8096 = vlaneseq
      %v8097 = vshrl.u32 %v8096, 7
      %v8098 = vsub.s32 6, %v8097
      %v8099 = vrot.slane %v7971, %v8098
      %v8100 = vlaneseq
      %v8101 = vshrl.u32 %v8100, 7
      %v8102 = vsub.s32 7, %v8101
      %v8103 = vrot.slane %v7971, %v8102
      %v8136 = vsel %vm7592, %v7979, 0.0
      %v8137 = vsel %vm7593, %v7983, 0.0
      %v8138 = vsel %vm7594, %v7987, 0.0
      %v8139 = vsel %vm7595, %v7991, 0.0
      %v8140 = vsel %vm7596, %v7995, 0.0
      %v8141 = vsel %vm7597, %v7999, 0.0
      %v8142 = vsel %vm7598, %v8003, 0.0
      %v8143 = vsel %vm7599, %v8007, 0.0
      %v8144 = vsel %vm7600, %v8011, 0.0
      %v8145 = vsel %vm7601, %v8015, 0.0
      %v8146 = vsel %vm7602, %v8019, 0.0
      %v8147 = vsel %vm7603, %v8023, 0.0
      %v8148 = vsel %vm7604, %v8027, 0.0
      %v8149 = vsel %vm7605, %v8031, 0.0
      %v8150 = vsel %vm7606, %v8035, 0.0
      %v8151 = vsel %vm7607, %v8039, 0.0
      %v8152 = vsel %vm7608, %v8043, 0.0
      %v8153 = vsel %vm7609, %v8047, 0.0
      %v8154 = vsel %vm7610, %v8051, 0.0
      %v8155 = vsel %vm7611, %v8055, 0.0
      %v8156 = vsel %vm7612, %v8059, 0.0
      %v8157 = vsel %vm7613, %v8063, 0.0
      %v8158 = vsel %vm7614, %v8067, 0.0
      %v8159 = vsel %vm7615, %v8071, 0.0
      %v8160 = vsel %vm7616, %v8075, 0.0
      %v8161 = vsel %vm7617, %v8079, 0.0
      %v8162 = vsel %vm7618, %v8083, 0.0
      %v8163 = vsel %vm7619, %v8087, 0.0
      %v8164 = vsel %vm7620, %v8091, 0.0
      %v8165 = vsel %vm7621, %v8095, 0.0
      %v8166 = vsel %vm7622, %v8099, 0.0
      %v8167 = vsel %vm7623, %v8103, 0.0
      %v8168 = vsel %vm7624, %v7979, 0.0
      %v8169 = vsel %vm7625, %v7983, 0.0
      %v8170 = vsel %vm7626, %v7987, 0.0
      %v8171 = vsel %vm7627, %v7991, 0.0
      %v8172 = vsel %vm7628, %v7995, 0.0
      %v8173 = vsel %vm7629, %v7999, 0.0
      %v8174 = vsel %vm7630, %v8003, 0.0
      %v8175 = vsel %vm7631, %v8007, 0.0
      %v8176 = vsel %vm7632, %v8011, 0.0
      %v8177 = vsel %vm7633, %v8015, 0.0
      %v8178 = vsel %vm7634, %v8019, 0.0
      %v8179 = vsel %vm7635, %v8023, 0.0
      %v8180 = vsel %vm7636, %v8027, 0.0
      %v8181 = vsel %vm7637, %v8031, 0.0
      %v8182 = vsel %vm7638, %v8035, 0.0
      %v8183 = vsel %vm7639, %v8039, 0.0
      %v8184 = vsel %vm7640, %v8043, 0.0
      %v8185 = vsel %vm7641, %v8047, 0.0
      %v8186 = vsel %vm7642, %v8051, 0.0
      %v8187 = vsel %vm7643, %v8055, 0.0
      %v8188 = vsel %vm7644, %v8059, 0.0
      %v8189 = vsel %vm7645, %v8063, 0.0
      %v8190 = vsel %vm7646, %v8067, 0.0
      %v8191 = vsel %vm7647, %v8071, 0.0
      %v8192 = vsel %vm7648, %v8075, 0.0
      %v8193 = vsel %vm7649, %v8079, 0.0
      %v8194 = vsel %vm7650, %v8083, 0.0
      %v8195 = vsel %vm7651, %v8087, 0.0
      %v8196 = vsel %vm7652, %v8091, 0.0
      %v8197 = vsel %vm7653, %v8095, 0.0
      %v8198 = vsel %vm7654, %v8099, 0.0
      %v8199 = vsel %vm7655, %v8103, 0.0
      %v8200 = vadd.f32 %v8136, %v8137
      %v8201 = vadd.f32 %v8200, %v8138
      %v8202 = vadd.f32 %v8201, %v8139
      %v8203 = vadd.f32 %v8202, %v8140
      %v8204 = vadd.f32 %v8203, %v8141
      %v8205 = vadd.f32 %v8204, %v8142
      %v8206 = vadd.f32 %v8205, %v8143
      %v8207 = vadd.f32 %v8206, %v8144
      %v8208 = vadd.f32 %v8207, %v8145
      %v8209 = vadd.f32 %v8208, %v8146
      %v8210 = vadd.f32 %v8209, %v8147
      %v8211 = vadd.f32 %v8210, %v8148
      %v8212 = vadd.f32 %v8211, %v8149
      %v8213 = vadd.f32 %v8212, %v8150
      %v8214 = vadd.f32 %v8213, %v8151
      %v8215 = vadd.f32 %v8214, %v8152
      %v8216 = vadd.f32 %v8215, %v8153
      %v8217 = vadd.f32 %v8216, %v8154
      %v8218 = vadd.f32 %v8217, %v8155
      %v8219 = vadd.f32 %v8218, %v8156
      %v8220 = vadd.f32 %v8219, %v8157
      %v8221 = vadd.f32 %v8220, %v8158
      %v8222 = vadd.f32 %v8221, %v8159
      %v8223 = vadd.f32 %v8222, %v8160
      %v8224 = vadd.f32 %v8223, %v8161
      %v8225 = vadd.f32 %v8224, %v8162
      %v8226 = vadd.f32 %v8225, %v8163
      %v8227 = vadd.f32 %v8226, %v8164
      %v8228 = vadd.f32 %v8227, %v8165
      %v8229 = vadd.f32 %v8228, %v8166
      %v8230 = vadd.f32 %v8229, %v8167
      %8231 = vadd.xlane.f32.xlu0 %v8230
      %v8232 = vpop.xlane.xlu0 %8231
      %v8233 = vadd.f32 %v8168, %v8169
      %v8234 = vadd.f32 %v8233, %v8170
      %v8235 = vadd.f32 %v8234, %v8171
      %v8236 = vadd.f32 %v8235, %v8172
      %v8237 = vadd.f32 %v8236, %v8173
      %v8238 = vadd.f32 %v8237, %v8174
      %v8239 = vadd.f32 %v8238, %v8175
      %v8240 = vadd.f32 %v8239, %v8176
      %v8241 = vadd.f32 %v8240, %v8177
      %v8242 = vadd.f32 %v8241, %v8178
      %v8243 = vadd.f32 %v8242, %v8179
      %v8244 = vadd.f32 %v8243, %v8180
      %v8245 = vadd.f32 %v8244, %v8181
      %v8246 = vadd.f32 %v8245, %v8182
      %v8247 = vadd.f32 %v8246, %v8183
      %v8248 = vadd.f32 %v8247, %v8184
      %v8249 = vadd.f32 %v8248, %v8185
      %v8250 = vadd.f32 %v8249, %v8186
      %v8251 = vadd.f32 %v8250, %v8187
      %v8252 = vadd.f32 %v8251, %v8188
      %v8253 = vadd.f32 %v8252, %v8189
      %v8254 = vadd.f32 %v8253, %v8190
      %v8255 = vadd.f32 %v8254, %v8191
      %v8256 = vadd.f32 %v8255, %v8192
      %v8257 = vadd.f32 %v8256, %v8193
      %v8258 = vadd.f32 %v8257, %v8194
      %v8259 = vadd.f32 %v8258, %v8195
      %v8260 = vadd.f32 %v8259, %v8196
      %v8261 = vadd.f32 %v8260, %v8197
      %v8262 = vadd.f32 %v8261, %v8198
      %v8263 = vadd.f32 %v8262, %v8199
      %8264 = vadd.xlane.f32.xlu0 %v8263
      %v8265 = vpop.xlane.xlu0 %8264
      %vm8266 = vcmp.eq.s32.totalorder %v7280, 1
      %v8267 = vsel %vm8266, 1, 0
      %vm8268 = vcmp.eq.s32.totalorder %v8267, 1
      %v8269 = vsel %vm8268, %v8232, 0.0
      %v8270 = vsel %vm8268, %v8265, 0.0
      %v8271 = vadd.f32 %v7962, %v8269
      %v8272 = vadd.f32 %v7963, %v8270
      %s8273 = scalar_lea.vmem %s16, 2
      %v8274 = vld [vmem:[%s8273] ss:$4 sm:$0xff]
      %s8275 = scalar_lea.vmem %s16, 34
      %v8276 = vld [vmem:[%s8275] ss:$4 sm:$0xff]
      %s8277 = scalar_lea.vmem %s16, 66
      %v8278 = vld [vmem:[%s8277] ss:$4 sm:$0xff]
      %s8279 = scalar_lea.vmem %s16, 98
      %v8280 = vld [vmem:[%s8279] ss:$4 sm:$0xff]
      %v8285 = vlaneseq
      %v8286 = vshrl.u32 %v8285, 7
      %v8287 = vsub.s32 0, %v8286
      %v8288 = vrot.slane %v8274, %v8287
      %v8289 = vlaneseq
      %v8290 = vshrl.u32 %v8289, 7
      %v8291 = vsub.s32 1, %v8290
      %v8292 = vrot.slane %v8274, %v8291
      %v8293 = vlaneseq
      %v8294 = vshrl.u32 %v8293, 7
      %v8295 = vsub.s32 2, %v8294
      %v8296 = vrot.slane %v8274, %v8295
      %v8297 = vlaneseq
      %v8298 = vshrl.u32 %v8297, 7
      %v8299 = vsub.s32 3, %v8298
      %v8300 = vrot.slane %v8274, %v8299
      %v8301 = vlaneseq
      %v8302 = vshrl.u32 %v8301, 7
      %v8303 = vsub.s32 4, %v8302
      %v8304 = vrot.slane %v8274, %v8303
      %v8305 = vlaneseq
      %v8306 = vshrl.u32 %v8305, 7
      %v8307 = vsub.s32 5, %v8306
      %v8308 = vrot.slane %v8274, %v8307
      %v8309 = vlaneseq
      %v8310 = vshrl.u32 %v8309, 7
      %v8311 = vsub.s32 6, %v8310
      %v8312 = vrot.slane %v8274, %v8311
      %v8313 = vlaneseq
      %v8314 = vshrl.u32 %v8313, 7
      %v8315 = vsub.s32 7, %v8314
      %v8316 = vrot.slane %v8274, %v8315
      %v8317 = vlaneseq
      %v8318 = vshrl.u32 %v8317, 7
      %v8319 = vsub.s32 0, %v8318
      %v8320 = vrot.slane %v8276, %v8319
      %v8321 = vlaneseq
      %v8322 = vshrl.u32 %v8321, 7
      %v8323 = vsub.s32 1, %v8322
      %v8324 = vrot.slane %v8276, %v8323
      %v8325 = vlaneseq
      %v8326 = vshrl.u32 %v8325, 7
      %v8327 = vsub.s32 2, %v8326
      %v8328 = vrot.slane %v8276, %v8327
      %v8329 = vlaneseq
      %v8330 = vshrl.u32 %v8329, 7
      %v8331 = vsub.s32 3, %v8330
      %v8332 = vrot.slane %v8276, %v8331
      %v8333 = vlaneseq
      %v8334 = vshrl.u32 %v8333, 7
      %v8335 = vsub.s32 4, %v8334
      %v8336 = vrot.slane %v8276, %v8335
      %v8337 = vlaneseq
      %v8338 = vshrl.u32 %v8337, 7
      %v8339 = vsub.s32 5, %v8338
      %v8340 = vrot.slane %v8276, %v8339
      %v8341 = vlaneseq
      %v8342 = vshrl.u32 %v8341, 7
      %v8343 = vsub.s32 6, %v8342
      %v8344 = vrot.slane %v8276, %v8343
      %v8345 = vlaneseq
      %v8346 = vshrl.u32 %v8345, 7
      %v8347 = vsub.s32 7, %v8346
      %v8348 = vrot.slane %v8276, %v8347
      %v8349 = vlaneseq
      %v8350 = vshrl.u32 %v8349, 7
      %v8351 = vsub.s32 0, %v8350
      %v8352 = vrot.slane %v8278, %v8351
      %v8353 = vlaneseq
      %v8354 = vshrl.u32 %v8353, 7
      %v8355 = vsub.s32 1, %v8354
      %v8356 = vrot.slane %v8278, %v8355
      %v8357 = vlaneseq
      %v8358 = vshrl.u32 %v8357, 7
      %v8359 = vsub.s32 2, %v8358
      %v8360 = vrot.slane %v8278, %v8359
      %v8361 = vlaneseq
      %v8362 = vshrl.u32 %v8361, 7
      %v8363 = vsub.s32 3, %v8362
      %v8364 = vrot.slane %v8278, %v8363
      %v8365 = vlaneseq
      %v8366 = vshrl.u32 %v8365, 7
      %v8367 = vsub.s32 4, %v8366
      %v8368 = vrot.slane %v8278, %v8367
      %v8369 = vlaneseq
      %v8370 = vshrl.u32 %v8369, 7
      %v8371 = vsub.s32 5, %v8370
      %v8372 = vrot.slane %v8278, %v8371
      %v8373 = vlaneseq
      %v8374 = vshrl.u32 %v8373, 7
      %v8375 = vsub.s32 6, %v8374
      %v8376 = vrot.slane %v8278, %v8375
      %v8377 = vlaneseq
      %v8378 = vshrl.u32 %v8377, 7
      %v8379 = vsub.s32 7, %v8378
      %v8380 = vrot.slane %v8278, %v8379
      %v8381 = vlaneseq
      %v8382 = vshrl.u32 %v8381, 7
      %v8383 = vsub.s32 0, %v8382
      %v8384 = vrot.slane %v8280, %v8383
      %v8385 = vlaneseq
      %v8386 = vshrl.u32 %v8385, 7
      %v8387 = vsub.s32 1, %v8386
      %v8388 = vrot.slane %v8280, %v8387
      %v8389 = vlaneseq
      %v8390 = vshrl.u32 %v8389, 7
      %v8391 = vsub.s32 2, %v8390
      %v8392 = vrot.slane %v8280, %v8391
      %v8393 = vlaneseq
      %v8394 = vshrl.u32 %v8393, 7
      %v8395 = vsub.s32 3, %v8394
      %v8396 = vrot.slane %v8280, %v8395
      %v8397 = vlaneseq
      %v8398 = vshrl.u32 %v8397, 7
      %v8399 = vsub.s32 4, %v8398
      %v8400 = vrot.slane %v8280, %v8399
      %v8401 = vlaneseq
      %v8402 = vshrl.u32 %v8401, 7
      %v8403 = vsub.s32 5, %v8402
      %v8404 = vrot.slane %v8280, %v8403
      %v8405 = vlaneseq
      %v8406 = vshrl.u32 %v8405, 7
      %v8407 = vsub.s32 6, %v8406
      %v8408 = vrot.slane %v8280, %v8407
      %v8409 = vlaneseq
      %v8410 = vshrl.u32 %v8409, 7
      %v8411 = vsub.s32 7, %v8410
      %v8412 = vrot.slane %v8280, %v8411
      %v8445 = vsel %vm7592, %v8288, 0.0
      %v8446 = vsel %vm7593, %v8292, 0.0
      %v8447 = vsel %vm7594, %v8296, 0.0
      %v8448 = vsel %vm7595, %v8300, 0.0
      %v8449 = vsel %vm7596, %v8304, 0.0
      %v8450 = vsel %vm7597, %v8308, 0.0
      %v8451 = vsel %vm7598, %v8312, 0.0
      %v8452 = vsel %vm7599, %v8316, 0.0
      %v8453 = vsel %vm7600, %v8320, 0.0
      %v8454 = vsel %vm7601, %v8324, 0.0
      %v8455 = vsel %vm7602, %v8328, 0.0
      %v8456 = vsel %vm7603, %v8332, 0.0
      %v8457 = vsel %vm7604, %v8336, 0.0
      %v8458 = vsel %vm7605, %v8340, 0.0
      %v8459 = vsel %vm7606, %v8344, 0.0
      %v8460 = vsel %vm7607, %v8348, 0.0
      %v8461 = vsel %vm7608, %v8352, 0.0
      %v8462 = vsel %vm7609, %v8356, 0.0
      %v8463 = vsel %vm7610, %v8360, 0.0
      %v8464 = vsel %vm7611, %v8364, 0.0
      %v8465 = vsel %vm7612, %v8368, 0.0
      %v8466 = vsel %vm7613, %v8372, 0.0
      %v8467 = vsel %vm7614, %v8376, 0.0
      %v8468 = vsel %vm7615, %v8380, 0.0
      %v8469 = vsel %vm7616, %v8384, 0.0
      %v8470 = vsel %vm7617, %v8388, 0.0
      %v8471 = vsel %vm7618, %v8392, 0.0
      %v8472 = vsel %vm7619, %v8396, 0.0
      %v8473 = vsel %vm7620, %v8400, 0.0
      %v8474 = vsel %vm7621, %v8404, 0.0
      %v8475 = vsel %vm7622, %v8408, 0.0
      %v8476 = vsel %vm7623, %v8412, 0.0
      %v8477 = vsel %vm7624, %v8288, 0.0
      %v8478 = vsel %vm7625, %v8292, 0.0
      %v8479 = vsel %vm7626, %v8296, 0.0
      %v8480 = vsel %vm7627, %v8300, 0.0
      %v8481 = vsel %vm7628, %v8304, 0.0
      %v8482 = vsel %vm7629, %v8308, 0.0
      %v8483 = vsel %vm7630, %v8312, 0.0
      %v8484 = vsel %vm7631, %v8316, 0.0
      %v8485 = vsel %vm7632, %v8320, 0.0
      %v8486 = vsel %vm7633, %v8324, 0.0
      %v8487 = vsel %vm7634, %v8328, 0.0
      %v8488 = vsel %vm7635, %v8332, 0.0
      %v8489 = vsel %vm7636, %v8336, 0.0
      %v8490 = vsel %vm7637, %v8340, 0.0
      %v8491 = vsel %vm7638, %v8344, 0.0
      %v8492 = vsel %vm7639, %v8348, 0.0
      %v8493 = vsel %vm7640, %v8352, 0.0
      %v8494 = vsel %vm7641, %v8356, 0.0
      %v8495 = vsel %vm7642, %v8360, 0.0
      %v8496 = vsel %vm7643, %v8364, 0.0
      %v8497 = vsel %vm7644, %v8368, 0.0
      %v8498 = vsel %vm7645, %v8372, 0.0
      %v8499 = vsel %vm7646, %v8376, 0.0
      %v8500 = vsel %vm7647, %v8380, 0.0
      %v8501 = vsel %vm7648, %v8384, 0.0
      %v8502 = vsel %vm7649, %v8388, 0.0
      %v8503 = vsel %vm7650, %v8392, 0.0
      %v8504 = vsel %vm7651, %v8396, 0.0
      %v8505 = vsel %vm7652, %v8400, 0.0
      %v8506 = vsel %vm7653, %v8404, 0.0
      %v8507 = vsel %vm7654, %v8408, 0.0
      %v8508 = vsel %vm7655, %v8412, 0.0
      %v8509 = vadd.f32 %v8445, %v8446
      %v8510 = vadd.f32 %v8509, %v8447
      %v8511 = vadd.f32 %v8510, %v8448
      %v8512 = vadd.f32 %v8511, %v8449
      %v8513 = vadd.f32 %v8512, %v8450
      %v8514 = vadd.f32 %v8513, %v8451
      %v8515 = vadd.f32 %v8514, %v8452
      %v8516 = vadd.f32 %v8515, %v8453
      %v8517 = vadd.f32 %v8516, %v8454
      %v8518 = vadd.f32 %v8517, %v8455
      %v8519 = vadd.f32 %v8518, %v8456
      %v8520 = vadd.f32 %v8519, %v8457
      %v8521 = vadd.f32 %v8520, %v8458
      %v8522 = vadd.f32 %v8521, %v8459
      %v8523 = vadd.f32 %v8522, %v8460
      %v8524 = vadd.f32 %v8523, %v8461
      %v8525 = vadd.f32 %v8524, %v8462
      %v8526 = vadd.f32 %v8525, %v8463
      %v8527 = vadd.f32 %v8526, %v8464
      %v8528 = vadd.f32 %v8527, %v8465
      %v8529 = vadd.f32 %v8528, %v8466
      %v8530 = vadd.f32 %v8529, %v8467
      %v8531 = vadd.f32 %v8530, %v8468
      %v8532 = vadd.f32 %v8531, %v8469
      %v8533 = vadd.f32 %v8532, %v8470
      %v8534 = vadd.f32 %v8533, %v8471
      %v8535 = vadd.f32 %v8534, %v8472
      %v8536 = vadd.f32 %v8535, %v8473
      %v8537 = vadd.f32 %v8536, %v8474
      %v8538 = vadd.f32 %v8537, %v8475
      %v8539 = vadd.f32 %v8538, %v8476
      %8540 = vadd.xlane.f32.xlu0 %v8539
      %v8541 = vpop.xlane.xlu0 %8540
      %v8542 = vadd.f32 %v8477, %v8478
      %v8543 = vadd.f32 %v8542, %v8479
      %v8544 = vadd.f32 %v8543, %v8480
      %v8545 = vadd.f32 %v8544, %v8481
      %v8546 = vadd.f32 %v8545, %v8482
      %v8547 = vadd.f32 %v8546, %v8483
      %v8548 = vadd.f32 %v8547, %v8484
      %v8549 = vadd.f32 %v8548, %v8485
      %v8550 = vadd.f32 %v8549, %v8486
      %v8551 = vadd.f32 %v8550, %v8487
      %v8552 = vadd.f32 %v8551, %v8488
      %v8553 = vadd.f32 %v8552, %v8489
      %v8554 = vadd.f32 %v8553, %v8490
      %v8555 = vadd.f32 %v8554, %v8491
      %v8556 = vadd.f32 %v8555, %v8492
      %v8557 = vadd.f32 %v8556, %v8493
      %v8558 = vadd.f32 %v8557, %v8494
      %v8559 = vadd.f32 %v8558, %v8495
      %v8560 = vadd.f32 %v8559, %v8496
      %v8561 = vadd.f32 %v8560, %v8497
      %v8562 = vadd.f32 %v8561, %v8498
      %v8563 = vadd.f32 %v8562, %v8499
      %v8564 = vadd.f32 %v8563, %v8500
      %v8565 = vadd.f32 %v8564, %v8501
      %v8566 = vadd.f32 %v8565, %v8502
      %v8567 = vadd.f32 %v8566, %v8503
      %v8568 = vadd.f32 %v8567, %v8504
      %v8569 = vadd.f32 %v8568, %v8505
      %v8570 = vadd.f32 %v8569, %v8506
      %v8571 = vadd.f32 %v8570, %v8507
      %v8572 = vadd.f32 %v8571, %v8508
      %8573 = vadd.xlane.f32.xlu0 %v8572
      %v8574 = vpop.xlane.xlu0 %8573
      %vm8575 = vcmp.eq.s32.totalorder %v7280, 2
      %v8576 = vsel %vm8575, 1, 0
      %vm8577 = vcmp.eq.s32.totalorder %v8576, 1
      %v8578 = vsel %vm8577, %v8541, 0.0
      %v8579 = vsel %vm8577, %v8574, 0.0
      %v8580 = vadd.f32 %v8271, %v8578
      %v8581 = vadd.f32 %v8272, %v8579
      %s8582 = scalar_lea.vmem %s16, 3
      %v8583 = vld [vmem:[%s8582] ss:$4 sm:$0xff]
      %s8584 = scalar_lea.vmem %s16, 35
      %v8585 = vld [vmem:[%s8584] ss:$4 sm:$0xff]
      %s8586 = scalar_lea.vmem %s16, 67
      %v8587 = vld [vmem:[%s8586] ss:$4 sm:$0xff]
      %s8588 = scalar_lea.vmem %s16, 99
      %v8589 = vld [vmem:[%s8588] ss:$4 sm:$0xff]
      %v8594 = vlaneseq
      %v8595 = vshrl.u32 %v8594, 7
      %v8596 = vsub.s32 0, %v8595
      %v8597 = vrot.slane %v8583, %v8596
      %v8598 = vlaneseq
      %v8599 = vshrl.u32 %v8598, 7
      %v8600 = vsub.s32 1, %v8599
      %v8601 = vrot.slane %v8583, %v8600
      %v8602 = vlaneseq
      %v8603 = vshrl.u32 %v8602, 7
      %v8604 = vsub.s32 2, %v8603
      %v8605 = vrot.slane %v8583, %v8604
      %v8606 = vlaneseq
      %v8607 = vshrl.u32 %v8606, 7
      %v8608 = vsub.s32 3, %v8607
      %v8609 = vrot.slane %v8583, %v8608
      %v8610 = vlaneseq
      %v8611 = vshrl.u32 %v8610, 7
      %v8612 = vsub.s32 4, %v8611
      %v8613 = vrot.slane %v8583, %v8612
      %v8614 = vlaneseq
      %v8615 = vshrl.u32 %v8614, 7
      %v8616 = vsub.s32 5, %v8615
      %v8617 = vrot.slane %v8583, %v8616
      %v8618 = vlaneseq
      %v8619 = vshrl.u32 %v8618, 7
      %v8620 = vsub.s32 6, %v8619
      %v8621 = vrot.slane %v8583, %v8620
      %v8622 = vlaneseq
      %v8623 = vshrl.u32 %v8622, 7
      %v8624 = vsub.s32 7, %v8623
      %v8625 = vrot.slane %v8583, %v8624
      %v8626 = vlaneseq
      %v8627 = vshrl.u32 %v8626, 7
      %v8628 = vsub.s32 0, %v8627
      %v8629 = vrot.slane %v8585, %v8628
      %v8630 = vlaneseq
      %v8631 = vshrl.u32 %v8630, 7
      %v8632 = vsub.s32 1, %v8631
      %v8633 = vrot.slane %v8585, %v8632
      %v8634 = vlaneseq
      %v8635 = vshrl.u32 %v8634, 7
      %v8636 = vsub.s32 2, %v8635
      %v8637 = vrot.slane %v8585, %v8636
      %v8638 = vlaneseq
      %v8639 = vshrl.u32 %v8638, 7
      %v8640 = vsub.s32 3, %v8639
      %v8641 = vrot.slane %v8585, %v8640
      %v8642 = vlaneseq
      %v8643 = vshrl.u32 %v8642, 7
      %v8644 = vsub.s32 4, %v8643
      %v8645 = vrot.slane %v8585, %v8644
      %v8646 = vlaneseq
      %v8647 = vshrl.u32 %v8646, 7
      %v8648 = vsub.s32 5, %v8647
      %v8649 = vrot.slane %v8585, %v8648
      %v8650 = vlaneseq
      %v8651 = vshrl.u32 %v8650, 7
      %v8652 = vsub.s32 6, %v8651
      %v8653 = vrot.slane %v8585, %v8652
      %v8654 = vlaneseq
      %v8655 = vshrl.u32 %v8654, 7
      %v8656 = vsub.s32 7, %v8655
      %v8657 = vrot.slane %v8585, %v8656
      %v8658 = vlaneseq
      %v8659 = vshrl.u32 %v8658, 7
      %v8660 = vsub.s32 0, %v8659
      %v8661 = vrot.slane %v8587, %v8660
      %v8662 = vlaneseq
      %v8663 = vshrl.u32 %v8662, 7
      %v8664 = vsub.s32 1, %v8663
      %v8665 = vrot.slane %v8587, %v8664
      %v8666 = vlaneseq
      %v8667 = vshrl.u32 %v8666, 7
      %v8668 = vsub.s32 2, %v8667
      %v8669 = vrot.slane %v8587, %v8668
      %v8670 = vlaneseq
      %v8671 = vshrl.u32 %v8670, 7
      %v8672 = vsub.s32 3, %v8671
      %v8673 = vrot.slane %v8587, %v8672
      %v8674 = vlaneseq
      %v8675 = vshrl.u32 %v8674, 7
      %v8676 = vsub.s32 4, %v8675
      %v8677 = vrot.slane %v8587, %v8676
      %v8678 = vlaneseq
      %v8679 = vshrl.u32 %v8678, 7
      %v8680 = vsub.s32 5, %v8679
      %v8681 = vrot.slane %v8587, %v8680
      %v8682 = vlaneseq
      %v8683 = vshrl.u32 %v8682, 7
      %v8684 = vsub.s32 6, %v8683
      %v8685 = vrot.slane %v8587, %v8684
      %v8686 = vlaneseq
      %v8687 = vshrl.u32 %v8686, 7
      %v8688 = vsub.s32 7, %v8687
      %v8689 = vrot.slane %v8587, %v8688
      %v8690 = vlaneseq
      %v8691 = vshrl.u32 %v8690, 7
      %v8692 = vsub.s32 0, %v8691
      %v8693 = vrot.slane %v8589, %v8692
      %v8694 = vlaneseq
      %v8695 = vshrl.u32 %v8694, 7
      %v8696 = vsub.s32 1, %v8695
      %v8697 = vrot.slane %v8589, %v8696
      %v8698 = vlaneseq
      %v8699 = vshrl.u32 %v8698, 7
      %v8700 = vsub.s32 2, %v8699
      %v8701 = vrot.slane %v8589, %v8700
      %v8702 = vlaneseq
      %v8703 = vshrl.u32 %v8702, 7
      %v8704 = vsub.s32 3, %v8703
      %v8705 = vrot.slane %v8589, %v8704
      %v8706 = vlaneseq
      %v8707 = vshrl.u32 %v8706, 7
      %v8708 = vsub.s32 4, %v8707
      %v8709 = vrot.slane %v8589, %v8708
      %v8710 = vlaneseq
      %v8711 = vshrl.u32 %v8710, 7
      %v8712 = vsub.s32 5, %v8711
      %v8713 = vrot.slane %v8589, %v8712
      %v8714 = vlaneseq
      %v8715 = vshrl.u32 %v8714, 7
      %v8716 = vsub.s32 6, %v8715
      %v8717 = vrot.slane %v8589, %v8716
      %v8718 = vlaneseq
      %v8719 = vshrl.u32 %v8718, 7
      %v8720 = vsub.s32 7, %v8719
      %v8721 = vrot.slane %v8589, %v8720
      %v8754 = vsel %vm7592, %v8597, 0.0
      %v8755 = vsel %vm7593, %v8601, 0.0
      %v8756 = vsel %vm7594, %v8605, 0.0
      %v8757 = vsel %vm7595, %v8609, 0.0
      %v8758 = vsel %vm7596, %v8613, 0.0
      %v8759 = vsel %vm7597, %v8617, 0.0
      %v8760 = vsel %vm7598, %v8621, 0.0
      %v8761 = vsel %vm7599, %v8625, 0.0
      %v8762 = vsel %vm7600, %v8629, 0.0
      %v8763 = vsel %vm7601, %v8633, 0.0
      %v8764 = vsel %vm7602, %v8637, 0.0
      %v8765 = vsel %vm7603, %v8641, 0.0
      %v8766 = vsel %vm7604, %v8645, 0.0
      %v8767 = vsel %vm7605, %v8649, 0.0
      %v8768 = vsel %vm7606, %v8653, 0.0
      %v8769 = vsel %vm7607, %v8657, 0.0
      %v8770 = vsel %vm7608, %v8661, 0.0
      %v8771 = vsel %vm7609, %v8665, 0.0
      %v8772 = vsel %vm7610, %v8669, 0.0
      %v8773 = vsel %vm7611, %v8673, 0.0
      %v8774 = vsel %vm7612, %v8677, 0.0
      %v8775 = vsel %vm7613, %v8681, 0.0
      %v8776 = vsel %vm7614, %v8685, 0.0
      %v8777 = vsel %vm7615, %v8689, 0.0
      %v8778 = vsel %vm7616, %v8693, 0.0
      %v8779 = vsel %vm7617, %v8697, 0.0
      %v8780 = vsel %vm7618, %v8701, 0.0
      %v8781 = vsel %vm7619, %v8705, 0.0
      %v8782 = vsel %vm7620, %v8709, 0.0
      %v8783 = vsel %vm7621, %v8713, 0.0
      %v8784 = vsel %vm7622, %v8717, 0.0
      %v8785 = vsel %vm7623, %v8721, 0.0
      %v8786 = vsel %vm7624, %v8597, 0.0
      %v8787 = vsel %vm7625, %v8601, 0.0
      %v8788 = vsel %vm7626, %v8605, 0.0
      %v8789 = vsel %vm7627, %v8609, 0.0
      %v8790 = vsel %vm7628, %v8613, 0.0
      %v8791 = vsel %vm7629, %v8617, 0.0
      %v8792 = vsel %vm7630, %v8621, 0.0
      %v8793 = vsel %vm7631, %v8625, 0.0
      %v8794 = vsel %vm7632, %v8629, 0.0
      %v8795 = vsel %vm7633, %v8633, 0.0
      %v8796 = vsel %vm7634, %v8637, 0.0
      %v8797 = vsel %vm7635, %v8641, 0.0
      %v8798 = vsel %vm7636, %v8645, 0.0
      %v8799 = vsel %vm7637, %v8649, 0.0
      %v8800 = vsel %vm7638, %v8653, 0.0
      %v8801 = vsel %vm7639, %v8657, 0.0
      %v8802 = vsel %vm7640, %v8661, 0.0
      %v8803 = vsel %vm7641, %v8665, 0.0
      %v8804 = vsel %vm7642, %v8669, 0.0
      %v8805 = vsel %vm7643, %v8673, 0.0
      %v8806 = vsel %vm7644, %v8677, 0.0
      %v8807 = vsel %vm7645, %v8681, 0.0
      %v8808 = vsel %vm7646, %v8685, 0.0
      %v8809 = vsel %vm7647, %v8689, 0.0
      %v8810 = vsel %vm7648, %v8693, 0.0
      %v8811 = vsel %vm7649, %v8697, 0.0
      %v8812 = vsel %vm7650, %v8701, 0.0
      %v8813 = vsel %vm7651, %v8705, 0.0
      %v8814 = vsel %vm7652, %v8709, 0.0
      %v8815 = vsel %vm7653, %v8713, 0.0
      %v8816 = vsel %vm7654, %v8717, 0.0
      %v8817 = vsel %vm7655, %v8721, 0.0
      %v8818 = vadd.f32 %v8754, %v8755
      %v8819 = vadd.f32 %v8818, %v8756
      %v8820 = vadd.f32 %v8819, %v8757
      %v8821 = vadd.f32 %v8820, %v8758
      %v8822 = vadd.f32 %v8821, %v8759
      %v8823 = vadd.f32 %v8822, %v8760
      %v8824 = vadd.f32 %v8823, %v8761
      %v8825 = vadd.f32 %v8824, %v8762
      %v8826 = vadd.f32 %v8825, %v8763
      %v8827 = vadd.f32 %v8826, %v8764
      %v8828 = vadd.f32 %v8827, %v8765
      %v8829 = vadd.f32 %v8828, %v8766
      %v8830 = vadd.f32 %v8829, %v8767
      %v8831 = vadd.f32 %v8830, %v8768
      %v8832 = vadd.f32 %v8831, %v8769
      %v8833 = vadd.f32 %v8832, %v8770
      %v8834 = vadd.f32 %v8833, %v8771
      %v8835 = vadd.f32 %v8834, %v8772
      %v8836 = vadd.f32 %v8835, %v8773
      %v8837 = vadd.f32 %v8836, %v8774
      %v8838 = vadd.f32 %v8837, %v8775
      %v8839 = vadd.f32 %v8838, %v8776
      %v8840 = vadd.f32 %v8839, %v8777
      %v8841 = vadd.f32 %v8840, %v8778
      %v8842 = vadd.f32 %v8841, %v8779
      %v8843 = vadd.f32 %v8842, %v8780
      %v8844 = vadd.f32 %v8843, %v8781
      %v8845 = vadd.f32 %v8844, %v8782
      %v8846 = vadd.f32 %v8845, %v8783
      %v8847 = vadd.f32 %v8846, %v8784
      %v8848 = vadd.f32 %v8847, %v8785
      %8849 = vadd.xlane.f32.xlu0 %v8848
      %v8850 = vpop.xlane.xlu0 %8849
      %v8851 = vadd.f32 %v8786, %v8787
      %v8852 = vadd.f32 %v8851, %v8788
      %v8853 = vadd.f32 %v8852, %v8789
      %v8854 = vadd.f32 %v8853, %v8790
      %v8855 = vadd.f32 %v8854, %v8791
      %v8856 = vadd.f32 %v8855, %v8792
      %v8857 = vadd.f32 %v8856, %v8793
      %v8858 = vadd.f32 %v8857, %v8794
      %v8859 = vadd.f32 %v8858, %v8795
      %v8860 = vadd.f32 %v8859, %v8796
      %v8861 = vadd.f32 %v8860, %v8797
      %v8862 = vadd.f32 %v8861, %v8798
      %v8863 = vadd.f32 %v8862, %v8799
      %v8864 = vadd.f32 %v8863, %v8800
      %v8865 = vadd.f32 %v8864, %v8801
      %v8866 = vadd.f32 %v8865, %v8802
      %v8867 = vadd.f32 %v8866, %v8803
      %v8868 = vadd.f32 %v8867, %v8804
      %v8869 = vadd.f32 %v8868, %v8805
      %v8870 = vadd.f32 %v8869, %v8806
      %v8871 = vadd.f32 %v8870, %v8807
      %v8872 = vadd.f32 %v8871, %v8808
      %v8873 = vadd.f32 %v8872, %v8809
      %v8874 = vadd.f32 %v8873, %v8810
      %v8875 = vadd.f32 %v8874, %v8811
      %v8876 = vadd.f32 %v8875, %v8812
      %v8877 = vadd.f32 %v8876, %v8813
      %v8878 = vadd.f32 %v8877, %v8814
      %v8879 = vadd.f32 %v8878, %v8815
      %v8880 = vadd.f32 %v8879, %v8816
      %v8881 = vadd.f32 %v8880, %v8817
      %8882 = vadd.xlane.f32.xlu0 %v8881
      %v8883 = vpop.xlane.xlu0 %8882
      %vm8884 = vcmp.eq.s32.totalorder %v7280, 3
      %v8885 = vsel %vm8884, 1, 0
      %vm8886 = vcmp.eq.s32.totalorder %v8885, 1
      %v8887 = vsel %vm8886, %v8850, 0.0
      %v8888 = vsel %vm8886, %v8883, 0.0
      %v8889 = vadd.f32 %v8580, %v8887
      %v8890 = vadd.f32 %v8581, %v8888
      %8891 = vst.msk [vmem:[%s548] sm:$0xff] %vm5849, %v8889
      %8892 = vst.msk [vmem:[%s548 + $0x8] sm:$0xff] %vm5849, %v8890
      %p8893 = scmp.lt.s32.totalorder %s28, 3
      %s8894 = scalar_select %p8893, %s28, 3
      %s8895 = smul.addr %s8894, 2
      %s8896 = smul.addr %s8895, 8
      %s8897 = scalar_lea.vmem %s17, %s8896
      // Predicated region
      $region89: #{_lambda_.1} parent=87 // pred_check
        %p8898 = pneg %p408
      $region90: #{_lambda_.1} parent=87 // pred_check_branch
        %8900 = sbr.rel (%p8898) target = $region92
      $region91: #{_lambda_.1} parent=87 // pred_region
        _
      $region92: #{_lambda_.1} parent=87 // pred_fallthru
        _
    $region88: #{_lambda_.1} parent=5 // pred_fallthru
      _
    %p8901 = scmp.le.s32.totalorder 2, %s23
    // Predicated region
    $region93: #{_lambda_.1} parent=5 // pred_check
      %p8902 = pneg %p8901
    $region94: #{_lambda_.1} parent=5 // pred_check_branch
      %8904 = sbr.rel (%p8902) target = $region96
    $region95: #{_lambda_.1} parent=5 // pred_region
      %s8905 = ssub.s32 %s23, 2
      // Predicated region
      $region97: #{_lambda_.1} parent=95 // pred_check
        %p8906 = pneg %p414
      $region98: #{_lambda_.1} parent=95 // pred_check_branch
        %8908 = sbr.rel (%p8906) target = $region100
      $region99: #{_lambda_.1} parent=95 // pred_region
        %p8909 = scmp.lt.s32.totalorder %s29, 3
        %s8910 = scalar_select %p8909, %s29, 3
        %s8911 = smul.addr %s8910, 2
        %s8912 = smul.addr %s8911, 8
        %s8913 = scalar_lea.vmem %s17, %s8912
      $region100: #{_lambda_.1} parent=95 // pred_fallthru
        _
    $region96: #{_lambda_.1} parent=5 // pred_fallthru
      _
  $region6: #{_lambda_.1} parent=0 // loop_footer
    %s27 = sadd.s32 1, %s23
  $region7: #{_lambda_.1} parent=0 // loop_footer_branch
    %22 = sbr.rel target = $region3
  $region8: #{_lambda_.1} parent=0 // loop_exit
    _

</llo_original>
